<compile_context>
chip_gen: v7x
topology: tpu7x:2x2x1
jax: 0.10.0
libtpu: 0.0.40
codegen_flags: <defaults>
</compile_context>

<pallas_src>
import jax
import jax.numpy as jnp
from jax.experimental import pallas as pl
from jax.experimental.pallas import tpu as pltpu


# ----------------------------- fused Pallas kernel -----------------------------

def _build_m5_kernel(N, S1, C1, C2, C3, C4, Lo, P):
    (Lo1, Lo2, Lo3, Lo4) = Lo
    (P1, P2, P3, P4) = P
    eps = 1e-5

    def kernel(x_ref,
               w1_ref, b1_ref, g1_ref, be1_ref,
               w2_ref, b2_ref, g2_ref, be2_ref,
               w3_ref, b3_ref, g3_ref, be3_ref,
               w4_ref, b4_ref, g4_ref, be4_ref,
               wfc_ref, bfc_ref,
               out_ref,
               z1_ref, a1_ref, z2_ref, a2_ref, z3_ref, a3_ref, z4_ref, a4_ref, feat_ref):

        def bn_coeffs(s, q, rows, g_ref, be_ref):
            # One-pass batch stats: mean and biased variance over all N*Lo rows.
            mean = s * (1.0 / rows)
            var = q * (1.0 / rows) - mean * mean
            scale = g_ref[...] * jax.lax.rsqrt(var + eps)
            shift = be_ref[...] - mean * scale
            return scale, shift

        def bn_relu_maxpool4(z_ref, a_ref, n, Lo_l, P_l, scale, shift):
            # y = relu(z*scale + shift); MaxPool1d(4) == max over the 4 stride-4 row phases.
            # Per-sample base keeps pool windows inside the sample and drops the Lo%4 tail.
            base = n * Lo_l
            pooled = None
            for k in range(4):
                phase = z_ref[pl.ds(base + k, P_l, stride=4), :]
                v = jnp.maximum(phase * scale + shift, 0.0)
                pooled = v if pooled is None else jnp.maximum(pooled, v)
            a_ref[pl.ds(n * P_l, P_l), :] = pooled

        # ---- layer 1: Conv1d(1, C1, kernel=80, stride=16) + BN + ReLU + MaxPool(4) ----
        s = jnp.zeros((1, C1), jnp.float32)
        q = jnp.zeros((1, C1), jnp.float32)
        for n in range(N):
            acc = jnp.zeros((Lo1, C1), jnp.float32)
            for j in range(5):                      # kernel 80 = 5 taps of 16 (the stride)
                acc = acc + jnp.dot(x_ref[pl.ds(n * S1 + j, Lo1), :],
                                    w1_ref[pl.ds(16 * j, 16), :],
                                    preferred_element_type=jnp.float32)
            z = acc + b1_ref[...]
            z1_ref[pl.ds(n * Lo1, Lo1), :] = z
            s = s + jnp.sum(z, axis=0, keepdims=True)
            q = q + jnp.sum(z * z, axis=0, keepdims=True)
        scale, shift = bn_coeffs(s, q, N * Lo1, g1_ref, be1_ref)
        for n in range(N):
            bn_relu_maxpool4(z1_ref, a1_ref, n, Lo1, P1, scale, shift)

        # ---- layers 2-4: Conv1d(kernel=3, stride=1) + BN + ReLU + MaxPool(4) ----
        def conv3_block(x_prev_ref, Lp, z_ref, a_ref, w_ref, b_ref, g_ref, be_ref,
                        Lo_l, P_l, Cout):
            s = jnp.zeros((1, Cout), jnp.float32)
            q = jnp.zeros((1, Cout), jnp.float32)
            for n in range(N):
                acc = jnp.zeros((Lo_l, Cout), jnp.float32)
                for j in range(3):
                    acc = acc + jnp.dot(x_prev_ref[pl.ds(n * Lp + j, Lo_l), :],
                                        w_ref[j],
                                        preferred_element_type=jnp.float32)
                z = acc + b_ref[...]
                z_ref[pl.ds(n * Lo_l, Lo_l), :] = z
                s = s + jnp.sum(z, axis=0, keepdims=True)
                q = q + jnp.sum(z * z, axis=0, keepdims=True)
            sc, sh = bn_coeffs(s, q, N * Lo_l, g_ref, be_ref)
            for n in range(N):
                bn_relu_maxpool4(z_ref, a_ref, n, Lo_l, P_l, sc, sh)

        conv3_block(a1_ref, P1, z2_ref, a2_ref, w2_ref, b2_ref, g2_ref, be2_ref, Lo2, P2, C2)
        conv3_block(a2_ref, P2, z3_ref, a3_ref, w3_ref, b3_ref, g3_ref, be3_ref, Lo3, P3, C3)
        conv3_block(a3_ref, P3, z4_ref, a4_ref, w4_ref, b4_ref, g4_ref, be4_ref, Lo4, P4, C4)

        # ---- F.avg_pool1d(x, x.shape[-1]): mean over remaining length, per sample ----
        for n in range(N):
            rows = a4_ref[pl.ds(n * P4, P4), :]
            feat_ref[pl.ds(n, 1), :] = jnp.mean(rows, axis=0, keepdims=True)

        # ---- Linear + log_softmax (dim = classes) ----
        logits = jnp.dot(feat_ref[...], wfc_ref[...],
                         preferred_element_type=jnp.float32) + bfc_ref[...]
        m = jnp.max(logits, axis=-1, keepdims=True)
        zc = logits - m
        lse = jnp.log(jnp.sum(jnp.exp(zc), axis=-1, keepdims=True))
        out_ref[...] = zc - lse

    return kernel


# ----------------------------- wrapper -----------------------------

@jax.jit
def m5_forward(x_ncl, params):
    """x_ncl: (N, 1, L) float32 (PyTorch NCW). Returns (N, 1, n_output) log-probabilities."""
    N, cin, L = x_ncl.shape
    if cin != 1:
        raise NotImplementedError("fused layer-1 path assumes n_input == 1 (M5 default)")
    if L % 16 != 0:
        raise ValueError("waveform length must be a multiple of the layer-1 stride (16)")

    S1 = L // 16
    Lo1 = (L - 80) // 16 + 1; P1 = Lo1 // 4
    Lo2 = P1 - 2;             P2 = Lo2 // 4
    Lo3 = P2 - 2;             P3 = Lo3 // 4
    Lo4 = P3 - 2;             P4 = Lo4 // 4
    assert P4 >= 1, "input too short for 4 conv/pool stages"

    C1 = params["w1"].shape[1]
    C2 = params["w2"].shape[2]
    C3 = params["w3"].shape[2]
    C4 = params["w4"].shape[2]
    n_out = params["wfc"].shape[1]

    # Free, contiguous reshape: (N,1,L) -> (N*L/16, 16); layer-1 im2col happens in-kernel.
    x16 = x_ncl.astype(jnp.float32).reshape(N * S1, 16)

    kernel = _build_m5_kernel(N, S1, C1, C2, C3, C4,
                              (Lo1, Lo2, Lo3, Lo4), (P1, P2, P3, P4))

    vmem = pl.BlockSpec(memory_space=pltpu.MemorySpace.VMEM)
    out = pl.pallas_call(
        kernel,
        out_shape=jax.ShapeDtypeStruct((N, n_out), jnp.float32),
        in_specs=[vmem] * 19,
        out_specs=vmem,
        scratch_shapes=[
            pltpu.VMEM((N * Lo1, C1), jnp.float32),  # z1 (conv1 + bias)
            pltpu.VMEM((N * P1, C1), jnp.float32),   # a1 (after BN/ReLU/pool)
            pltpu.VMEM((N * Lo2, C2), jnp.float32),  # z2
            pltpu.VMEM((N * P2, C2), jnp.float32),   # a2
            pltpu.VMEM((N * Lo3, C3), jnp.float32),  # z3
            pltpu.VMEM((N * P3, C3), jnp.float32),   # a3
            pltpu.VMEM((N * Lo4, C4), jnp.float32),  # z4
            pltpu.VMEM((N * P4, C4), jnp.float32),   # a4
            pltpu.VMEM((N, C4), jnp.float32),        # feat (after avg pool)
        ],
    )(x16,
      params["w1"], params["b1"], params["g1"], params["be1"],
      params["w2"], params["b2"], params["g2"], params["be2"],
      params["w3"], params["b3"], params["g3"], params["be3"],
      params["w4"], params["b4"], params["g4"], params["be4"],
      params["wfc"], params["bfc"])

    return out[:, None, :]     # (N, 1, n_output), matches permute(0,2,1) + fc + log_softmax


# ----------------------------- init (weights pre-transformed once) -----------------------------

def init_params(key, n_input=1, n_output=35, n_channel=32):
    if n_input != 1:
        raise NotImplementedError("M5 kernel specialised to n_input == 1")
    ks = jax.random.split(key, 18)

    def conv_w_b(kw, kb, cin, cout, k):
        bound = 1.0 / float(cin * k) ** 0.5
        w = jax.random.uniform(kw, (cout, cin, k), jnp.float32, -bound, bound)
        b = jax.random.uniform(kb, (cout,), jnp.float32, -bound, bound)
        return w, b

    def bn_g_b(kg, kb, c):
        gamma = 1.0 + 0.05 * jax.random.normal(kg, (c,), jnp.float32)
        beta = 0.05 * jax.random.normal(kb, (c,), jnp.float32)
        return gamma, beta

    cfg = [
        (n_input, n_channel, 80),
        (n_channel, n_channel, 3),
        (n_channel, 2 * n_channel, 3),
        (2 * n_channel, 2 * n_channel, 3),
    ]
    params = {}
    for i, (cin, cout, k) in enumerate(cfg):
        w, b = conv_w_b(ks[4 * i + 0], ks[4 * i + 1], cin, cout, k)
        gamma, beta = bn_g_b(ks[4 * i + 2], ks[4 * i + 3], cout)
        # Kernel-ready layouts, computed once at init (not in the forward pass):
        #   PyTorch conv weight (Cout, Cin, K) -> (K, Cin, Cout); layer 1 flattens to (K*Cin, Cout).
        wk = jnp.transpose(w, (2, 1, 0))
        if i == 0:
            wk = wk.reshape(k * cin, cout)
        params[f"w{i + 1}"] = wk
        params[f"b{i + 1}"] = b[None, :]
        params[f"g{i + 1}"] = gamma[None, :]
        params[f"be{i + 1}"] = beta[None, :]

    fc_bound = 1.0 / float(2 * n_channel) ** 0.5
    w_fc = jax.random.uniform(ks[16], (n_output, 2 * n_channel), jnp.float32, -fc_bound, fc_bound)
    b_fc = jax.random.uniform(ks[17], (n_output,), jnp.float32, -fc_bound, fc_bound)
    params["wfc"] = w_fc.T            # (2*n_channel, n_output)
    params["bfc"] = b_fc[None, :]
    return params


# ----------------------------------- main -----------------------------------

if __name__ == "__main__":
    key = jax.random.PRNGKey(0)
    kx, kp = jax.random.split(key)

    # 1 s of mono audio at 8 kHz (min length surviving the 4 conv/pool stages is 6848).
    N, C_in, L = 2, 1, 8000
    x = jax.random.normal(kx, (N, C_in, L), jnp.float32)

    params = init_params(kp, n_input=C_in, n_output=35, n_channel=32)
    out = jax.block_until_ready(m5_forward(x, params))

    assert out.shape == (N, 1, 35), out.shape
    # log_softmax sanity: rows exponentiate-sum to 1.
    assert bool(jnp.allclose(jnp.sum(jnp.exp(out), axis=-1), 1.0, atol=1e-4))
    print("KERNEL_OK")
</pallas_src>

<mosaic_0001>
module attributes {stable_mosaic.version = 11 : i64} {
  func.func @kernel(%arg0: memref<1000x16xf32, #tpu.memory_space<vmem>>, %arg1: memref<80x32xf32, #tpu.memory_space<vmem>>, %arg2: memref<1x32xf32, #tpu.memory_space<vmem>>, %arg3: memref<1x32xf32, #tpu.memory_space<vmem>>, %arg4: memref<1x32xf32, #tpu.memory_space<vmem>>, %arg5: memref<3x32x32xf32, #tpu.memory_space<vmem>>, %arg6: memref<1x32xf32, #tpu.memory_space<vmem>>, %arg7: memref<1x32xf32, #tpu.memory_space<vmem>>, %arg8: memref<1x32xf32, #tpu.memory_space<vmem>>, %arg9: memref<3x32x64xf32, #tpu.memory_space<vmem>>, %arg10: memref<1x64xf32, #tpu.memory_space<vmem>>, %arg11: memref<1x64xf32, #tpu.memory_space<vmem>>, %arg12: memref<1x64xf32, #tpu.memory_space<vmem>>, %arg13: memref<3x64x64xf32, #tpu.memory_space<vmem>>, %arg14: memref<1x64xf32, #tpu.memory_space<vmem>>, %arg15: memref<1x64xf32, #tpu.memory_space<vmem>>, %arg16: memref<1x64xf32, #tpu.memory_space<vmem>>, %arg17: memref<64x35xf32, #tpu.memory_space<vmem>>, %arg18: memref<1x35xf32, #tpu.memory_space<vmem>>, %arg19: memref<2x35xf32, #tpu.memory_space<vmem>>, %arg20: memref<992x32xf32, #tpu.memory_space<vmem>>, %arg21: memref<248x32xf32, #tpu.memory_space<vmem>>, %arg22: memref<244x32xf32, #tpu.memory_space<vmem>>, %arg23: memref<60x32xf32, #tpu.memory_space<vmem>>, %arg24: memref<56x64xf32, #tpu.memory_space<vmem>>, %arg25: memref<14x64xf32, #tpu.memory_space<vmem>>, %arg26: memref<10x64xf32, #tpu.memory_space<vmem>>, %arg27: memref<2x64xf32, #tpu.memory_space<vmem>>, %arg28: memref<2x64xf32, #tpu.memory_space<vmem>>) attributes {dimension_semantics = [], scalar_prefetch = 0 : i64, scratch_operands = 9 : i64, tpu.core_type = #tpu.core_type<tc>} {
    %cst = arith.constant 0.000000e+00 : f32
    %0 = vector.broadcast %cst : f32 to vector<1x32xf32>
    %cst_0 = arith.constant 0.000000e+00 : f32
    %1 = vector.broadcast %cst_0 : f32 to vector<1x32xf32>
    %cst_1 = arith.constant 0.000000e+00 : f32
    %2 = vector.broadcast %cst_1 : f32 to vector<496x32xf32>
    %c0 = arith.constant 0 : index
    %c0_2 = arith.constant 0 : index
    %3 = vector.load %arg0[%c0, %c0_2] : memref<1000x16xf32, #tpu.memory_space<vmem>>, vector<496x16xf32>
    %c0_3 = arith.constant 0 : index
    %c0_4 = arith.constant 0 : index
    %4 = vector.load %arg1[%c0_3, %c0_4] : memref<80x32xf32, #tpu.memory_space<vmem>>, vector<16x32xf32>
    %cst_5 = arith.constant dense<0.000000e+00> : vector<496x32xf32>
    %5 = tpu.matmul %3, %4, %cst_5 {dimension_numbers = #tpu.dot_dimension_numbers<[1], [0], [0], [1], [0, 0, 1, 1], [], []>} : vector<496x16xf32>, vector<16x32xf32>, vector<496x32xf32> -> vector<496x32xf32>
    %6 = arith.addf %2, %5 : vector<496x32xf32>
    %c1 = arith.constant 1 : index
    %c0_6 = arith.constant 0 : index
    %7 = vector.load %arg0[%c1, %c0_6] : memref<1000x16xf32, #tpu.memory_space<vmem>>, vector<496x16xf32>
    %c16 = arith.constant 16 : index
    %c0_7 = arith.constant 0 : index
    %8 = vector.load %arg1[%c16, %c0_7] : memref<80x32xf32, #tpu.memory_space<vmem>>, vector<16x32xf32>
    %cst_8 = arith.constant dense<0.000000e+00> : vector<496x32xf32>
    %9 = tpu.matmul %7, %8, %cst_8 {dimension_numbers = #tpu.dot_dimension_numbers<[1], [0], [0], [1], [0, 0, 1, 1], [], []>} : vector<496x16xf32>, vector<16x32xf32>, vector<496x32xf32> -> vector<496x32xf32>
    %10 = arith.addf %6, %9 : vector<496x32xf32>
    %c2 = arith.constant 2 : index
    %c0_9 = arith.constant 0 : index
    %11 = vector.load %arg0[%c2, %c0_9] : memref<1000x16xf32, #tpu.memory_space<vmem>>, vector<496x16xf32>
    %c32 = arith.constant 32 : index
    %c0_10 = arith.constant 0 : index
    %12 = vector.load %arg1[%c32, %c0_10] : memref<80x32xf32, #tpu.memory_space<vmem>>, vector<16x32xf32>
    %cst_11 = arith.constant dense<0.000000e+00> : vector<496x32xf32>
    %13 = tpu.matmul %11, %12, %cst_11 {dimension_numbers = #tpu.dot_dimension_numbers<[1], [0], [0], [1], [0, 0, 1, 1], [], []>} : vector<496x16xf32>, vector<16x32xf32>, vector<496x32xf32> -> vector<496x32xf32>
    %14 = arith.addf %10, %13 : vector<496x32xf32>
    %c3 = arith.constant 3 : index
    %c0_12 = arith.constant 0 : index
    %15 = vector.load %arg0[%c3, %c0_12] : memref<1000x16xf32, #tpu.memory_space<vmem>>, vector<496x16xf32>
    %c48 = arith.constant 48 : index
    %c0_13 = arith.constant 0 : index
    %16 = vector.load %arg1[%c48, %c0_13] : memref<80x32xf32, #tpu.memory_space<vmem>>, vector<16x32xf32>
    %cst_14 = arith.constant dense<0.000000e+00> : vector<496x32xf32>
    %17 = tpu.matmul %15, %16, %cst_14 {dimension_numbers = #tpu.dot_dimension_numbers<[1], [0], [0], [1], [0, 0, 1, 1], [], []>} : vector<496x16xf32>, vector<16x32xf32>, vector<496x32xf32> -> vector<496x32xf32>
    %18 = arith.addf %14, %17 : vector<496x32xf32>
    %c4 = arith.constant 4 : index
    %c0_15 = arith.constant 0 : index
    %19 = vector.load %arg0[%c4, %c0_15] : memref<1000x16xf32, #tpu.memory_space<vmem>>, vector<496x16xf32>
    %c64 = arith.constant 64 : index
    %c0_16 = arith.constant 0 : index
    %20 = vector.load %arg1[%c64, %c0_16] : memref<80x32xf32, #tpu.memory_space<vmem>>, vector<16x32xf32>
    %cst_17 = arith.constant dense<0.000000e+00> : vector<496x32xf32>
    %21 = tpu.matmul %19, %20, %cst_17 {dimension_numbers = #tpu.dot_dimension_numbers<[1], [0], [0], [1], [0, 0, 1, 1], [], []>} : vector<496x16xf32>, vector<16x32xf32>, vector<496x32xf32> -> vector<496x32xf32>
    %22 = arith.addf %18, %21 : vector<496x32xf32>
    %c0_18 = arith.constant 0 : index
    %c0_19 = arith.constant 0 : index
    %23 = vector.load %arg2[%c0_18, %c0_19] : memref<1x32xf32, #tpu.memory_space<vmem>>, vector<1x32xf32>
    %24 = vector.broadcast %23 : vector<1x32xf32> to vector<496x32xf32>
    %25 = arith.addf %22, %24 : vector<496x32xf32>
    %c0_20 = arith.constant 0 : index
    %c0_21 = arith.constant 0 : index
    %26 = vector.load %arg20[%c0_20, %c0_21] : memref<992x32xf32, #tpu.memory_space<vmem>>, vector<496x32xf32>
    tpu.vector_store %arg20[%c0_20, %c0_21], %25 {strides = array<i32>} : memref<992x32xf32, #tpu.memory_space<vmem>>, vector<496x32xf32>,
    %cst_22 = arith.constant dense<0.000000e+00> : vector<32xf32>
    %27 = vector.multi_reduction <add>, %25, %cst_22 [0] : vector<496x32xf32> to vector<32xf32>
    %28 = vector.shape_cast %27 : vector<32xf32> to vector<1x32xf32>
    %29 = arith.addf %0, %28 : vector<1x32xf32>
    %30 = arith.mulf %25, %25 : vector<496x32xf32>
    %cst_23 = arith.constant dense<0.000000e+00> : vector<32xf32>
    %31 = vector.multi_reduction <add>, %30, %cst_23 [0] : vector<496x32xf32> to vector<32xf32>
    %32 = vector.shape_cast %31 : vector<32xf32> to vector<1x32xf32>
    %33 = arith.addf %1, %32 : vector<1x32xf32>
    %cst_24 = arith.constant 0.000000e+00 : f32
    %34 = vector.broadcast %cst_24 : f32 to vector<496x32xf32>
    %c500 = arith.constant 500 : index
    %c0_25 = arith.constant 0 : index
    %35 = vector.load %arg0[%c500, %c0_25] : memref<1000x16xf32, #tpu.memory_space<vmem>>, vector<496x16xf32>
    %c0_26 = arith.constant 0 : index
    %c0_27 = arith.constant 0 : index
    %36 = vector.load %arg1[%c0_26, %c0_27] : memref<80x32xf32, #tpu.memory_space<vmem>>, vector<16x32xf32>
    %cst_28 = arith.constant dense<0.000000e+00> : vector<496x32xf32>
    %37 = tpu.matmul %35, %36, %cst_28 {dimension_numbers = #tpu.dot_dimension_numbers<[1], [0], [0], [1], [0, 0, 1, 1], [], []>} : vector<496x16xf32>, vector<16x32xf32>, vector<496x32xf32> -> vector<496x32xf32>
    %38 = arith.addf %34, %37 : vector<496x32xf32>
    %c501 = arith.constant 501 : index
    %c0_29 = arith.constant 0 : index
    %39 = vector.load %arg0[%c501, %c0_29] : memref<1000x16xf32, #tpu.memory_space<vmem>>, vector<496x16xf32>
    %c16_30 = arith.constant 16 : index
    %c0_31 = arith.constant 0 : index
    %40 = vector.load %arg1[%c16_30, %c0_31] : memref<80x32xf32, #tpu.memory_space<vmem>>, vector<16x32xf32>
    %cst_32 = arith.constant dense<0.000000e+00> : vector<496x32xf32>
    %41 = tpu.matmul %39, %40, %cst_32 {dimension_numbers = #tpu.dot_dimension_numbers<[1], [0], [0], [1], [0, 0, 1, 1], [], []>} : vector<496x16xf32>, vector<16x32xf32>, vector<496x32xf32> -> vector<496x32xf32>
    %42 = arith.addf %38, %41 : vector<496x32xf32>
    %c502 = arith.constant 502 : index
    %c0_33 = arith.constant 0 : index
    %43 = vector.load %arg0[%c502, %c0_33] : memref<1000x16xf32, #tpu.memory_space<vmem>>, vector<496x16xf32>
    %c32_34 = arith.constant 32 : index
    %c0_35 = arith.constant 0 : index
    %44 = vector.load %arg1[%c32_34, %c0_35] : memref<80x32xf32, #tpu.memory_space<vmem>>, vector<16x32xf32>
    %cst_36 = arith.constant dense<0.000000e+00> : vector<496x32xf32>
    %45 = tpu.matmul %43, %44, %cst_36 {dimension_numbers = #tpu.dot_dimension_numbers<[1], [0], [0], [1], [0, 0, 1, 1], [], []>} : vector<496x16xf32>, vector<16x32xf32>, vector<496x32xf32> -> vector<496x32xf32>
    %46 = arith.addf %42, %45 : vector<496x32xf32>
    %c503 = arith.constant 503 : index
    %c0_37 = arith.constant 0 : index
    %47 = vector.load %arg0[%c503, %c0_37] : memref<1000x16xf32, #tpu.memory_space<vmem>>, vector<496x16xf32>
    %c48_38 = arith.constant 48 : index
    %c0_39 = arith.constant 0 : index
    %48 = vector.load %arg1[%c48_38, %c0_39] : memref<80x32xf32, #tpu.memory_space<vmem>>, vector<16x32xf32>
    %cst_40 = arith.constant dense<0.000000e+00> : vector<496x32xf32>
    %49 = tpu.matmul %47, %48, %cst_40 {dimension_numbers = #tpu.dot_dimension_numbers<[1], [0], [0], [1], [0, 0, 1, 1], [], []>} : vector<496x16xf32>, vector<16x32xf32>, vector<496x32xf32> -> vector<496x32xf32>
    %50 = arith.addf %46, %49 : vector<496x32xf32>
    %c504 = arith.constant 504 : index
    %c0_41 = arith.constant 0 : index
    %51 = vector.load %arg0[%c504, %c0_41] : memref<1000x16xf32, #tpu.memory_space<vmem>>, vector<496x16xf32>
    %c64_42 = arith.constant 64 : index
    %c0_43 = arith.constant 0 : index
    %52 = vector.load %arg1[%c64_42, %c0_43] : memref<80x32xf32, #tpu.memory_space<vmem>>, vector<16x32xf32>
    %cst_44 = arith.constant dense<0.000000e+00> : vector<496x32xf32>
    %53 = tpu.matmul %51, %52, %cst_44 {dimension_numbers = #tpu.dot_dimension_numbers<[1], [0], [0], [1], [0, 0, 1, 1], [], []>} : vector<496x16xf32>, vector<16x32xf32>, vector<496x32xf32> -> vector<496x32xf32>
    %54 = arith.addf %50, %53 : vector<496x32xf32>
    %c0_45 = arith.constant 0 : index
    %c0_46 = arith.constant 0 : index
    %55 = vector.load %arg2[%c0_45, %c0_46] : memref<1x32xf32, #tpu.memory_space<vmem>>, vector<1x32xf32>
    %56 = vector.broadcast %55 : vector<1x32xf32> to vector<496x32xf32>
    %57 = arith.addf %54, %56 : vector<496x32xf32>
    %c496 = arith.constant 496 : index
    %c0_47 = arith.constant 0 : index
    %58 = vector.load %arg20[%c496, %c0_47] : memref<992x32xf32, #tpu.memory_space<vmem>>, vector<496x32xf32>
    tpu.vector_store %arg20[%c496, %c0_47], %57 {strides = array<i32>} : memref<992x32xf32, #tpu.memory_space<vmem>>, vector<496x32xf32>,
    %cst_48 = arith.constant dense<0.000000e+00> : vector<32xf32>
    %59 = vector.multi_reduction <add>, %57, %cst_48 [0] : vector<496x32xf32> to vector<32xf32>
    %60 = vector.shape_cast %59 : vector<32xf32> to vector<1x32xf32>
    %61 = arith.addf %29, %60 : vector<1x32xf32>
    %62 = arith.mulf %57, %57 : vector<496x32xf32>
    %cst_49 = arith.constant dense<0.000000e+00> : vector<32xf32>
    %63 = vector.multi_reduction <add>, %62, %cst_49 [0] : vector<496x32xf32> to vector<32xf32>
    %64 = vector.shape_cast %63 : vector<32xf32> to vector<1x32xf32>
    %65 = arith.addf %33, %64 : vector<1x32xf32>
    %cst_50 = arith.constant 0.00100806449 : f32
    %66 = vector.broadcast %cst_50 : f32 to vector<1x32xf32>
    %67 = arith.mulf %61, %66 : vector<1x32xf32>
    %cst_51 = arith.constant 0.00100806449 : f32
    %68 = vector.broadcast %cst_51 : f32 to vector<1x32xf32>
    %69 = arith.mulf %65, %68 : vector<1x32xf32>
    %70 = arith.mulf %67, %67 : vector<1x32xf32>
    %71 = arith.subf %69, %70 : vector<1x32xf32>
    %c0_52 = arith.constant 0 : index
    %c0_53 = arith.constant 0 : index
    %72 = vector.load %arg3[%c0_52, %c0_53] : memref<1x32xf32, #tpu.memory_space<vmem>>, vector<1x32xf32>
    %cst_54 = arith.constant 9.99999974E-6 : f32
    %73 = vector.broadcast %cst_54 : f32 to vector<1x32xf32>
    %74 = arith.addf %71, %73 : vector<1x32xf32>
    %75 = math.rsqrt %74 : vector<1x32xf32>
    %76 = arith.mulf %72, %75 : vector<1x32xf32>
    %c0_55 = arith.constant 0 : index
    %c0_56 = arith.constant 0 : index
    %77 = vector.load %arg4[%c0_55, %c0_56] : memref<1x32xf32, #tpu.memory_space<vmem>>, vector<1x32xf32>
    %78 = arith.mulf %67, %76 : vector<1x32xf32>
    %79 = arith.subf %77, %78 : vector<1x32xf32>
    %c0_57 = arith.constant 0 : index
    %c0_58 = arith.constant 0 : index
    %80 = tpu.strided_load %arg20[%c0_57, %c0_58] {strides = array<i32: 4, 1>} : memref<992x32xf32, #tpu.memory_space<vmem>>, vector<124x32xf32>
    %81 = vector.broadcast %76 : vector<1x32xf32> to vector<124x32xf32>
    %82 = arith.mulf %80, %81 : vector<124x32xf32>
    %83 = vector.broadcast %79 : vector<1x32xf32> to vector<124x32xf32>
    %84 = arith.addf %82, %83 : vector<124x32xf32>
    %cst_59 = arith.constant 0.000000e+00 : f32
    %85 = vector.broadcast %cst_59 : f32 to vector<124x32xf32>
    %86 = arith.maximumf %84, %85 : vector<124x32xf32>
    %c1_60 = arith.constant 1 : index
    %c0_61 = arith.constant 0 : index
    %87 = tpu.strided_load %arg20[%c1_60, %c0_61] {strides = array<i32: 4, 1>} : memref<992x32xf32, #tpu.memory_space<vmem>>, vector<124x32xf32>
    %88 = vector.broadcast %76 : vector<1x32xf32> to vector<124x32xf32>
    %89 = arith.mulf %87, %88 : vector<124x32xf32>
    %90 = vector.broadcast %79 : vector<1x32xf32> to vector<124x32xf32>
    %91 = arith.addf %89, %90 : vector<124x32xf32>
    %cst_62 = arith.constant 0.000000e+00 : f32
    %92 = vector.broadcast %cst_62 : f32 to vector<124x32xf32>
    %93 = arith.maximumf %91, %92 : vector<124x32xf32>
    %94 = arith.maximumf %86, %93 : vector<124x32xf32>
    %c2_63 = arith.constant 2 : index
    %c0_64 = arith.constant 0 : index
    %95 = tpu.strided_load %arg20[%c2_63, %c0_64] {strides = array<i32: 4, 1>} : memref<992x32xf32, #tpu.memory_space<vmem>>, vector<124x32xf32>
    %96 = vector.broadcast %76 : vector<1x32xf32> to vector<124x32xf32>
    %97 = arith.mulf %95, %96 : vector<124x32xf32>
    %98 = vector.broadcast %79 : vector<1x32xf32> to vector<124x32xf32>
    %99 = arith.addf %97, %98 : vector<124x32xf32>
    %cst_65 = arith.constant 0.000000e+00 : f32
    %100 = vector.broadcast %cst_65 : f32 to vector<124x32xf32>
    %101 = arith.maximumf %99, %100 : vector<124x32xf32>
    %102 = arith.maximumf %94, %101 : vector<124x32xf32>
    %c3_66 = arith.constant 3 : index
    %c0_67 = arith.constant 0 : index
    %103 = tpu.strided_load %arg20[%c3_66, %c0_67] {strides = array<i32: 4, 1>} : memref<992x32xf32, #tpu.memory_space<vmem>>, vector<124x32xf32>
    %104 = vector.broadcast %76 : vector<1x32xf32> to vector<124x32xf32>
    %105 = arith.mulf %103, %104 : vector<124x32xf32>
    %106 = vector.broadcast %79 : vector<1x32xf32> to vector<124x32xf32>
    %107 = arith.addf %105, %106 : vector<124x32xf32>
    %cst_68 = arith.constant 0.000000e+00 : f32
    %108 = vector.broadcast %cst_68 : f32 to vector<124x32xf32>
    %109 = arith.maximumf %107, %108 : vector<124x32xf32>
    %110 = arith.maximumf %102, %109 : vector<124x32xf32>
    %c0_69 = arith.constant 0 : index
    %c0_70 = arith.constant 0 : index
    %111 = vector.load %arg21[%c0_69, %c0_70] : memref<248x32xf32, #tpu.memory_space<vmem>>, vector<124x32xf32>
    tpu.vector_store %arg21[%c0_69, %c0_70], %110 {strides = array<i32>} : memref<248x32xf32, #tpu.memory_space<vmem>>, vector<124x32xf32>,
    %c496_71 = arith.constant 496 : index
    %c0_72 = arith.constant 0 : index
    %112 = tpu.strided_load %arg20[%c496_71, %c0_72] {strides = array<i32: 4, 1>} : memref<992x32xf32, #tpu.memory_space<vmem>>, vector<124x32xf32>
    %113 = vector.broadcast %76 : vector<1x32xf32> to vector<124x32xf32>
    %114 = arith.mulf %112, %113 : vector<124x32xf32>
    %115 = vector.broadcast %79 : vector<1x32xf32> to vector<124x32xf32>
    %116 = arith.addf %114, %115 : vector<124x32xf32>
    %cst_73 = arith.constant 0.000000e+00 : f32
    %117 = vector.broadcast %cst_73 : f32 to vector<124x32xf32>
    %118 = arith.maximumf %116, %117 : vector<124x32xf32>
    %c497 = arith.constant 497 : index
    %c0_74 = arith.constant 0 : index
    %119 = tpu.strided_load %arg20[%c497, %c0_74] {strides = array<i32: 4, 1>} : memref<992x32xf32, #tpu.memory_space<vmem>>, vector<124x32xf32>
    %120 = vector.broadcast %76 : vector<1x32xf32> to vector<124x32xf32>
    %121 = arith.mulf %119, %120 : vector<124x32xf32>
    %122 = vector.broadcast %79 : vector<1x32xf32> to vector<124x32xf32>
    %123 = arith.addf %121, %122 : vector<124x32xf32>
    %cst_75 = arith.constant 0.000000e+00 : f32
    %124 = vector.broadcast %cst_75 : f32 to vector<124x32xf32>
    %125 = arith.maximumf %123, %124 : vector<124x32xf32>
    %126 = arith.maximumf %118, %125 : vector<124x32xf32>
    %c498 = arith.constant 498 : index
    %c0_76 = arith.constant 0 : index
    %127 = tpu.strided_load %arg20[%c498, %c0_76] {strides = array<i32: 4, 1>} : memref<992x32xf32, #tpu.memory_space<vmem>>, vector<124x32xf32>
    %128 = vector.broadcast %76 : vector<1x32xf32> to vector<124x32xf32>
    %129 = arith.mulf %127, %128 : vector<124x32xf32>
    %130 = vector.broadcast %79 : vector<1x32xf32> to vector<124x32xf32>
    %131 = arith.addf %129, %130 : vector<124x32xf32>
    %cst_77 = arith.constant 0.000000e+00 : f32
    %132 = vector.broadcast %cst_77 : f32 to vector<124x32xf32>
    %133 = arith.maximumf %131, %132 : vector<124x32xf32>
    %134 = arith.maximumf %126, %133 : vector<124x32xf32>
    %c499 = arith.constant 499 : index
    %c0_78 = arith.constant 0 : index
    %135 = tpu.strided_load %arg20[%c499, %c0_78] {strides = array<i32: 4, 1>} : memref<992x32xf32, #tpu.memory_space<vmem>>, vector<124x32xf32>
    %136 = vector.broadcast %76 : vector<1x32xf32> to vector<124x32xf32>
    %137 = arith.mulf %135, %136 : vector<124x32xf32>
    %138 = vector.broadcast %79 : vector<1x32xf32> to vector<124x32xf32>
    %139 = arith.addf %137, %138 : vector<124x32xf32>
    %cst_79 = arith.constant 0.000000e+00 : f32
    %140 = vector.broadcast %cst_79 : f32 to vector<124x32xf32>
    %141 = arith.maximumf %139, %140 : vector<124x32xf32>
    %142 = arith.maximumf %134, %141 : vector<124x32xf32>
    %c124 = arith.constant 124 : index
    %c0_80 = arith.constant 0 : index
    %143 = vector.load %arg21[%c124, %c0_80] : memref<248x32xf32, #tpu.memory_space<vmem>>, vector<124x32xf32>
    tpu.vector_store %arg21[%c124, %c0_80], %142 {strides = array<i32>} : memref<248x32xf32, #tpu.memory_space<vmem>>, vector<124x32xf32>,
    %cst_81 = arith.constant 0.000000e+00 : f32
    %144 = vector.broadcast %cst_81 : f32 to vector<1x32xf32>
    %cst_82 = arith.constant 0.000000e+00 : f32
    %145 = vector.broadcast %cst_82 : f32 to vector<1x32xf32>
    %cst_83 = arith.constant 0.000000e+00 : f32
    %146 = vector.broadcast %cst_83 : f32 to vector<122x32xf32>
    %c0_84 = arith.constant 0 : index
    %c0_85 = arith.constant 0 : index
    %147 = vector.load %arg21[%c0_84, %c0_85] : memref<248x32xf32, #tpu.memory_space<vmem>>, vector<122x32xf32>
    %c0_86 = arith.constant 0 : index
    %c0_87 = arith.constant 0 : index
    %c0_88 = arith.constant 0 : index
    %148 = vector.load %arg5[%c0_86, %c0_87, %c0_88] : memref<3x32x32xf32, #tpu.memory_space<vmem>>, vector<1x32x32xf32>
    %149 = vector.shape_cast %148 : vector<1x32x32xf32> to vector<32x32xf32>
    %cst_89 = arith.constant dense<0.000000e+00> : vector<122x32xf32>
    %150 = tpu.matmul %147, %149, %cst_89 {dimension_numbers = #tpu.dot_dimension_numbers<[1], [0], [0], [1], [0, 0, 1, 1], [], []>} : vector<122x32xf32>, vector<32x32xf32>, vector<122x32xf32> -> vector<122x32xf32>
    %151 = arith.addf %146, %150 : vector<122x32xf32>
    %c1_90 = arith.constant 1 : index
    %c0_91 = arith.constant 0 : index
    %152 = vector.load %arg21[%c1_90, %c0_91] : memref<248x32xf32, #tpu.memory_space<vmem>>, vector<122x32xf32>
    %c1_92 = arith.constant 1 : index
    %c0_93 = arith.constant 0 : index
    %c0_94 = arith.constant 0 : index
    %153 = vector.load %arg5[%c1_92, %c0_93, %c0_94] : memref<3x32x32xf32, #tpu.memory_space<vmem>>, vector<1x32x32xf32>
    %154 = vector.shape_cast %153 : vector<1x32x32xf32> to vector<32x32xf32>
    %cst_95 = arith.constant dense<0.000000e+00> : vector<122x32xf32>
    %155 = tpu.matmul %152, %154, %cst_95 {dimension_numbers = #tpu.dot_dimension_numbers<[1], [0], [0], [1], [0, 0, 1, 1], [], []>} : vector<122x32xf32>, vector<32x32xf32>, vector<122x32xf32> -> vector<122x32xf32>
    %156 = arith.addf %151, %155 : vector<122x32xf32>
    %c2_96 = arith.constant 2 : index
    %c0_97 = arith.constant 0 : index
    %157 = vector.load %arg21[%c2_96, %c0_97] : memref<248x32xf32, #tpu.memory_space<vmem>>, vector<122x32xf32>
    %c2_98 = arith.constant 2 : index
    %c0_99 = arith.constant 0 : index
    %c0_100 = arith.constant 0 : index
    %158 = vector.load %arg5[%c2_98, %c0_99, %c0_100] : memref<3x32x32xf32, #tpu.memory_space<vmem>>, vector<1x32x32xf32>
    %159 = vector.shape_cast %158 : vector<1x32x32xf32> to vector<32x32xf32>
    %cst_101 = arith.constant dense<0.000000e+00> : vector<122x32xf32>
    %160 = tpu.matmul %157, %159, %cst_101 {dimension_numbers = #tpu.dot_dimension_numbers<[1], [0], [0], [1], [0, 0, 1, 1], [], []>} : vector<122x32xf32>, vector<32x32xf32>, vector<122x32xf32> -> vector<122x32xf32>
    %161 = arith.addf %156, %160 : vector<122x32xf32>
    %c0_102 = arith.constant 0 : index
    %c0_103 = arith.constant 0 : index
    %162 = vector.load %arg6[%c0_102, %c0_103] : memref<1x32xf32, #tpu.memory_space<vmem>>, vector<1x32xf32>
    %163 = vector.broadcast %162 : vector<1x32xf32> to vector<122x32xf32>
    %164 = arith.addf %161, %163 : vector<122x32xf32>
    %c0_104 = arith.constant 0 : index
    %c0_105 = arith.constant 0 : index
    %165 = vector.load %arg22[%c0_104, %c0_105] : memref<244x32xf32, #tpu.memory_space<vmem>>, vector<122x32xf32>
    tpu.vector_store %arg22[%c0_104, %c0_105], %164 {strides = array<i32>} : memref<244x32xf32, #tpu.memory_space<vmem>>, vector<122x32xf32>,
    %cst_106 = arith.constant dense<0.000000e+00> : vector<32xf32>
    %166 = vector.multi_reduction <add>, %164, %cst_106 [0] : vector<122x32xf32> to vector<32xf32>
    %167 = vector.shape_cast %166 : vector<32xf32> to vector<1x32xf32>
    %168 = arith.addf %144, %167 : vector<1x32xf32>
    %169 = arith.mulf %164, %164 : vector<122x32xf32>
    %cst_107 = arith.constant dense<0.000000e+00> : vector<32xf32>
    %170 = vector.multi_reduction <add>, %169, %cst_107 [0] : vector<122x32xf32> to vector<32xf32>
    %171 = vector.shape_cast %170 : vector<32xf32> to vector<1x32xf32>
    %172 = arith.addf %145, %171 : vector<1x32xf32>
    %cst_108 = arith.constant 0.000000e+00 : f32
    %173 = vector.broadcast %cst_108 : f32 to vector<122x32xf32>
    %c124_109 = arith.constant 124 : index
    %c0_110 = arith.constant 0 : index
    %174 = vector.load %arg21[%c124_109, %c0_110] : memref<248x32xf32, #tpu.memory_space<vmem>>, vector<122x32xf32>
    %c0_111 = arith.constant 0 : index
    %c0_112 = arith.constant 0 : index
    %c0_113 = arith.constant 0 : index
    %175 = vector.load %arg5[%c0_111, %c0_112, %c0_113] : memref<3x32x32xf32, #tpu.memory_space<vmem>>, vector<1x32x32xf32>
    %176 = vector.shape_cast %175 : vector<1x32x32xf32> to vector<32x32xf32>
    %cst_114 = arith.constant dense<0.000000e+00> : vector<122x32xf32>
    %177 = tpu.matmul %174, %176, %cst_114 {dimension_numbers = #tpu.dot_dimension_numbers<[1], [0], [0], [1], [0, 0, 1, 1], [], []>} : vector<122x32xf32>, vector<32x32xf32>, vector<122x32xf32> -> vector<122x32xf32>
    %178 = arith.addf %173, %177 : vector<122x32xf32>
    %c125 = arith.constant 125 : index
    %c0_115 = arith.constant 0 : index
    %179 = vector.load %arg21[%c125, %c0_115] : memref<248x32xf32, #tpu.memory_space<vmem>>, vector<122x32xf32>
    %c1_116 = arith.constant 1 : index
    %c0_117 = arith.constant 0 : index
    %c0_118 = arith.constant 0 : index
    %180 = vector.load %arg5[%c1_116, %c0_117, %c0_118] : memref<3x32x32xf32, #tpu.memory_space<vmem>>, vector<1x32x32xf32>
    %181 = vector.shape_cast %180 : vector<1x32x32xf32> to vector<32x32xf32>
    %cst_119 = arith.constant dense<0.000000e+00> : vector<122x32xf32>
    %182 = tpu.matmul %179, %181, %cst_119 {dimension_numbers = #tpu.dot_dimension_numbers<[1], [0], [0], [1], [0, 0, 1, 1], [], []>} : vector<122x32xf32>, vector<32x32xf32>, vector<122x32xf32> -> vector<122x32xf32>
    %183 = arith.addf %178, %182 : vector<122x32xf32>
    %c126 = arith.constant 126 : index
    %c0_120 = arith.constant 0 : index
    %184 = vector.load %arg21[%c126, %c0_120] : memref<248x32xf32, #tpu.memory_space<vmem>>, vector<122x32xf32>
    %c2_121 = arith.constant 2 : index
    %c0_122 = arith.constant 0 : index
    %c0_123 = arith.constant 0 : index
    %185 = vector.load %arg5[%c2_121, %c0_122, %c0_123] : memref<3x32x32xf32, #tpu.memory_space<vmem>>, vector<1x32x32xf32>
    %186 = vector.shape_cast %185 : vector<1x32x32xf32> to vector<32x32xf32>
    %cst_124 = arith.constant dense<0.000000e+00> : vector<122x32xf32>
    %187 = tpu.matmul %184, %186, %cst_124 {dimension_numbers = #tpu.dot_dimension_numbers<[1], [0], [0], [1], [0, 0, 1, 1], [], []>} : vector<122x32xf32>, vector<32x32xf32>, vector<122x32xf32> -> vector<122x32xf32>
    %188 = arith.addf %183, %187 : vector<122x32xf32>
    %c0_125 = arith.constant 0 : index
    %c0_126 = arith.constant 0 : index
    %189 = vector.load %arg6[%c0_125, %c0_126] : memref<1x32xf32, #tpu.memory_space<vmem>>, vector<1x32xf32>
    %190 = vector.broadcast %189 : vector<1x32xf32> to vector<122x32xf32>
    %191 = arith.addf %188, %190 : vector<122x32xf32>
    %c122 = arith.constant 122 : index
    %c0_127 = arith.constant 0 : index
    %192 = vector.load %arg22[%c122, %c0_127] : memref<244x32xf32, #tpu.memory_space<vmem>>, vector<122x32xf32>
    tpu.vector_store %arg22[%c122, %c0_127], %191 {strides = array<i32>} : memref<244x32xf32, #tpu.memory_space<vmem>>, vector<122x32xf32>,
    %cst_128 = arith.constant dense<0.000000e+00> : vector<32xf32>
    %193 = vector.multi_reduction <add>, %191, %cst_128 [0] : vector<122x32xf32> to vector<32xf32>
    %194 = vector.shape_cast %193 : vector<32xf32> to vector<1x32xf32>
    %195 = arith.addf %168, %194 : vector<1x32xf32>
    %196 = arith.mulf %191, %191 : vector<122x32xf32>
    %cst_129 = arith.constant dense<0.000000e+00> : vector<32xf32>
    %197 = vector.multi_reduction <add>, %196, %cst_129 [0] : vector<122x32xf32> to vector<32xf32>
    %198 = vector.shape_cast %197 : vector<32xf32> to vector<1x32xf32>
    %199 = arith.addf %172, %198 : vector<1x32xf32>
    %cst_130 = arith.constant 0.00409836043 : f32
    %200 = vector.broadcast %cst_130 : f32 to vector<1x32xf32>
    %201 = arith.mulf %195, %200 : vector<1x32xf32>
    %cst_131 = arith.constant 0.00409836043 : f32
    %202 = vector.broadcast %cst_131 : f32 to vector<1x32xf32>
    %203 = arith.mulf %199, %202 : vector<1x32xf32>
    %204 = arith.mulf %201, %201 : vector<1x32xf32>
    %205 = arith.subf %203, %204 : vector<1x32xf32>
    %c0_132 = arith.constant 0 : index
    %c0_133 = arith.constant 0 : index
    %206 = vector.load %arg7[%c0_132, %c0_133] : memref<1x32xf32, #tpu.memory_space<vmem>>, vector<1x32xf32>
    %cst_134 = arith.constant 9.99999974E-6 : f32
    %207 = vector.broadcast %cst_134 : f32 to vector<1x32xf32>
    %208 = arith.addf %205, %207 : vector<1x32xf32>
    %209 = math.rsqrt %208 : vector<1x32xf32>
    %210 = arith.mulf %206, %209 : vector<1x32xf32>
    %c0_135 = arith.constant 0 : index
    %c0_136 = arith.constant 0 : index
    %211 = vector.load %arg8[%c0_135, %c0_136] : memref<1x32xf32, #tpu.memory_space<vmem>>, vector<1x32xf32>
    %212 = arith.mulf %201, %210 : vector<1x32xf32>
    %213 = arith.subf %211, %212 : vector<1x32xf32>
    %c0_137 = arith.constant 0 : index
    %c0_138 = arith.constant 0 : index
    %214 = tpu.strided_load %arg22[%c0_137, %c0_138] {strides = array<i32: 4, 1>} : memref<244x32xf32, #tpu.memory_space<vmem>>, vector<30x32xf32>
    %215 = vector.broadcast %210 : vector<1x32xf32> to vector<30x32xf32>
    %216 = arith.mulf %214, %215 : vector<30x32xf32>
    %217 = vector.broadcast %213 : vector<1x32xf32> to vector<30x32xf32>
    %218 = arith.addf %216, %217 : vector<30x32xf32>
    %cst_139 = arith.constant 0.000000e+00 : f32
    %219 = vector.broadcast %cst_139 : f32 to vector<30x32xf32>
    %220 = arith.maximumf %218, %219 : vector<30x32xf32>
    %c1_140 = arith.constant 1 : index
    %c0_141 = arith.constant 0 : index
    %221 = tpu.strided_load %arg22[%c1_140, %c0_141] {strides = array<i32: 4, 1>} : memref<244x32xf32, #tpu.memory_space<vmem>>, vector<30x32xf32>
    %222 = vector.broadcast %210 : vector<1x32xf32> to vector<30x32xf32>
    %223 = arith.mulf %221, %222 : vector<30x32xf32>
    %224 = vector.broadcast %213 : vector<1x32xf32> to vector<30x32xf32>
    %225 = arith.addf %223, %224 : vector<30x32xf32>
    %cst_142 = arith.constant 0.000000e+00 : f32
    %226 = vector.broadcast %cst_142 : f32 to vector<30x32xf32>
    %227 = arith.maximumf %225, %226 : vector<30x32xf32>
    %228 = arith.maximumf %220, %227 : vector<30x32xf32>
    %c2_143 = arith.constant 2 : index
    %c0_144 = arith.constant 0 : index
    %229 = tpu.strided_load %arg22[%c2_143, %c0_144] {strides = array<i32: 4, 1>} : memref<244x32xf32, #tpu.memory_space<vmem>>, vector<30x32xf32>
    %230 = vector.broadcast %210 : vector<1x32xf32> to vector<30x32xf32>
    %231 = arith.mulf %229, %230 : vector<30x32xf32>
    %232 = vector.broadcast %213 : vector<1x32xf32> to vector<30x32xf32>
    %233 = arith.addf %231, %232 : vector<30x32xf32>
    %cst_145 = arith.constant 0.000000e+00 : f32
    %234 = vector.broadcast %cst_145 : f32 to vector<30x32xf32>
    %235 = arith.maximumf %233, %234 : vector<30x32xf32>
    %236 = arith.maximumf %228, %235 : vector<30x32xf32>
    %c3_146 = arith.constant 3 : index
    %c0_147 = arith.constant 0 : index
    %237 = tpu.strided_load %arg22[%c3_146, %c0_147] {strides = array<i32: 4, 1>} : memref<244x32xf32, #tpu.memory_space<vmem>>, vector<30x32xf32>
    %238 = vector.broadcast %210 : vector<1x32xf32> to vector<30x32xf32>
    %239 = arith.mulf %237, %238 : vector<30x32xf32>
    %240 = vector.broadcast %213 : vector<1x32xf32> to vector<30x32xf32>
    %241 = arith.addf %239, %240 : vector<30x32xf32>
    %cst_148 = arith.constant 0.000000e+00 : f32
    %242 = vector.broadcast %cst_148 : f32 to vector<30x32xf32>
    %243 = arith.maximumf %241, %242 : vector<30x32xf32>
    %244 = arith.maximumf %236, %243 : vector<30x32xf32>
    %c0_149 = arith.constant 0 : index
    %c0_150 = arith.constant 0 : index
    %245 = vector.load %arg23[%c0_149, %c0_150] : memref<60x32xf32, #tpu.memory_space<vmem>>, vector<30x32xf32>
    tpu.vector_store %arg23[%c0_149, %c0_150], %244 {strides = array<i32>} : memref<60x32xf32, #tpu.memory_space<vmem>>, vector<30x32xf32>,
    %c122_151 = arith.constant 122 : index
    %c0_152 = arith.constant 0 : index
    %246 = tpu.strided_load %arg22[%c122_151, %c0_152] {strides = array<i32: 4, 1>} : memref<244x32xf32, #tpu.memory_space<vmem>>, vector<30x32xf32>
    %247 = vector.broadcast %210 : vector<1x32xf32> to vector<30x32xf32>
    %248 = arith.mulf %246, %247 : vector<30x32xf32>
    %249 = vector.broadcast %213 : vector<1x32xf32> to vector<30x32xf32>
    %250 = arith.addf %248, %249 : vector<30x32xf32>
    %cst_153 = arith.constant 0.000000e+00 : f32
    %251 = vector.broadcast %cst_153 : f32 to vector<30x32xf32>
    %252 = arith.maximumf %250, %251 : vector<30x32xf32>
    %c123 = arith.constant 123 : index
    %c0_154 = arith.constant 0 : index
    %253 = tpu.strided_load %arg22[%c123, %c0_154] {strides = array<i32: 4, 1>} : memref<244x32xf32, #tpu.memory_space<vmem>>, vector<30x32xf32>
    %254 = vector.broadcast %210 : vector<1x32xf32> to vector<30x32xf32>
    %255 = arith.mulf %253, %254 : vector<30x32xf32>
    %256 = vector.broadcast %213 : vector<1x32xf32> to vector<30x32xf32>
    %257 = arith.addf %255, %256 : vector<30x32xf32>
    %cst_155 = arith.constant 0.000000e+00 : f32
    %258 = vector.broadcast %cst_155 : f32 to vector<30x32xf32>
    %259 = arith.maximumf %257, %258 : vector<30x32xf32>
    %260 = arith.maximumf %252, %259 : vector<30x32xf32>
    %c124_156 = arith.constant 124 : index
    %c0_157 = arith.constant 0 : index
    %261 = tpu.strided_load %arg22[%c124_156, %c0_157] {strides = array<i32: 4, 1>} : memref<244x32xf32, #tpu.memory_space<vmem>>, vector<30x32xf32>
    %262 = vector.broadcast %210 : vector<1x32xf32> to vector<30x32xf32>
    %263 = arith.mulf %261, %262 : vector<30x32xf32>
    %264 = vector.broadcast %213 : vector<1x32xf32> to vector<30x32xf32>
    %265 = arith.addf %263, %264 : vector<30x32xf32>
    %cst_158 = arith.constant 0.000000e+00 : f32
    %266 = vector.broadcast %cst_158 : f32 to vector<30x32xf32>
    %267 = arith.maximumf %265, %266 : vector<30x32xf32>
    %268 = arith.maximumf %260, %267 : vector<30x32xf32>
    %c125_159 = arith.constant 125 : index
    %c0_160 = arith.constant 0 : index
    %269 = tpu.strided_load %arg22[%c125_159, %c0_160] {strides = array<i32: 4, 1>} : memref<244x32xf32, #tpu.memory_space<vmem>>, vector<30x32xf32>
    %270 = vector.broadcast %210 : vector<1x32xf32> to vector<30x32xf32>
    %271 = arith.mulf %269, %270 : vector<30x32xf32>
    %272 = vector.broadcast %213 : vector<1x32xf32> to vector<30x32xf32>
    %273 = arith.addf %271, %272 : vector<30x32xf32>
    %cst_161 = arith.constant 0.000000e+00 : f32
    %274 = vector.broadcast %cst_161 : f32 to vector<30x32xf32>
    %275 = arith.maximumf %273, %274 : vector<30x32xf32>
    %276 = arith.maximumf %268, %275 : vector<30x32xf32>
    %c30 = arith.constant 30 : index
    %c0_162 = arith.constant 0 : index
    %277 = vector.load %arg23[%c30, %c0_162] : memref<60x32xf32, #tpu.memory_space<vmem>>, vector<30x32xf32>
    tpu.vector_store %arg23[%c30, %c0_162], %276 {strides = array<i32>} : memref<60x32xf32, #tpu.memory_space<vmem>>, vector<30x32xf32>,
    %cst_163 = arith.constant 0.000000e+00 : f32
    %278 = vector.broadcast %cst_163 : f32 to vector<1x64xf32>
    %cst_164 = arith.constant 0.000000e+00 : f32
    %279 = vector.broadcast %cst_164 : f32 to vector<1x64xf32>
    %cst_165 = arith.constant 0.000000e+00 : f32
    %280 = vector.broadcast %cst_165 : f32 to vector<28x64xf32>
    %c0_166 = arith.constant 0 : index
    %c0_167 = arith.constant 0 : index
    %281 = vector.load %arg23[%c0_166, %c0_167] : memref<60x32xf32, #tpu.memory_space<vmem>>, vector<28x32xf32>
    %c0_168 = arith.constant 0 : index
    %c0_169 = arith.constant 0 : index
    %c0_170 = arith.constant 0 : index
    %282 = vector.load %arg9[%c0_168, %c0_169, %c0_170] : memref<3x32x64xf32, #tpu.memory_space<vmem>>, vector<1x32x64xf32>
    %283 = vector.shape_cast %282 : vector<1x32x64xf32> to vector<32x64xf32>
    %cst_171 = arith.constant dense<0.000000e+00> : vector<28x64xf32>
    %284 = tpu.matmul %281, %283, %cst_171 {dimension_numbers = #tpu.dot_dimension_numbers<[1], [0], [0], [1], [0, 0, 1, 1], [], []>} : vector<28x32xf32>, vector<32x64xf32>, vector<28x64xf32> -> vector<28x64xf32>
    %285 = arith.addf %280, %284 : vector<28x64xf32>
    %c1_172 = arith.constant 1 : index
    %c0_173 = arith.constant 0 : index
    %286 = vector.load %arg23[%c1_172, %c0_173] : memref<60x32xf32, #tpu.memory_space<vmem>>, vector<28x32xf32>
    %c1_174 = arith.constant 1 : index
    %c0_175 = arith.constant 0 : index
    %c0_176 = arith.constant 0 : index
    %287 = vector.load %arg9[%c1_174, %c0_175, %c0_176] : memref<3x32x64xf32, #tpu.memory_space<vmem>>, vector<1x32x64xf32>
    %288 = vector.shape_cast %287 : vector<1x32x64xf32> to vector<32x64xf32>
    %cst_177 = arith.constant dense<0.000000e+00> : vector<28x64xf32>
    %289 = tpu.matmul %286, %288, %cst_177 {dimension_numbers = #tpu.dot_dimension_numbers<[1], [0], [0], [1], [0, 0, 1, 1], [], []>} : vector<28x32xf32>, vector<32x64xf32>, vector<28x64xf32> -> vector<28x64xf32>
    %290 = arith.addf %285, %289 : vector<28x64xf32>
    %c2_178 = arith.constant 2 : index
    %c0_179 = arith.constant 0 : index
    %291 = vector.load %arg23[%c2_178, %c0_179] : memref<60x32xf32, #tpu.memory_space<vmem>>, vector<28x32xf32>
    %c2_180 = arith.constant 2 : index
    %c0_181 = arith.constant 0 : index
    %c0_182 = arith.constant 0 : index
    %292 = vector.load %arg9[%c2_180, %c0_181, %c0_182] : memref<3x32x64xf32, #tpu.memory_space<vmem>>, vector<1x32x64xf32>
    %293 = vector.shape_cast %292 : vector<1x32x64xf32> to vector<32x64xf32>
    %cst_183 = arith.constant dense<0.000000e+00> : vector<28x64xf32>
    %294 = tpu.matmul %291, %293, %cst_183 {dimension_numbers = #tpu.dot_dimension_numbers<[1], [0], [0], [1], [0, 0, 1, 1], [], []>} : vector<28x32xf32>, vector<32x64xf32>, vector<28x64xf32> -> vector<28x64xf32>
    %295 = arith.addf %290, %294 : vector<28x64xf32>
    %c0_184 = arith.constant 0 : index
    %c0_185 = arith.constant 0 : index
    %296 = vector.load %arg10[%c0_184, %c0_185] : memref<1x64xf32, #tpu.memory_space<vmem>>, vector<1x64xf32>
    %297 = vector.broadcast %296 : vector<1x64xf32> to vector<28x64xf32>
    %298 = arith.addf %295, %297 : vector<28x64xf32>
    %c0_186 = arith.constant 0 : index
    %c0_187 = arith.constant 0 : index
    %299 = vector.load %arg24[%c0_186, %c0_187] : memref<56x64xf32, #tpu.memory_space<vmem>>, vector<28x64xf32>
    tpu.vector_store %arg24[%c0_186, %c0_187], %298 {strides = array<i32>} : memref<56x64xf32, #tpu.memory_space<vmem>>, vector<28x64xf32>,
    %cst_188 = arith.constant dense<0.000000e+00> : vector<64xf32>
    %300 = vector.multi_reduction <add>, %298, %cst_188 [0] : vector<28x64xf32> to vector<64xf32>
    %301 = vector.shape_cast %300 : vector<64xf32> to vector<1x64xf32>
    %302 = arith.addf %278, %301 : vector<1x64xf32>
    %303 = arith.mulf %298, %298 : vector<28x64xf32>
    %cst_189 = arith.constant dense<0.000000e+00> : vector<64xf32>
    %304 = vector.multi_reduction <add>, %303, %cst_189 [0] : vector<28x64xf32> to vector<64xf32>
    %305 = vector.shape_cast %304 : vector<64xf32> to vector<1x64xf32>
    %306 = arith.addf %279, %305 : vector<1x64xf32>
    %cst_190 = arith.constant 0.000000e+00 : f32
    %307 = vector.broadcast %cst_190 : f32 to vector<28x64xf32>
    %c30_191 = arith.constant 30 : index
    %c0_192 = arith.constant 0 : index
    %308 = vector.load %arg23[%c30_191, %c0_192] : memref<60x32xf32, #tpu.memory_space<vmem>>, vector<28x32xf32>
    %c0_193 = arith.constant 0 : index
    %c0_194 = arith.constant 0 : index
    %c0_195 = arith.constant 0 : index
    %309 = vector.load %arg9[%c0_193, %c0_194, %c0_195] : memref<3x32x64xf32, #tpu.memory_space<vmem>>, vector<1x32x64xf32>
    %310 = vector.shape_cast %309 : vector<1x32x64xf32> to vector<32x64xf32>
    %cst_196 = arith.constant dense<0.000000e+00> : vector<28x64xf32>
    %311 = tpu.matmul %308, %310, %cst_196 {dimension_numbers = #tpu.dot_dimension_numbers<[1], [0], [0], [1], [0, 0, 1, 1], [], []>} : vector<28x32xf32>, vector<32x64xf32>, vector<28x64xf32> -> vector<28x64xf32>
    %312 = arith.addf %307, %311 : vector<28x64xf32>
    %c31 = arith.constant 31 : index
    %c0_197 = arith.constant 0 : index
    %313 = vector.load %arg23[%c31, %c0_197] : memref<60x32xf32, #tpu.memory_space<vmem>>, vector<28x32xf32>
    %c1_198 = arith.constant 1 : index
    %c0_199 = arith.constant 0 : index
    %c0_200 = arith.constant 0 : index
    %314 = vector.load %arg9[%c1_198, %c0_199, %c0_200] : memref<3x32x64xf32, #tpu.memory_space<vmem>>, vector<1x32x64xf32>
    %315 = vector.shape_cast %314 : vector<1x32x64xf32> to vector<32x64xf32>
    %cst_201 = arith.constant dense<0.000000e+00> : vector<28x64xf32>
    %316 = tpu.matmul %313, %315, %cst_201 {dimension_numbers = #tpu.dot_dimension_numbers<[1], [0], [0], [1], [0, 0, 1, 1], [], []>} : vector<28x32xf32>, vector<32x64xf32>, vector<28x64xf32> -> vector<28x64xf32>
    %317 = arith.addf %312, %316 : vector<28x64xf32>
    %c32_202 = arith.constant 32 : index
    %c0_203 = arith.constant 0 : index
    %318 = vector.load %arg23[%c32_202, %c0_203] : memref<60x32xf32, #tpu.memory_space<vmem>>, vector<28x32xf32>
    %c2_204 = arith.constant 2 : index
    %c0_205 = arith.constant 0 : index
    %c0_206 = arith.constant 0 : index
    %319 = vector.load %arg9[%c2_204, %c0_205, %c0_206] : memref<3x32x64xf32, #tpu.memory_space<vmem>>, vector<1x32x64xf32>
    %320 = vector.shape_cast %319 : vector<1x32x64xf32> to vector<32x64xf32>
    %cst_207 = arith.constant dense<0.000000e+00> : vector<28x64xf32>
    %321 = tpu.matmul %318, %320, %cst_207 {dimension_numbers = #tpu.dot_dimension_numbers<[1], [0], [0], [1], [0, 0, 1, 1], [], []>} : vector<28x32xf32>, vector<32x64xf32>, vector<28x64xf32> -> vector<28x64xf32>
    %322 = arith.addf %317, %321 : vector<28x64xf32>
    %c0_208 = arith.constant 0 : index
    %c0_209 = arith.constant 0 : index
    %323 = vector.load %arg10[%c0_208, %c0_209] : memref<1x64xf32, #tpu.memory_space<vmem>>, vector<1x64xf32>
    %324 = vector.broadcast %323 : vector<1x64xf32> to vector<28x64xf32>
    %325 = arith.addf %322, %324 : vector<28x64xf32>
    %c28 = arith.constant 28 : index
    %c0_210 = arith.constant 0 : index
    %326 = vector.load %arg24[%c28, %c0_210] : memref<56x64xf32, #tpu.memory_space<vmem>>, vector<28x64xf32>
    tpu.vector_store %arg24[%c28, %c0_210], %325 {strides = array<i32>} : memref<56x64xf32, #tpu.memory_space<vmem>>, vector<28x64xf32>,
    %cst_211 = arith.constant dense<0.000000e+00> : vector<64xf32>
    %327 = vector.multi_reduction <add>, %325, %cst_211 [0] : vector<28x64xf32> to vector<64xf32>
    %328 = vector.shape_cast %327 : vector<64xf32> to vector<1x64xf32>
    %329 = arith.addf %302, %328 : vector<1x64xf32>
    %330 = arith.mulf %325, %325 : vector<28x64xf32>
    %cst_212 = arith.constant dense<0.000000e+00> : vector<64xf32>
    %331 = vector.multi_reduction <add>, %330, %cst_212 [0] : vector<28x64xf32> to vector<64xf32>
    %332 = vector.shape_cast %331 : vector<64xf32> to vector<1x64xf32>
    %333 = arith.addf %306, %332 : vector<1x64xf32>
    %cst_213 = arith.constant 0.0178571437 : f32
    %334 = vector.broadcast %cst_213 : f32 to vector<1x64xf32>
    %335 = arith.mulf %329, %334 : vector<1x64xf32>
    %cst_214 = arith.constant 0.0178571437 : f32
    %336 = vector.broadcast %cst_214 : f32 to vector<1x64xf32>
    %337 = arith.mulf %333, %336 : vector<1x64xf32>
    %338 = arith.mulf %335, %335 : vector<1x64xf32>
    %339 = arith.subf %337, %338 : vector<1x64xf32>
    %c0_215 = arith.constant 0 : index
    %c0_216 = arith.constant 0 : index
    %340 = vector.load %arg11[%c0_215, %c0_216] : memref<1x64xf32, #tpu.memory_space<vmem>>, vector<1x64xf32>
    %cst_217 = arith.constant 9.99999974E-6 : f32
    %341 = vector.broadcast %cst_217 : f32 to vector<1x64xf32>
    %342 = arith.addf %339, %341 : vector<1x64xf32>
    %343 = math.rsqrt %342 : vector<1x64xf32>
    %344 = arith.mulf %340, %343 : vector<1x64xf32>
    %c0_218 = arith.constant 0 : index
    %c0_219 = arith.constant 0 : index
    %345 = vector.load %arg12[%c0_218, %c0_219] : memref<1x64xf32, #tpu.memory_space<vmem>>, vector<1x64xf32>
    %346 = arith.mulf %335, %344 : vector<1x64xf32>
    %347 = arith.subf %345, %346 : vector<1x64xf32>
    %c0_220 = arith.constant 0 : index
    %c0_221 = arith.constant 0 : index
    %348 = tpu.strided_load %arg24[%c0_220, %c0_221] {strides = array<i32: 4, 1>} : memref<56x64xf32, #tpu.memory_space<vmem>>, vector<7x64xf32>
    %349 = vector.broadcast %344 : vector<1x64xf32> to vector<7x64xf32>
    %350 = arith.mulf %348, %349 : vector<7x64xf32>
    %351 = vector.broadcast %347 : vector<1x64xf32> to vector<7x64xf32>
    %352 = arith.addf %350, %351 : vector<7x64xf32>
    %cst_222 = arith.constant 0.000000e+00 : f32
    %353 = vector.broadcast %cst_222 : f32 to vector<7x64xf32>
    %354 = arith.maximumf %352, %353 : vector<7x64xf32>
    %c1_223 = arith.constant 1 : index
    %c0_224 = arith.constant 0 : index
    %355 = tpu.strided_load %arg24[%c1_223, %c0_224] {strides = array<i32: 4, 1>} : memref<56x64xf32, #tpu.memory_space<vmem>>, vector<7x64xf32>
    %356 = vector.broadcast %344 : vector<1x64xf32> to vector<7x64xf32>
    %357 = arith.mulf %355, %356 : vector<7x64xf32>
    %358 = vector.broadcast %347 : vector<1x64xf32> to vector<7x64xf32>
    %359 = arith.addf %357, %358 : vector<7x64xf32>
    %cst_225 = arith.constant 0.000000e+00 : f32
    %360 = vector.broadcast %cst_225 : f32 to vector<7x64xf32>
    %361 = arith.maximumf %359, %360 : vector<7x64xf32>
    %362 = arith.maximumf %354, %361 : vector<7x64xf32>
    %c2_226 = arith.constant 2 : index
    %c0_227 = arith.constant 0 : index
    %363 = tpu.strided_load %arg24[%c2_226, %c0_227] {strides = array<i32: 4, 1>} : memref<56x64xf32, #tpu.memory_space<vmem>>, vector<7x64xf32>
    %364 = vector.broadcast %344 : vector<1x64xf32> to vector<7x64xf32>
    %365 = arith.mulf %363, %364 : vector<7x64xf32>
    %366 = vector.broadcast %347 : vector<1x64xf32> to vector<7x64xf32>
    %367 = arith.addf %365, %366 : vector<7x64xf32>
    %cst_228 = arith.constant 0.000000e+00 : f32
    %368 = vector.broadcast %cst_228 : f32 to vector<7x64xf32>
    %369 = arith.maximumf %367, %368 : vector<7x64xf32>
    %370 = arith.maximumf %362, %369 : vector<7x64xf32>
    %c3_229 = arith.constant 3 : index
    %c0_230 = arith.constant 0 : index
    %371 = tpu.strided_load %arg24[%c3_229, %c0_230] {strides = array<i32: 4, 1>} : memref<56x64xf32, #tpu.memory_space<vmem>>, vector<7x64xf32>
    %372 = vector.broadcast %344 : vector<1x64xf32> to vector<7x64xf32>
    %373 = arith.mulf %371, %372 : vector<7x64xf32>
    %374 = vector.broadcast %347 : vector<1x64xf32> to vector<7x64xf32>
    %375 = arith.addf %373, %374 : vector<7x64xf32>
    %cst_231 = arith.constant 0.000000e+00 : f32
    %376 = vector.broadcast %cst_231 : f32 to vector<7x64xf32>
    %377 = arith.maximumf %375, %376 : vector<7x64xf32>
    %378 = arith.maximumf %370, %377 : vector<7x64xf32>
    %c0_232 = arith.constant 0 : index
    %c0_233 = arith.constant 0 : index
    %379 = vector.load %arg25[%c0_232, %c0_233] : memref<14x64xf32, #tpu.memory_space<vmem>>, vector<7x64xf32>
    tpu.vector_store %arg25[%c0_232, %c0_233], %378 {strides = array<i32>} : memref<14x64xf32, #tpu.memory_space<vmem>>, vector<7x64xf32>,
    %c28_234 = arith.constant 28 : index
    %c0_235 = arith.constant 0 : index
    %380 = tpu.strided_load %arg24[%c28_234, %c0_235] {strides = array<i32: 4, 1>} : memref<56x64xf32, #tpu.memory_space<vmem>>, vector<7x64xf32>
    %381 = vector.broadcast %344 : vector<1x64xf32> to vector<7x64xf32>
    %382 = arith.mulf %380, %381 : vector<7x64xf32>
    %383 = vector.broadcast %347 : vector<1x64xf32> to vector<7x64xf32>
    %384 = arith.addf %382, %383 : vector<7x64xf32>
    %cst_236 = arith.constant 0.000000e+00 : f32
    %385 = vector.broadcast %cst_236 : f32 to vector<7x64xf32>
    %386 = arith.maximumf %384, %385 : vector<7x64xf32>
    %c29 = arith.constant 29 : index
    %c0_237 = arith.constant 0 : index
    %387 = tpu.strided_load %arg24[%c29, %c0_237] {strides = array<i32: 4, 1>} : memref<56x64xf32, #tpu.memory_space<vmem>>, vector<7x64xf32>
    %388 = vector.broadcast %344 : vector<1x64xf32> to vector<7x64xf32>
    %389 = arith.mulf %387, %388 : vector<7x64xf32>
    %390 = vector.broadcast %347 : vector<1x64xf32> to vector<7x64xf32>
    %391 = arith.addf %389, %390 : vector<7x64xf32>
    %cst_238 = arith.constant 0.000000e+00 : f32
    %392 = vector.broadcast %cst_238 : f32 to vector<7x64xf32>
    %393 = arith.maximumf %391, %392 : vector<7x64xf32>
    %394 = arith.maximumf %386, %393 : vector<7x64xf32>
    %c30_239 = arith.constant 30 : index
    %c0_240 = arith.constant 0 : index
    %395 = tpu.strided_load %arg24[%c30_239, %c0_240] {strides = array<i32: 4, 1>} : memref<56x64xf32, #tpu.memory_space<vmem>>, vector<7x64xf32>
    %396 = vector.broadcast %344 : vector<1x64xf32> to vector<7x64xf32>
    %397 = arith.mulf %395, %396 : vector<7x64xf32>
    %398 = vector.broadcast %347 : vector<1x64xf32> to vector<7x64xf32>
    %399 = arith.addf %397, %398 : vector<7x64xf32>
    %cst_241 = arith.constant 0.000000e+00 : f32
    %400 = vector.broadcast %cst_241 : f32 to vector<7x64xf32>
    %401 = arith.maximumf %399, %400 : vector<7x64xf32>
    %402 = arith.maximumf %394, %401 : vector<7x64xf32>
    %c31_242 = arith.constant 31 : index
    %c0_243 = arith.constant 0 : index
    %403 = tpu.strided_load %arg24[%c31_242, %c0_243] {strides = array<i32: 4, 1>} : memref<56x64xf32, #tpu.memory_space<vmem>>, vector<7x64xf32>
    %404 = vector.broadcast %344 : vector<1x64xf32> to vector<7x64xf32>
    %405 = arith.mulf %403, %404 : vector<7x64xf32>
    %406 = vector.broadcast %347 : vector<1x64xf32> to vector<7x64xf32>
    %407 = arith.addf %405, %406 : vector<7x64xf32>
    %cst_244 = arith.constant 0.000000e+00 : f32
    %408 = vector.broadcast %cst_244 : f32 to vector<7x64xf32>
    %409 = arith.maximumf %407, %408 : vector<7x64xf32>
    %410 = arith.maximumf %402, %409 : vector<7x64xf32>
    %c7 = arith.constant 7 : index
    %c0_245 = arith.constant 0 : index
    %411 = vector.load %arg25[%c7, %c0_245] : memref<14x64xf32, #tpu.memory_space<vmem>>, vector<7x64xf32>
    tpu.vector_store %arg25[%c7, %c0_245], %410 {strides = array<i32>} : memref<14x64xf32, #tpu.memory_space<vmem>>, vector<7x64xf32>,
    %cst_246 = arith.constant 0.000000e+00 : f32
    %412 = vector.broadcast %cst_246 : f32 to vector<1x64xf32>
    %cst_247 = arith.constant 0.000000e+00 : f32
    %413 = vector.broadcast %cst_247 : f32 to vector<1x64xf32>
    %cst_248 = arith.constant 0.000000e+00 : f32
    %414 = vector.broadcast %cst_248 : f32 to vector<5x64xf32>
    %c0_249 = arith.constant 0 : index
    %c0_250 = arith.constant 0 : index
    %415 = vector.load %arg25[%c0_249, %c0_250] : memref<14x64xf32, #tpu.memory_space<vmem>>, vector<5x64xf32>
    %c0_251 = arith.constant 0 : index
    %c0_252 = arith.constant 0 : index
    %c0_253 = arith.constant 0 : index
    %416 = vector.load %arg13[%c0_251, %c0_252, %c0_253] : memref<3x64x64xf32, #tpu.memory_space<vmem>>, vector<1x64x64xf32>
    %417 = vector.shape_cast %416 : vector<1x64x64xf32> to vector<64x64xf32>
    %cst_254 = arith.constant dense<0.000000e+00> : vector<5x64xf32>
    %418 = tpu.matmul %415, %417, %cst_254 {dimension_numbers = #tpu.dot_dimension_numbers<[1], [0], [0], [1], [0, 0, 1, 1], [], []>} : vector<5x64xf32>, vector<64x64xf32>, vector<5x64xf32> -> vector<5x64xf32>
    %419 = arith.addf %414, %418 : vector<5x64xf32>
    %c1_255 = arith.constant 1 : index
    %c0_256 = arith.constant 0 : index
    %420 = vector.load %arg25[%c1_255, %c0_256] : memref<14x64xf32, #tpu.memory_space<vmem>>, vector<5x64xf32>
    %c1_257 = arith.constant 1 : index
    %c0_258 = arith.constant 0 : index
    %c0_259 = arith.constant 0 : index
    %421 = vector.load %arg13[%c1_257, %c0_258, %c0_259] : memref<3x64x64xf32, #tpu.memory_space<vmem>>, vector<1x64x64xf32>
    %422 = vector.shape_cast %421 : vector<1x64x64xf32> to vector<64x64xf32>
    %cst_260 = arith.constant dense<0.000000e+00> : vector<5x64xf32>
    %423 = tpu.matmul %420, %422, %cst_260 {dimension_numbers = #tpu.dot_dimension_numbers<[1], [0], [0], [1], [0, 0, 1, 1], [], []>} : vector<5x64xf32>, vector<64x64xf32>, vector<5x64xf32> -> vector<5x64xf32>
    %424 = arith.addf %419, %423 : vector<5x64xf32>
    %c2_261 = arith.constant 2 : index
    %c0_262 = arith.constant 0 : index
    %425 = vector.load %arg25[%c2_261, %c0_262] : memref<14x64xf32, #tpu.memory_space<vmem>>, vector<5x64xf32>
    %c2_263 = arith.constant 2 : index
    %c0_264 = arith.constant 0 : index
    %c0_265 = arith.constant 0 : index
    %426 = vector.load %arg13[%c2_263, %c0_264, %c0_265] : memref<3x64x64xf32, #tpu.memory_space<vmem>>, vector<1x64x64xf32>
    %427 = vector.shape_cast %426 : vector<1x64x64xf32> to vector<64x64xf32>
    %cst_266 = arith.constant dense<0.000000e+00> : vector<5x64xf32>
    %428 = tpu.matmul %425, %427, %cst_266 {dimension_numbers = #tpu.dot_dimension_numbers<[1], [0], [0], [1], [0, 0, 1, 1], [], []>} : vector<5x64xf32>, vector<64x64xf32>, vector<5x64xf32> -> vector<5x64xf32>
    %429 = arith.addf %424, %428 : vector<5x64xf32>
    %c0_267 = arith.constant 0 : index
    %c0_268 = arith.constant 0 : index
    %430 = vector.load %arg14[%c0_267, %c0_268] : memref<1x64xf32, #tpu.memory_space<vmem>>, vector<1x64xf32>
    %431 = vector.broadcast %430 : vector<1x64xf32> to vector<5x64xf32>
    %432 = arith.addf %429, %431 : vector<5x64xf32>
    %c0_269 = arith.constant 0 : index
    %c0_270 = arith.constant 0 : index
    %433 = vector.load %arg26[%c0_269, %c0_270] : memref<10x64xf32, #tpu.memory_space<vmem>>, vector<5x64xf32>
    tpu.vector_store %arg26[%c0_269, %c0_270], %432 {strides = array<i32>} : memref<10x64xf32, #tpu.memory_space<vmem>>, vector<5x64xf32>,
    %cst_271 = arith.constant dense<0.000000e+00> : vector<64xf32>
    %434 = vector.multi_reduction <add>, %432, %cst_271 [0] : vector<5x64xf32> to vector<64xf32>
    %435 = vector.shape_cast %434 : vector<64xf32> to vector<1x64xf32>
    %436 = arith.addf %412, %435 : vector<1x64xf32>
    %437 = arith.mulf %432, %432 : vector<5x64xf32>
    %cst_272 = arith.constant dense<0.000000e+00> : vector<64xf32>
    %438 = vector.multi_reduction <add>, %437, %cst_272 [0] : vector<5x64xf32> to vector<64xf32>
    %439 = vector.shape_cast %438 : vector<64xf32> to vector<1x64xf32>
    %440 = arith.addf %413, %439 : vector<1x64xf32>
    %cst_273 = arith.constant 0.000000e+00 : f32
    %441 = vector.broadcast %cst_273 : f32 to vector<5x64xf32>
    %c7_274 = arith.constant 7 : index
    %c0_275 = arith.constant 0 : index
    %442 = vector.load %arg25[%c7_274, %c0_275] : memref<14x64xf32, #tpu.memory_space<vmem>>, vector<5x64xf32>
    %c0_276 = arith.constant 0 : index
    %c0_277 = arith.constant 0 : index
    %c0_278 = arith.constant 0 : index
    %443 = vector.load %arg13[%c0_276, %c0_277, %c0_278] : memref<3x64x64xf32, #tpu.memory_space<vmem>>, vector<1x64x64xf32>
    %444 = vector.shape_cast %443 : vector<1x64x64xf32> to vector<64x64xf32>
    %cst_279 = arith.constant dense<0.000000e+00> : vector<5x64xf32>
    %445 = tpu.matmul %442, %444, %cst_279 {dimension_numbers = #tpu.dot_dimension_numbers<[1], [0], [0], [1], [0, 0, 1, 1], [], []>} : vector<5x64xf32>, vector<64x64xf32>, vector<5x64xf32> -> vector<5x64xf32>
    %446 = arith.addf %441, %445 : vector<5x64xf32>
    %c8 = arith.constant 8 : index
    %c0_280 = arith.constant 0 : index
    %447 = vector.load %arg25[%c8, %c0_280] : memref<14x64xf32, #tpu.memory_space<vmem>>, vector<5x64xf32>
    %c1_281 = arith.constant 1 : index
    %c0_282 = arith.constant 0 : index
    %c0_283 = arith.constant 0 : index
    %448 = vector.load %arg13[%c1_281, %c0_282, %c0_283] : memref<3x64x64xf32, #tpu.memory_space<vmem>>, vector<1x64x64xf32>
    %449 = vector.shape_cast %448 : vector<1x64x64xf32> to vector<64x64xf32>
    %cst_284 = arith.constant dense<0.000000e+00> : vector<5x64xf32>
    %450 = tpu.matmul %447, %449, %cst_284 {dimension_numbers = #tpu.dot_dimension_numbers<[1], [0], [0], [1], [0, 0, 1, 1], [], []>} : vector<5x64xf32>, vector<64x64xf32>, vector<5x64xf32> -> vector<5x64xf32>
    %451 = arith.addf %446, %450 : vector<5x64xf32>
    %c9 = arith.constant 9 : index
    %c0_285 = arith.constant 0 : index
    %452 = vector.load %arg25[%c9, %c0_285] : memref<14x64xf32, #tpu.memory_space<vmem>>, vector<5x64xf32>
    %c2_286 = arith.constant 2 : index
    %c0_287 = arith.constant 0 : index
    %c0_288 = arith.constant 0 : index
    %453 = vector.load %arg13[%c2_286, %c0_287, %c0_288] : memref<3x64x64xf32, #tpu.memory_space<vmem>>, vector<1x64x64xf32>
    %454 = vector.shape_cast %453 : vector<1x64x64xf32> to vector<64x64xf32>
    %cst_289 = arith.constant dense<0.000000e+00> : vector<5x64xf32>
    %455 = tpu.matmul %452, %454, %cst_289 {dimension_numbers = #tpu.dot_dimension_numbers<[1], [0], [0], [1], [0, 0, 1, 1], [], []>} : vector<5x64xf32>, vector<64x64xf32>, vector<5x64xf32> -> vector<5x64xf32>
    %456 = arith.addf %451, %455 : vector<5x64xf32>
    %c0_290 = arith.constant 0 : index
    %c0_291 = arith.constant 0 : index
    %457 = vector.load %arg14[%c0_290, %c0_291] : memref<1x64xf32, #tpu.memory_space<vmem>>, vector<1x64xf32>
    %458 = vector.broadcast %457 : vector<1x64xf32> to vector<5x64xf32>
    %459 = arith.addf %456, %458 : vector<5x64xf32>
    %c5 = arith.constant 5 : index
    %c0_292 = arith.constant 0 : index
    %460 = vector.load %arg26[%c5, %c0_292] : memref<10x64xf32, #tpu.memory_space<vmem>>, vector<5x64xf32>
    tpu.vector_store %arg26[%c5, %c0_292], %459 {strides = array<i32>} : memref<10x64xf32, #tpu.memory_space<vmem>>, vector<5x64xf32>,
    %cst_293 = arith.constant dense<0.000000e+00> : vector<64xf32>
    %461 = vector.multi_reduction <add>, %459, %cst_293 [0] : vector<5x64xf32> to vector<64xf32>
    %462 = vector.shape_cast %461 : vector<64xf32> to vector<1x64xf32>
    %463 = arith.addf %436, %462 : vector<1x64xf32>
    %464 = arith.mulf %459, %459 : vector<5x64xf32>
    %cst_294 = arith.constant dense<0.000000e+00> : vector<64xf32>
    %465 = vector.multi_reduction <add>, %464, %cst_294 [0] : vector<5x64xf32> to vector<64xf32>
    %466 = vector.shape_cast %465 : vector<64xf32> to vector<1x64xf32>
    %467 = arith.addf %440, %466 : vector<1x64xf32>
    %cst_295 = arith.constant 1.000000e-01 : f32
    %468 = vector.broadcast %cst_295 : f32 to vector<1x64xf32>
    %469 = arith.mulf %463, %468 : vector<1x64xf32>
    %cst_296 = arith.constant 1.000000e-01 : f32
    %470 = vector.broadcast %cst_296 : f32 to vector<1x64xf32>
    %471 = arith.mulf %467, %470 : vector<1x64xf32>
    %472 = arith.mulf %469, %469 : vector<1x64xf32>
    %473 = arith.subf %471, %472 : vector<1x64xf32>
    %c0_297 = arith.constant 0 : index
    %c0_298 = arith.constant 0 : index
    %474 = vector.load %arg15[%c0_297, %c0_298] : memref<1x64xf32, #tpu.memory_space<vmem>>, vector<1x64xf32>
    %cst_299 = arith.constant 9.99999974E-6 : f32
    %475 = vector.broadcast %cst_299 : f32 to vector<1x64xf32>
    %476 = arith.addf %473, %475 : vector<1x64xf32>
    %477 = math.rsqrt %476 : vector<1x64xf32>
    %478 = arith.mulf %474, %477 : vector<1x64xf32>
    %c0_300 = arith.constant 0 : index
    %c0_301 = arith.constant 0 : index
    %479 = vector.load %arg16[%c0_300, %c0_301] : memref<1x64xf32, #tpu.memory_space<vmem>>, vector<1x64xf32>
    %480 = arith.mulf %469, %478 : vector<1x64xf32>
    %481 = arith.subf %479, %480 : vector<1x64xf32>
    %c0_302 = arith.constant 0 : index
    %c0_303 = arith.constant 0 : index
    %482 = tpu.strided_load %arg26[%c0_302, %c0_303] {strides = array<i32: 4, 1>} : memref<10x64xf32, #tpu.memory_space<vmem>>, vector<1x64xf32>
    %483 = arith.mulf %482, %478 : vector<1x64xf32>
    %484 = arith.addf %483, %481 : vector<1x64xf32>
    %cst_304 = arith.constant 0.000000e+00 : f32
    %485 = vector.broadcast %cst_304 : f32 to vector<1x64xf32>
    %486 = arith.maximumf %484, %485 : vector<1x64xf32>
    %c1_305 = arith.constant 1 : index
    %c0_306 = arith.constant 0 : index
    %487 = tpu.strided_load %arg26[%c1_305, %c0_306] {strides = array<i32: 4, 1>} : memref<10x64xf32, #tpu.memory_space<vmem>>, vector<1x64xf32>
    %488 = arith.mulf %487, %478 : vector<1x64xf32>
    %489 = arith.addf %488, %481 : vector<1x64xf32>
    %cst_307 = arith.constant 0.000000e+00 : f32
    %490 = vector.broadcast %cst_307 : f32 to vector<1x64xf32>
    %491 = arith.maximumf %489, %490 : vector<1x64xf32>
    %492 = arith.maximumf %486, %491 : vector<1x64xf32>
    %c2_308 = arith.constant 2 : index
    %c0_309 = arith.constant 0 : index
    %493 = tpu.strided_load %arg26[%c2_308, %c0_309] {strides = array<i32: 4, 1>} : memref<10x64xf32, #tpu.memory_space<vmem>>, vector<1x64xf32>
    %494 = arith.mulf %493, %478 : vector<1x64xf32>
    %495 = arith.addf %494, %481 : vector<1x64xf32>
    %cst_310 = arith.constant 0.000000e+00 : f32
    %496 = vector.broadcast %cst_310 : f32 to vector<1x64xf32>
    %497 = arith.maximumf %495, %496 : vector<1x64xf32>
    %498 = arith.maximumf %492, %497 : vector<1x64xf32>
    %c3_311 = arith.constant 3 : index
    %c0_312 = arith.constant 0 : index
    %499 = tpu.strided_load %arg26[%c3_311, %c0_312] {strides = array<i32: 4, 1>} : memref<10x64xf32, #tpu.memory_space<vmem>>, vector<1x64xf32>
    %500 = arith.mulf %499, %478 : vector<1x64xf32>
    %501 = arith.addf %500, %481 : vector<1x64xf32>
    %cst_313 = arith.constant 0.000000e+00 : f32
    %502 = vector.broadcast %cst_313 : f32 to vector<1x64xf32>
    %503 = arith.maximumf %501, %502 : vector<1x64xf32>
    %504 = arith.maximumf %498, %503 : vector<1x64xf32>
    %c0_314 = arith.constant 0 : index
    %c0_315 = arith.constant 0 : index
    %505 = vector.load %arg27[%c0_314, %c0_315] : memref<2x64xf32, #tpu.memory_space<vmem>>, vector<1x64xf32>
    tpu.vector_store %arg27[%c0_314, %c0_315], %504 {strides = array<i32>} : memref<2x64xf32, #tpu.memory_space<vmem>>, vector<1x64xf32>,
    %c5_316 = arith.constant 5 : index
    %c0_317 = arith.constant 0 : index
    %506 = tpu.strided_load %arg26[%c5_316, %c0_317] {strides = array<i32: 4, 1>} : memref<10x64xf32, #tpu.memory_space<vmem>>, vector<1x64xf32>
    %507 = arith.mulf %506, %478 : vector<1x64xf32>
    %508 = arith.addf %507, %481 : vector<1x64xf32>
    %cst_318 = arith.constant 0.000000e+00 : f32
    %509 = vector.broadcast %cst_318 : f32 to vector<1x64xf32>
    %510 = arith.maximumf %508, %509 : vector<1x64xf32>
    %c6 = arith.constant 6 : index
    %c0_319 = arith.constant 0 : index
    %511 = tpu.strided_load %arg26[%c6, %c0_319] {strides = array<i32: 4, 1>} : memref<10x64xf32, #tpu.memory_space<vmem>>, vector<1x64xf32>
    %512 = arith.mulf %511, %478 : vector<1x64xf32>
    %513 = arith.addf %512, %481 : vector<1x64xf32>
    %cst_320 = arith.constant 0.000000e+00 : f32
    %514 = vector.broadcast %cst_320 : f32 to vector<1x64xf32>
    %515 = arith.maximumf %513, %514 : vector<1x64xf32>
    %516 = arith.maximumf %510, %515 : vector<1x64xf32>
    %c7_321 = arith.constant 7 : index
    %c0_322 = arith.constant 0 : index
    %517 = tpu.strided_load %arg26[%c7_321, %c0_322] {strides = array<i32: 4, 1>} : memref<10x64xf32, #tpu.memory_space<vmem>>, vector<1x64xf32>
    %518 = arith.mulf %517, %478 : vector<1x64xf32>
    %519 = arith.addf %518, %481 : vector<1x64xf32>
    %cst_323 = arith.constant 0.000000e+00 : f32
    %520 = vector.broadcast %cst_323 : f32 to vector<1x64xf32>
    %521 = arith.maximumf %519, %520 : vector<1x64xf32>
    %522 = arith.maximumf %516, %521 : vector<1x64xf32>
    %c8_324 = arith.constant 8 : index
    %c0_325 = arith.constant 0 : index
    %523 = tpu.strided_load %arg26[%c8_324, %c0_325] {strides = array<i32: 4, 1>} : memref<10x64xf32, #tpu.memory_space<vmem>>, vector<1x64xf32>
    %524 = arith.mulf %523, %478 : vector<1x64xf32>
    %525 = arith.addf %524, %481 : vector<1x64xf32>
    %cst_326 = arith.constant 0.000000e+00 : f32
    %526 = vector.broadcast %cst_326 : f32 to vector<1x64xf32>
    %527 = arith.maximumf %525, %526 : vector<1x64xf32>
    %528 = arith.maximumf %522, %527 : vector<1x64xf32>
    %c1_327 = arith.constant 1 : index
    %c0_328 = arith.constant 0 : index
    %529 = vector.load %arg27[%c1_327, %c0_328] : memref<2x64xf32, #tpu.memory_space<vmem>>, vector<1x64xf32>
    tpu.vector_store %arg27[%c1_327, %c0_328], %528 {strides = array<i32>} : memref<2x64xf32, #tpu.memory_space<vmem>>, vector<1x64xf32>,
    %c0_329 = arith.constant 0 : index
    %c0_330 = arith.constant 0 : index
    %530 = vector.load %arg27[%c0_329, %c0_330] : memref<2x64xf32, #tpu.memory_space<vmem>>, vector<1x64xf32>
    %cst_331 = arith.constant dense<0.000000e+00> : vector<64xf32>
    %531 = vector.multi_reduction <add>, %530, %cst_331 [0] : vector<1x64xf32> to vector<64xf32>
    %532 = vector.shape_cast %531 : vector<64xf32> to vector<1x64xf32>
    %cst_332 = arith.constant 1.000000e+00 : f32
    %533 = vector.broadcast %cst_332 : f32 to vector<1x64xf32>
    %534 = arith.divf %532, %533 : vector<1x64xf32>
    %c0_333 = arith.constant 0 : index
    %c0_334 = arith.constant 0 : index
    %535 = vector.load %arg28[%c0_333, %c0_334] : memref<2x64xf32, #tpu.memory_space<vmem>>, vector<1x64xf32>
    tpu.vector_store %arg28[%c0_333, %c0_334], %534 {strides = array<i32>} : memref<2x64xf32, #tpu.memory_space<vmem>>, vector<1x64xf32>,
    %c1_335 = arith.constant 1 : index
    %c0_336 = arith.constant 0 : index
    %536 = vector.load %arg27[%c1_335, %c0_336] : memref<2x64xf32, #tpu.memory_space<vmem>>, vector<1x64xf32>
    %cst_337 = arith.constant dense<0.000000e+00> : vector<64xf32>
    %537 = vector.multi_reduction <add>, %536, %cst_337 [0] : vector<1x64xf32> to vector<64xf32>
    %538 = vector.shape_cast %537 : vector<64xf32> to vector<1x64xf32>
    %cst_338 = arith.constant 1.000000e+00 : f32
    %539 = vector.broadcast %cst_338 : f32 to vector<1x64xf32>
    %540 = arith.divf %538, %539 : vector<1x64xf32>
    %c1_339 = arith.constant 1 : index
    %c0_340 = arith.constant 0 : index
    %541 = vector.load %arg28[%c1_339, %c0_340] : memref<2x64xf32, #tpu.memory_space<vmem>>, vector<1x64xf32>
    tpu.vector_store %arg28[%c1_339, %c0_340], %540 {strides = array<i32>} : memref<2x64xf32, #tpu.memory_space<vmem>>, vector<1x64xf32>,
    %c0_341 = arith.constant 0 : index
    %c0_342 = arith.constant 0 : index
    %542 = vector.load %arg28[%c0_341, %c0_342] : memref<2x64xf32, #tpu.memory_space<vmem>>, vector<2x64xf32>
    %c0_343 = arith.constant 0 : index
    %c0_344 = arith.constant 0 : index
    %543 = vector.load %arg17[%c0_343, %c0_344] : memref<64x35xf32, #tpu.memory_space<vmem>>, vector<64x35xf32>
    %cst_345 = arith.constant dense<0.000000e+00> : vector<2x35xf32>
    %544 = tpu.matmul %542, %543, %cst_345 {dimension_numbers = #tpu.dot_dimension_numbers<[1], [0], [0], [1], [0, 0, 1, 1], [], []>} : vector<2x64xf32>, vector<64x35xf32>, vector<2x35xf32> -> vector<2x35xf32>
    %c0_346 = arith.constant 0 : index
    %c0_347 = arith.constant 0 : index
    %545 = vector.load %arg18[%c0_346, %c0_347] : memref<1x35xf32, #tpu.memory_space<vmem>>, vector<1x35xf32>
    %546 = vector.broadcast %545 : vector<1x35xf32> to vector<2x35xf32>
    %547 = arith.addf %544, %546 : vector<2x35xf32>
    %cst_348 = arith.constant dense<0xFF800000> : vector<2xf32>
    %548 = vector.multi_reduction <maximumf>, %547, %cst_348 [1] : vector<2x35xf32> to vector<2xf32>
    %549 = vector.shape_cast %548 : vector<2xf32> to vector<2x1xf32>
    %550 = vector.broadcast %549 : vector<2x1xf32> to vector<2x35xf32>
    %551 = arith.subf %547, %550 : vector<2x35xf32>
    %552 = math.exp %551 : vector<2x35xf32>
    %cst_349 = arith.constant dense<0.000000e+00> : vector<2xf32>
    %553 = vector.multi_reduction <add>, %552, %cst_349 [1] : vector<2x35xf32> to vector<2xf32>
    %554 = vector.shape_cast %553 : vector<2xf32> to vector<2x1xf32>
    %555 = math.log %554 : vector<2x1xf32>
    %556 = vector.broadcast %555 : vector<2x1xf32> to vector<2x35xf32>
    %557 = arith.subf %551, %556 : vector<2x35xf32>
    %c0_350 = arith.constant 0 : index
    %c0_351 = arith.constant 0 : index
    %558 = vector.load %arg19[%c0_350, %c0_351] : memref<2x35xf32, #tpu.memory_space<vmem>>, vector<2x35xf32>
    tpu.vector_store %arg19[%c0_350, %c0_351], %557 {strides = array<i32>} : memref<2x35xf32, #tpu.memory_space<vmem>>, vector<2x35xf32>,
    return
  }
}

</mosaic_0001>

<llo_original>
// kernel: m5_forward.1
$region0: #{m5_forward.1}
  #allocation0 [shape = 'u32[]', space=smem, size = 0x4, offset = 0x4, fixed_abs, tag = 'smem constant byte address 0x4 - core index']
  #allocation1 [shape = 'u32[144,128]{1,0:T(1,128)}', space=vmem, size = 0x12000, scoped, tag = 'internal scratch']
  #allocation2 [shape = 'f32[992,32]{1,0:T(8,128)}', space=vmem, size = 0x7c000, scoped, tag = 'scratch operand']
  #allocation3 [shape = 'f32[248,32]{1,0:T(8,128)}', space=vmem, size = 0x1f000, scoped, tag = 'scratch operand']
  #allocation4 [shape = 'f32[244,32]{1,0:T(8,128)}', space=vmem, size = 0x1f000, scoped, tag = 'scratch operand']
  #allocation5 [shape = 'f32[60,32]{1,0:T(8,128)}', space=vmem, size = 0x8000, scoped, tag = 'scratch operand']
  #allocation6 [shape = 'f32[56,64]{1,0:T(8,128)}', space=vmem, size = 0x7000, scoped, tag = 'scratch operand']
  #allocation7 [shape = 'f32[14,64]{1,0:T(8,128)}', space=vmem, size = 0x2000, scoped, tag = 'scratch operand']
  #allocation8 [shape = 'f32[10,64]{1,0:T(8,128)}', space=vmem, size = 0x2000, scoped, tag = 'scratch operand']
  #allocation9 [shape = 'f32[2,64]{1,0:T(2,128)}', space=vmem, size = 0x400, scoped, tag = 'scratch operand']
  #allocation10 [shape = 'f32[2,64]{1,0:T(2,128)}', space=vmem, size = 0x400, scoped, tag = 'scratch operand']
  %s0 = inlined_call_operand.vmem [shape: f32[1000,16], index: 0, kind: input, shape index: {}]
  %s1 = inlined_call_operand.vmem [shape: f32[80,32], index: 1, kind: input, shape index: {}]
  %s2 = inlined_call_operand.vmem [shape: f32[1,32], index: 2, kind: input, shape index: {}]
  %s3 = inlined_call_operand.vmem [shape: f32[1,32], index: 3, kind: input, shape index: {}]
  %s4 = inlined_call_operand.vmem [shape: f32[1,32], index: 4, kind: input, shape index: {}]
  %s5 = inlined_call_operand.vmem [shape: f32[3,32,32], index: 5, kind: input, shape index: {}]
  %s6 = inlined_call_operand.vmem [shape: f32[1,32], index: 6, kind: input, shape index: {}]
  %s7 = inlined_call_operand.vmem [shape: f32[1,32], index: 7, kind: input, shape index: {}]
  %s8 = inlined_call_operand.vmem [shape: f32[1,32], index: 8, kind: input, shape index: {}]
  %s9 = inlined_call_operand.vmem [shape: f32[3,32,64], index: 9, kind: input, shape index: {}]
  %s10 = inlined_call_operand.vmem [shape: f32[1,64], index: 10, kind: input, shape index: {}]
  %s11 = inlined_call_operand.vmem [shape: f32[1,64], index: 11, kind: input, shape index: {}]
  %s12 = inlined_call_operand.vmem [shape: f32[1,64], index: 12, kind: input, shape index: {}]
  %s13 = inlined_call_operand.vmem [shape: f32[3,64,64], index: 13, kind: input, shape index: {}]
  %s14 = inlined_call_operand.vmem [shape: f32[1,64], index: 14, kind: input, shape index: {}]
  %s15 = inlined_call_operand.vmem [shape: f32[1,64], index: 15, kind: input, shape index: {}]
  %s16 = inlined_call_operand.vmem [shape: f32[1,64], index: 16, kind: input, shape index: {}]
  %s17 = inlined_call_operand.vmem [shape: f32[64,35], index: 17, kind: input, shape index: {}]
  %s18 = inlined_call_operand.vmem [shape: f32[1,35], index: 18, kind: input, shape index: {}]
  %s19 = inlined_call_operand.hbm [shape: f32[2,35], index: 19, kind: output, shape index: {}]
  %s20 = sld [smem:[#allocation0]]
  $region86: #{m5_forward.1} parent=0
    _
  %s22 = ssub.s32 1, %s20
  %s23 = scalar_select 0, %s22, %s20
  $region1: #{m5_forward.1} parent=0
    #allocation11 [shape = 'u8[1024]{0}', space=vmem, size = 0x400, scoped, tag = 'output window, operand 0, single buffered']
    #allocation12 [shape = 's32[1]{0}', space=sflag, size = 0x4, scoped, tag = 'scoped memory for m5_forward.1']
    %24 = vsyncpa [#allocation12], 0
    // Predicated region
    $region2: #{m5_forward.1} parent=1 // pred_check
      _
    $region3: #{m5_forward.1} parent=1 // pred_check_branch
      %26 = sbr.rel (0) target = $region5
    $region4: #{m5_forward.1} parent=1 // pred_region
      _
    $region5: #{m5_forward.1} parent=1 // pred_fallthru
      _
    // Predicated region
    $region6: #{m5_forward.1} parent=1 // pred_check
      _
    $region7: #{m5_forward.1} parent=1 // pred_check_branch
      %28 = sbr.rel (0) target = $region9
    $region8: #{m5_forward.1} parent=1 // pred_region
      _
    $region9: #{m5_forward.1} parent=1 // pred_fallthru
      _
    // Predicated region
    $region10: #{m5_forward.1} parent=1 // pred_check
      _
    $region11: #{m5_forward.1} parent=1 // pred_check_branch
      %30 = sbr.rel (0) target = $region13
    $region12: #{m5_forward.1} parent=1 // pred_region
      _
    $region13: #{m5_forward.1} parent=1 // pred_fallthru
      _
    // Predicated region
    $region14: #{m5_forward.1} parent=1 // pred_check
      _
    $region15: #{m5_forward.1} parent=1 // pred_check_branch
      %32 = sbr.rel (0) target = $region17
    $region16: #{m5_forward.1} parent=1 // pred_region
      _
    $region17: #{m5_forward.1} parent=1 // pred_fallthru
      _
    // Predicated region
    $region18: #{m5_forward.1} parent=1 // pred_check
      _
    $region19: #{m5_forward.1} parent=1 // pred_check_branch
      %34 = sbr.rel (0) target = $region21
    $region20: #{m5_forward.1} parent=1 // pred_region
      _
    $region21: #{m5_forward.1} parent=1 // pred_fallthru
      _
    // Predicated region
    $region22: #{m5_forward.1} parent=1 // pred_check
      _
    $region23: #{m5_forward.1} parent=1 // pred_check_branch
      %36 = sbr.rel (0) target = $region25
    $region24: #{m5_forward.1} parent=1 // pred_region
      _
    $region25: #{m5_forward.1} parent=1 // pred_fallthru
      _
    // Predicated region
    $region26: #{m5_forward.1} parent=1 // pred_check
      _
    $region27: #{m5_forward.1} parent=1 // pred_check_branch
      %38 = sbr.rel (0) target = $region29
    $region28: #{m5_forward.1} parent=1 // pred_region
      _
    $region29: #{m5_forward.1} parent=1 // pred_fallthru
      _
    // Predicated region
    $region30: #{m5_forward.1} parent=1 // pred_check
      _
    $region31: #{m5_forward.1} parent=1 // pred_check_branch
      %40 = sbr.rel (0) target = $region33
    $region32: #{m5_forward.1} parent=1 // pred_region
      _
    $region33: #{m5_forward.1} parent=1 // pred_fallthru
      _
    // Predicated region
    $region34: #{m5_forward.1} parent=1 // pred_check
      _
    $region35: #{m5_forward.1} parent=1 // pred_check_branch
      %42 = sbr.rel (0) target = $region37
    $region36: #{m5_forward.1} parent=1 // pred_region
      _
    $region37: #{m5_forward.1} parent=1 // pred_fallthru
      _
    // Predicated region
    $region38: #{m5_forward.1} parent=1 // pred_check
      _
    $region39: #{m5_forward.1} parent=1 // pred_check_branch
      %44 = sbr.rel (0) target = $region41
    $region40: #{m5_forward.1} parent=1 // pred_region
      _
    $region41: #{m5_forward.1} parent=1 // pred_fallthru
      _
    // Predicated region
    $region42: #{m5_forward.1} parent=1 // pred_check
      _
    $region43: #{m5_forward.1} parent=1 // pred_check_branch
      %46 = sbr.rel (0) target = $region45
    $region44: #{m5_forward.1} parent=1 // pred_region
      _
    $region45: #{m5_forward.1} parent=1 // pred_fallthru
      _
    // Predicated region
    $region46: #{m5_forward.1} parent=1 // pred_check
      _
    $region47: #{m5_forward.1} parent=1 // pred_check_branch
      %48 = sbr.rel (0) target = $region49
    $region48: #{m5_forward.1} parent=1 // pred_region
      _
    $region49: #{m5_forward.1} parent=1 // pred_fallthru
      _
    // Predicated region
    $region50: #{m5_forward.1} parent=1 // pred_check
      _
    $region51: #{m5_forward.1} parent=1 // pred_check_branch
      %50 = sbr.rel (0) target = $region53
    $region52: #{m5_forward.1} parent=1 // pred_region
      _
    $region53: #{m5_forward.1} parent=1 // pred_fallthru
      _
    // Predicated region
    $region54: #{m5_forward.1} parent=1 // pred_check
      _
    $region55: #{m5_forward.1} parent=1 // pred_check_branch
      %52 = sbr.rel (0) target = $region57
    $region56: #{m5_forward.1} parent=1 // pred_region
      _
    $region57: #{m5_forward.1} parent=1 // pred_fallthru
      _
    // Predicated region
    $region58: #{m5_forward.1} parent=1 // pred_check
      _
    $region59: #{m5_forward.1} parent=1 // pred_check_branch
      %54 = sbr.rel (0) target = $region61
    $region60: #{m5_forward.1} parent=1 // pred_region
      _
    $region61: #{m5_forward.1} parent=1 // pred_fallthru
      _
    // Predicated region
    $region62: #{m5_forward.1} parent=1 // pred_check
      _
    $region63: #{m5_forward.1} parent=1 // pred_check_branch
      %56 = sbr.rel (0) target = $region65
    $region64: #{m5_forward.1} parent=1 // pred_region
      _
    $region65: #{m5_forward.1} parent=1 // pred_fallthru
      _
    // Predicated region
    $region66: #{m5_forward.1} parent=1 // pred_check
      _
    $region67: #{m5_forward.1} parent=1 // pred_check_branch
      %58 = sbr.rel (0) target = $region69
    $region68: #{m5_forward.1} parent=1 // pred_region
      _
    $region69: #{m5_forward.1} parent=1 // pred_fallthru
      _
    // Predicated region
    $region70: #{m5_forward.1} parent=1 // pred_check
      _
    $region71: #{m5_forward.1} parent=1 // pred_check_branch
      %60 = sbr.rel (0) target = $region73
    $region72: #{m5_forward.1} parent=1 // pred_region
      _
    $region73: #{m5_forward.1} parent=1 // pred_fallthru
      _
    // Predicated region
    $region74: #{m5_forward.1} parent=1 // pred_check
      _
    $region75: #{m5_forward.1} parent=1 // pred_check_branch
      %62 = sbr.rel (0) target = $region77
    $region76: #{m5_forward.1} parent=1 // pred_region
      _
    $region77: #{m5_forward.1} parent=1 // pred_fallthru
      _
    %v63 = vld [vmem:[%s0] sm:$0xff]
    %v64 = vld [vmem:[%s0 + $0x8] sm:$0xff]
    %v65 = vld [vmem:[%s0 + $0x10] sm:$0xff]
    %v66 = vld [vmem:[%s0 + $0x18] sm:$0xff]
    %v67 = vld [vmem:[%s0 + $0x20] sm:$0xff]
    %v68 = vld [vmem:[%s0 + $0x28] sm:$0xff]
    %v69 = vld [vmem:[%s0 + $0x30] sm:$0xff]
    %v70 = vld [vmem:[%s0 + $0x38] sm:$0xff]
    %v71 = vld [vmem:[%s0 + $0x40] sm:$0xff]
    %v72 = vld [vmem:[%s0 + $0x48] sm:$0xff]
    %v73 = vld [vmem:[%s0 + $0x50] sm:$0xff]
    %v74 = vld [vmem:[%s0 + $0x58] sm:$0xff]
    %v75 = vld [vmem:[%s0 + $0x60] sm:$0xff]
    %v76 = vld [vmem:[%s0 + $0x68] sm:$0xff]
    %v77 = vld [vmem:[%s0 + $0x70] sm:$0xff]
    %v78 = vld [vmem:[%s0 + $0x78] sm:$0xff]
    %v79 = vld [vmem:[%s0 + $0x80] sm:$0xff]
    %v80 = vld [vmem:[%s0 + $0x88] sm:$0xff]
    %v81 = vld [vmem:[%s0 + $0x90] sm:$0xff]
    %v82 = vld [vmem:[%s0 + $0x98] sm:$0xff]
    %v83 = vld [vmem:[%s0 + $0xa0] sm:$0xff]
    %v84 = vld [vmem:[%s0 + $0xa8] sm:$0xff]
    %v85 = vld [vmem:[%s0 + $0xb0] sm:$0xff]
    %v86 = vld [vmem:[%s0 + $0xb8] sm:$0xff]
    %v87 = vld [vmem:[%s0 + $0xc0] sm:$0xff]
    %v88 = vld [vmem:[%s0 + $0xc8] sm:$0xff]
    %v89 = vld [vmem:[%s0 + $0xd0] sm:$0xff]
    %v90 = vld [vmem:[%s0 + $0xd8] sm:$0xff]
    %v91 = vld [vmem:[%s0 + $0xe0] sm:$0xff]
    %v92 = vld [vmem:[%s0 + $0xe8] sm:$0xff]
    %v93 = vld [vmem:[%s0 + $0xf0] sm:$0xff]
    %v94 = vld [vmem:[%s0 + $0xf8] sm:$0xff]
    %v95 = vld [vmem:[%s0 + $0x100] sm:$0xff]
    %v96 = vld [vmem:[%s0 + $0x108] sm:$0xff]
    %v97 = vld [vmem:[%s0 + $0x110] sm:$0xff]
    %v98 = vld [vmem:[%s0 + $0x118] sm:$0xff]
    %v99 = vld [vmem:[%s0 + $0x120] sm:$0xff]
    %v100 = vld [vmem:[%s0 + $0x128] sm:$0xff]
    %v101 = vld [vmem:[%s0 + $0x130] sm:$0xff]
    %v102 = vld [vmem:[%s0 + $0x138] sm:$0xff]
    %v103 = vld [vmem:[%s0 + $0x140] sm:$0xff]
    %v104 = vld [vmem:[%s0 + $0x148] sm:$0xff]
    %v105 = vld [vmem:[%s0 + $0x150] sm:$0xff]
    %v106 = vld [vmem:[%s0 + $0x158] sm:$0xff]
    %v107 = vld [vmem:[%s0 + $0x160] sm:$0xff]
    %v108 = vld [vmem:[%s0 + $0x168] sm:$0xff]
    %v109 = vld [vmem:[%s0 + $0x170] sm:$0xff]
    %v110 = vld [vmem:[%s0 + $0x178] sm:$0xff]
    %v111 = vld [vmem:[%s0 + $0x180] sm:$0xff]
    %v112 = vld [vmem:[%s0 + $0x188] sm:$0xff]
    %v113 = vld [vmem:[%s0 + $0x190] sm:$0xff]
    %v114 = vld [vmem:[%s0 + $0x198] sm:$0xff]
    %v115 = vld [vmem:[%s0 + $0x1a0] sm:$0xff]
    %v116 = vld [vmem:[%s0 + $0x1a8] sm:$0xff]
    %v117 = vld [vmem:[%s0 + $0x1b0] sm:$0xff]
    %v118 = vld [vmem:[%s0 + $0x1b8] sm:$0xff]
    %v119 = vld [vmem:[%s0 + $0x1c0] sm:$0xff]
    %v120 = vld [vmem:[%s0 + $0x1c8] sm:$0xff]
    %v121 = vld [vmem:[%s0 + $0x1d0] sm:$0xff]
    %v122 = vld [vmem:[%s0 + $0x1d8] sm:$0xff]
    %v123 = vld [vmem:[%s0 + $0x1e0] sm:$0xff]
    %v124 = vld [vmem:[%s0 + $0x1e8] sm:$0xff]
    %v125 = vld [vmem:[%s1] sm:$0xff]
    %v126 = vld [vmem:[%s1 + $0x8] sm:$0xff]
    %v127 = vld [vmem:[%s0 + $0x1] sm:$0xff]
    %v128 = vld [vmem:[%s0 + $0x9] sm:$0xff]
    %v129 = vld [vmem:[%s0 + $0x11] sm:$0xff]
    %v130 = vld [vmem:[%s0 + $0x19] sm:$0xff]
    %v131 = vld [vmem:[%s0 + $0x21] sm:$0xff]
    %v132 = vld [vmem:[%s0 + $0x29] sm:$0xff]
    %v133 = vld [vmem:[%s0 + $0x31] sm:$0xff]
    %v134 = vld [vmem:[%s0 + $0x39] sm:$0xff]
    %v135 = vld [vmem:[%s0 + $0x41] sm:$0xff]
    %v136 = vld [vmem:[%s0 + $0x49] sm:$0xff]
    %v137 = vld [vmem:[%s0 + $0x51] sm:$0xff]
    %v138 = vld [vmem:[%s0 + $0x59] sm:$0xff]
    %v139 = vld [vmem:[%s0 + $0x61] sm:$0xff]
    %v140 = vld [vmem:[%s0 + $0x69] sm:$0xff]
    %v141 = vld [vmem:[%s0 + $0x71] sm:$0xff]
    %v142 = vld [vmem:[%s0 + $0x79] sm:$0xff]
    %v143 = vld [vmem:[%s0 + $0x81] sm:$0xff]
    %v144 = vld [vmem:[%s0 + $0x89] sm:$0xff]
    %v145 = vld [vmem:[%s0 + $0x91] sm:$0xff]
    %v146 = vld [vmem:[%s0 + $0x99] sm:$0xff]
    %v147 = vld [vmem:[%s0 + $0xa1] sm:$0xff]
    %v148 = vld [vmem:[%s0 + $0xa9] sm:$0xff]
    %v149 = vld [vmem:[%s0 + $0xb1] sm:$0xff]
    %v150 = vld [vmem:[%s0 + $0xb9] sm:$0xff]
    %v151 = vld [vmem:[%s0 + $0xc1] sm:$0xff]
    %v152 = vld [vmem:[%s0 + $0xc9] sm:$0xff]
    %v153 = vld [vmem:[%s0 + $0xd1] sm:$0xff]
    %v154 = vld [vmem:[%s0 + $0xd9] sm:$0xff]
    %v155 = vld [vmem:[%s0 + $0xe1] sm:$0xff]
    %v156 = vld [vmem:[%s0 + $0xe9] sm:$0xff]
    %v157 = vld [vmem:[%s0 + $0xf1] sm:$0xff]
    %v158 = vld [vmem:[%s0 + $0xf9] sm:$0xff]
    %v159 = vld [vmem:[%s0 + $0x101] sm:$0xff]
    %v160 = vld [vmem:[%s0 + $0x109] sm:$0xff]
    %v161 = vld [vmem:[%s0 + $0x111] sm:$0xff]
    %v162 = vld [vmem:[%s0 + $0x119] sm:$0xff]
    %v163 = vld [vmem:[%s0 + $0x121] sm:$0xff]
    %v164 = vld [vmem:[%s0 + $0x129] sm:$0xff]
    %v165 = vld [vmem:[%s0 + $0x131] sm:$0xff]
    %v166 = vld [vmem:[%s0 + $0x139] sm:$0xff]
    %v167 = vld [vmem:[%s0 + $0x141] sm:$0xff]
    %v168 = vld [vmem:[%s0 + $0x149] sm:$0xff]
    %v169 = vld [vmem:[%s0 + $0x151] sm:$0xff]
    %v170 = vld [vmem:[%s0 + $0x159] sm:$0xff]
    %v171 = vld [vmem:[%s0 + $0x161] sm:$0xff]
    %v172 = vld [vmem:[%s0 + $0x169] sm:$0xff]
    %v173 = vld [vmem:[%s0 + $0x171] sm:$0xff]
    %v174 = vld [vmem:[%s0 + $0x179] sm:$0xff]
    %v175 = vld [vmem:[%s0 + $0x181] sm:$0xff]
    %v176 = vld [vmem:[%s0 + $0x189] sm:$0xff]
    %v177 = vld [vmem:[%s0 + $0x191] sm:$0xff]
    %v178 = vld [vmem:[%s0 + $0x199] sm:$0xff]
    %v179 = vld [vmem:[%s0 + $0x1a1] sm:$0xff]
    %v180 = vld [vmem:[%s0 + $0x1a9] sm:$0xff]
    %v181 = vld [vmem:[%s0 + $0x1b1] sm:$0xff]
    %v182 = vld [vmem:[%s0 + $0x1b9] sm:$0xff]
    %v183 = vld [vmem:[%s0 + $0x1c1] sm:$0xff]
    %v184 = vld [vmem:[%s0 + $0x1c9] sm:$0xff]
    %v185 = vld [vmem:[%s0 + $0x1d1] sm:$0xff]
    %v186 = vld [vmem:[%s0 + $0x1d9] sm:$0xff]
    %v187 = vld [vmem:[%s0 + $0x1e1] sm:$0xff]
    %v188 = vld [vmem:[%s0 + $0x1e9] sm:$0xff]
    %v189 = vld [vmem:[%s1 + $0x10] sm:$0xff]
    %v190 = vld [vmem:[%s1 + $0x18] sm:$0xff]
    %vm191 = vcmask 130048
    %v193 = vsel %vm191, %v127, 0
    %v196 = vsel %vm191, %v128, 0
    %v199 = vsel %vm191, %v129, 0
    %v202 = vsel %vm191, %v130, 0
    %v205 = vsel %vm191, %v131, 0
    %v208 = vsel %vm191, %v132, 0
    %v211 = vsel %vm191, %v133, 0
    %v214 = vsel %vm191, %v134, 0
    %v217 = vsel %vm191, %v135, 0
    %v220 = vsel %vm191, %v136, 0
    %v223 = vsel %vm191, %v137, 0
    %v226 = vsel %vm191, %v138, 0
    %v229 = vsel %vm191, %v139, 0
    %v232 = vsel %vm191, %v140, 0
    %v235 = vsel %vm191, %v141, 0
    %v238 = vsel %vm191, %v142, 0
    %v241 = vsel %vm191, %v143, 0
    %v244 = vsel %vm191, %v144, 0
    %v247 = vsel %vm191, %v145, 0
    %v250 = vsel %vm191, %v146, 0
    %v253 = vsel %vm191, %v147, 0
    %v256 = vsel %vm191, %v148, 0
    %v259 = vsel %vm191, %v149, 0
    %v262 = vsel %vm191, %v150, 0
    %v265 = vsel %vm191, %v151, 0
    %v268 = vsel %vm191, %v152, 0
    %v271 = vsel %vm191, %v153, 0
    %v274 = vsel %vm191, %v154, 0
    %v277 = vsel %vm191, %v155, 0
    %v280 = vsel %vm191, %v156, 0
    %v283 = vsel %vm191, %v157, 0
    %v286 = vsel %vm191, %v158, 0
    %v289 = vsel %vm191, %v159, 0
    %v292 = vsel %vm191, %v160, 0
    %v295 = vsel %vm191, %v161, 0
    %v298 = vsel %vm191, %v162, 0
    %v301 = vsel %vm191, %v163, 0
    %v304 = vsel %vm191, %v164, 0
    %v307 = vsel %vm191, %v165, 0
    %v310 = vsel %vm191, %v166, 0
    %v313 = vsel %vm191, %v167, 0
    %v316 = vsel %vm191, %v168, 0
    %v319 = vsel %vm191, %v169, 0
    %v322 = vsel %vm191, %v170, 0
    %v325 = vsel %vm191, %v171, 0
    %v328 = vsel %vm191, %v172, 0
    %v331 = vsel %vm191, %v173, 0
    %v334 = vsel %vm191, %v174, 0
    %v337 = vsel %vm191, %v175, 0
    %v340 = vsel %vm191, %v176, 0
    %v343 = vsel %vm191, %v177, 0
    %v346 = vsel %vm191, %v178, 0
    %v349 = vsel %vm191, %v179, 0
    %v352 = vsel %vm191, %v180, 0
    %v355 = vsel %vm191, %v181, 0
    %v358 = vsel %vm191, %v182, 0
    %v361 = vsel %vm191, %v183, 0
    %v364 = vsel %vm191, %v184, 0
    %v367 = vsel %vm191, %v185, 0
    %v370 = vsel %vm191, %v186, 0
    %v373 = vsel %vm191, %v187, 0
    %v376 = vsel %vm191, %v188, 0
    %378 = vmatprep.subr.mxu0 0.0
    %379 = vmatpush1.msra.mxu0 %v189
    %380 = vmatprep.subr.mxu0 0.0
    %381 = vmatpush1.msra.mxu0 %v190
    %382 = vmatprep.subr.mxu0 0.0
    %383 = vmatpush1.msra.mxu0 0.0
    %384 = vmatprep.subr.mxu0 0.0
    %385 = vmatpush1.msra.mxu0 0.0
    %386 = vmatprep.subr.mxu0 0.0
    %387 = vmatpush1.msra.mxu0 0.0
    %388 = vmatprep.subr.mxu0 0.0
    %389 = vmatpush1.msra.mxu0 0.0
    %390 = vmatprep.subr.mxu0 0.0
    %391 = vmatpush1.msra.mxu0 0.0
    %392 = vmatprep.subr.mxu0 0.0
    %393 = vmatpush1.msra.mxu0 0.0
    %394 = vmatprep.subr.mxu0 0.0
    %395 = vmatpush1.msra.mxu0 0.0
    %396 = vmatprep.subr.mxu0 0.0
    %397 = vmatpush1.msra.mxu0 0.0
    %398 = vmatprep.subr.mxu0 0.0
    %399 = vmatpush1.msra.mxu0 0.0
    %400 = vmatprep.subr.mxu0 0.0
    %401 = vmatpush1.msra.mxu0 0.0
    %402 = vmatprep.subr.mxu0 0.0
    %403 = vmatpush1.msra.mxu0 0.0
    %404 = vmatprep.subr.mxu0 0.0
    %405 = vmatpush1.msra.mxu0 0.0
    %406 = vmatprep.subr.mxu0 0.0
    %407 = vmatpush1.msra.mxu0 0.0
    %408 = vmatprep.subr.mxu0 0.0
    %409 = vmatpush1.msra.mxu0 0.0
    %410 = vmatprep.subr.mxu0 0.0
    %411 = vmatpush1.msra.mxu0 0.0
    %412 = vmatprep.subr.mxu0 0.0
    %413 = vmatpush1.msra.mxu0 0.0
    %414 = vmatprep.subr.mxu0 0.0
    %415 = vmatpush1.msra.mxu0 0.0
    %416 = vmatprep.subr.mxu0 0.0
    %417 = vmatpush1.msra.mxu0 0.0
    %418 = vmatprep.subr.mxu0 0.0
    %419 = vmatpush1.msra.mxu0 0.0
    %420 = vmatprep.subr.mxu0 0.0
    %421 = vmatpush1.msra.mxu0 0.0
    %422 = vmatprep.subr.mxu0 0.0
    %423 = vmatpush1.msra.mxu0 0.0
    %424 = vmatprep.subr.mxu0 0.0
    %425 = vmatpush1.msra.mxu0 0.0
    %426 = vmatprep.subr.mxu0 0.0
    %427 = vmatpush1.msra.mxu0 0.0
    %428 = vmatprep.subr.mxu0 0.0
    %429 = vmatpush1.msra.mxu0 0.0
    %430 = vmatprep.subr.mxu0 0.0
    %431 = vmatpush1.msra.mxu0 0.0
    %432 = vmatprep.subr.mxu0 0.0
    %433 = vmatpush1.msra.mxu0 0.0
    %434 = vmatprep.subr.mxu0 0.0
    %435 = vmatpush1.msra.mxu0 0.0
    %436 = vmatprep.subr.mxu0 0.0
    %437 = vmatpush1.msra.mxu0 0.0
    %438 = vmatprep.subr.mxu0 0.0
    %439 = vmatpush1.msra.mxu0 0.0
    %440 = vmatprep.subr.mxu0 0.0
    %441 = vmatpush1.msra.mxu0 0.0
    %442 = vmatprep.mubr.f32.mxu0 0.0
    %443 = vmatmul.mubr.f32.gmra.mrb[0].mxu0 %v193
    %v444 = vpop.f32.mrb[0].mxu0
    %v445 = vadd.f32 0.0, %v444
    %v446 = vpop.f32.mrb[0].mxu0
    %447 = vmatprep.mubr.f32.mxu0 0.0
    %448 = vmatmul.mubr.f32.gmra.mrb[0].mxu0 %v196
    %v449 = vpop.f32.mrb[0].mxu0
    %v450 = vadd.f32 0.0, %v449
    %v451 = vpop.f32.mrb[0].mxu0
    %452 = vmatprep.mubr.f32.mxu0 0.0
    %453 = vmatmul.mubr.f32.gmra.mrb[0].mxu0 %v199
    %v454 = vpop.f32.mrb[0].mxu0
    %v455 = vadd.f32 0.0, %v454
    %v456 = vpop.f32.mrb[0].mxu0
    %457 = vmatprep.mubr.f32.mxu0 0.0
    %458 = vmatmul.mubr.f32.gmra.mrb[0].mxu0 %v202
    %v459 = vpop.f32.mrb[0].mxu0
    %v460 = vadd.f32 0.0, %v459
    %v461 = vpop.f32.mrb[0].mxu0
    %462 = vmatprep.mubr.f32.mxu0 0.0
    %463 = vmatmul.mubr.f32.gmra.mrb[0].mxu0 %v205
    %v464 = vpop.f32.mrb[0].mxu0
    %v465 = vadd.f32 0.0, %v464
    %v466 = vpop.f32.mrb[0].mxu0
    %467 = vmatprep.mubr.f32.mxu0 0.0
    %468 = vmatmul.mubr.f32.gmra.mrb[0].mxu0 %v208
    %v469 = vpop.f32.mrb[0].mxu0
    %v470 = vadd.f32 0.0, %v469
    %v471 = vpop.f32.mrb[0].mxu0
    %472 = vmatprep.mubr.f32.mxu0 0.0
    %473 = vmatmul.mubr.f32.gmra.mrb[0].mxu0 %v211
    %v474 = vpop.f32.mrb[0].mxu0
    %v475 = vadd.f32 0.0, %v474
    %v476 = vpop.f32.mrb[0].mxu0
    %477 = vmatprep.mubr.f32.mxu0 0.0
    %478 = vmatmul.mubr.f32.gmra.mrb[0].mxu0 %v214
    %v479 = vpop.f32.mrb[0].mxu0
    %v480 = vadd.f32 0.0, %v479
    %v481 = vpop.f32.mrb[0].mxu0
    %482 = vmatprep.mubr.f32.mxu0 0.0
    %483 = vmatmul.mubr.f32.gmra.mrb[0].mxu0 %v217
    %v484 = vpop.f32.mrb[0].mxu0
    %v485 = vadd.f32 0.0, %v484
    %v486 = vpop.f32.mrb[0].mxu0
    %487 = vmatprep.mubr.f32.mxu0 0.0
    %488 = vmatmul.mubr.f32.gmra.mrb[0].mxu0 %v220
    %v489 = vpop.f32.mrb[0].mxu0
    %v490 = vadd.f32 0.0, %v489
    %v491 = vpop.f32.mrb[0].mxu0
    %492 = vmatprep.mubr.f32.mxu0 0.0
    %493 = vmatmul.mubr.f32.gmra.mrb[0].mxu0 %v223
    %v494 = vpop.f32.mrb[0].mxu0
    %v495 = vadd.f32 0.0, %v494
    %v496 = vpop.f32.mrb[0].mxu0
    %497 = vmatprep.mubr.f32.mxu0 0.0
    %498 = vmatmul.mubr.f32.gmra.mrb[0].mxu0 %v226
    %v499 = vpop.f32.mrb[0].mxu0
    %v500 = vadd.f32 0.0, %v499
    %v501 = vpop.f32.mrb[0].mxu0
    %502 = vmatprep.mubr.f32.mxu0 0.0
    %503 = vmatmul.mubr.f32.gmra.mrb[0].mxu0 %v229
    %v504 = vpop.f32.mrb[0].mxu0
    %v505 = vadd.f32 0.0, %v504
    %v506 = vpop.f32.mrb[0].mxu0
    %507 = vmatprep.mubr.f32.mxu0 0.0
    %508 = vmatmul.mubr.f32.gmra.mrb[0].mxu0 %v232
    %v509 = vpop.f32.mrb[0].mxu0
    %v510 = vadd.f32 0.0, %v509
    %v511 = vpop.f32.mrb[0].mxu0
    %512 = vmatprep.mubr.f32.mxu0 0.0
    %513 = vmatmul.mubr.f32.gmra.mrb[0].mxu0 %v235
    %v514 = vpop.f32.mrb[0].mxu0
    %v515 = vadd.f32 0.0, %v514
    %v516 = vpop.f32.mrb[0].mxu0
    %517 = vmatprep.mubr.f32.mxu0 0.0
    %518 = vmatmul.mubr.f32.gmra.mrb[0].mxu0 %v238
    %v519 = vpop.f32.mrb[0].mxu0
    %v520 = vadd.f32 0.0, %v519
    %v521 = vpop.f32.mrb[0].mxu0
    %522 = vmatprep.mubr.f32.mxu0 0.0
    %523 = vmatmul.mubr.f32.gmra.mrb[0].mxu0 %v241
    %v524 = vpop.f32.mrb[0].mxu0
    %v525 = vadd.f32 0.0, %v524
    %v526 = vpop.f32.mrb[0].mxu0
    %527 = vmatprep.mubr.f32.mxu0 0.0
    %528 = vmatmul.mubr.f32.gmra.mrb[0].mxu0 %v244
    %v529 = vpop.f32.mrb[0].mxu0
    %v530 = vadd.f32 0.0, %v529
    %v531 = vpop.f32.mrb[0].mxu0
    %532 = vmatprep.mubr.f32.mxu0 0.0
    %533 = vmatmul.mubr.f32.gmra.mrb[0].mxu0 %v247
    %v534 = vpop.f32.mrb[0].mxu0
    %v535 = vadd.f32 0.0, %v534
    %v536 = vpop.f32.mrb[0].mxu0
    %537 = vmatprep.mubr.f32.mxu0 0.0
    %538 = vmatmul.mubr.f32.gmra.mrb[0].mxu0 %v250
    %v539 = vpop.f32.mrb[0].mxu0
    %v540 = vadd.f32 0.0, %v539
    %v541 = vpop.f32.mrb[0].mxu0
    %542 = vmatprep.mubr.f32.mxu0 0.0
    %543 = vmatmul.mubr.f32.gmra.mrb[0].mxu0 %v253
    %v544 = vpop.f32.mrb[0].mxu0
    %v545 = vadd.f32 0.0, %v544
    %v546 = vpop.f32.mrb[0].mxu0
    %547 = vmatprep.mubr.f32.mxu0 0.0
    %548 = vmatmul.mubr.f32.gmra.mrb[0].mxu0 %v256
    %v549 = vpop.f32.mrb[0].mxu0
    %v550 = vadd.f32 0.0, %v549
    %v551 = vpop.f32.mrb[0].mxu0
    %552 = vmatprep.mubr.f32.mxu0 0.0
    %553 = vmatmul.mubr.f32.gmra.mrb[0].mxu0 %v259
    %v554 = vpop.f32.mrb[0].mxu0
    %v555 = vadd.f32 0.0, %v554
    %v556 = vpop.f32.mrb[0].mxu0
    %557 = vmatprep.mubr.f32.mxu0 0.0
    %558 = vmatmul.mubr.f32.gmra.mrb[0].mxu0 %v262
    %v559 = vpop.f32.mrb[0].mxu0
    %v560 = vadd.f32 0.0, %v559
    %v561 = vpop.f32.mrb[0].mxu0
    %562 = vmatprep.mubr.f32.mxu0 0.0
    %563 = vmatmul.mubr.f32.gmra.mrb[0].mxu0 %v265
    %v564 = vpop.f32.mrb[0].mxu0
    %v565 = vadd.f32 0.0, %v564
    %v566 = vpop.f32.mrb[0].mxu0
    %567 = vmatprep.mubr.f32.mxu0 0.0
    %568 = vmatmul.mubr.f32.gmra.mrb[0].mxu0 %v268
    %v569 = vpop.f32.mrb[0].mxu0
    %v570 = vadd.f32 0.0, %v569
    %v571 = vpop.f32.mrb[0].mxu0
    %572 = vmatprep.mubr.f32.mxu0 0.0
    %573 = vmatmul.mubr.f32.gmra.mrb[0].mxu0 %v271
    %v574 = vpop.f32.mrb[0].mxu0
    %v575 = vadd.f32 0.0, %v574
    %v576 = vpop.f32.mrb[0].mxu0
    %577 = vmatprep.mubr.f32.mxu0 0.0
    %578 = vmatmul.mubr.f32.gmra.mrb[0].mxu0 %v274
    %v579 = vpop.f32.mrb[0].mxu0
    %v580 = vadd.f32 0.0, %v579
    %v581 = vpop.f32.mrb[0].mxu0
    %582 = vmatprep.mubr.f32.mxu0 0.0
    %583 = vmatmul.mubr.f32.gmra.mrb[0].mxu0 %v277
    %v584 = vpop.f32.mrb[0].mxu0
    %v585 = vadd.f32 0.0, %v584
    %v586 = vpop.f32.mrb[0].mxu0
    %587 = vmatprep.mubr.f32.mxu0 0.0
    %588 = vmatmul.mubr.f32.gmra.mrb[0].mxu0 %v280
    %v589 = vpop.f32.mrb[0].mxu0
    %v590 = vadd.f32 0.0, %v589
    %v591 = vpop.f32.mrb[0].mxu0
    %592 = vmatprep.mubr.f32.mxu0 0.0
    %593 = vmatmul.mubr.f32.gmra.mrb[0].mxu0 %v283
    %v594 = vpop.f32.mrb[0].mxu0
    %v595 = vadd.f32 0.0, %v594
    %v596 = vpop.f32.mrb[0].mxu0
    %597 = vmatprep.mubr.f32.mxu0 0.0
    %598 = vmatmul.mubr.f32.gmra.mrb[0].mxu0 %v286
    %v599 = vpop.f32.mrb[0].mxu0
    %v600 = vadd.f32 0.0, %v599
    %v601 = vpop.f32.mrb[0].mxu0
    %602 = vmatprep.mubr.f32.mxu0 0.0
    %603 = vmatmul.mubr.f32.gmra.mrb[0].mxu0 %v289
    %v604 = vpop.f32.mrb[0].mxu0
    %v605 = vadd.f32 0.0, %v604
    %v606 = vpop.f32.mrb[0].mxu0
    %607 = vmatprep.mubr.f32.mxu0 0.0
    %608 = vmatmul.mubr.f32.gmra.mrb[0].mxu0 %v292
    %v609 = vpop.f32.mrb[0].mxu0
    %v610 = vadd.f32 0.0, %v609
    %v611 = vpop.f32.mrb[0].mxu0
    %612 = vmatprep.mubr.f32.mxu0 0.0
    %613 = vmatmul.mubr.f32.gmra.mrb[0].mxu0 %v295
    %v614 = vpop.f32.mrb[0].mxu0
    %v615 = vadd.f32 0.0, %v614
    %v616 = vpop.f32.mrb[0].mxu0
    %617 = vmatprep.mubr.f32.mxu0 0.0
    %618 = vmatmul.mubr.f32.gmra.mrb[0].mxu0 %v298
    %v619 = vpop.f32.mrb[0].mxu0
    %v620 = vadd.f32 0.0, %v619
    %v621 = vpop.f32.mrb[0].mxu0
    %622 = vmatprep.mubr.f32.mxu0 0.0
    %623 = vmatmul.mubr.f32.gmra.mrb[0].mxu0 %v301
    %v624 = vpop.f32.mrb[0].mxu0
    %v625 = vadd.f32 0.0, %v624
    %v626 = vpop.f32.mrb[0].mxu0
    %627 = vmatprep.mubr.f32.mxu0 0.0
    %628 = vmatmul.mubr.f32.gmra.mrb[0].mxu0 %v304
    %v629 = vpop.f32.mrb[0].mxu0
    %v630 = vadd.f32 0.0, %v629
    %v631 = vpop.f32.mrb[0].mxu0
    %632 = vmatprep.mubr.f32.mxu0 0.0
    %633 = vmatmul.mubr.f32.gmra.mrb[0].mxu0 %v307
    %v634 = vpop.f32.mrb[0].mxu0
    %v635 = vadd.f32 0.0, %v634
    %v636 = vpop.f32.mrb[0].mxu0
    %637 = vmatprep.mubr.f32.mxu0 0.0
    %638 = vmatmul.mubr.f32.gmra.mrb[0].mxu0 %v310
    %v639 = vpop.f32.mrb[0].mxu0
    %v640 = vadd.f32 0.0, %v639
    %v641 = vpop.f32.mrb[0].mxu0
    %642 = vmatprep.mubr.f32.mxu0 0.0
    %643 = vmatmul.mubr.f32.gmra.mrb[0].mxu0 %v313
    %v644 = vpop.f32.mrb[0].mxu0
    %v645 = vadd.f32 0.0, %v644
    %v646 = vpop.f32.mrb[0].mxu0
    %647 = vmatprep.mubr.f32.mxu0 0.0
    %648 = vmatmul.mubr.f32.gmra.mrb[0].mxu0 %v316
    %v649 = vpop.f32.mrb[0].mxu0
    %v650 = vadd.f32 0.0, %v649
    %v651 = vpop.f32.mrb[0].mxu0
    %652 = vmatprep.mubr.f32.mxu0 0.0
    %653 = vmatmul.mubr.f32.gmra.mrb[0].mxu0 %v319
    %v654 = vpop.f32.mrb[0].mxu0
    %v655 = vadd.f32 0.0, %v654
    %v656 = vpop.f32.mrb[0].mxu0
    %657 = vmatprep.mubr.f32.mxu0 0.0
    %658 = vmatmul.mubr.f32.gmra.mrb[0].mxu0 %v322
    %v659 = vpop.f32.mrb[0].mxu0
    %v660 = vadd.f32 0.0, %v659
    %v661 = vpop.f32.mrb[0].mxu0
    %662 = vmatprep.mubr.f32.mxu0 0.0
    %663 = vmatmul.mubr.f32.gmra.mrb[0].mxu0 %v325
    %v664 = vpop.f32.mrb[0].mxu0
    %v665 = vadd.f32 0.0, %v664
    %v666 = vpop.f32.mrb[0].mxu0
    %667 = vmatprep.mubr.f32.mxu0 0.0
    %668 = vmatmul.mubr.f32.gmra.mrb[0].mxu0 %v328
    %v669 = vpop.f32.mrb[0].mxu0
    %v670 = vadd.f32 0.0, %v669
    %v671 = vpop.f32.mrb[0].mxu0
    %672 = vmatprep.mubr.f32.mxu0 0.0
    %673 = vmatmul.mubr.f32.gmra.mrb[0].mxu0 %v331
    %v674 = vpop.f32.mrb[0].mxu0
    %v675 = vadd.f32 0.0, %v674
    %v676 = vpop.f32.mrb[0].mxu0
    %677 = vmatprep.mubr.f32.mxu0 0.0
    %678 = vmatmul.mubr.f32.gmra.mrb[0].mxu0 %v334
    %v679 = vpop.f32.mrb[0].mxu0
    %v680 = vadd.f32 0.0, %v679
    %v681 = vpop.f32.mrb[0].mxu0
    %682 = vmatprep.mubr.f32.mxu0 0.0
    %683 = vmatmul.mubr.f32.gmra.mrb[0].mxu0 %v337
    %v684 = vpop.f32.mrb[0].mxu0
    %v685 = vadd.f32 0.0, %v684
    %v686 = vpop.f32.mrb[0].mxu0
    %687 = vmatprep.mubr.f32.mxu0 0.0
    %688 = vmatmul.mubr.f32.gmra.mrb[0].mxu0 %v340
    %v689 = vpop.f32.mrb[0].mxu0
    %v690 = vadd.f32 0.0, %v689
    %v691 = vpop.f32.mrb[0].mxu0
    %692 = vmatprep.mubr.f32.mxu0 0.0
    %693 = vmatmul.mubr.f32.gmra.mrb[0].mxu0 %v343
    %v694 = vpop.f32.mrb[0].mxu0
    %v695 = vadd.f32 0.0, %v694
    %v696 = vpop.f32.mrb[0].mxu0
    %697 = vmatprep.mubr.f32.mxu0 0.0
    %698 = vmatmul.mubr.f32.gmra.mrb[0].mxu0 %v346
    %v699 = vpop.f32.mrb[0].mxu0
    %v700 = vadd.f32 0.0, %v699
    %v701 = vpop.f32.mrb[0].mxu0
    %702 = vmatprep.mubr.f32.mxu0 0.0
    %703 = vmatmul.mubr.f32.gmra.mrb[0].mxu0 %v349
    %v704 = vpop.f32.mrb[0].mxu0
    %v705 = vadd.f32 0.0, %v704
    %v706 = vpop.f32.mrb[0].mxu0
    %707 = vmatprep.mubr.f32.mxu0 0.0
    %708 = vmatmul.mubr.f32.gmra.mrb[0].mxu0 %v352
    %v709 = vpop.f32.mrb[0].mxu0
    %v710 = vadd.f32 0.0, %v709
    %v711 = vpop.f32.mrb[0].mxu0
    %712 = vmatprep.mubr.f32.mxu0 0.0
    %713 = vmatmul.mubr.f32.gmra.mrb[0].mxu0 %v355
    %v714 = vpop.f32.mrb[0].mxu0
    %v715 = vadd.f32 0.0, %v714
    %v716 = vpop.f32.mrb[0].mxu0
    %717 = vmatprep.mubr.f32.mxu0 0.0
    %718 = vmatmul.mubr.f32.gmra.mrb[0].mxu0 %v358
    %v719 = vpop.f32.mrb[0].mxu0
    %v720 = vadd.f32 0.0, %v719
    %v721 = vpop.f32.mrb[0].mxu0
    %722 = vmatprep.mubr.f32.mxu0 0.0
    %723 = vmatmul.mubr.f32.gmra.mrb[0].mxu0 %v361
    %v724 = vpop.f32.mrb[0].mxu0
    %v725 = vadd.f32 0.0, %v724
    %v726 = vpop.f32.mrb[0].mxu0
    %727 = vmatprep.mubr.f32.mxu0 0.0
    %728 = vmatmul.mubr.f32.gmra.mrb[0].mxu0 %v364
    %v729 = vpop.f32.mrb[0].mxu0
    %v730 = vadd.f32 0.0, %v729
    %v731 = vpop.f32.mrb[0].mxu0
    %732 = vmatprep.mubr.f32.mxu0 0.0
    %733 = vmatmul.mubr.f32.gmra.mrb[0].mxu0 %v367
    %v734 = vpop.f32.mrb[0].mxu0
    %v735 = vadd.f32 0.0, %v734
    %v736 = vpop.f32.mrb[0].mxu0
    %737 = vmatprep.mubr.f32.mxu0 0.0
    %738 = vmatmul.mubr.f32.gmra.mrb[0].mxu0 %v370
    %v739 = vpop.f32.mrb[0].mxu0
    %v740 = vadd.f32 0.0, %v739
    %v741 = vpop.f32.mrb[0].mxu0
    %742 = vmatprep.mubr.f32.mxu0 0.0
    %743 = vmatmul.mubr.f32.gmra.mrb[0].mxu0 %v373
    %v744 = vpop.f32.mrb[0].mxu0
    %v745 = vadd.f32 0.0, %v744
    %v746 = vpop.f32.mrb[0].mxu0
    %747 = vmatprep.mubr.f32.mxu0 0.0
    %748 = vmatmul.mubr.f32.gmra.mrb[0].mxu0 %v376
    %v749 = vpop.f32.mrb[0].mxu0
    %v750 = vadd.f32 0.0, %v749
    %v751 = vpop.f32.mrb[0].mxu0
    %752 = vdwg.mxu0
    %v754 = vsel %vm191, %v63, 0
    %v757 = vsel %vm191, %v64, 0
    %v760 = vsel %vm191, %v65, 0
    %v763 = vsel %vm191, %v66, 0
    %v766 = vsel %vm191, %v67, 0
    %v769 = vsel %vm191, %v68, 0
    %v772 = vsel %vm191, %v69, 0
    %v775 = vsel %vm191, %v70, 0
    %v778 = vsel %vm191, %v71, 0
    %v781 = vsel %vm191, %v72, 0
    %v784 = vsel %vm191, %v73, 0
    %v787 = vsel %vm191, %v74, 0
    %v790 = vsel %vm191, %v75, 0
    %v793 = vsel %vm191, %v76, 0
    %v796 = vsel %vm191, %v77, 0
    %v799 = vsel %vm191, %v78, 0
    %v802 = vsel %vm191, %v79, 0
    %v805 = vsel %vm191, %v80, 0
    %v808 = vsel %vm191, %v81, 0
    %v811 = vsel %vm191, %v82, 0
    %v814 = vsel %vm191, %v83, 0
    %v817 = vsel %vm191, %v84, 0
    %v820 = vsel %vm191, %v85, 0
    %v823 = vsel %vm191, %v86, 0
    %v826 = vsel %vm191, %v87, 0
    %v829 = vsel %vm191, %v88, 0
    %v832 = vsel %vm191, %v89, 0
    %v835 = vsel %vm191, %v90, 0
    %v838 = vsel %vm191, %v91, 0
    %v841 = vsel %vm191, %v92, 0
    %v844 = vsel %vm191, %v93, 0
    %v847 = vsel %vm191, %v94, 0
    %v850 = vsel %vm191, %v95, 0
    %v853 = vsel %vm191, %v96, 0
    %v856 = vsel %vm191, %v97, 0
    %v859 = vsel %vm191, %v98, 0
    %v862 = vsel %vm191, %v99, 0
    %v865 = vsel %vm191, %v100, 0
    %v868 = vsel %vm191, %v101, 0
    %v871 = vsel %vm191, %v102, 0
    %v874 = vsel %vm191, %v103, 0
    %v877 = vsel %vm191, %v104, 0
    %v880 = vsel %vm191, %v105, 0
    %v883 = vsel %vm191, %v106, 0
    %v886 = vsel %vm191, %v107, 0
    %v889 = vsel %vm191, %v108, 0
    %v892 = vsel %vm191, %v109, 0
    %v895 = vsel %vm191, %v110, 0
    %v898 = vsel %vm191, %v111, 0
    %v901 = vsel %vm191, %v112, 0
    %v904 = vsel %vm191, %v113, 0
    %v907 = vsel %vm191, %v114, 0
    %v910 = vsel %vm191, %v115, 0
    %v913 = vsel %vm191, %v116, 0
    %v916 = vsel %vm191, %v117, 0
    %v919 = vsel %vm191, %v118, 0
    %v922 = vsel %vm191, %v119, 0
    %v925 = vsel %vm191, %v120, 0
    %v928 = vsel %vm191, %v121, 0
    %v931 = vsel %vm191, %v122, 0
    %v934 = vsel %vm191, %v123, 0
    %v937 = vsel %vm191, %v124, 0
    %939 = vmatprep.subr.mxu0 0.0
    %940 = vmatpush1.msra.mxu0 %v125
    %941 = vmatprep.subr.mxu0 0.0
    %942 = vmatpush1.msra.mxu0 %v126
    %943 = vmatprep.subr.mxu0 0.0
    %944 = vmatpush1.msra.mxu0 0.0
    %945 = vmatprep.subr.mxu0 0.0
    %946 = vmatpush1.msra.mxu0 0.0
    %947 = vmatprep.subr.mxu0 0.0
    %948 = vmatpush1.msra.mxu0 0.0
    %949 = vmatprep.subr.mxu0 0.0
    %950 = vmatpush1.msra.mxu0 0.0
    %951 = vmatprep.subr.mxu0 0.0
    %952 = vmatpush1.msra.mxu0 0.0
    %953 = vmatprep.subr.mxu0 0.0
    %954 = vmatpush1.msra.mxu0 0.0
    %955 = vmatprep.subr.mxu0 0.0
    %956 = vmatpush1.msra.mxu0 0.0
    %957 = vmatprep.subr.mxu0 0.0
    %958 = vmatpush1.msra.mxu0 0.0
    %959 = vmatprep.subr.mxu0 0.0
    %960 = vmatpush1.msra.mxu0 0.0
    %961 = vmatprep.subr.mxu0 0.0
    %962 = vmatpush1.msra.mxu0 0.0
    %963 = vmatprep.subr.mxu0 0.0
    %964 = vmatpush1.msra.mxu0 0.0
    %965 = vmatprep.subr.mxu0 0.0
    %966 = vmatpush1.msra.mxu0 0.0
    %967 = vmatprep.subr.mxu0 0.0
    %968 = vmatpush1.msra.mxu0 0.0
    %969 = vmatprep.subr.mxu0 0.0
    %970 = vmatpush1.msra.mxu0 0.0
    %971 = vmatprep.subr.mxu0 0.0
    %972 = vmatpush1.msra.mxu0 0.0
    %973 = vmatprep.subr.mxu0 0.0
    %974 = vmatpush1.msra.mxu0 0.0
    %975 = vmatprep.subr.mxu0 0.0
    %976 = vmatpush1.msra.mxu0 0.0
    %977 = vmatprep.subr.mxu0 0.0
    %978 = vmatpush1.msra.mxu0 0.0
    %979 = vmatprep.subr.mxu0 0.0
    %980 = vmatpush1.msra.mxu0 0.0
    %981 = vmatprep.subr.mxu0 0.0
    %982 = vmatpush1.msra.mxu0 0.0
    %983 = vmatprep.subr.mxu0 0.0
    %984 = vmatpush1.msra.mxu0 0.0
    %985 = vmatprep.subr.mxu0 0.0
    %986 = vmatpush1.msra.mxu0 0.0
    %987 = vmatprep.subr.mxu0 0.0
    %988 = vmatpush1.msra.mxu0 0.0
    %989 = vmatprep.subr.mxu0 0.0
    %990 = vmatpush1.msra.mxu0 0.0
    %991 = vmatprep.subr.mxu0 0.0
    %992 = vmatpush1.msra.mxu0 0.0
    %993 = vmatprep.subr.mxu0 0.0
    %994 = vmatpush1.msra.mxu0 0.0
    %995 = vmatprep.subr.mxu0 0.0
    %996 = vmatpush1.msra.mxu0 0.0
    %997 = vmatprep.subr.mxu0 0.0
    %998 = vmatpush1.msra.mxu0 0.0
    %999 = vmatprep.subr.mxu0 0.0
    %1000 = vmatpush1.msra.mxu0 0.0
    %1001 = vmatprep.subr.mxu0 0.0
    %1002 = vmatpush1.msra.mxu0 0.0
    %1003 = vmatprep.mubr.f32.mxu0 0.0
    %1004 = vmatmul.mubr.f32.gmra.mrb[0].mxu0 %v754
    %v1005 = vpop.f32.mrb[0].mxu0
    %v1006 = vadd.f32 %v445, %v1005
    %v1007 = vpop.f32.mrb[0].mxu0
    %1008 = vmatprep.mubr.f32.mxu0 0.0
    %1009 = vmatmul.mubr.f32.gmra.mrb[0].mxu0 %v757
    %v1010 = vpop.f32.mrb[0].mxu0
    %v1011 = vadd.f32 %v450, %v1010
    %v1012 = vpop.f32.mrb[0].mxu0
    %1013 = vmatprep.mubr.f32.mxu0 0.0
    %1014 = vmatmul.mubr.f32.gmra.mrb[0].mxu0 %v760
    %v1015 = vpop.f32.mrb[0].mxu0
    %v1016 = vadd.f32 %v455, %v1015
    %v1017 = vpop.f32.mrb[0].mxu0
    %1018 = vmatprep.mubr.f32.mxu0 0.0
    %1019 = vmatmul.mubr.f32.gmra.mrb[0].mxu0 %v763
    %v1020 = vpop.f32.mrb[0].mxu0
    %v1021 = vadd.f32 %v460, %v1020
    %v1022 = vpop.f32.mrb[0].mxu0
    %1023 = vmatprep.mubr.f32.mxu0 0.0
    %1024 = vmatmul.mubr.f32.gmra.mrb[0].mxu0 %v766
    %v1025 = vpop.f32.mrb[0].mxu0
    %v1026 = vadd.f32 %v465, %v1025
    %v1027 = vpop.f32.mrb[0].mxu0
    %1028 = vmatprep.mubr.f32.mxu0 0.0
    %1029 = vmatmul.mubr.f32.gmra.mrb[0].mxu0 %v769
    %v1030 = vpop.f32.mrb[0].mxu0
    %v1031 = vadd.f32 %v470, %v1030
    %v1032 = vpop.f32.mrb[0].mxu0
    %1033 = vmatprep.mubr.f32.mxu0 0.0
    %1034 = vmatmul.mubr.f32.gmra.mrb[0].mxu0 %v772
    %v1035 = vpop.f32.mrb[0].mxu0
    %v1036 = vadd.f32 %v475, %v1035
    %v1037 = vpop.f32.mrb[0].mxu0
    %1038 = vmatprep.mubr.f32.mxu0 0.0
    %1039 = vmatmul.mubr.f32.gmra.mrb[0].mxu0 %v775
    %v1040 = vpop.f32.mrb[0].mxu0
    %v1041 = vadd.f32 %v480, %v1040
    %v1042 = vpop.f32.mrb[0].mxu0
    %1043 = vmatprep.mubr.f32.mxu0 0.0
    %1044 = vmatmul.mubr.f32.gmra.mrb[0].mxu0 %v778
    %v1045 = vpop.f32.mrb[0].mxu0
    %v1046 = vadd.f32 %v485, %v1045
    %v1047 = vpop.f32.mrb[0].mxu0
    %1048 = vmatprep.mubr.f32.mxu0 0.0
    %1049 = vmatmul.mubr.f32.gmra.mrb[0].mxu0 %v781
    %v1050 = vpop.f32.mrb[0].mxu0
    %v1051 = vadd.f32 %v490, %v1050
    %v1052 = vpop.f32.mrb[0].mxu0
    %1053 = vmatprep.mubr.f32.mxu0 0.0
    %1054 = vmatmul.mubr.f32.gmra.mrb[0].mxu0 %v784
    %v1055 = vpop.f32.mrb[0].mxu0
    %v1056 = vadd.f32 %v495, %v1055
    %v1057 = vpop.f32.mrb[0].mxu0
    %1058 = vmatprep.mubr.f32.mxu0 0.0
    %1059 = vmatmul.mubr.f32.gmra.mrb[0].mxu0 %v787
    %v1060 = vpop.f32.mrb[0].mxu0
    %v1061 = vadd.f32 %v500, %v1060
    %v1062 = vpop.f32.mrb[0].mxu0
    %1063 = vmatprep.mubr.f32.mxu0 0.0
    %1064 = vmatmul.mubr.f32.gmra.mrb[0].mxu0 %v790
    %v1065 = vpop.f32.mrb[0].mxu0
    %v1066 = vadd.f32 %v505, %v1065
    %v1067 = vpop.f32.mrb[0].mxu0
    %1068 = vmatprep.mubr.f32.mxu0 0.0
    %1069 = vmatmul.mubr.f32.gmra.mrb[0].mxu0 %v793
    %v1070 = vpop.f32.mrb[0].mxu0
    %v1071 = vadd.f32 %v510, %v1070
    %v1072 = vpop.f32.mrb[0].mxu0
    %1073 = vmatprep.mubr.f32.mxu0 0.0
    %1074 = vmatmul.mubr.f32.gmra.mrb[0].mxu0 %v796
    %v1075 = vpop.f32.mrb[0].mxu0
    %v1076 = vadd.f32 %v515, %v1075
    %v1077 = vpop.f32.mrb[0].mxu0
    %1078 = vmatprep.mubr.f32.mxu0 0.0
    %1079 = vmatmul.mubr.f32.gmra.mrb[0].mxu0 %v799
    %v1080 = vpop.f32.mrb[0].mxu0
    %v1081 = vadd.f32 %v520, %v1080
    %v1082 = vpop.f32.mrb[0].mxu0
    %1083 = vmatprep.mubr.f32.mxu0 0.0
    %1084 = vmatmul.mubr.f32.gmra.mrb[0].mxu0 %v802
    %v1085 = vpop.f32.mrb[0].mxu0
    %v1086 = vadd.f32 %v525, %v1085
    %v1087 = vpop.f32.mrb[0].mxu0
    %1088 = vmatprep.mubr.f32.mxu0 0.0
    %1089 = vmatmul.mubr.f32.gmra.mrb[0].mxu0 %v805
    %v1090 = vpop.f32.mrb[0].mxu0
    %v1091 = vadd.f32 %v530, %v1090
    %v1092 = vpop.f32.mrb[0].mxu0
    %1093 = vmatprep.mubr.f32.mxu0 0.0
    %1094 = vmatmul.mubr.f32.gmra.mrb[0].mxu0 %v808
    %v1095 = vpop.f32.mrb[0].mxu0
    %v1096 = vadd.f32 %v535, %v1095
    %v1097 = vpop.f32.mrb[0].mxu0
    %1098 = vmatprep.mubr.f32.mxu0 0.0
    %1099 = vmatmul.mubr.f32.gmra.mrb[0].mxu0 %v811
    %v1100 = vpop.f32.mrb[0].mxu0
    %v1101 = vadd.f32 %v540, %v1100
    %v1102 = vpop.f32.mrb[0].mxu0
    %1103 = vmatprep.mubr.f32.mxu0 0.0
    %1104 = vmatmul.mubr.f32.gmra.mrb[0].mxu0 %v814
    %v1105 = vpop.f32.mrb[0].mxu0
    %v1106 = vadd.f32 %v545, %v1105
    %v1107 = vpop.f32.mrb[0].mxu0
    %1108 = vmatprep.mubr.f32.mxu0 0.0
    %1109 = vmatmul.mubr.f32.gmra.mrb[0].mxu0 %v817
    %v1110 = vpop.f32.mrb[0].mxu0
    %v1111 = vadd.f32 %v550, %v1110
    %v1112 = vpop.f32.mrb[0].mxu0
    %1113 = vmatprep.mubr.f32.mxu0 0.0
    %1114 = vmatmul.mubr.f32.gmra.mrb[0].mxu0 %v820
    %v1115 = vpop.f32.mrb[0].mxu0
    %v1116 = vadd.f32 %v555, %v1115
    %v1117 = vpop.f32.mrb[0].mxu0
    %1118 = vmatprep.mubr.f32.mxu0 0.0
    %1119 = vmatmul.mubr.f32.gmra.mrb[0].mxu0 %v823
    %v1120 = vpop.f32.mrb[0].mxu0
    %v1121 = vadd.f32 %v560, %v1120
    %v1122 = vpop.f32.mrb[0].mxu0
    %1123 = vmatprep.mubr.f32.mxu0 0.0
    %1124 = vmatmul.mubr.f32.gmra.mrb[0].mxu0 %v826
    %v1125 = vpop.f32.mrb[0].mxu0
    %v1126 = vadd.f32 %v565, %v1125
    %v1127 = vpop.f32.mrb[0].mxu0
    %1128 = vmatprep.mubr.f32.mxu0 0.0
    %1129 = vmatmul.mubr.f32.gmra.mrb[0].mxu0 %v829
    %v1130 = vpop.f32.mrb[0].mxu0
    %v1131 = vadd.f32 %v570, %v1130
    %v1132 = vpop.f32.mrb[0].mxu0
    %1133 = vmatprep.mubr.f32.mxu0 0.0
    %1134 = vmatmul.mubr.f32.gmra.mrb[0].mxu0 %v832
    %v1135 = vpop.f32.mrb[0].mxu0
    %v1136 = vadd.f32 %v575, %v1135
    %v1137 = vpop.f32.mrb[0].mxu0
    %1138 = vmatprep.mubr.f32.mxu0 0.0
    %1139 = vmatmul.mubr.f32.gmra.mrb[0].mxu0 %v835
    %v1140 = vpop.f32.mrb[0].mxu0
    %v1141 = vadd.f32 %v580, %v1140
    %v1142 = vpop.f32.mrb[0].mxu0
    %1143 = vmatprep.mubr.f32.mxu0 0.0
    %1144 = vmatmul.mubr.f32.gmra.mrb[0].mxu0 %v838
    %v1145 = vpop.f32.mrb[0].mxu0
    %v1146 = vadd.f32 %v585, %v1145
    %v1147 = vpop.f32.mrb[0].mxu0
    %1148 = vmatprep.mubr.f32.mxu0 0.0
    %1149 = vmatmul.mubr.f32.gmra.mrb[0].mxu0 %v841
    %v1150 = vpop.f32.mrb[0].mxu0
    %v1151 = vadd.f32 %v590, %v1150
    %v1152 = vpop.f32.mrb[0].mxu0
    %1153 = vmatprep.mubr.f32.mxu0 0.0
    %1154 = vmatmul.mubr.f32.gmra.mrb[0].mxu0 %v844
    %v1155 = vpop.f32.mrb[0].mxu0
    %v1156 = vadd.f32 %v595, %v1155
    %v1157 = vpop.f32.mrb[0].mxu0
    %1158 = vmatprep.mubr.f32.mxu0 0.0
    %1159 = vmatmul.mubr.f32.gmra.mrb[0].mxu0 %v847
    %v1160 = vpop.f32.mrb[0].mxu0
    %v1161 = vadd.f32 %v600, %v1160
    %v1162 = vpop.f32.mrb[0].mxu0
    %1163 = vmatprep.mubr.f32.mxu0 0.0
    %1164 = vmatmul.mubr.f32.gmra.mrb[0].mxu0 %v850
    %v1165 = vpop.f32.mrb[0].mxu0
    %v1166 = vadd.f32 %v605, %v1165
    %v1167 = vpop.f32.mrb[0].mxu0
    %1168 = vmatprep.mubr.f32.mxu0 0.0
    %1169 = vmatmul.mubr.f32.gmra.mrb[0].mxu0 %v853
    %v1170 = vpop.f32.mrb[0].mxu0
    %v1171 = vadd.f32 %v610, %v1170
    %v1172 = vpop.f32.mrb[0].mxu0
    %1173 = vmatprep.mubr.f32.mxu0 0.0
    %1174 = vmatmul.mubr.f32.gmra.mrb[0].mxu0 %v856
    %v1175 = vpop.f32.mrb[0].mxu0
    %v1176 = vadd.f32 %v615, %v1175
    %v1177 = vpop.f32.mrb[0].mxu0
    %1178 = vmatprep.mubr.f32.mxu0 0.0
    %1179 = vmatmul.mubr.f32.gmra.mrb[0].mxu0 %v859
    %v1180 = vpop.f32.mrb[0].mxu0
    %v1181 = vadd.f32 %v620, %v1180
    %v1182 = vpop.f32.mrb[0].mxu0
    %1183 = vmatprep.mubr.f32.mxu0 0.0
    %1184 = vmatmul.mubr.f32.gmra.mrb[0].mxu0 %v862
    %v1185 = vpop.f32.mrb[0].mxu0
    %v1186 = vadd.f32 %v625, %v1185
    %v1187 = vpop.f32.mrb[0].mxu0
    %1188 = vmatprep.mubr.f32.mxu0 0.0
    %1189 = vmatmul.mubr.f32.gmra.mrb[0].mxu0 %v865
    %v1190 = vpop.f32.mrb[0].mxu0
    %v1191 = vadd.f32 %v630, %v1190
    %v1192 = vpop.f32.mrb[0].mxu0
    %1193 = vmatprep.mubr.f32.mxu0 0.0
    %1194 = vmatmul.mubr.f32.gmra.mrb[0].mxu0 %v868
    %v1195 = vpop.f32.mrb[0].mxu0
    %v1196 = vadd.f32 %v635, %v1195
    %v1197 = vpop.f32.mrb[0].mxu0
    %1198 = vmatprep.mubr.f32.mxu0 0.0
    %1199 = vmatmul.mubr.f32.gmra.mrb[0].mxu0 %v871
    %v1200 = vpop.f32.mrb[0].mxu0
    %v1201 = vadd.f32 %v640, %v1200
    %v1202 = vpop.f32.mrb[0].mxu0
    %1203 = vmatprep.mubr.f32.mxu0 0.0
    %1204 = vmatmul.mubr.f32.gmra.mrb[0].mxu0 %v874
    %v1205 = vpop.f32.mrb[0].mxu0
    %v1206 = vadd.f32 %v645, %v1205
    %v1207 = vpop.f32.mrb[0].mxu0
    %1208 = vmatprep.mubr.f32.mxu0 0.0
    %1209 = vmatmul.mubr.f32.gmra.mrb[0].mxu0 %v877
    %v1210 = vpop.f32.mrb[0].mxu0
    %v1211 = vadd.f32 %v650, %v1210
    %v1212 = vpop.f32.mrb[0].mxu0
    %1213 = vmatprep.mubr.f32.mxu0 0.0
    %1214 = vmatmul.mubr.f32.gmra.mrb[0].mxu0 %v880
    %v1215 = vpop.f32.mrb[0].mxu0
    %v1216 = vadd.f32 %v655, %v1215
    %v1217 = vpop.f32.mrb[0].mxu0
    %1218 = vmatprep.mubr.f32.mxu0 0.0
    %1219 = vmatmul.mubr.f32.gmra.mrb[0].mxu0 %v883
    %v1220 = vpop.f32.mrb[0].mxu0
    %v1221 = vadd.f32 %v660, %v1220
    %v1222 = vpop.f32.mrb[0].mxu0
    %1223 = vmatprep.mubr.f32.mxu0 0.0
    %1224 = vmatmul.mubr.f32.gmra.mrb[0].mxu0 %v886
    %v1225 = vpop.f32.mrb[0].mxu0
    %v1226 = vadd.f32 %v665, %v1225
    %v1227 = vpop.f32.mrb[0].mxu0
    %1228 = vmatprep.mubr.f32.mxu0 0.0
    %1229 = vmatmul.mubr.f32.gmra.mrb[0].mxu0 %v889
    %v1230 = vpop.f32.mrb[0].mxu0
    %v1231 = vadd.f32 %v670, %v1230
    %v1232 = vpop.f32.mrb[0].mxu0
    %1233 = vmatprep.mubr.f32.mxu0 0.0
    %1234 = vmatmul.mubr.f32.gmra.mrb[0].mxu0 %v892
    %v1235 = vpop.f32.mrb[0].mxu0
    %v1236 = vadd.f32 %v675, %v1235
    %v1237 = vpop.f32.mrb[0].mxu0
    %1238 = vmatprep.mubr.f32.mxu0 0.0
    %1239 = vmatmul.mubr.f32.gmra.mrb[0].mxu0 %v895
    %v1240 = vpop.f32.mrb[0].mxu0
    %v1241 = vadd.f32 %v680, %v1240
    %v1242 = vpop.f32.mrb[0].mxu0
    %1243 = vmatprep.mubr.f32.mxu0 0.0
    %1244 = vmatmul.mubr.f32.gmra.mrb[0].mxu0 %v898
    %v1245 = vpop.f32.mrb[0].mxu0
    %v1246 = vadd.f32 %v685, %v1245
    %v1247 = vpop.f32.mrb[0].mxu0
    %1248 = vmatprep.mubr.f32.mxu0 0.0
    %1249 = vmatmul.mubr.f32.gmra.mrb[0].mxu0 %v901
    %v1250 = vpop.f32.mrb[0].mxu0
    %v1251 = vadd.f32 %v690, %v1250
    %v1252 = vpop.f32.mrb[0].mxu0
    %1253 = vmatprep.mubr.f32.mxu0 0.0
    %1254 = vmatmul.mubr.f32.gmra.mrb[0].mxu0 %v904
    %v1255 = vpop.f32.mrb[0].mxu0
    %v1256 = vadd.f32 %v695, %v1255
    %v1257 = vpop.f32.mrb[0].mxu0
    %1258 = vmatprep.mubr.f32.mxu0 0.0
    %1259 = vmatmul.mubr.f32.gmra.mrb[0].mxu0 %v907
    %v1260 = vpop.f32.mrb[0].mxu0
    %v1261 = vadd.f32 %v700, %v1260
    %v1262 = vpop.f32.mrb[0].mxu0
    %1263 = vmatprep.mubr.f32.mxu0 0.0
    %1264 = vmatmul.mubr.f32.gmra.mrb[0].mxu0 %v910
    %v1265 = vpop.f32.mrb[0].mxu0
    %v1266 = vadd.f32 %v705, %v1265
    %v1267 = vpop.f32.mrb[0].mxu0
    %1268 = vmatprep.mubr.f32.mxu0 0.0
    %1269 = vmatmul.mubr.f32.gmra.mrb[0].mxu0 %v913
    %v1270 = vpop.f32.mrb[0].mxu0
    %v1271 = vadd.f32 %v710, %v1270
    %v1272 = vpop.f32.mrb[0].mxu0
    %1273 = vmatprep.mubr.f32.mxu0 0.0
    %1274 = vmatmul.mubr.f32.gmra.mrb[0].mxu0 %v916
    %v1275 = vpop.f32.mrb[0].mxu0
    %v1276 = vadd.f32 %v715, %v1275
    %v1277 = vpop.f32.mrb[0].mxu0
    %1278 = vmatprep.mubr.f32.mxu0 0.0
    %1279 = vmatmul.mubr.f32.gmra.mrb[0].mxu0 %v919
    %v1280 = vpop.f32.mrb[0].mxu0
    %v1281 = vadd.f32 %v720, %v1280
    %v1282 = vpop.f32.mrb[0].mxu0
    %1283 = vmatprep.mubr.f32.mxu0 0.0
    %1284 = vmatmul.mubr.f32.gmra.mrb[0].mxu0 %v922
    %v1285 = vpop.f32.mrb[0].mxu0
    %v1286 = vadd.f32 %v725, %v1285
    %v1287 = vpop.f32.mrb[0].mxu0
    %1288 = vmatprep.mubr.f32.mxu0 0.0
    %1289 = vmatmul.mubr.f32.gmra.mrb[0].mxu0 %v925
    %v1290 = vpop.f32.mrb[0].mxu0
    %v1291 = vadd.f32 %v730, %v1290
    %v1292 = vpop.f32.mrb[0].mxu0
    %1293 = vmatprep.mubr.f32.mxu0 0.0
    %1294 = vmatmul.mubr.f32.gmra.mrb[0].mxu0 %v928
    %v1295 = vpop.f32.mrb[0].mxu0
    %v1296 = vadd.f32 %v735, %v1295
    %v1297 = vpop.f32.mrb[0].mxu0
    %1298 = vmatprep.mubr.f32.mxu0 0.0
    %1299 = vmatmul.mubr.f32.gmra.mrb[0].mxu0 %v931
    %v1300 = vpop.f32.mrb[0].mxu0
    %v1301 = vadd.f32 %v740, %v1300
    %v1302 = vpop.f32.mrb[0].mxu0
    %1303 = vmatprep.mubr.f32.mxu0 0.0
    %1304 = vmatmul.mubr.f32.gmra.mrb[0].mxu0 %v934
    %v1305 = vpop.f32.mrb[0].mxu0
    %v1306 = vadd.f32 %v745, %v1305
    %v1307 = vpop.f32.mrb[0].mxu0
    %1308 = vmatprep.mubr.f32.mxu0 0.0
    %1309 = vmatmul.mubr.f32.gmra.mrb[0].mxu0 %v937
    %v1310 = vpop.f32.mrb[0].mxu0
    %v1311 = vadd.f32 %v750, %v1310
    %v1312 = vpop.f32.mrb[0].mxu0
    %1313 = vdwg.mxu0
    %v1314 = vld [vmem:[%s0 + $0x2] sm:$0xff]
    %v1315 = vld [vmem:[%s0 + $0xa] sm:$0xff]
    %v1316 = vld [vmem:[%s0 + $0x12] sm:$0xff]
    %v1317 = vld [vmem:[%s0 + $0x1a] sm:$0xff]
    %v1318 = vld [vmem:[%s0 + $0x22] sm:$0xff]
    %v1319 = vld [vmem:[%s0 + $0x2a] sm:$0xff]
    %v1320 = vld [vmem:[%s0 + $0x32] sm:$0xff]
    %v1321 = vld [vmem:[%s0 + $0x3a] sm:$0xff]
    %v1322 = vld [vmem:[%s0 + $0x42] sm:$0xff]
    %v1323 = vld [vmem:[%s0 + $0x4a] sm:$0xff]
    %v1324 = vld [vmem:[%s0 + $0x52] sm:$0xff]
    %v1325 = vld [vmem:[%s0 + $0x5a] sm:$0xff]
    %v1326 = vld [vmem:[%s0 + $0x62] sm:$0xff]
    %v1327 = vld [vmem:[%s0 + $0x6a] sm:$0xff]
    %v1328 = vld [vmem:[%s0 + $0x72] sm:$0xff]
    %v1329 = vld [vmem:[%s0 + $0x7a] sm:$0xff]
    %v1330 = vld [vmem:[%s0 + $0x82] sm:$0xff]
    %v1331 = vld [vmem:[%s0 + $0x8a] sm:$0xff]
    %v1332 = vld [vmem:[%s0 + $0x92] sm:$0xff]
    %v1333 = vld [vmem:[%s0 + $0x9a] sm:$0xff]
    %v1334 = vld [vmem:[%s0 + $0xa2] sm:$0xff]
    %v1335 = vld [vmem:[%s0 + $0xaa] sm:$0xff]
    %v1336 = vld [vmem:[%s0 + $0xb2] sm:$0xff]
    %v1337 = vld [vmem:[%s0 + $0xba] sm:$0xff]
    %v1338 = vld [vmem:[%s0 + $0xc2] sm:$0xff]
    %v1339 = vld [vmem:[%s0 + $0xca] sm:$0xff]
    %v1340 = vld [vmem:[%s0 + $0xd2] sm:$0xff]
    %v1341 = vld [vmem:[%s0 + $0xda] sm:$0xff]
    %v1342 = vld [vmem:[%s0 + $0xe2] sm:$0xff]
    %v1343 = vld [vmem:[%s0 + $0xea] sm:$0xff]
    %v1344 = vld [vmem:[%s0 + $0xf2] sm:$0xff]
    %v1345 = vld [vmem:[%s0 + $0xfa] sm:$0xff]
    %v1346 = vld [vmem:[%s0 + $0x102] sm:$0xff]
    %v1347 = vld [vmem:[%s0 + $0x10a] sm:$0xff]
    %v1348 = vld [vmem:[%s0 + $0x112] sm:$0xff]
    %v1349 = vld [vmem:[%s0 + $0x11a] sm:$0xff]
    %v1350 = vld [vmem:[%s0 + $0x122] sm:$0xff]
    %v1351 = vld [vmem:[%s0 + $0x12a] sm:$0xff]
    %v1352 = vld [vmem:[%s0 + $0x132] sm:$0xff]
    %v1353 = vld [vmem:[%s0 + $0x13a] sm:$0xff]
    %v1354 = vld [vmem:[%s0 + $0x142] sm:$0xff]
    %v1355 = vld [vmem:[%s0 + $0x14a] sm:$0xff]
    %v1356 = vld [vmem:[%s0 + $0x152] sm:$0xff]
    %v1357 = vld [vmem:[%s0 + $0x15a] sm:$0xff]
    %v1358 = vld [vmem:[%s0 + $0x162] sm:$0xff]
    %v1359 = vld [vmem:[%s0 + $0x16a] sm:$0xff]
    %v1360 = vld [vmem:[%s0 + $0x172] sm:$0xff]
    %v1361 = vld [vmem:[%s0 + $0x17a] sm:$0xff]
    %v1362 = vld [vmem:[%s0 + $0x182] sm:$0xff]
    %v1363 = vld [vmem:[%s0 + $0x18a] sm:$0xff]
    %v1364 = vld [vmem:[%s0 + $0x192] sm:$0xff]
    %v1365 = vld [vmem:[%s0 + $0x19a] sm:$0xff]
    %v1366 = vld [vmem:[%s0 + $0x1a2] sm:$0xff]
    %v1367 = vld [vmem:[%s0 + $0x1aa] sm:$0xff]
    %v1368 = vld [vmem:[%s0 + $0x1b2] sm:$0xff]
    %v1369 = vld [vmem:[%s0 + $0x1ba] sm:$0xff]
    %v1370 = vld [vmem:[%s0 + $0x1c2] sm:$0xff]
    %v1371 = vld [vmem:[%s0 + $0x1ca] sm:$0xff]
    %v1372 = vld [vmem:[%s0 + $0x1d2] sm:$0xff]
    %v1373 = vld [vmem:[%s0 + $0x1da] sm:$0xff]
    %v1374 = vld [vmem:[%s0 + $0x1e2] sm:$0xff]
    %v1375 = vld [vmem:[%s0 + $0x1ea] sm:$0xff]
    %v1376 = vld [vmem:[%s1 + $0x20] sm:$0xff]
    %v1377 = vld [vmem:[%s1 + $0x28] sm:$0xff]
    %v1379 = vsel %vm191, %v1314, 0
    %v1382 = vsel %vm191, %v1315, 0
    %v1385 = vsel %vm191, %v1316, 0
    %v1388 = vsel %vm191, %v1317, 0
    %v1391 = vsel %vm191, %v1318, 0
    %v1394 = vsel %vm191, %v1319, 0
    %v1397 = vsel %vm191, %v1320, 0
    %v1400 = vsel %vm191, %v1321, 0
    %v1403 = vsel %vm191, %v1322, 0
    %v1406 = vsel %vm191, %v1323, 0
    %v1409 = vsel %vm191, %v1324, 0
    %v1412 = vsel %vm191, %v1325, 0
    %v1415 = vsel %vm191, %v1326, 0
    %v1418 = vsel %vm191, %v1327, 0
    %v1421 = vsel %vm191, %v1328, 0
    %v1424 = vsel %vm191, %v1329, 0
    %v1427 = vsel %vm191, %v1330, 0
    %v1430 = vsel %vm191, %v1331, 0
    %v1433 = vsel %vm191, %v1332, 0
    %v1436 = vsel %vm191, %v1333, 0
    %v1439 = vsel %vm191, %v1334, 0
    %v1442 = vsel %vm191, %v1335, 0
    %v1445 = vsel %vm191, %v1336, 0
    %v1448 = vsel %vm191, %v1337, 0
    %v1451 = vsel %vm191, %v1338, 0
    %v1454 = vsel %vm191, %v1339, 0
    %v1457 = vsel %vm191, %v1340, 0
    %v1460 = vsel %vm191, %v1341, 0
    %v1463 = vsel %vm191, %v1342, 0
    %v1466 = vsel %vm191, %v1343, 0
    %v1469 = vsel %vm191, %v1344, 0
    %v1472 = vsel %vm191, %v1345, 0
    %v1475 = vsel %vm191, %v1346, 0
    %v1478 = vsel %vm191, %v1347, 0
    %v1481 = vsel %vm191, %v1348, 0
    %v1484 = vsel %vm191, %v1349, 0
    %v1487 = vsel %vm191, %v1350, 0
    %v1490 = vsel %vm191, %v1351, 0
    %v1493 = vsel %vm191, %v1352, 0
    %v1496 = vsel %vm191, %v1353, 0
    %v1499 = vsel %vm191, %v1354, 0
    %v1502 = vsel %vm191, %v1355, 0
    %v1505 = vsel %vm191, %v1356, 0
    %v1508 = vsel %vm191, %v1357, 0
    %v1511 = vsel %vm191, %v1358, 0
    %v1514 = vsel %vm191, %v1359, 0
    %v1517 = vsel %vm191, %v1360, 0
    %v1520 = vsel %vm191, %v1361, 0
    %v1523 = vsel %vm191, %v1362, 0
    %v1526 = vsel %vm191, %v1363, 0
    %v1529 = vsel %vm191, %v1364, 0
    %v1532 = vsel %vm191, %v1365, 0
    %v1535 = vsel %vm191, %v1366, 0
    %v1538 = vsel %vm191, %v1367, 0
    %v1541 = vsel %vm191, %v1368, 0
    %v1544 = vsel %vm191, %v1369, 0
    %v1547 = vsel %vm191, %v1370, 0
    %v1550 = vsel %vm191, %v1371, 0
    %v1553 = vsel %vm191, %v1372, 0
    %v1556 = vsel %vm191, %v1373, 0
    %v1559 = vsel %vm191, %v1374, 0
    %v1562 = vsel %vm191, %v1375, 0
    %1564 = vmatprep.subr.mxu0 0.0
    %1565 = vmatpush1.msra.mxu0 %v1376
    %1566 = vmatprep.subr.mxu0 0.0
    %1567 = vmatpush1.msra.mxu0 %v1377
    %1568 = vmatprep.subr.mxu0 0.0
    %1569 = vmatpush1.msra.mxu0 0.0
    %1570 = vmatprep.subr.mxu0 0.0
    %1571 = vmatpush1.msra.mxu0 0.0
    %1572 = vmatprep.subr.mxu0 0.0
    %1573 = vmatpush1.msra.mxu0 0.0
    %1574 = vmatprep.subr.mxu0 0.0
    %1575 = vmatpush1.msra.mxu0 0.0
    %1576 = vmatprep.subr.mxu0 0.0
    %1577 = vmatpush1.msra.mxu0 0.0
    %1578 = vmatprep.subr.mxu0 0.0
    %1579 = vmatpush1.msra.mxu0 0.0
    %1580 = vmatprep.subr.mxu0 0.0
    %1581 = vmatpush1.msra.mxu0 0.0
    %1582 = vmatprep.subr.mxu0 0.0
    %1583 = vmatpush1.msra.mxu0 0.0
    %1584 = vmatprep.subr.mxu0 0.0
    %1585 = vmatpush1.msra.mxu0 0.0
    %1586 = vmatprep.subr.mxu0 0.0
    %1587 = vmatpush1.msra.mxu0 0.0
    %1588 = vmatprep.subr.mxu0 0.0
    %1589 = vmatpush1.msra.mxu0 0.0
    %1590 = vmatprep.subr.mxu0 0.0
    %1591 = vmatpush1.msra.mxu0 0.0
    %1592 = vmatprep.subr.mxu0 0.0
    %1593 = vmatpush1.msra.mxu0 0.0
    %1594 = vmatprep.subr.mxu0 0.0
    %1595 = vmatpush1.msra.mxu0 0.0
    %1596 = vmatprep.subr.mxu0 0.0
    %1597 = vmatpush1.msra.mxu0 0.0
    %1598 = vmatprep.subr.mxu0 0.0
    %1599 = vmatpush1.msra.mxu0 0.0
    %1600 = vmatprep.subr.mxu0 0.0
    %1601 = vmatpush1.msra.mxu0 0.0
    %1602 = vmatprep.subr.mxu0 0.0
    %1603 = vmatpush1.msra.mxu0 0.0
    %1604 = vmatprep.subr.mxu0 0.0
    %1605 = vmatpush1.msra.mxu0 0.0
    %1606 = vmatprep.subr.mxu0 0.0
    %1607 = vmatpush1.msra.mxu0 0.0
    %1608 = vmatprep.subr.mxu0 0.0
    %1609 = vmatpush1.msra.mxu0 0.0
    %1610 = vmatprep.subr.mxu0 0.0
    %1611 = vmatpush1.msra.mxu0 0.0
    %1612 = vmatprep.subr.mxu0 0.0
    %1613 = vmatpush1.msra.mxu0 0.0
    %1614 = vmatprep.subr.mxu0 0.0
    %1615 = vmatpush1.msra.mxu0 0.0
    %1616 = vmatprep.subr.mxu0 0.0
    %1617 = vmatpush1.msra.mxu0 0.0
    %1618 = vmatprep.subr.mxu0 0.0
    %1619 = vmatpush1.msra.mxu0 0.0
    %1620 = vmatprep.subr.mxu0 0.0
    %1621 = vmatpush1.msra.mxu0 0.0
    %1622 = vmatprep.subr.mxu0 0.0
    %1623 = vmatpush1.msra.mxu0 0.0
    %1624 = vmatprep.subr.mxu0 0.0
    %1625 = vmatpush1.msra.mxu0 0.0
    %1626 = vmatprep.subr.mxu0 0.0
    %1627 = vmatpush1.msra.mxu0 0.0
    %1628 = vmatprep.mubr.f32.mxu0 0.0
    %1629 = vmatmul.mubr.f32.gmra.mrb[0].mxu0 %v1379
    %v1630 = vpop.f32.mrb[0].mxu0
    %v1631 = vadd.f32 0.0, %v1630
    %v1632 = vpop.f32.mrb[0].mxu0
    %1633 = vmatprep.mubr.f32.mxu0 0.0
    %1634 = vmatmul.mubr.f32.gmra.mrb[0].mxu0 %v1382
    %v1635 = vpop.f32.mrb[0].mxu0
    %v1636 = vadd.f32 0.0, %v1635
    %v1637 = vpop.f32.mrb[0].mxu0
    %1638 = vmatprep.mubr.f32.mxu0 0.0
    %1639 = vmatmul.mubr.f32.gmra.mrb[0].mxu0 %v1385
    %v1640 = vpop.f32.mrb[0].mxu0
    %v1641 = vadd.f32 0.0, %v1640
    %v1642 = vpop.f32.mrb[0].mxu0
    %1643 = vmatprep.mubr.f32.mxu0 0.0
    %1644 = vmatmul.mubr.f32.gmra.mrb[0].mxu0 %v1388
    %v1645 = vpop.f32.mrb[0].mxu0
    %v1646 = vadd.f32 0.0, %v1645
    %v1647 = vpop.f32.mrb[0].mxu0
    %1648 = vmatprep.mubr.f32.mxu0 0.0
    %1649 = vmatmul.mubr.f32.gmra.mrb[0].mxu0 %v1391
    %v1650 = vpop.f32.mrb[0].mxu0
    %v1651 = vadd.f32 0.0, %v1650
    %v1652 = vpop.f32.mrb[0].mxu0
    %1653 = vmatprep.mubr.f32.mxu0 0.0
    %1654 = vmatmul.mubr.f32.gmra.mrb[0].mxu0 %v1394
    %v1655 = vpop.f32.mrb[0].mxu0
    %v1656 = vadd.f32 0.0, %v1655
    %v1657 = vpop.f32.mrb[0].mxu0
    %1658 = vmatprep.mubr.f32.mxu0 0.0
    %1659 = vmatmul.mubr.f32.gmra.mrb[0].mxu0 %v1397
    %v1660 = vpop.f32.mrb[0].mxu0
    %v1661 = vadd.f32 0.0, %v1660
    %v1662 = vpop.f32.mrb[0].mxu0
    %1663 = vmatprep.mubr.f32.mxu0 0.0
    %1664 = vmatmul.mubr.f32.gmra.mrb[0].mxu0 %v1400
    %v1665 = vpop.f32.mrb[0].mxu0
    %v1666 = vadd.f32 0.0, %v1665
    %v1667 = vpop.f32.mrb[0].mxu0
    %1668 = vmatprep.mubr.f32.mxu0 0.0
    %1669 = vmatmul.mubr.f32.gmra.mrb[0].mxu0 %v1403
    %v1670 = vpop.f32.mrb[0].mxu0
    %v1671 = vadd.f32 0.0, %v1670
    %v1672 = vpop.f32.mrb[0].mxu0
    %1673 = vmatprep.mubr.f32.mxu0 0.0
    %1674 = vmatmul.mubr.f32.gmra.mrb[0].mxu0 %v1406
    %v1675 = vpop.f32.mrb[0].mxu0
    %v1676 = vadd.f32 0.0, %v1675
    %v1677 = vpop.f32.mrb[0].mxu0
    %1678 = vmatprep.mubr.f32.mxu0 0.0
    %1679 = vmatmul.mubr.f32.gmra.mrb[0].mxu0 %v1409
    %v1680 = vpop.f32.mrb[0].mxu0
    %v1681 = vadd.f32 0.0, %v1680
    %v1682 = vpop.f32.mrb[0].mxu0
    %1683 = vmatprep.mubr.f32.mxu0 0.0
    %1684 = vmatmul.mubr.f32.gmra.mrb[0].mxu0 %v1412
    %v1685 = vpop.f32.mrb[0].mxu0
    %v1686 = vadd.f32 0.0, %v1685
    %v1687 = vpop.f32.mrb[0].mxu0
    %1688 = vmatprep.mubr.f32.mxu0 0.0
    %1689 = vmatmul.mubr.f32.gmra.mrb[0].mxu0 %v1415
    %v1690 = vpop.f32.mrb[0].mxu0
    %v1691 = vadd.f32 0.0, %v1690
    %v1692 = vpop.f32.mrb[0].mxu0
    %1693 = vmatprep.mubr.f32.mxu0 0.0
    %1694 = vmatmul.mubr.f32.gmra.mrb[0].mxu0 %v1418
    %v1695 = vpop.f32.mrb[0].mxu0
    %v1696 = vadd.f32 0.0, %v1695
    %v1697 = vpop.f32.mrb[0].mxu0
    %1698 = vmatprep.mubr.f32.mxu0 0.0
    %1699 = vmatmul.mubr.f32.gmra.mrb[0].mxu0 %v1421
    %v1700 = vpop.f32.mrb[0].mxu0
    %v1701 = vadd.f32 0.0, %v1700
    %v1702 = vpop.f32.mrb[0].mxu0
    %1703 = vmatprep.mubr.f32.mxu0 0.0
    %1704 = vmatmul.mubr.f32.gmra.mrb[0].mxu0 %v1424
    %v1705 = vpop.f32.mrb[0].mxu0
    %v1706 = vadd.f32 0.0, %v1705
    %v1707 = vpop.f32.mrb[0].mxu0
    %1708 = vmatprep.mubr.f32.mxu0 0.0
    %1709 = vmatmul.mubr.f32.gmra.mrb[0].mxu0 %v1427
    %v1710 = vpop.f32.mrb[0].mxu0
    %v1711 = vadd.f32 0.0, %v1710
    %v1712 = vpop.f32.mrb[0].mxu0
    %1713 = vmatprep.mubr.f32.mxu0 0.0
    %1714 = vmatmul.mubr.f32.gmra.mrb[0].mxu0 %v1430
    %v1715 = vpop.f32.mrb[0].mxu0
    %v1716 = vadd.f32 0.0, %v1715
    %v1717 = vpop.f32.mrb[0].mxu0
    %1718 = vmatprep.mubr.f32.mxu0 0.0
    %1719 = vmatmul.mubr.f32.gmra.mrb[0].mxu0 %v1433
    %v1720 = vpop.f32.mrb[0].mxu0
    %v1721 = vadd.f32 0.0, %v1720
    %v1722 = vpop.f32.mrb[0].mxu0
    %1723 = vmatprep.mubr.f32.mxu0 0.0
    %1724 = vmatmul.mubr.f32.gmra.mrb[0].mxu0 %v1436
    %v1725 = vpop.f32.mrb[0].mxu0
    %v1726 = vadd.f32 0.0, %v1725
    %v1727 = vpop.f32.mrb[0].mxu0
    %1728 = vmatprep.mubr.f32.mxu0 0.0
    %1729 = vmatmul.mubr.f32.gmra.mrb[0].mxu0 %v1439
    %v1730 = vpop.f32.mrb[0].mxu0
    %v1731 = vadd.f32 0.0, %v1730
    %v1732 = vpop.f32.mrb[0].mxu0
    %1733 = vmatprep.mubr.f32.mxu0 0.0
    %1734 = vmatmul.mubr.f32.gmra.mrb[0].mxu0 %v1442
    %v1735 = vpop.f32.mrb[0].mxu0
    %v1736 = vadd.f32 0.0, %v1735
    %v1737 = vpop.f32.mrb[0].mxu0
    %1738 = vmatprep.mubr.f32.mxu0 0.0
    %1739 = vmatmul.mubr.f32.gmra.mrb[0].mxu0 %v1445
    %v1740 = vpop.f32.mrb[0].mxu0
    %v1741 = vadd.f32 0.0, %v1740
    %v1742 = vpop.f32.mrb[0].mxu0
    %1743 = vmatprep.mubr.f32.mxu0 0.0
    %1744 = vmatmul.mubr.f32.gmra.mrb[0].mxu0 %v1448
    %v1745 = vpop.f32.mrb[0].mxu0
    %v1746 = vadd.f32 0.0, %v1745
    %v1747 = vpop.f32.mrb[0].mxu0
    %1748 = vmatprep.mubr.f32.mxu0 0.0
    %1749 = vmatmul.mubr.f32.gmra.mrb[0].mxu0 %v1451
    %v1750 = vpop.f32.mrb[0].mxu0
    %v1751 = vadd.f32 0.0, %v1750
    %v1752 = vpop.f32.mrb[0].mxu0
    %1753 = vmatprep.mubr.f32.mxu0 0.0
    %1754 = vmatmul.mubr.f32.gmra.mrb[0].mxu0 %v1454
    %v1755 = vpop.f32.mrb[0].mxu0
    %v1756 = vadd.f32 0.0, %v1755
    %v1757 = vpop.f32.mrb[0].mxu0
    %1758 = vmatprep.mubr.f32.mxu0 0.0
    %1759 = vmatmul.mubr.f32.gmra.mrb[0].mxu0 %v1457
    %v1760 = vpop.f32.mrb[0].mxu0
    %v1761 = vadd.f32 0.0, %v1760
    %v1762 = vpop.f32.mrb[0].mxu0
    %1763 = vmatprep.mubr.f32.mxu0 0.0
    %1764 = vmatmul.mubr.f32.gmra.mrb[0].mxu0 %v1460
    %v1765 = vpop.f32.mrb[0].mxu0
    %v1766 = vadd.f32 0.0, %v1765
    %v1767 = vpop.f32.mrb[0].mxu0
    %1768 = vmatprep.mubr.f32.mxu0 0.0
    %1769 = vmatmul.mubr.f32.gmra.mrb[0].mxu0 %v1463
    %v1770 = vpop.f32.mrb[0].mxu0
    %v1771 = vadd.f32 0.0, %v1770
    %v1772 = vpop.f32.mrb[0].mxu0
    %1773 = vmatprep.mubr.f32.mxu0 0.0
    %1774 = vmatmul.mubr.f32.gmra.mrb[0].mxu0 %v1466
    %v1775 = vpop.f32.mrb[0].mxu0
    %v1776 = vadd.f32 0.0, %v1775
    %v1777 = vpop.f32.mrb[0].mxu0
    %1778 = vmatprep.mubr.f32.mxu0 0.0
    %1779 = vmatmul.mubr.f32.gmra.mrb[0].mxu0 %v1469
    %v1780 = vpop.f32.mrb[0].mxu0
    %v1781 = vadd.f32 0.0, %v1780
    %v1782 = vpop.f32.mrb[0].mxu0
    %1783 = vmatprep.mubr.f32.mxu0 0.0
    %1784 = vmatmul.mubr.f32.gmra.mrb[0].mxu0 %v1472
    %v1785 = vpop.f32.mrb[0].mxu0
    %v1786 = vadd.f32 0.0, %v1785
    %v1787 = vpop.f32.mrb[0].mxu0
    %1788 = vmatprep.mubr.f32.mxu0 0.0
    %1789 = vmatmul.mubr.f32.gmra.mrb[0].mxu0 %v1475
    %v1790 = vpop.f32.mrb[0].mxu0
    %v1791 = vadd.f32 0.0, %v1790
    %v1792 = vpop.f32.mrb[0].mxu0
    %1793 = vmatprep.mubr.f32.mxu0 0.0
    %1794 = vmatmul.mubr.f32.gmra.mrb[0].mxu0 %v1478
    %v1795 = vpop.f32.mrb[0].mxu0
    %v1796 = vadd.f32 0.0, %v1795
    %v1797 = vpop.f32.mrb[0].mxu0
    %1798 = vmatprep.mubr.f32.mxu0 0.0
    %1799 = vmatmul.mubr.f32.gmra.mrb[0].mxu0 %v1481
    %v1800 = vpop.f32.mrb[0].mxu0
    %v1801 = vadd.f32 0.0, %v1800
    %v1802 = vpop.f32.mrb[0].mxu0
    %1803 = vmatprep.mubr.f32.mxu0 0.0
    %1804 = vmatmul.mubr.f32.gmra.mrb[0].mxu0 %v1484
    %v1805 = vpop.f32.mrb[0].mxu0
    %v1806 = vadd.f32 0.0, %v1805
    %v1807 = vpop.f32.mrb[0].mxu0
    %1808 = vmatprep.mubr.f32.mxu0 0.0
    %1809 = vmatmul.mubr.f32.gmra.mrb[0].mxu0 %v1487
    %v1810 = vpop.f32.mrb[0].mxu0
    %v1811 = vadd.f32 0.0, %v1810
    %v1812 = vpop.f32.mrb[0].mxu0
    %1813 = vmatprep.mubr.f32.mxu0 0.0
    %1814 = vmatmul.mubr.f32.gmra.mrb[0].mxu0 %v1490
    %v1815 = vpop.f32.mrb[0].mxu0
    %v1816 = vadd.f32 0.0, %v1815
    %v1817 = vpop.f32.mrb[0].mxu0
    %1818 = vmatprep.mubr.f32.mxu0 0.0
    %1819 = vmatmul.mubr.f32.gmra.mrb[0].mxu0 %v1493
    %v1820 = vpop.f32.mrb[0].mxu0
    %v1821 = vadd.f32 0.0, %v1820
    %v1822 = vpop.f32.mrb[0].mxu0
    %1823 = vmatprep.mubr.f32.mxu0 0.0
    %1824 = vmatmul.mubr.f32.gmra.mrb[0].mxu0 %v1496
    %v1825 = vpop.f32.mrb[0].mxu0
    %v1826 = vadd.f32 0.0, %v1825
    %v1827 = vpop.f32.mrb[0].mxu0
    %1828 = vmatprep.mubr.f32.mxu0 0.0
    %1829 = vmatmul.mubr.f32.gmra.mrb[0].mxu0 %v1499
    %v1830 = vpop.f32.mrb[0].mxu0
    %v1831 = vadd.f32 0.0, %v1830
    %v1832 = vpop.f32.mrb[0].mxu0
    %1833 = vmatprep.mubr.f32.mxu0 0.0
    %1834 = vmatmul.mubr.f32.gmra.mrb[0].mxu0 %v1502
    %v1835 = vpop.f32.mrb[0].mxu0
    %v1836 = vadd.f32 0.0, %v1835
    %v1837 = vpop.f32.mrb[0].mxu0
    %1838 = vmatprep.mubr.f32.mxu0 0.0
    %1839 = vmatmul.mubr.f32.gmra.mrb[0].mxu0 %v1505
    %v1840 = vpop.f32.mrb[0].mxu0
    %v1841 = vadd.f32 0.0, %v1840
    %v1842 = vpop.f32.mrb[0].mxu0
    %1843 = vmatprep.mubr.f32.mxu0 0.0
    %1844 = vmatmul.mubr.f32.gmra.mrb[0].mxu0 %v1508
    %v1845 = vpop.f32.mrb[0].mxu0
    %v1846 = vadd.f32 0.0, %v1845
    %v1847 = vpop.f32.mrb[0].mxu0
    %1848 = vmatprep.mubr.f32.mxu0 0.0
    %1849 = vmatmul.mubr.f32.gmra.mrb[0].mxu0 %v1511
    %v1850 = vpop.f32.mrb[0].mxu0
    %v1851 = vadd.f32 0.0, %v1850
    %v1852 = vpop.f32.mrb[0].mxu0
    %1853 = vmatprep.mubr.f32.mxu0 0.0
    %1854 = vmatmul.mubr.f32.gmra.mrb[0].mxu0 %v1514
    %v1855 = vpop.f32.mrb[0].mxu0
    %v1856 = vadd.f32 0.0, %v1855
    %v1857 = vpop.f32.mrb[0].mxu0
    %1858 = vmatprep.mubr.f32.mxu0 0.0
    %1859 = vmatmul.mubr.f32.gmra.mrb[0].mxu0 %v1517
    %v1860 = vpop.f32.mrb[0].mxu0
    %v1861 = vadd.f32 0.0, %v1860
    %v1862 = vpop.f32.mrb[0].mxu0
    %1863 = vmatprep.mubr.f32.mxu0 0.0
    %1864 = vmatmul.mubr.f32.gmra.mrb[0].mxu0 %v1520
    %v1865 = vpop.f32.mrb[0].mxu0
    %v1866 = vadd.f32 0.0, %v1865
    %v1867 = vpop.f32.mrb[0].mxu0
    %1868 = vmatprep.mubr.f32.mxu0 0.0
    %1869 = vmatmul.mubr.f32.gmra.mrb[0].mxu0 %v1523
    %v1870 = vpop.f32.mrb[0].mxu0
    %v1871 = vadd.f32 0.0, %v1870
    %v1872 = vpop.f32.mrb[0].mxu0
    %1873 = vmatprep.mubr.f32.mxu0 0.0
    %1874 = vmatmul.mubr.f32.gmra.mrb[0].mxu0 %v1526
    %v1875 = vpop.f32.mrb[0].mxu0
    %v1876 = vadd.f32 0.0, %v1875
    %v1877 = vpop.f32.mrb[0].mxu0
    %1878 = vmatprep.mubr.f32.mxu0 0.0
    %1879 = vmatmul.mubr.f32.gmra.mrb[0].mxu0 %v1529
    %v1880 = vpop.f32.mrb[0].mxu0
    %v1881 = vadd.f32 0.0, %v1880
    %v1882 = vpop.f32.mrb[0].mxu0
    %1883 = vmatprep.mubr.f32.mxu0 0.0
    %1884 = vmatmul.mubr.f32.gmra.mrb[0].mxu0 %v1532
    %v1885 = vpop.f32.mrb[0].mxu0
    %v1886 = vadd.f32 0.0, %v1885
    %v1887 = vpop.f32.mrb[0].mxu0
    %1888 = vmatprep.mubr.f32.mxu0 0.0
    %1889 = vmatmul.mubr.f32.gmra.mrb[0].mxu0 %v1535
    %v1890 = vpop.f32.mrb[0].mxu0
    %v1891 = vadd.f32 0.0, %v1890
    %v1892 = vpop.f32.mrb[0].mxu0
    %1893 = vmatprep.mubr.f32.mxu0 0.0
    %1894 = vmatmul.mubr.f32.gmra.mrb[0].mxu0 %v1538
    %v1895 = vpop.f32.mrb[0].mxu0
    %v1896 = vadd.f32 0.0, %v1895
    %v1897 = vpop.f32.mrb[0].mxu0
    %1898 = vmatprep.mubr.f32.mxu0 0.0
    %1899 = vmatmul.mubr.f32.gmra.mrb[0].mxu0 %v1541
    %v1900 = vpop.f32.mrb[0].mxu0
    %v1901 = vadd.f32 0.0, %v1900
    %v1902 = vpop.f32.mrb[0].mxu0
    %1903 = vmatprep.mubr.f32.mxu0 0.0
    %1904 = vmatmul.mubr.f32.gmra.mrb[0].mxu0 %v1544
    %v1905 = vpop.f32.mrb[0].mxu0
    %v1906 = vadd.f32 0.0, %v1905
    %v1907 = vpop.f32.mrb[0].mxu0
    %1908 = vmatprep.mubr.f32.mxu0 0.0
    %1909 = vmatmul.mubr.f32.gmra.mrb[0].mxu0 %v1547
    %v1910 = vpop.f32.mrb[0].mxu0
    %v1911 = vadd.f32 0.0, %v1910
    %v1912 = vpop.f32.mrb[0].mxu0
    %1913 = vmatprep.mubr.f32.mxu0 0.0
    %1914 = vmatmul.mubr.f32.gmra.mrb[0].mxu0 %v1550
    %v1915 = vpop.f32.mrb[0].mxu0
    %v1916 = vadd.f32 0.0, %v1915
    %v1917 = vpop.f32.mrb[0].mxu0
    %1918 = vmatprep.mubr.f32.mxu0 0.0
    %1919 = vmatmul.mubr.f32.gmra.mrb[0].mxu0 %v1553
    %v1920 = vpop.f32.mrb[0].mxu0
    %v1921 = vadd.f32 0.0, %v1920
    %v1922 = vpop.f32.mrb[0].mxu0
    %1923 = vmatprep.mubr.f32.mxu0 0.0
    %1924 = vmatmul.mubr.f32.gmra.mrb[0].mxu0 %v1556
    %v1925 = vpop.f32.mrb[0].mxu0
    %v1926 = vadd.f32 0.0, %v1925
    %v1927 = vpop.f32.mrb[0].mxu0
    %1928 = vmatprep.mubr.f32.mxu0 0.0
    %1929 = vmatmul.mubr.f32.gmra.mrb[0].mxu0 %v1559
    %v1930 = vpop.f32.mrb[0].mxu0
    %v1931 = vadd.f32 0.0, %v1930
    %v1932 = vpop.f32.mrb[0].mxu0
    %1933 = vmatprep.mubr.f32.mxu0 0.0
    %1934 = vmatmul.mubr.f32.gmra.mrb[0].mxu0 %v1562
    %v1935 = vpop.f32.mrb[0].mxu0
    %v1936 = vadd.f32 0.0, %v1935
    %v1937 = vpop.f32.mrb[0].mxu0
    %1938 = vdwg.mxu0
    %v1939 = vadd.f32 %v1006, %v1631
    %v1940 = vadd.f32 %v1011, %v1636
    %v1941 = vadd.f32 %v1016, %v1641
    %v1942 = vadd.f32 %v1021, %v1646
    %v1943 = vadd.f32 %v1026, %v1651
    %v1944 = vadd.f32 %v1031, %v1656
    %v1945 = vadd.f32 %v1036, %v1661
    %v1946 = vadd.f32 %v1041, %v1666
    %v1947 = vadd.f32 %v1046, %v1671
    %v1948 = vadd.f32 %v1051, %v1676
    %v1949 = vadd.f32 %v1056, %v1681
    %v1950 = vadd.f32 %v1061, %v1686
    %v1951 = vadd.f32 %v1066, %v1691
    %v1952 = vadd.f32 %v1071, %v1696
    %v1953 = vadd.f32 %v1076, %v1701
    %v1954 = vadd.f32 %v1081, %v1706
    %v1955 = vadd.f32 %v1086, %v1711
    %v1956 = vadd.f32 %v1091, %v1716
    %v1957 = vadd.f32 %v1096, %v1721
    %v1958 = vadd.f32 %v1101, %v1726
    %v1959 = vadd.f32 %v1106, %v1731
    %v1960 = vadd.f32 %v1111, %v1736
    %v1961 = vadd.f32 %v1116, %v1741
    %v1962 = vadd.f32 %v1121, %v1746
    %v1963 = vadd.f32 %v1126, %v1751
    %v1964 = vadd.f32 %v1131, %v1756
    %v1965 = vadd.f32 %v1136, %v1761
    %v1966 = vadd.f32 %v1141, %v1766
    %v1967 = vadd.f32 %v1146, %v1771
    %v1968 = vadd.f32 %v1151, %v1776
    %v1969 = vadd.f32 %v1156, %v1781
    %v1970 = vadd.f32 %v1161, %v1786
    %v1971 = vadd.f32 %v1166, %v1791
    %v1972 = vadd.f32 %v1171, %v1796
    %v1973 = vadd.f32 %v1176, %v1801
    %v1974 = vadd.f32 %v1181, %v1806
    %v1975 = vadd.f32 %v1186, %v1811
    %v1976 = vadd.f32 %v1191, %v1816
    %v1977 = vadd.f32 %v1196, %v1821
    %v1978 = vadd.f32 %v1201, %v1826
    %v1979 = vadd.f32 %v1206, %v1831
    %v1980 = vadd.f32 %v1211, %v1836
    %v1981 = vadd.f32 %v1216, %v1841
    %v1982 = vadd.f32 %v1221, %v1846
    %v1983 = vadd.f32 %v1226, %v1851
    %v1984 = vadd.f32 %v1231, %v1856
    %v1985 = vadd.f32 %v1236, %v1861
    %v1986 = vadd.f32 %v1241, %v1866
    %v1987 = vadd.f32 %v1246, %v1871
    %v1988 = vadd.f32 %v1251, %v1876
    %v1989 = vadd.f32 %v1256, %v1881
    %v1990 = vadd.f32 %v1261, %v1886
    %v1991 = vadd.f32 %v1266, %v1891
    %v1992 = vadd.f32 %v1271, %v1896
    %v1993 = vadd.f32 %v1276, %v1901
    %v1994 = vadd.f32 %v1281, %v1906
    %v1995 = vadd.f32 %v1286, %v1911
    %v1996 = vadd.f32 %v1291, %v1916
    %v1997 = vadd.f32 %v1296, %v1921
    %v1998 = vadd.f32 %v1301, %v1926
    %v1999 = vadd.f32 %v1306, %v1931
    %v2000 = vadd.f32 %v1311, %v1936
    %v2001 = vld [vmem:[%s0 + $0x3] sm:$0xff]
    %v2002 = vld [vmem:[%s0 + $0xb] sm:$0xff]
    %v2003 = vld [vmem:[%s0 + $0x13] sm:$0xff]
    %v2004 = vld [vmem:[%s0 + $0x1b] sm:$0xff]
    %v2005 = vld [vmem:[%s0 + $0x23] sm:$0xff]
    %v2006 = vld [vmem:[%s0 + $0x2b] sm:$0xff]
    %v2007 = vld [vmem:[%s0 + $0x33] sm:$0xff]
    %v2008 = vld [vmem:[%s0 + $0x3b] sm:$0xff]
    %v2009 = vld [vmem:[%s0 + $0x43] sm:$0xff]
    %v2010 = vld [vmem:[%s0 + $0x4b] sm:$0xff]
    %v2011 = vld [vmem:[%s0 + $0x53] sm:$0xff]
    %v2012 = vld [vmem:[%s0 + $0x5b] sm:$0xff]
    %v2013 = vld [vmem:[%s0 + $0x63] sm:$0xff]
    %v2014 = vld [vmem:[%s0 + $0x6b] sm:$0xff]
    %v2015 = vld [vmem:[%s0 + $0x73] sm:$0xff]
    %v2016 = vld [vmem:[%s0 + $0x7b] sm:$0xff]
    %v2017 = vld [vmem:[%s0 + $0x83] sm:$0xff]
    %v2018 = vld [vmem:[%s0 + $0x8b] sm:$0xff]
    %v2019 = vld [vmem:[%s0 + $0x93] sm:$0xff]
    %v2020 = vld [vmem:[%s0 + $0x9b] sm:$0xff]
    %v2021 = vld [vmem:[%s0 + $0xa3] sm:$0xff]
    %v2022 = vld [vmem:[%s0 + $0xab] sm:$0xff]
    %v2023 = vld [vmem:[%s0 + $0xb3] sm:$0xff]
    %v2024 = vld [vmem:[%s0 + $0xbb] sm:$0xff]
    %v2025 = vld [vmem:[%s0 + $0xc3] sm:$0xff]
    %v2026 = vld [vmem:[%s0 + $0xcb] sm:$0xff]
    %v2027 = vld [vmem:[%s0 + $0xd3] sm:$0xff]
    %v2028 = vld [vmem:[%s0 + $0xdb] sm:$0xff]
    %v2029 = vld [vmem:[%s0 + $0xe3] sm:$0xff]
    %v2030 = vld [vmem:[%s0 + $0xeb] sm:$0xff]
    %v2031 = vld [vmem:[%s0 + $0xf3] sm:$0xff]
    %v2032 = vld [vmem:[%s0 + $0xfb] sm:$0xff]
    %v2033 = vld [vmem:[%s0 + $0x103] sm:$0xff]
    %v2034 = vld [vmem:[%s0 + $0x10b] sm:$0xff]
    %v2035 = vld [vmem:[%s0 + $0x113] sm:$0xff]
    %v2036 = vld [vmem:[%s0 + $0x11b] sm:$0xff]
    %v2037 = vld [vmem:[%s0 + $0x123] sm:$0xff]
    %v2038 = vld [vmem:[%s0 + $0x12b] sm:$0xff]
    %v2039 = vld [vmem:[%s0 + $0x133] sm:$0xff]
    %v2040 = vld [vmem:[%s0 + $0x13b] sm:$0xff]
    %v2041 = vld [vmem:[%s0 + $0x143] sm:$0xff]
    %v2042 = vld [vmem:[%s0 + $0x14b] sm:$0xff]
    %v2043 = vld [vmem:[%s0 + $0x153] sm:$0xff]
    %v2044 = vld [vmem:[%s0 + $0x15b] sm:$0xff]
    %v2045 = vld [vmem:[%s0 + $0x163] sm:$0xff]
    %v2046 = vld [vmem:[%s0 + $0x16b] sm:$0xff]
    %v2047 = vld [vmem:[%s0 + $0x173] sm:$0xff]
    %v2048 = vld [vmem:[%s0 + $0x17b] sm:$0xff]
    %v2049 = vld [vmem:[%s0 + $0x183] sm:$0xff]
    %v2050 = vld [vmem:[%s0 + $0x18b] sm:$0xff]
    %v2051 = vld [vmem:[%s0 + $0x193] sm:$0xff]
    %v2052 = vld [vmem:[%s0 + $0x19b] sm:$0xff]
    %v2053 = vld [vmem:[%s0 + $0x1a3] sm:$0xff]
    %v2054 = vld [vmem:[%s0 + $0x1ab] sm:$0xff]
    %v2055 = vld [vmem:[%s0 + $0x1b3] sm:$0xff]
    %v2056 = vld [vmem:[%s0 + $0x1bb] sm:$0xff]
    %v2057 = vld [vmem:[%s0 + $0x1c3] sm:$0xff]
    %v2058 = vld [vmem:[%s0 + $0x1cb] sm:$0xff]
    %v2059 = vld [vmem:[%s0 + $0x1d3] sm:$0xff]
    %v2060 = vld [vmem:[%s0 + $0x1db] sm:$0xff]
    %v2061 = vld [vmem:[%s0 + $0x1e3] sm:$0xff]
    %v2062 = vld [vmem:[%s0 + $0x1eb] sm:$0xff]
    %v2063 = vld [vmem:[%s1 + $0x30] sm:$0xff]
    %v2064 = vld [vmem:[%s1 + $0x38] sm:$0xff]
    %v2066 = vsel %vm191, %v2001, 0
    %v2069 = vsel %vm191, %v2002, 0
    %v2072 = vsel %vm191, %v2003, 0
    %v2075 = vsel %vm191, %v2004, 0
    %v2078 = vsel %vm191, %v2005, 0
    %v2081 = vsel %vm191, %v2006, 0
    %v2084 = vsel %vm191, %v2007, 0
    %v2087 = vsel %vm191, %v2008, 0
    %v2090 = vsel %vm191, %v2009, 0
    %v2093 = vsel %vm191, %v2010, 0
    %v2096 = vsel %vm191, %v2011, 0
    %v2099 = vsel %vm191, %v2012, 0
    %v2102 = vsel %vm191, %v2013, 0
    %v2105 = vsel %vm191, %v2014, 0
    %v2108 = vsel %vm191, %v2015, 0
    %v2111 = vsel %vm191, %v2016, 0
    %v2114 = vsel %vm191, %v2017, 0
    %v2117 = vsel %vm191, %v2018, 0
    %v2120 = vsel %vm191, %v2019, 0
    %v2123 = vsel %vm191, %v2020, 0
    %v2126 = vsel %vm191, %v2021, 0
    %v2129 = vsel %vm191, %v2022, 0
    %v2132 = vsel %vm191, %v2023, 0
    %v2135 = vsel %vm191, %v2024, 0
    %v2138 = vsel %vm191, %v2025, 0
    %v2141 = vsel %vm191, %v2026, 0
    %v2144 = vsel %vm191, %v2027, 0
    %v2147 = vsel %vm191, %v2028, 0
    %v2150 = vsel %vm191, %v2029, 0
    %v2153 = vsel %vm191, %v2030, 0
    %v2156 = vsel %vm191, %v2031, 0
    %v2159 = vsel %vm191, %v2032, 0
    %v2162 = vsel %vm191, %v2033, 0
    %v2165 = vsel %vm191, %v2034, 0
    %v2168 = vsel %vm191, %v2035, 0
    %v2171 = vsel %vm191, %v2036, 0
    %v2174 = vsel %vm191, %v2037, 0
    %v2177 = vsel %vm191, %v2038, 0
    %v2180 = vsel %vm191, %v2039, 0
    %v2183 = vsel %vm191, %v2040, 0
    %v2186 = vsel %vm191, %v2041, 0
    %v2189 = vsel %vm191, %v2042, 0
    %v2192 = vsel %vm191, %v2043, 0
    %v2195 = vsel %vm191, %v2044, 0
    %v2198 = vsel %vm191, %v2045, 0
    %v2201 = vsel %vm191, %v2046, 0
    %v2204 = vsel %vm191, %v2047, 0
    %v2207 = vsel %vm191, %v2048, 0
    %v2210 = vsel %vm191, %v2049, 0
    %v2213 = vsel %vm191, %v2050, 0
    %v2216 = vsel %vm191, %v2051, 0
    %v2219 = vsel %vm191, %v2052, 0
    %v2222 = vsel %vm191, %v2053, 0
    %v2225 = vsel %vm191, %v2054, 0
    %v2228 = vsel %vm191, %v2055, 0
    %v2231 = vsel %vm191, %v2056, 0
    %v2234 = vsel %vm191, %v2057, 0
    %v2237 = vsel %vm191, %v2058, 0
    %v2240 = vsel %vm191, %v2059, 0
    %v2243 = vsel %vm191, %v2060, 0
    %v2246 = vsel %vm191, %v2061, 0
    %v2249 = vsel %vm191, %v2062, 0
    %2251 = vmatprep.subr.mxu0 0.0
    %2252 = vmatpush1.msra.mxu0 %v2063
    %2253 = vmatprep.subr.mxu0 0.0
    %2254 = vmatpush1.msra.mxu0 %v2064
    %2255 = vmatprep.subr.mxu0 0.0
    %2256 = vmatpush1.msra.mxu0 0.0
    %2257 = vmatprep.subr.mxu0 0.0
    %2258 = vmatpush1.msra.mxu0 0.0
    %2259 = vmatprep.subr.mxu0 0.0
    %2260 = vmatpush1.msra.mxu0 0.0
    %2261 = vmatprep.subr.mxu0 0.0
    %2262 = vmatpush1.msra.mxu0 0.0
    %2263 = vmatprep.subr.mxu0 0.0
    %2264 = vmatpush1.msra.mxu0 0.0
    %2265 = vmatprep.subr.mxu0 0.0
    %2266 = vmatpush1.msra.mxu0 0.0
    %2267 = vmatprep.subr.mxu0 0.0
    %2268 = vmatpush1.msra.mxu0 0.0
    %2269 = vmatprep.subr.mxu0 0.0
    %2270 = vmatpush1.msra.mxu0 0.0
    %2271 = vmatprep.subr.mxu0 0.0
    %2272 = vmatpush1.msra.mxu0 0.0
    %2273 = vmatprep.subr.mxu0 0.0
    %2274 = vmatpush1.msra.mxu0 0.0
    %2275 = vmatprep.subr.mxu0 0.0
    %2276 = vmatpush1.msra.mxu0 0.0
    %2277 = vmatprep.subr.mxu0 0.0
    %2278 = vmatpush1.msra.mxu0 0.0
    %2279 = vmatprep.subr.mxu0 0.0
    %2280 = vmatpush1.msra.mxu0 0.0
    %2281 = vmatprep.subr.mxu0 0.0
    %2282 = vmatpush1.msra.mxu0 0.0
    %2283 = vmatprep.subr.mxu0 0.0
    %2284 = vmatpush1.msra.mxu0 0.0
    %2285 = vmatprep.subr.mxu0 0.0
    %2286 = vmatpush1.msra.mxu0 0.0
    %2287 = vmatprep.subr.mxu0 0.0
    %2288 = vmatpush1.msra.mxu0 0.0
    %2289 = vmatprep.subr.mxu0 0.0
    %2290 = vmatpush1.msra.mxu0 0.0
    %2291 = vmatprep.subr.mxu0 0.0
    %2292 = vmatpush1.msra.mxu0 0.0
    %2293 = vmatprep.subr.mxu0 0.0
    %2294 = vmatpush1.msra.mxu0 0.0
    %2295 = vmatprep.subr.mxu0 0.0
    %2296 = vmatpush1.msra.mxu0 0.0
    %2297 = vmatprep.subr.mxu0 0.0
    %2298 = vmatpush1.msra.mxu0 0.0
    %2299 = vmatprep.subr.mxu0 0.0
    %2300 = vmatpush1.msra.mxu0 0.0
    %2301 = vmatprep.subr.mxu0 0.0
    %2302 = vmatpush1.msra.mxu0 0.0
    %2303 = vmatprep.subr.mxu0 0.0
    %2304 = vmatpush1.msra.mxu0 0.0
    %2305 = vmatprep.subr.mxu0 0.0
    %2306 = vmatpush1.msra.mxu0 0.0
    %2307 = vmatprep.subr.mxu0 0.0
    %2308 = vmatpush1.msra.mxu0 0.0
    %2309 = vmatprep.subr.mxu0 0.0
    %2310 = vmatpush1.msra.mxu0 0.0
    %2311 = vmatprep.subr.mxu0 0.0
    %2312 = vmatpush1.msra.mxu0 0.0
    %2313 = vmatprep.subr.mxu0 0.0
    %2314 = vmatpush1.msra.mxu0 0.0
    %2315 = vmatprep.mubr.f32.mxu0 0.0
    %2316 = vmatmul.mubr.f32.gmra.mrb[0].mxu0 %v2066
    %v2317 = vpop.f32.mrb[0].mxu0
    %v2318 = vadd.f32 0.0, %v2317
    %v2319 = vpop.f32.mrb[0].mxu0
    %2320 = vmatprep.mubr.f32.mxu0 0.0
    %2321 = vmatmul.mubr.f32.gmra.mrb[0].mxu0 %v2069
    %v2322 = vpop.f32.mrb[0].mxu0
    %v2323 = vadd.f32 0.0, %v2322
    %v2324 = vpop.f32.mrb[0].mxu0
    %2325 = vmatprep.mubr.f32.mxu0 0.0
    %2326 = vmatmul.mubr.f32.gmra.mrb[0].mxu0 %v2072
    %v2327 = vpop.f32.mrb[0].mxu0
    %v2328 = vadd.f32 0.0, %v2327
    %v2329 = vpop.f32.mrb[0].mxu0
    %2330 = vmatprep.mubr.f32.mxu0 0.0
    %2331 = vmatmul.mubr.f32.gmra.mrb[0].mxu0 %v2075
    %v2332 = vpop.f32.mrb[0].mxu0
    %v2333 = vadd.f32 0.0, %v2332
    %v2334 = vpop.f32.mrb[0].mxu0
    %2335 = vmatprep.mubr.f32.mxu0 0.0
    %2336 = vmatmul.mubr.f32.gmra.mrb[0].mxu0 %v2078
    %v2337 = vpop.f32.mrb[0].mxu0
    %v2338 = vadd.f32 0.0, %v2337
    %v2339 = vpop.f32.mrb[0].mxu0
    %2340 = vmatprep.mubr.f32.mxu0 0.0
    %2341 = vmatmul.mubr.f32.gmra.mrb[0].mxu0 %v2081
    %v2342 = vpop.f32.mrb[0].mxu0
    %v2343 = vadd.f32 0.0, %v2342
    %v2344 = vpop.f32.mrb[0].mxu0
    %2345 = vmatprep.mubr.f32.mxu0 0.0
    %2346 = vmatmul.mubr.f32.gmra.mrb[0].mxu0 %v2084
    %v2347 = vpop.f32.mrb[0].mxu0
    %v2348 = vadd.f32 0.0, %v2347
    %v2349 = vpop.f32.mrb[0].mxu0
    %2350 = vmatprep.mubr.f32.mxu0 0.0
    %2351 = vmatmul.mubr.f32.gmra.mrb[0].mxu0 %v2087
    %v2352 = vpop.f32.mrb[0].mxu0
    %v2353 = vadd.f32 0.0, %v2352
    %v2354 = vpop.f32.mrb[0].mxu0
    %2355 = vmatprep.mubr.f32.mxu0 0.0
    %2356 = vmatmul.mubr.f32.gmra.mrb[0].mxu0 %v2090
    %v2357 = vpop.f32.mrb[0].mxu0
    %v2358 = vadd.f32 0.0, %v2357
    %v2359 = vpop.f32.mrb[0].mxu0
    %2360 = vmatprep.mubr.f32.mxu0 0.0
    %2361 = vmatmul.mubr.f32.gmra.mrb[0].mxu0 %v2093
    %v2362 = vpop.f32.mrb[0].mxu0
    %v2363 = vadd.f32 0.0, %v2362
    %v2364 = vpop.f32.mrb[0].mxu0
    %2365 = vmatprep.mubr.f32.mxu0 0.0
    %2366 = vmatmul.mubr.f32.gmra.mrb[0].mxu0 %v2096
    %v2367 = vpop.f32.mrb[0].mxu0
    %v2368 = vadd.f32 0.0, %v2367
    %v2369 = vpop.f32.mrb[0].mxu0
    %2370 = vmatprep.mubr.f32.mxu0 0.0
    %2371 = vmatmul.mubr.f32.gmra.mrb[0].mxu0 %v2099
    %v2372 = vpop.f32.mrb[0].mxu0
    %v2373 = vadd.f32 0.0, %v2372
    %v2374 = vpop.f32.mrb[0].mxu0
    %2375 = vmatprep.mubr.f32.mxu0 0.0
    %2376 = vmatmul.mubr.f32.gmra.mrb[0].mxu0 %v2102
    %v2377 = vpop.f32.mrb[0].mxu0
    %v2378 = vadd.f32 0.0, %v2377
    %v2379 = vpop.f32.mrb[0].mxu0
    %2380 = vmatprep.mubr.f32.mxu0 0.0
    %2381 = vmatmul.mubr.f32.gmra.mrb[0].mxu0 %v2105
    %v2382 = vpop.f32.mrb[0].mxu0
    %v2383 = vadd.f32 0.0, %v2382
    %v2384 = vpop.f32.mrb[0].mxu0
    %2385 = vmatprep.mubr.f32.mxu0 0.0
    %2386 = vmatmul.mubr.f32.gmra.mrb[0].mxu0 %v2108
    %v2387 = vpop.f32.mrb[0].mxu0
    %v2388 = vadd.f32 0.0, %v2387
    %v2389 = vpop.f32.mrb[0].mxu0
    %2390 = vmatprep.mubr.f32.mxu0 0.0
    %2391 = vmatmul.mubr.f32.gmra.mrb[0].mxu0 %v2111
    %v2392 = vpop.f32.mrb[0].mxu0
    %v2393 = vadd.f32 0.0, %v2392
    %v2394 = vpop.f32.mrb[0].mxu0
    %2395 = vmatprep.mubr.f32.mxu0 0.0
    %2396 = vmatmul.mubr.f32.gmra.mrb[0].mxu0 %v2114
    %v2397 = vpop.f32.mrb[0].mxu0
    %v2398 = vadd.f32 0.0, %v2397
    %v2399 = vpop.f32.mrb[0].mxu0
    %2400 = vmatprep.mubr.f32.mxu0 0.0
    %2401 = vmatmul.mubr.f32.gmra.mrb[0].mxu0 %v2117
    %v2402 = vpop.f32.mrb[0].mxu0
    %v2403 = vadd.f32 0.0, %v2402
    %v2404 = vpop.f32.mrb[0].mxu0
    %2405 = vmatprep.mubr.f32.mxu0 0.0
    %2406 = vmatmul.mubr.f32.gmra.mrb[0].mxu0 %v2120
    %v2407 = vpop.f32.mrb[0].mxu0
    %v2408 = vadd.f32 0.0, %v2407
    %v2409 = vpop.f32.mrb[0].mxu0
    %2410 = vmatprep.mubr.f32.mxu0 0.0
    %2411 = vmatmul.mubr.f32.gmra.mrb[0].mxu0 %v2123
    %v2412 = vpop.f32.mrb[0].mxu0
    %v2413 = vadd.f32 0.0, %v2412
    %v2414 = vpop.f32.mrb[0].mxu0
    %2415 = vmatprep.mubr.f32.mxu0 0.0
    %2416 = vmatmul.mubr.f32.gmra.mrb[0].mxu0 %v2126
    %v2417 = vpop.f32.mrb[0].mxu0
    %v2418 = vadd.f32 0.0, %v2417
    %v2419 = vpop.f32.mrb[0].mxu0
    %2420 = vmatprep.mubr.f32.mxu0 0.0
    %2421 = vmatmul.mubr.f32.gmra.mrb[0].mxu0 %v2129
    %v2422 = vpop.f32.mrb[0].mxu0
    %v2423 = vadd.f32 0.0, %v2422
    %v2424 = vpop.f32.mrb[0].mxu0
    %2425 = vmatprep.mubr.f32.mxu0 0.0
    %2426 = vmatmul.mubr.f32.gmra.mrb[0].mxu0 %v2132
    %v2427 = vpop.f32.mrb[0].mxu0
    %v2428 = vadd.f32 0.0, %v2427
    %v2429 = vpop.f32.mrb[0].mxu0
    %2430 = vmatprep.mubr.f32.mxu0 0.0
    %2431 = vmatmul.mubr.f32.gmra.mrb[0].mxu0 %v2135
    %v2432 = vpop.f32.mrb[0].mxu0
    %v2433 = vadd.f32 0.0, %v2432
    %v2434 = vpop.f32.mrb[0].mxu0
    %2435 = vmatprep.mubr.f32.mxu0 0.0
    %2436 = vmatmul.mubr.f32.gmra.mrb[0].mxu0 %v2138
    %v2437 = vpop.f32.mrb[0].mxu0
    %v2438 = vadd.f32 0.0, %v2437
    %v2439 = vpop.f32.mrb[0].mxu0
    %2440 = vmatprep.mubr.f32.mxu0 0.0
    %2441 = vmatmul.mubr.f32.gmra.mrb[0].mxu0 %v2141
    %v2442 = vpop.f32.mrb[0].mxu0
    %v2443 = vadd.f32 0.0, %v2442
    %v2444 = vpop.f32.mrb[0].mxu0
    %2445 = vmatprep.mubr.f32.mxu0 0.0
    %2446 = vmatmul.mubr.f32.gmra.mrb[0].mxu0 %v2144
    %v2447 = vpop.f32.mrb[0].mxu0
    %v2448 = vadd.f32 0.0, %v2447
    %v2449 = vpop.f32.mrb[0].mxu0
    %2450 = vmatprep.mubr.f32.mxu0 0.0
    %2451 = vmatmul.mubr.f32.gmra.mrb[0].mxu0 %v2147
    %v2452 = vpop.f32.mrb[0].mxu0
    %v2453 = vadd.f32 0.0, %v2452
    %v2454 = vpop.f32.mrb[0].mxu0
    %2455 = vmatprep.mubr.f32.mxu0 0.0
    %2456 = vmatmul.mubr.f32.gmra.mrb[0].mxu0 %v2150
    %v2457 = vpop.f32.mrb[0].mxu0
    %v2458 = vadd.f32 0.0, %v2457
    %v2459 = vpop.f32.mrb[0].mxu0
    %2460 = vmatprep.mubr.f32.mxu0 0.0
    %2461 = vmatmul.mubr.f32.gmra.mrb[0].mxu0 %v2153
    %v2462 = vpop.f32.mrb[0].mxu0
    %v2463 = vadd.f32 0.0, %v2462
    %v2464 = vpop.f32.mrb[0].mxu0
    %2465 = vmatprep.mubr.f32.mxu0 0.0
    %2466 = vmatmul.mubr.f32.gmra.mrb[0].mxu0 %v2156
    %v2467 = vpop.f32.mrb[0].mxu0
    %v2468 = vadd.f32 0.0, %v2467
    %v2469 = vpop.f32.mrb[0].mxu0
    %2470 = vmatprep.mubr.f32.mxu0 0.0
    %2471 = vmatmul.mubr.f32.gmra.mrb[0].mxu0 %v2159
    %v2472 = vpop.f32.mrb[0].mxu0
    %v2473 = vadd.f32 0.0, %v2472
    %v2474 = vpop.f32.mrb[0].mxu0
    %2475 = vmatprep.mubr.f32.mxu0 0.0
    %2476 = vmatmul.mubr.f32.gmra.mrb[0].mxu0 %v2162
    %v2477 = vpop.f32.mrb[0].mxu0
    %v2478 = vadd.f32 0.0, %v2477
    %v2479 = vpop.f32.mrb[0].mxu0
    %2480 = vmatprep.mubr.f32.mxu0 0.0
    %2481 = vmatmul.mubr.f32.gmra.mrb[0].mxu0 %v2165
    %v2482 = vpop.f32.mrb[0].mxu0
    %v2483 = vadd.f32 0.0, %v2482
    %v2484 = vpop.f32.mrb[0].mxu0
    %2485 = vmatprep.mubr.f32.mxu0 0.0
    %2486 = vmatmul.mubr.f32.gmra.mrb[0].mxu0 %v2168
    %v2487 = vpop.f32.mrb[0].mxu0
    %v2488 = vadd.f32 0.0, %v2487
    %v2489 = vpop.f32.mrb[0].mxu0
    %2490 = vmatprep.mubr.f32.mxu0 0.0
    %2491 = vmatmul.mubr.f32.gmra.mrb[0].mxu0 %v2171
    %v2492 = vpop.f32.mrb[0].mxu0
    %v2493 = vadd.f32 0.0, %v2492
    %v2494 = vpop.f32.mrb[0].mxu0
    %2495 = vmatprep.mubr.f32.mxu0 0.0
    %2496 = vmatmul.mubr.f32.gmra.mrb[0].mxu0 %v2174
    %v2497 = vpop.f32.mrb[0].mxu0
    %v2498 = vadd.f32 0.0, %v2497
    %v2499 = vpop.f32.mrb[0].mxu0
    %2500 = vmatprep.mubr.f32.mxu0 0.0
    %2501 = vmatmul.mubr.f32.gmra.mrb[0].mxu0 %v2177
    %v2502 = vpop.f32.mrb[0].mxu0
    %v2503 = vadd.f32 0.0, %v2502
    %v2504 = vpop.f32.mrb[0].mxu0
    %2505 = vmatprep.mubr.f32.mxu0 0.0
    %2506 = vmatmul.mubr.f32.gmra.mrb[0].mxu0 %v2180
    %v2507 = vpop.f32.mrb[0].mxu0
    %v2508 = vadd.f32 0.0, %v2507
    %v2509 = vpop.f32.mrb[0].mxu0
    %2510 = vmatprep.mubr.f32.mxu0 0.0
    %2511 = vmatmul.mubr.f32.gmra.mrb[0].mxu0 %v2183
    %v2512 = vpop.f32.mrb[0].mxu0
    %v2513 = vadd.f32 0.0, %v2512
    %v2514 = vpop.f32.mrb[0].mxu0
    %2515 = vmatprep.mubr.f32.mxu0 0.0
    %2516 = vmatmul.mubr.f32.gmra.mrb[0].mxu0 %v2186
    %v2517 = vpop.f32.mrb[0].mxu0
    %v2518 = vadd.f32 0.0, %v2517
    %v2519 = vpop.f32.mrb[0].mxu0
    %2520 = vmatprep.mubr.f32.mxu0 0.0
    %2521 = vmatmul.mubr.f32.gmra.mrb[0].mxu0 %v2189
    %v2522 = vpop.f32.mrb[0].mxu0
    %v2523 = vadd.f32 0.0, %v2522
    %v2524 = vpop.f32.mrb[0].mxu0
    %2525 = vmatprep.mubr.f32.mxu0 0.0
    %2526 = vmatmul.mubr.f32.gmra.mrb[0].mxu0 %v2192
    %v2527 = vpop.f32.mrb[0].mxu0
    %v2528 = vadd.f32 0.0, %v2527
    %v2529 = vpop.f32.mrb[0].mxu0
    %2530 = vmatprep.mubr.f32.mxu0 0.0
    %2531 = vmatmul.mubr.f32.gmra.mrb[0].mxu0 %v2195
    %v2532 = vpop.f32.mrb[0].mxu0
    %v2533 = vadd.f32 0.0, %v2532
    %v2534 = vpop.f32.mrb[0].mxu0
    %2535 = vmatprep.mubr.f32.mxu0 0.0
    %2536 = vmatmul.mubr.f32.gmra.mrb[0].mxu0 %v2198
    %v2537 = vpop.f32.mrb[0].mxu0
    %v2538 = vadd.f32 0.0, %v2537
    %v2539 = vpop.f32.mrb[0].mxu0
    %2540 = vmatprep.mubr.f32.mxu0 0.0
    %2541 = vmatmul.mubr.f32.gmra.mrb[0].mxu0 %v2201
    %v2542 = vpop.f32.mrb[0].mxu0
    %v2543 = vadd.f32 0.0, %v2542
    %v2544 = vpop.f32.mrb[0].mxu0
    %2545 = vmatprep.mubr.f32.mxu0 0.0
    %2546 = vmatmul.mubr.f32.gmra.mrb[0].mxu0 %v2204
    %v2547 = vpop.f32.mrb[0].mxu0
    %v2548 = vadd.f32 0.0, %v2547
    %v2549 = vpop.f32.mrb[0].mxu0
    %2550 = vmatprep.mubr.f32.mxu0 0.0
    %2551 = vmatmul.mubr.f32.gmra.mrb[0].mxu0 %v2207
    %v2552 = vpop.f32.mrb[0].mxu0
    %v2553 = vadd.f32 0.0, %v2552
    %v2554 = vpop.f32.mrb[0].mxu0
    %2555 = vmatprep.mubr.f32.mxu0 0.0
    %2556 = vmatmul.mubr.f32.gmra.mrb[0].mxu0 %v2210
    %v2557 = vpop.f32.mrb[0].mxu0
    %v2558 = vadd.f32 0.0, %v2557
    %v2559 = vpop.f32.mrb[0].mxu0
    %2560 = vmatprep.mubr.f32.mxu0 0.0
    %2561 = vmatmul.mubr.f32.gmra.mrb[0].mxu0 %v2213
    %v2562 = vpop.f32.mrb[0].mxu0
    %v2563 = vadd.f32 0.0, %v2562
    %v2564 = vpop.f32.mrb[0].mxu0
    %2565 = vmatprep.mubr.f32.mxu0 0.0
    %2566 = vmatmul.mubr.f32.gmra.mrb[0].mxu0 %v2216
    %v2567 = vpop.f32.mrb[0].mxu0
    %v2568 = vadd.f32 0.0, %v2567
    %v2569 = vpop.f32.mrb[0].mxu0
    %2570 = vmatprep.mubr.f32.mxu0 0.0
    %2571 = vmatmul.mubr.f32.gmra.mrb[0].mxu0 %v2219
    %v2572 = vpop.f32.mrb[0].mxu0
    %v2573 = vadd.f32 0.0, %v2572
    %v2574 = vpop.f32.mrb[0].mxu0
    %2575 = vmatprep.mubr.f32.mxu0 0.0
    %2576 = vmatmul.mubr.f32.gmra.mrb[0].mxu0 %v2222
    %v2577 = vpop.f32.mrb[0].mxu0
    %v2578 = vadd.f32 0.0, %v2577
    %v2579 = vpop.f32.mrb[0].mxu0
    %2580 = vmatprep.mubr.f32.mxu0 0.0
    %2581 = vmatmul.mubr.f32.gmra.mrb[0].mxu0 %v2225
    %v2582 = vpop.f32.mrb[0].mxu0
    %v2583 = vadd.f32 0.0, %v2582
    %v2584 = vpop.f32.mrb[0].mxu0
    %2585 = vmatprep.mubr.f32.mxu0 0.0
    %2586 = vmatmul.mubr.f32.gmra.mrb[0].mxu0 %v2228
    %v2587 = vpop.f32.mrb[0].mxu0
    %v2588 = vadd.f32 0.0, %v2587
    %v2589 = vpop.f32.mrb[0].mxu0
    %2590 = vmatprep.mubr.f32.mxu0 0.0
    %2591 = vmatmul.mubr.f32.gmra.mrb[0].mxu0 %v2231
    %v2592 = vpop.f32.mrb[0].mxu0
    %v2593 = vadd.f32 0.0, %v2592
    %v2594 = vpop.f32.mrb[0].mxu0
    %2595 = vmatprep.mubr.f32.mxu0 0.0
    %2596 = vmatmul.mubr.f32.gmra.mrb[0].mxu0 %v2234
    %v2597 = vpop.f32.mrb[0].mxu0
    %v2598 = vadd.f32 0.0, %v2597
    %v2599 = vpop.f32.mrb[0].mxu0
    %2600 = vmatprep.mubr.f32.mxu0 0.0
    %2601 = vmatmul.mubr.f32.gmra.mrb[0].mxu0 %v2237
    %v2602 = vpop.f32.mrb[0].mxu0
    %v2603 = vadd.f32 0.0, %v2602
    %v2604 = vpop.f32.mrb[0].mxu0
    %2605 = vmatprep.mubr.f32.mxu0 0.0
    %2606 = vmatmul.mubr.f32.gmra.mrb[0].mxu0 %v2240
    %v2607 = vpop.f32.mrb[0].mxu0
    %v2608 = vadd.f32 0.0, %v2607
    %v2609 = vpop.f32.mrb[0].mxu0
    %2610 = vmatprep.mubr.f32.mxu0 0.0
    %2611 = vmatmul.mubr.f32.gmra.mrb[0].mxu0 %v2243
    %v2612 = vpop.f32.mrb[0].mxu0
    %v2613 = vadd.f32 0.0, %v2612
    %v2614 = vpop.f32.mrb[0].mxu0
    %2615 = vmatprep.mubr.f32.mxu0 0.0
    %2616 = vmatmul.mubr.f32.gmra.mrb[0].mxu0 %v2246
    %v2617 = vpop.f32.mrb[0].mxu0
    %v2618 = vadd.f32 0.0, %v2617
    %v2619 = vpop.f32.mrb[0].mxu0
    %2620 = vmatprep.mubr.f32.mxu0 0.0
    %2621 = vmatmul.mubr.f32.gmra.mrb[0].mxu0 %v2249
    %v2622 = vpop.f32.mrb[0].mxu0
    %v2623 = vadd.f32 0.0, %v2622
    %v2624 = vpop.f32.mrb[0].mxu0
    %2625 = vdwg.mxu0
    %v2626 = vadd.f32 %v1939, %v2318
    %v2627 = vadd.f32 %v1940, %v2323
    %v2628 = vadd.f32 %v1941, %v2328
    %v2629 = vadd.f32 %v1942, %v2333
    %v2630 = vadd.f32 %v1943, %v2338
    %v2631 = vadd.f32 %v1944, %v2343
    %v2632 = vadd.f32 %v1945, %v2348
    %v2633 = vadd.f32 %v1946, %v2353
    %v2634 = vadd.f32 %v1947, %v2358
    %v2635 = vadd.f32 %v1948, %v2363
    %v2636 = vadd.f32 %v1949, %v2368
    %v2637 = vadd.f32 %v1950, %v2373
    %v2638 = vadd.f32 %v1951, %v2378
    %v2639 = vadd.f32 %v1952, %v2383
    %v2640 = vadd.f32 %v1953, %v2388
    %v2641 = vadd.f32 %v1954, %v2393
    %v2642 = vadd.f32 %v1955, %v2398
    %v2643 = vadd.f32 %v1956, %v2403
    %v2644 = vadd.f32 %v1957, %v2408
    %v2645 = vadd.f32 %v1958, %v2413
    %v2646 = vadd.f32 %v1959, %v2418
    %v2647 = vadd.f32 %v1960, %v2423
    %v2648 = vadd.f32 %v1961, %v2428
    %v2649 = vadd.f32 %v1962, %v2433
    %v2650 = vadd.f32 %v1963, %v2438
    %v2651 = vadd.f32 %v1964, %v2443
    %v2652 = vadd.f32 %v1965, %v2448
    %v2653 = vadd.f32 %v1966, %v2453
    %v2654 = vadd.f32 %v1967, %v2458
    %v2655 = vadd.f32 %v1968, %v2463
    %v2656 = vadd.f32 %v1969, %v2468
    %v2657 = vadd.f32 %v1970, %v2473
    %v2658 = vadd.f32 %v1971, %v2478
    %v2659 = vadd.f32 %v1972, %v2483
    %v2660 = vadd.f32 %v1973, %v2488
    %v2661 = vadd.f32 %v1974, %v2493
    %v2662 = vadd.f32 %v1975, %v2498
    %v2663 = vadd.f32 %v1976, %v2503
    %v2664 = vadd.f32 %v1977, %v2508
    %v2665 = vadd.f32 %v1978, %v2513
    %v2666 = vadd.f32 %v1979, %v2518
    %v2667 = vadd.f32 %v1980, %v2523
    %v2668 = vadd.f32 %v1981, %v2528
    %v2669 = vadd.f32 %v1982, %v2533
    %v2670 = vadd.f32 %v1983, %v2538
    %v2671 = vadd.f32 %v1984, %v2543
    %v2672 = vadd.f32 %v1985, %v2548
    %v2673 = vadd.f32 %v1986, %v2553
    %v2674 = vadd.f32 %v1987, %v2558
    %v2675 = vadd.f32 %v1988, %v2563
    %v2676 = vadd.f32 %v1989, %v2568
    %v2677 = vadd.f32 %v1990, %v2573
    %v2678 = vadd.f32 %v1991, %v2578
    %v2679 = vadd.f32 %v1992, %v2583
    %v2680 = vadd.f32 %v1993, %v2588
    %v2681 = vadd.f32 %v1994, %v2593
    %v2682 = vadd.f32 %v1995, %v2598
    %v2683 = vadd.f32 %v1996, %v2603
    %v2684 = vadd.f32 %v1997, %v2608
    %v2685 = vadd.f32 %v1998, %v2613
    %v2686 = vadd.f32 %v1999, %v2618
    %v2687 = vadd.f32 %v2000, %v2623
    %v2688 = vld [vmem:[%s0 + $0x4] sm:$0xff]
    %v2689 = vld [vmem:[%s0 + $0xc] sm:$0xff]
    %v2690 = vld [vmem:[%s0 + $0x14] sm:$0xff]
    %v2691 = vld [vmem:[%s0 + $0x1c] sm:$0xff]
    %v2692 = vld [vmem:[%s0 + $0x24] sm:$0xff]
    %v2693 = vld [vmem:[%s0 + $0x2c] sm:$0xff]
    %v2694 = vld [vmem:[%s0 + $0x34] sm:$0xff]
    %v2695 = vld [vmem:[%s0 + $0x3c] sm:$0xff]
    %v2696 = vld [vmem:[%s0 + $0x44] sm:$0xff]
    %v2697 = vld [vmem:[%s0 + $0x4c] sm:$0xff]
    %v2698 = vld [vmem:[%s0 + $0x54] sm:$0xff]
    %v2699 = vld [vmem:[%s0 + $0x5c] sm:$0xff]
    %v2700 = vld [vmem:[%s0 + $0x64] sm:$0xff]
    %v2701 = vld [vmem:[%s0 + $0x6c] sm:$0xff]
    %v2702 = vld [vmem:[%s0 + $0x74] sm:$0xff]
    %v2703 = vld [vmem:[%s0 + $0x7c] sm:$0xff]
    %v2704 = vld [vmem:[%s0 + $0x84] sm:$0xff]
    %v2705 = vld [vmem:[%s0 + $0x8c] sm:$0xff]
    %v2706 = vld [vmem:[%s0 + $0x94] sm:$0xff]
    %v2707 = vld [vmem:[%s0 + $0x9c] sm:$0xff]
    %v2708 = vld [vmem:[%s0 + $0xa4] sm:$0xff]
    %v2709 = vld [vmem:[%s0 + $0xac] sm:$0xff]
    %v2710 = vld [vmem:[%s0 + $0xb4] sm:$0xff]
    %v2711 = vld [vmem:[%s0 + $0xbc] sm:$0xff]
    %v2712 = vld [vmem:[%s0 + $0xc4] sm:$0xff]
    %v2713 = vld [vmem:[%s0 + $0xcc] sm:$0xff]
    %v2714 = vld [vmem:[%s0 + $0xd4] sm:$0xff]
    %v2715 = vld [vmem:[%s0 + $0xdc] sm:$0xff]
    %v2716 = vld [vmem:[%s0 + $0xe4] sm:$0xff]
    %v2717 = vld [vmem:[%s0 + $0xec] sm:$0xff]
    %v2718 = vld [vmem:[%s0 + $0xf4] sm:$0xff]
    %v2719 = vld [vmem:[%s0 + $0xfc] sm:$0xff]
    %v2720 = vld [vmem:[%s0 + $0x104] sm:$0xff]
    %v2721 = vld [vmem:[%s0 + $0x10c] sm:$0xff]
    %v2722 = vld [vmem:[%s0 + $0x114] sm:$0xff]
    %v2723 = vld [vmem:[%s0 + $0x11c] sm:$0xff]
    %v2724 = vld [vmem:[%s0 + $0x124] sm:$0xff]
    %v2725 = vld [vmem:[%s0 + $0x12c] sm:$0xff]
    %v2726 = vld [vmem:[%s0 + $0x134] sm:$0xff]
    %v2727 = vld [vmem:[%s0 + $0x13c] sm:$0xff]
    %v2728 = vld [vmem:[%s0 + $0x144] sm:$0xff]
    %v2729 = vld [vmem:[%s0 + $0x14c] sm:$0xff]
    %v2730 = vld [vmem:[%s0 + $0x154] sm:$0xff]
    %v2731 = vld [vmem:[%s0 + $0x15c] sm:$0xff]
    %v2732 = vld [vmem:[%s0 + $0x164] sm:$0xff]
    %v2733 = vld [vmem:[%s0 + $0x16c] sm:$0xff]
    %v2734 = vld [vmem:[%s0 + $0x174] sm:$0xff]
    %v2735 = vld [vmem:[%s0 + $0x17c] sm:$0xff]
    %v2736 = vld [vmem:[%s0 + $0x184] sm:$0xff]
    %v2737 = vld [vmem:[%s0 + $0x18c] sm:$0xff]
    %v2738 = vld [vmem:[%s0 + $0x194] sm:$0xff]
    %v2739 = vld [vmem:[%s0 + $0x19c] sm:$0xff]
    %v2740 = vld [vmem:[%s0 + $0x1a4] sm:$0xff]
    %v2741 = vld [vmem:[%s0 + $0x1ac] sm:$0xff]
    %v2742 = vld [vmem:[%s0 + $0x1b4] sm:$0xff]
    %v2743 = vld [vmem:[%s0 + $0x1bc] sm:$0xff]
    %v2744 = vld [vmem:[%s0 + $0x1c4] sm:$0xff]
    %v2745 = vld [vmem:[%s0 + $0x1cc] sm:$0xff]
    %v2746 = vld [vmem:[%s0 + $0x1d4] sm:$0xff]
    %v2747 = vld [vmem:[%s0 + $0x1dc] sm:$0xff]
    %v2748 = vld [vmem:[%s0 + $0x1e4] sm:$0xff]
    %v2749 = vld [vmem:[%s0 + $0x1ec] sm:$0xff]
    %v2750 = vld [vmem:[%s1 + $0x40] sm:$0xff]
    %v2751 = vld [vmem:[%s1 + $0x48] sm:$0xff]
    %v2753 = vsel %vm191, %v2688, 0
    %v2756 = vsel %vm191, %v2689, 0
    %v2759 = vsel %vm191, %v2690, 0
    %v2762 = vsel %vm191, %v2691, 0
    %v2765 = vsel %vm191, %v2692, 0
    %v2768 = vsel %vm191, %v2693, 0
    %v2771 = vsel %vm191, %v2694, 0
    %v2774 = vsel %vm191, %v2695, 0
    %v2777 = vsel %vm191, %v2696, 0
    %v2780 = vsel %vm191, %v2697, 0
    %v2783 = vsel %vm191, %v2698, 0
    %v2786 = vsel %vm191, %v2699, 0
    %v2789 = vsel %vm191, %v2700, 0
    %v2792 = vsel %vm191, %v2701, 0
    %v2795 = vsel %vm191, %v2702, 0
    %v2798 = vsel %vm191, %v2703, 0
    %v2801 = vsel %vm191, %v2704, 0
    %v2804 = vsel %vm191, %v2705, 0
    %v2807 = vsel %vm191, %v2706, 0
    %v2810 = vsel %vm191, %v2707, 0
    %v2813 = vsel %vm191, %v2708, 0
    %v2816 = vsel %vm191, %v2709, 0
    %v2819 = vsel %vm191, %v2710, 0
    %v2822 = vsel %vm191, %v2711, 0
    %v2825 = vsel %vm191, %v2712, 0
    %v2828 = vsel %vm191, %v2713, 0
    %v2831 = vsel %vm191, %v2714, 0
    %v2834 = vsel %vm191, %v2715, 0
    %v2837 = vsel %vm191, %v2716, 0
    %v2840 = vsel %vm191, %v2717, 0
    %v2843 = vsel %vm191, %v2718, 0
    %v2846 = vsel %vm191, %v2719, 0
    %v2849 = vsel %vm191, %v2720, 0
    %v2852 = vsel %vm191, %v2721, 0
    %v2855 = vsel %vm191, %v2722, 0
    %v2858 = vsel %vm191, %v2723, 0
    %v2861 = vsel %vm191, %v2724, 0
    %v2864 = vsel %vm191, %v2725, 0
    %v2867 = vsel %vm191, %v2726, 0
    %v2870 = vsel %vm191, %v2727, 0
    %v2873 = vsel %vm191, %v2728, 0
    %v2876 = vsel %vm191, %v2729, 0
    %v2879 = vsel %vm191, %v2730, 0
    %v2882 = vsel %vm191, %v2731, 0
    %v2885 = vsel %vm191, %v2732, 0
    %v2888 = vsel %vm191, %v2733, 0
    %v2891 = vsel %vm191, %v2734, 0
    %v2894 = vsel %vm191, %v2735, 0
    %v2897 = vsel %vm191, %v2736, 0
    %v2900 = vsel %vm191, %v2737, 0
    %v2903 = vsel %vm191, %v2738, 0
    %v2906 = vsel %vm191, %v2739, 0
    %v2909 = vsel %vm191, %v2740, 0
    %v2912 = vsel %vm191, %v2741, 0
    %v2915 = vsel %vm191, %v2742, 0
    %v2918 = vsel %vm191, %v2743, 0
    %v2921 = vsel %vm191, %v2744, 0
    %v2924 = vsel %vm191, %v2745, 0
    %v2927 = vsel %vm191, %v2746, 0
    %v2930 = vsel %vm191, %v2747, 0
    %v2933 = vsel %vm191, %v2748, 0
    %v2936 = vsel %vm191, %v2749, 0
    %2938 = vmatprep.subr.mxu0 0.0
    %2939 = vmatpush1.msra.mxu0 %v2750
    %2940 = vmatprep.subr.mxu0 0.0
    %2941 = vmatpush1.msra.mxu0 %v2751
    %2942 = vmatprep.subr.mxu0 0.0
    %2943 = vmatpush1.msra.mxu0 0.0
    %2944 = vmatprep.subr.mxu0 0.0
    %2945 = vmatpush1.msra.mxu0 0.0
    %2946 = vmatprep.subr.mxu0 0.0
    %2947 = vmatpush1.msra.mxu0 0.0
    %2948 = vmatprep.subr.mxu0 0.0
    %2949 = vmatpush1.msra.mxu0 0.0
    %2950 = vmatprep.subr.mxu0 0.0
    %2951 = vmatpush1.msra.mxu0 0.0
    %2952 = vmatprep.subr.mxu0 0.0
    %2953 = vmatpush1.msra.mxu0 0.0
    %2954 = vmatprep.subr.mxu0 0.0
    %2955 = vmatpush1.msra.mxu0 0.0
    %2956 = vmatprep.subr.mxu0 0.0
    %2957 = vmatpush1.msra.mxu0 0.0
    %2958 = vmatprep.subr.mxu0 0.0
    %2959 = vmatpush1.msra.mxu0 0.0
    %2960 = vmatprep.subr.mxu0 0.0
    %2961 = vmatpush1.msra.mxu0 0.0
    %2962 = vmatprep.subr.mxu0 0.0
    %2963 = vmatpush1.msra.mxu0 0.0
    %2964 = vmatprep.subr.mxu0 0.0
    %2965 = vmatpush1.msra.mxu0 0.0
    %2966 = vmatprep.subr.mxu0 0.0
    %2967 = vmatpush1.msra.mxu0 0.0
    %2968 = vmatprep.subr.mxu0 0.0
    %2969 = vmatpush1.msra.mxu0 0.0
    %2970 = vmatprep.subr.mxu0 0.0
    %2971 = vmatpush1.msra.mxu0 0.0
    %2972 = vmatprep.subr.mxu0 0.0
    %2973 = vmatpush1.msra.mxu0 0.0
    %2974 = vmatprep.subr.mxu0 0.0
    %2975 = vmatpush1.msra.mxu0 0.0
    %2976 = vmatprep.subr.mxu0 0.0
    %2977 = vmatpush1.msra.mxu0 0.0
    %2978 = vmatprep.subr.mxu0 0.0
    %2979 = vmatpush1.msra.mxu0 0.0
    %2980 = vmatprep.subr.mxu0 0.0
    %2981 = vmatpush1.msra.mxu0 0.0
    %2982 = vmatprep.subr.mxu0 0.0
    %2983 = vmatpush1.msra.mxu0 0.0
    %2984 = vmatprep.subr.mxu0 0.0
    %2985 = vmatpush1.msra.mxu0 0.0
    %2986 = vmatprep.subr.mxu0 0.0
    %2987 = vmatpush1.msra.mxu0 0.0
    %2988 = vmatprep.subr.mxu0 0.0
    %2989 = vmatpush1.msra.mxu0 0.0
    %2990 = vmatprep.subr.mxu0 0.0
    %2991 = vmatpush1.msra.mxu0 0.0
    %2992 = vmatprep.subr.mxu0 0.0
    %2993 = vmatpush1.msra.mxu0 0.0
    %2994 = vmatprep.subr.mxu0 0.0
    %2995 = vmatpush1.msra.mxu0 0.0
    %2996 = vmatprep.subr.mxu0 0.0
    %2997 = vmatpush1.msra.mxu0 0.0
    %2998 = vmatprep.subr.mxu0 0.0
    %2999 = vmatpush1.msra.mxu0 0.0
    %3000 = vmatprep.subr.mxu0 0.0
    %3001 = vmatpush1.msra.mxu0 0.0
    %3002 = vmatprep.mubr.f32.mxu0 0.0
    %3003 = vmatmul.mubr.f32.gmra.mrb[0].mxu0 %v2753
    %v3004 = vpop.f32.mrb[0].mxu0
    %v3005 = vadd.f32 0.0, %v3004
    %v3006 = vpop.f32.mrb[0].mxu0
    %3007 = vmatprep.mubr.f32.mxu0 0.0
    %3008 = vmatmul.mubr.f32.gmra.mrb[0].mxu0 %v2756
    %v3009 = vpop.f32.mrb[0].mxu0
    %v3010 = vadd.f32 0.0, %v3009
    %v3011 = vpop.f32.mrb[0].mxu0
    %3012 = vmatprep.mubr.f32.mxu0 0.0
    %3013 = vmatmul.mubr.f32.gmra.mrb[0].mxu0 %v2759
    %v3014 = vpop.f32.mrb[0].mxu0
    %v3015 = vadd.f32 0.0, %v3014
    %v3016 = vpop.f32.mrb[0].mxu0
    %3017 = vmatprep.mubr.f32.mxu0 0.0
    %3018 = vmatmul.mubr.f32.gmra.mrb[0].mxu0 %v2762
    %v3019 = vpop.f32.mrb[0].mxu0
    %v3020 = vadd.f32 0.0, %v3019
    %v3021 = vpop.f32.mrb[0].mxu0
    %3022 = vmatprep.mubr.f32.mxu0 0.0
    %3023 = vmatmul.mubr.f32.gmra.mrb[0].mxu0 %v2765
    %v3024 = vpop.f32.mrb[0].mxu0
    %v3025 = vadd.f32 0.0, %v3024
    %v3026 = vpop.f32.mrb[0].mxu0
    %3027 = vmatprep.mubr.f32.mxu0 0.0
    %3028 = vmatmul.mubr.f32.gmra.mrb[0].mxu0 %v2768
    %v3029 = vpop.f32.mrb[0].mxu0
    %v3030 = vadd.f32 0.0, %v3029
    %v3031 = vpop.f32.mrb[0].mxu0
    %3032 = vmatprep.mubr.f32.mxu0 0.0
    %3033 = vmatmul.mubr.f32.gmra.mrb[0].mxu0 %v2771
    %v3034 = vpop.f32.mrb[0].mxu0
    %v3035 = vadd.f32 0.0, %v3034
    %v3036 = vpop.f32.mrb[0].mxu0
    %3037 = vmatprep.mubr.f32.mxu0 0.0
    %3038 = vmatmul.mubr.f32.gmra.mrb[0].mxu0 %v2774
    %v3039 = vpop.f32.mrb[0].mxu0
    %v3040 = vadd.f32 0.0, %v3039
    %v3041 = vpop.f32.mrb[0].mxu0
    %3042 = vmatprep.mubr.f32.mxu0 0.0
    %3043 = vmatmul.mubr.f32.gmra.mrb[0].mxu0 %v2777
    %v3044 = vpop.f32.mrb[0].mxu0
    %v3045 = vadd.f32 0.0, %v3044
    %v3046 = vpop.f32.mrb[0].mxu0
    %3047 = vmatprep.mubr.f32.mxu0 0.0
    %3048 = vmatmul.mubr.f32.gmra.mrb[0].mxu0 %v2780
    %v3049 = vpop.f32.mrb[0].mxu0
    %v3050 = vadd.f32 0.0, %v3049
    %v3051 = vpop.f32.mrb[0].mxu0
    %3052 = vmatprep.mubr.f32.mxu0 0.0
    %3053 = vmatmul.mubr.f32.gmra.mrb[0].mxu0 %v2783
    %v3054 = vpop.f32.mrb[0].mxu0
    %v3055 = vadd.f32 0.0, %v3054
    %v3056 = vpop.f32.mrb[0].mxu0
    %3057 = vmatprep.mubr.f32.mxu0 0.0
    %3058 = vmatmul.mubr.f32.gmra.mrb[0].mxu0 %v2786
    %v3059 = vpop.f32.mrb[0].mxu0
    %v3060 = vadd.f32 0.0, %v3059
    %v3061 = vpop.f32.mrb[0].mxu0
    %3062 = vmatprep.mubr.f32.mxu0 0.0
    %3063 = vmatmul.mubr.f32.gmra.mrb[0].mxu0 %v2789
    %v3064 = vpop.f32.mrb[0].mxu0
    %v3065 = vadd.f32 0.0, %v3064
    %v3066 = vpop.f32.mrb[0].mxu0
    %3067 = vmatprep.mubr.f32.mxu0 0.0
    %3068 = vmatmul.mubr.f32.gmra.mrb[0].mxu0 %v2792
    %v3069 = vpop.f32.mrb[0].mxu0
    %v3070 = vadd.f32 0.0, %v3069
    %v3071 = vpop.f32.mrb[0].mxu0
    %3072 = vmatprep.mubr.f32.mxu0 0.0
    %3073 = vmatmul.mubr.f32.gmra.mrb[0].mxu0 %v2795
    %v3074 = vpop.f32.mrb[0].mxu0
    %v3075 = vadd.f32 0.0, %v3074
    %v3076 = vpop.f32.mrb[0].mxu0
    %3077 = vmatprep.mubr.f32.mxu0 0.0
    %3078 = vmatmul.mubr.f32.gmra.mrb[0].mxu0 %v2798
    %v3079 = vpop.f32.mrb[0].mxu0
    %v3080 = vadd.f32 0.0, %v3079
    %v3081 = vpop.f32.mrb[0].mxu0
    %3082 = vmatprep.mubr.f32.mxu0 0.0
    %3083 = vmatmul.mubr.f32.gmra.mrb[0].mxu0 %v2801
    %v3084 = vpop.f32.mrb[0].mxu0
    %v3085 = vadd.f32 0.0, %v3084
    %v3086 = vpop.f32.mrb[0].mxu0
    %3087 = vmatprep.mubr.f32.mxu0 0.0
    %3088 = vmatmul.mubr.f32.gmra.mrb[0].mxu0 %v2804
    %v3089 = vpop.f32.mrb[0].mxu0
    %v3090 = vadd.f32 0.0, %v3089
    %v3091 = vpop.f32.mrb[0].mxu0
    %3092 = vmatprep.mubr.f32.mxu0 0.0
    %3093 = vmatmul.mubr.f32.gmra.mrb[0].mxu0 %v2807
    %v3094 = vpop.f32.mrb[0].mxu0
    %v3095 = vadd.f32 0.0, %v3094
    %v3096 = vpop.f32.mrb[0].mxu0
    %3097 = vmatprep.mubr.f32.mxu0 0.0
    %3098 = vmatmul.mubr.f32.gmra.mrb[0].mxu0 %v2810
    %v3099 = vpop.f32.mrb[0].mxu0
    %v3100 = vadd.f32 0.0, %v3099
    %v3101 = vpop.f32.mrb[0].mxu0
    %3102 = vmatprep.mubr.f32.mxu0 0.0
    %3103 = vmatmul.mubr.f32.gmra.mrb[0].mxu0 %v2813
    %v3104 = vpop.f32.mrb[0].mxu0
    %v3105 = vadd.f32 0.0, %v3104
    %v3106 = vpop.f32.mrb[0].mxu0
    %3107 = vmatprep.mubr.f32.mxu0 0.0
    %3108 = vmatmul.mubr.f32.gmra.mrb[0].mxu0 %v2816
    %v3109 = vpop.f32.mrb[0].mxu0
    %v3110 = vadd.f32 0.0, %v3109
    %v3111 = vpop.f32.mrb[0].mxu0
    %3112 = vmatprep.mubr.f32.mxu0 0.0
    %3113 = vmatmul.mubr.f32.gmra.mrb[0].mxu0 %v2819
    %v3114 = vpop.f32.mrb[0].mxu0
    %v3115 = vadd.f32 0.0, %v3114
    %v3116 = vpop.f32.mrb[0].mxu0
    %3117 = vmatprep.mubr.f32.mxu0 0.0
    %3118 = vmatmul.mubr.f32.gmra.mrb[0].mxu0 %v2822
    %v3119 = vpop.f32.mrb[0].mxu0
    %v3120 = vadd.f32 0.0, %v3119
    %v3121 = vpop.f32.mrb[0].mxu0
    %3122 = vmatprep.mubr.f32.mxu0 0.0
    %3123 = vmatmul.mubr.f32.gmra.mrb[0].mxu0 %v2825
    %v3124 = vpop.f32.mrb[0].mxu0
    %v3125 = vadd.f32 0.0, %v3124
    %v3126 = vpop.f32.mrb[0].mxu0
    %3127 = vmatprep.mubr.f32.mxu0 0.0
    %3128 = vmatmul.mubr.f32.gmra.mrb[0].mxu0 %v2828
    %v3129 = vpop.f32.mrb[0].mxu0
    %v3130 = vadd.f32 0.0, %v3129
    %v3131 = vpop.f32.mrb[0].mxu0
    %3132 = vmatprep.mubr.f32.mxu0 0.0
    %3133 = vmatmul.mubr.f32.gmra.mrb[0].mxu0 %v2831
    %v3134 = vpop.f32.mrb[0].mxu0
    %v3135 = vadd.f32 0.0, %v3134
    %v3136 = vpop.f32.mrb[0].mxu0
    %3137 = vmatprep.mubr.f32.mxu0 0.0
    %3138 = vmatmul.mubr.f32.gmra.mrb[0].mxu0 %v2834
    %v3139 = vpop.f32.mrb[0].mxu0
    %v3140 = vadd.f32 0.0, %v3139
    %v3141 = vpop.f32.mrb[0].mxu0
    %3142 = vmatprep.mubr.f32.mxu0 0.0
    %3143 = vmatmul.mubr.f32.gmra.mrb[0].mxu0 %v2837
    %v3144 = vpop.f32.mrb[0].mxu0
    %v3145 = vadd.f32 0.0, %v3144
    %v3146 = vpop.f32.mrb[0].mxu0
    %3147 = vmatprep.mubr.f32.mxu0 0.0
    %3148 = vmatmul.mubr.f32.gmra.mrb[0].mxu0 %v2840
    %v3149 = vpop.f32.mrb[0].mxu0
    %v3150 = vadd.f32 0.0, %v3149
    %v3151 = vpop.f32.mrb[0].mxu0
    %3152 = vmatprep.mubr.f32.mxu0 0.0
    %3153 = vmatmul.mubr.f32.gmra.mrb[0].mxu0 %v2843
    %v3154 = vpop.f32.mrb[0].mxu0
    %v3155 = vadd.f32 0.0, %v3154
    %v3156 = vpop.f32.mrb[0].mxu0
    %3157 = vmatprep.mubr.f32.mxu0 0.0
    %3158 = vmatmul.mubr.f32.gmra.mrb[0].mxu0 %v2846
    %v3159 = vpop.f32.mrb[0].mxu0
    %v3160 = vadd.f32 0.0, %v3159
    %v3161 = vpop.f32.mrb[0].mxu0
    %3162 = vmatprep.mubr.f32.mxu0 0.0
    %3163 = vmatmul.mubr.f32.gmra.mrb[0].mxu0 %v2849
    %v3164 = vpop.f32.mrb[0].mxu0
    %v3165 = vadd.f32 0.0, %v3164
    %v3166 = vpop.f32.mrb[0].mxu0
    %3167 = vmatprep.mubr.f32.mxu0 0.0
    %3168 = vmatmul.mubr.f32.gmra.mrb[0].mxu0 %v2852
    %v3169 = vpop.f32.mrb[0].mxu0
    %v3170 = vadd.f32 0.0, %v3169
    %v3171 = vpop.f32.mrb[0].mxu0
    %3172 = vmatprep.mubr.f32.mxu0 0.0
    %3173 = vmatmul.mubr.f32.gmra.mrb[0].mxu0 %v2855
    %v3174 = vpop.f32.mrb[0].mxu0
    %v3175 = vadd.f32 0.0, %v3174
    %v3176 = vpop.f32.mrb[0].mxu0
    %3177 = vmatprep.mubr.f32.mxu0 0.0
    %3178 = vmatmul.mubr.f32.gmra.mrb[0].mxu0 %v2858
    %v3179 = vpop.f32.mrb[0].mxu0
    %v3180 = vadd.f32 0.0, %v3179
    %v3181 = vpop.f32.mrb[0].mxu0
    %3182 = vmatprep.mubr.f32.mxu0 0.0
    %3183 = vmatmul.mubr.f32.gmra.mrb[0].mxu0 %v2861
    %v3184 = vpop.f32.mrb[0].mxu0
    %v3185 = vadd.f32 0.0, %v3184
    %v3186 = vpop.f32.mrb[0].mxu0
    %3187 = vmatprep.mubr.f32.mxu0 0.0
    %3188 = vmatmul.mubr.f32.gmra.mrb[0].mxu0 %v2864
    %v3189 = vpop.f32.mrb[0].mxu0
    %v3190 = vadd.f32 0.0, %v3189
    %v3191 = vpop.f32.mrb[0].mxu0
    %3192 = vmatprep.mubr.f32.mxu0 0.0
    %3193 = vmatmul.mubr.f32.gmra.mrb[0].mxu0 %v2867
    %v3194 = vpop.f32.mrb[0].mxu0
    %v3195 = vadd.f32 0.0, %v3194
    %v3196 = vpop.f32.mrb[0].mxu0
    %3197 = vmatprep.mubr.f32.mxu0 0.0
    %3198 = vmatmul.mubr.f32.gmra.mrb[0].mxu0 %v2870
    %v3199 = vpop.f32.mrb[0].mxu0
    %v3200 = vadd.f32 0.0, %v3199
    %v3201 = vpop.f32.mrb[0].mxu0
    %3202 = vmatprep.mubr.f32.mxu0 0.0
    %3203 = vmatmul.mubr.f32.gmra.mrb[0].mxu0 %v2873
    %v3204 = vpop.f32.mrb[0].mxu0
    %v3205 = vadd.f32 0.0, %v3204
    %v3206 = vpop.f32.mrb[0].mxu0
    %3207 = vmatprep.mubr.f32.mxu0 0.0
    %3208 = vmatmul.mubr.f32.gmra.mrb[0].mxu0 %v2876
    %v3209 = vpop.f32.mrb[0].mxu0
    %v3210 = vadd.f32 0.0, %v3209
    %v3211 = vpop.f32.mrb[0].mxu0
    %3212 = vmatprep.mubr.f32.mxu0 0.0
    %3213 = vmatmul.mubr.f32.gmra.mrb[0].mxu0 %v2879
    %v3214 = vpop.f32.mrb[0].mxu0
    %v3215 = vadd.f32 0.0, %v3214
    %v3216 = vpop.f32.mrb[0].mxu0
    %3217 = vmatprep.mubr.f32.mxu0 0.0
    %3218 = vmatmul.mubr.f32.gmra.mrb[0].mxu0 %v2882
    %v3219 = vpop.f32.mrb[0].mxu0
    %v3220 = vadd.f32 0.0, %v3219
    %v3221 = vpop.f32.mrb[0].mxu0
    %3222 = vmatprep.mubr.f32.mxu0 0.0
    %3223 = vmatmul.mubr.f32.gmra.mrb[0].mxu0 %v2885
    %v3224 = vpop.f32.mrb[0].mxu0
    %v3225 = vadd.f32 0.0, %v3224
    %v3226 = vpop.f32.mrb[0].mxu0
    %3227 = vmatprep.mubr.f32.mxu0 0.0
    %3228 = vmatmul.mubr.f32.gmra.mrb[0].mxu0 %v2888
    %v3229 = vpop.f32.mrb[0].mxu0
    %v3230 = vadd.f32 0.0, %v3229
    %v3231 = vpop.f32.mrb[0].mxu0
    %3232 = vmatprep.mubr.f32.mxu0 0.0
    %3233 = vmatmul.mubr.f32.gmra.mrb[0].mxu0 %v2891
    %v3234 = vpop.f32.mrb[0].mxu0
    %v3235 = vadd.f32 0.0, %v3234
    %v3236 = vpop.f32.mrb[0].mxu0
    %3237 = vmatprep.mubr.f32.mxu0 0.0
    %3238 = vmatmul.mubr.f32.gmra.mrb[0].mxu0 %v2894
    %v3239 = vpop.f32.mrb[0].mxu0
    %v3240 = vadd.f32 0.0, %v3239
    %v3241 = vpop.f32.mrb[0].mxu0
    %3242 = vmatprep.mubr.f32.mxu0 0.0
    %3243 = vmatmul.mubr.f32.gmra.mrb[0].mxu0 %v2897
    %v3244 = vpop.f32.mrb[0].mxu0
    %v3245 = vadd.f32 0.0, %v3244
    %v3246 = vpop.f32.mrb[0].mxu0
    %3247 = vmatprep.mubr.f32.mxu0 0.0
    %3248 = vmatmul.mubr.f32.gmra.mrb[0].mxu0 %v2900
    %v3249 = vpop.f32.mrb[0].mxu0
    %v3250 = vadd.f32 0.0, %v3249
    %v3251 = vpop.f32.mrb[0].mxu0
    %3252 = vmatprep.mubr.f32.mxu0 0.0
    %3253 = vmatmul.mubr.f32.gmra.mrb[0].mxu0 %v2903
    %v3254 = vpop.f32.mrb[0].mxu0
    %v3255 = vadd.f32 0.0, %v3254
    %v3256 = vpop.f32.mrb[0].mxu0
    %3257 = vmatprep.mubr.f32.mxu0 0.0
    %3258 = vmatmul.mubr.f32.gmra.mrb[0].mxu0 %v2906
    %v3259 = vpop.f32.mrb[0].mxu0
    %v3260 = vadd.f32 0.0, %v3259
    %v3261 = vpop.f32.mrb[0].mxu0
    %3262 = vmatprep.mubr.f32.mxu0 0.0
    %3263 = vmatmul.mubr.f32.gmra.mrb[0].mxu0 %v2909
    %v3264 = vpop.f32.mrb[0].mxu0
    %v3265 = vadd.f32 0.0, %v3264
    %v3266 = vpop.f32.mrb[0].mxu0
    %3267 = vmatprep.mubr.f32.mxu0 0.0
    %3268 = vmatmul.mubr.f32.gmra.mrb[0].mxu0 %v2912
    %v3269 = vpop.f32.mrb[0].mxu0
    %v3270 = vadd.f32 0.0, %v3269
    %v3271 = vpop.f32.mrb[0].mxu0
    %3272 = vmatprep.mubr.f32.mxu0 0.0
    %3273 = vmatmul.mubr.f32.gmra.mrb[0].mxu0 %v2915
    %v3274 = vpop.f32.mrb[0].mxu0
    %v3275 = vadd.f32 0.0, %v3274
    %v3276 = vpop.f32.mrb[0].mxu0
    %3277 = vmatprep.mubr.f32.mxu0 0.0
    %3278 = vmatmul.mubr.f32.gmra.mrb[0].mxu0 %v2918
    %v3279 = vpop.f32.mrb[0].mxu0
    %v3280 = vadd.f32 0.0, %v3279
    %v3281 = vpop.f32.mrb[0].mxu0
    %3282 = vmatprep.mubr.f32.mxu0 0.0
    %3283 = vmatmul.mubr.f32.gmra.mrb[0].mxu0 %v2921
    %v3284 = vpop.f32.mrb[0].mxu0
    %v3285 = vadd.f32 0.0, %v3284
    %v3286 = vpop.f32.mrb[0].mxu0
    %3287 = vmatprep.mubr.f32.mxu0 0.0
    %3288 = vmatmul.mubr.f32.gmra.mrb[0].mxu0 %v2924
    %v3289 = vpop.f32.mrb[0].mxu0
    %v3290 = vadd.f32 0.0, %v3289
    %v3291 = vpop.f32.mrb[0].mxu0
    %3292 = vmatprep.mubr.f32.mxu0 0.0
    %3293 = vmatmul.mubr.f32.gmra.mrb[0].mxu0 %v2927
    %v3294 = vpop.f32.mrb[0].mxu0
    %v3295 = vadd.f32 0.0, %v3294
    %v3296 = vpop.f32.mrb[0].mxu0
    %3297 = vmatprep.mubr.f32.mxu0 0.0
    %3298 = vmatmul.mubr.f32.gmra.mrb[0].mxu0 %v2930
    %v3299 = vpop.f32.mrb[0].mxu0
    %v3300 = vadd.f32 0.0, %v3299
    %v3301 = vpop.f32.mrb[0].mxu0
    %3302 = vmatprep.mubr.f32.mxu0 0.0
    %3303 = vmatmul.mubr.f32.gmra.mrb[0].mxu0 %v2933
    %v3304 = vpop.f32.mrb[0].mxu0
    %v3305 = vadd.f32 0.0, %v3304
    %v3306 = vpop.f32.mrb[0].mxu0
    %3307 = vmatprep.mubr.f32.mxu0 0.0
    %3308 = vmatmul.mubr.f32.gmra.mrb[0].mxu0 %v2936
    %v3309 = vpop.f32.mrb[0].mxu0
    %v3310 = vadd.f32 0.0, %v3309
    %v3311 = vpop.f32.mrb[0].mxu0
    %3312 = vdwg.mxu0
    %v3313 = vadd.f32 %v2626, %v3005
    %v3314 = vadd.f32 %v2627, %v3010
    %v3315 = vadd.f32 %v2628, %v3015
    %v3316 = vadd.f32 %v2629, %v3020
    %v3317 = vadd.f32 %v2630, %v3025
    %v3318 = vadd.f32 %v2631, %v3030
    %v3319 = vadd.f32 %v2632, %v3035
    %v3320 = vadd.f32 %v2633, %v3040
    %v3321 = vadd.f32 %v2634, %v3045
    %v3322 = vadd.f32 %v2635, %v3050
    %v3323 = vadd.f32 %v2636, %v3055
    %v3324 = vadd.f32 %v2637, %v3060
    %v3325 = vadd.f32 %v2638, %v3065
    %v3326 = vadd.f32 %v2639, %v3070
    %v3327 = vadd.f32 %v2640, %v3075
    %v3328 = vadd.f32 %v2641, %v3080
    %v3329 = vadd.f32 %v2642, %v3085
    %v3330 = vadd.f32 %v2643, %v3090
    %v3331 = vadd.f32 %v2644, %v3095
    %v3332 = vadd.f32 %v2645, %v3100
    %v3333 = vadd.f32 %v2646, %v3105
    %v3334 = vadd.f32 %v2647, %v3110
    %v3335 = vadd.f32 %v2648, %v3115
    %v3336 = vadd.f32 %v2649, %v3120
    %v3337 = vadd.f32 %v2650, %v3125
    %v3338 = vadd.f32 %v2651, %v3130
    %v3339 = vadd.f32 %v2652, %v3135
    %v3340 = vadd.f32 %v2653, %v3140
    %v3341 = vadd.f32 %v2654, %v3145
    %v3342 = vadd.f32 %v2655, %v3150
    %v3343 = vadd.f32 %v2656, %v3155
    %v3344 = vadd.f32 %v2657, %v3160
    %v3345 = vadd.f32 %v2658, %v3165
    %v3346 = vadd.f32 %v2659, %v3170
    %v3347 = vadd.f32 %v2660, %v3175
    %v3348 = vadd.f32 %v2661, %v3180
    %v3349 = vadd.f32 %v2662, %v3185
    %v3350 = vadd.f32 %v2663, %v3190
    %v3351 = vadd.f32 %v2664, %v3195
    %v3352 = vadd.f32 %v2665, %v3200
    %v3353 = vadd.f32 %v2666, %v3205
    %v3354 = vadd.f32 %v2667, %v3210
    %v3355 = vadd.f32 %v2668, %v3215
    %v3356 = vadd.f32 %v2669, %v3220
    %v3357 = vadd.f32 %v2670, %v3225
    %v3358 = vadd.f32 %v2671, %v3230
    %v3359 = vadd.f32 %v2672, %v3235
    %v3360 = vadd.f32 %v2673, %v3240
    %v3361 = vadd.f32 %v2674, %v3245
    %v3362 = vadd.f32 %v2675, %v3250
    %v3363 = vadd.f32 %v2676, %v3255
    %v3364 = vadd.f32 %v2677, %v3260
    %v3365 = vadd.f32 %v2678, %v3265
    %v3366 = vadd.f32 %v2679, %v3270
    %v3367 = vadd.f32 %v2680, %v3275
    %v3368 = vadd.f32 %v2681, %v3280
    %v3369 = vadd.f32 %v2682, %v3285
    %v3370 = vadd.f32 %v2683, %v3290
    %v3371 = vadd.f32 %v2684, %v3295
    %v3372 = vadd.f32 %v2685, %v3300
    %v3373 = vadd.f32 %v2686, %v3305
    %v3374 = vadd.f32 %v2687, %v3310
    %v3375 = vld [vmem:[%s2] sm:$0x1]
    %v3377 = vlaneseq
    %v3378 = vshrl.u32 %v3377, 7
    %v3379 = vsub.s32 0, %v3378
    %v3380 = vrot.slane %v3375, %v3379
    %v3382 = vadd.f32 %v3313, %v3380
    %v3383 = vadd.f32 %v3314, %v3380
    %v3384 = vadd.f32 %v3315, %v3380
    %v3385 = vadd.f32 %v3316, %v3380
    %v3386 = vadd.f32 %v3317, %v3380
    %v3387 = vadd.f32 %v3318, %v3380
    %v3388 = vadd.f32 %v3319, %v3380
    %v3389 = vadd.f32 %v3320, %v3380
    %v3390 = vadd.f32 %v3321, %v3380
    %v3391 = vadd.f32 %v3322, %v3380
    %v3392 = vadd.f32 %v3323, %v3380
    %v3393 = vadd.f32 %v3324, %v3380
    %v3394 = vadd.f32 %v3325, %v3380
    %v3395 = vadd.f32 %v3326, %v3380
    %v3396 = vadd.f32 %v3327, %v3380
    %v3397 = vadd.f32 %v3328, %v3380
    %v3398 = vadd.f32 %v3329, %v3380
    %v3399 = vadd.f32 %v3330, %v3380
    %v3400 = vadd.f32 %v3331, %v3380
    %v3401 = vadd.f32 %v3332, %v3380
    %v3402 = vadd.f32 %v3333, %v3380
    %v3403 = vadd.f32 %v3334, %v3380
    %v3404 = vadd.f32 %v3335, %v3380
    %v3405 = vadd.f32 %v3336, %v3380
    %v3406 = vadd.f32 %v3337, %v3380
    %v3407 = vadd.f32 %v3338, %v3380
    %v3408 = vadd.f32 %v3339, %v3380
    %v3409 = vadd.f32 %v3340, %v3380
    %v3410 = vadd.f32 %v3341, %v3380
    %v3411 = vadd.f32 %v3342, %v3380
    %v3412 = vadd.f32 %v3343, %v3380
    %v3413 = vadd.f32 %v3344, %v3380
    %v3414 = vadd.f32 %v3345, %v3380
    %v3415 = vadd.f32 %v3346, %v3380
    %v3416 = vadd.f32 %v3347, %v3380
    %v3417 = vadd.f32 %v3348, %v3380
    %v3418 = vadd.f32 %v3349, %v3380
    %v3419 = vadd.f32 %v3350, %v3380
    %v3420 = vadd.f32 %v3351, %v3380
    %v3421 = vadd.f32 %v3352, %v3380
    %v3422 = vadd.f32 %v3353, %v3380
    %v3423 = vadd.f32 %v3354, %v3380
    %v3424 = vadd.f32 %v3355, %v3380
    %v3425 = vadd.f32 %v3356, %v3380
    %v3426 = vadd.f32 %v3357, %v3380
    %v3427 = vadd.f32 %v3358, %v3380
    %v3428 = vadd.f32 %v3359, %v3380
    %v3429 = vadd.f32 %v3360, %v3380
    %v3430 = vadd.f32 %v3361, %v3380
    %v3431 = vadd.f32 %v3362, %v3380
    %v3432 = vadd.f32 %v3363, %v3380
    %v3433 = vadd.f32 %v3364, %v3380
    %v3434 = vadd.f32 %v3365, %v3380
    %v3435 = vadd.f32 %v3366, %v3380
    %v3436 = vadd.f32 %v3367, %v3380
    %v3437 = vadd.f32 %v3368, %v3380
    %v3438 = vadd.f32 %v3369, %v3380
    %v3439 = vadd.f32 %v3370, %v3380
    %v3440 = vadd.f32 %v3371, %v3380
    %v3441 = vadd.f32 %v3372, %v3380
    %v3442 = vadd.f32 %v3373, %v3380
    %v3443 = vadd.f32 %v3374, %v3380
    %vm3444 = vcmask 261120
    %3445 = vst.msk [vmem:[#allocation2] sm:$0xff] %vm3444, %v3382
    %3446 = vst.msk [vmem:[#allocation2 + $0x8] sm:$0xff] %vm3444, %v3383
    %3447 = vst.msk [vmem:[#allocation2 + $0x10] sm:$0xff] %vm3444, %v3384
    %3448 = vst.msk [vmem:[#allocation2 + $0x18] sm:$0xff] %vm3444, %v3385
    %3449 = vst.msk [vmem:[#allocation2 + $0x20] sm:$0xff] %vm3444, %v3386
    %3450 = vst.msk [vmem:[#allocation2 + $0x28] sm:$0xff] %vm3444, %v3387
    %3451 = vst.msk [vmem:[#allocation2 + $0x30] sm:$0xff] %vm3444, %v3388
    %3452 = vst.msk [vmem:[#allocation2 + $0x38] sm:$0xff] %vm3444, %v3389
    %3453 = vst.msk [vmem:[#allocation2 + $0x40] sm:$0xff] %vm3444, %v3390
    %3454 = vst.msk [vmem:[#allocation2 + $0x48] sm:$0xff] %vm3444, %v3391
    %3455 = vst.msk [vmem:[#allocation2 + $0x50] sm:$0xff] %vm3444, %v3392
    %3456 = vst.msk [vmem:[#allocation2 + $0x58] sm:$0xff] %vm3444, %v3393
    %3457 = vst.msk [vmem:[#allocation2 + $0x60] sm:$0xff] %vm3444, %v3394
    %3458 = vst.msk [vmem:[#allocation2 + $0x68] sm:$0xff] %vm3444, %v3395
    %3459 = vst.msk [vmem:[#allocation2 + $0x70] sm:$0xff] %vm3444, %v3396
    %3460 = vst.msk [vmem:[#allocation2 + $0x78] sm:$0xff] %vm3444, %v3397
    %3461 = vst.msk [vmem:[#allocation2 + $0x80] sm:$0xff] %vm3444, %v3398
    %3462 = vst.msk [vmem:[#allocation2 + $0x88] sm:$0xff] %vm3444, %v3399
    %3463 = vst.msk [vmem:[#allocation2 + $0x90] sm:$0xff] %vm3444, %v3400
    %3464 = vst.msk [vmem:[#allocation2 + $0x98] sm:$0xff] %vm3444, %v3401
    %3465 = vst.msk [vmem:[#allocation2 + $0xa0] sm:$0xff] %vm3444, %v3402
    %3466 = vst.msk [vmem:[#allocation2 + $0xa8] sm:$0xff] %vm3444, %v3403
    %3467 = vst.msk [vmem:[#allocation2 + $0xb0] sm:$0xff] %vm3444, %v3404
    %3468 = vst.msk [vmem:[#allocation2 + $0xb8] sm:$0xff] %vm3444, %v3405
    %3469 = vst.msk [vmem:[#allocation2 + $0xc0] sm:$0xff] %vm3444, %v3406
    %3470 = vst.msk [vmem:[#allocation2 + $0xc8] sm:$0xff] %vm3444, %v3407
    %3471 = vst.msk [vmem:[#allocation2 + $0xd0] sm:$0xff] %vm3444, %v3408
    %3472 = vst.msk [vmem:[#allocation2 + $0xd8] sm:$0xff] %vm3444, %v3409
    %3473 = vst.msk [vmem:[#allocation2 + $0xe0] sm:$0xff] %vm3444, %v3410
    %3474 = vst.msk [vmem:[#allocation2 + $0xe8] sm:$0xff] %vm3444, %v3411
    %3475 = vst.msk [vmem:[#allocation2 + $0xf0] sm:$0xff] %vm3444, %v3412
    %3476 = vst.msk [vmem:[#allocation2 + $0xf8] sm:$0xff] %vm3444, %v3413
    %3477 = vst.msk [vmem:[#allocation2 + $0x100] sm:$0xff] %vm3444, %v3414
    %3478 = vst.msk [vmem:[#allocation2 + $0x108] sm:$0xff] %vm3444, %v3415
    %3479 = vst.msk [vmem:[#allocation2 + $0x110] sm:$0xff] %vm3444, %v3416
    %3480 = vst.msk [vmem:[#allocation2 + $0x118] sm:$0xff] %vm3444, %v3417
    %3481 = vst.msk [vmem:[#allocation2 + $0x120] sm:$0xff] %vm3444, %v3418
    %3482 = vst.msk [vmem:[#allocation2 + $0x128] sm:$0xff] %vm3444, %v3419
    %3483 = vst.msk [vmem:[#allocation2 + $0x130] sm:$0xff] %vm3444, %v3420
    %3484 = vst.msk [vmem:[#allocation2 + $0x138] sm:$0xff] %vm3444, %v3421
    %3485 = vst.msk [vmem:[#allocation2 + $0x140] sm:$0xff] %vm3444, %v3422
    %3486 = vst.msk [vmem:[#allocation2 + $0x148] sm:$0xff] %vm3444, %v3423
    %3487 = vst.msk [vmem:[#allocation2 + $0x150] sm:$0xff] %vm3444, %v3424
    %3488 = vst.msk [vmem:[#allocation2 + $0x158] sm:$0xff] %vm3444, %v3425
    %3489 = vst.msk [vmem:[#allocation2 + $0x160] sm:$0xff] %vm3444, %v3426
    %3490 = vst.msk [vmem:[#allocation2 + $0x168] sm:$0xff] %vm3444, %v3427
    %3491 = vst.msk [vmem:[#allocation2 + $0x170] sm:$0xff] %vm3444, %v3428
    %3492 = vst.msk [vmem:[#allocation2 + $0x178] sm:$0xff] %vm3444, %v3429
    %3493 = vst.msk [vmem:[#allocation2 + $0x180] sm:$0xff] %vm3444, %v3430
    %3494 = vst.msk [vmem:[#allocation2 + $0x188] sm:$0xff] %vm3444, %v3431
    %3495 = vst.msk [vmem:[#allocation2 + $0x190] sm:$0xff] %vm3444, %v3432
    %3496 = vst.msk [vmem:[#allocation2 + $0x198] sm:$0xff] %vm3444, %v3433
    %3497 = vst.msk [vmem:[#allocation2 + $0x1a0] sm:$0xff] %vm3444, %v3434
    %3498 = vst.msk [vmem:[#allocation2 + $0x1a8] sm:$0xff] %vm3444, %v3435
    %3499 = vst.msk [vmem:[#allocation2 + $0x1b0] sm:$0xff] %vm3444, %v3436
    %3500 = vst.msk [vmem:[#allocation2 + $0x1b8] sm:$0xff] %vm3444, %v3437
    %3501 = vst.msk [vmem:[#allocation2 + $0x1c0] sm:$0xff] %vm3444, %v3438
    %3502 = vst.msk [vmem:[#allocation2 + $0x1c8] sm:$0xff] %vm3444, %v3439
    %3503 = vst.msk [vmem:[#allocation2 + $0x1d0] sm:$0xff] %vm3444, %v3440
    %3504 = vst.msk [vmem:[#allocation2 + $0x1d8] sm:$0xff] %vm3444, %v3441
    %3505 = vst.msk [vmem:[#allocation2 + $0x1e0] sm:$0xff] %vm3444, %v3442
    %3506 = vst.msk [vmem:[#allocation2 + $0x1e8] sm:$0xff] %vm3444, %v3443
    %v3507 = vsel %vm3444, %v3382, 0.0
    %v3508 = vsel %vm3444, %v3383, 0.0
    %v3509 = vadd.f32 %v3507, %v3508
    %v3510 = vsel %vm3444, %v3384, 0.0
    %v3511 = vadd.f32 %v3509, %v3510
    %v3512 = vsel %vm3444, %v3385, 0.0
    %v3513 = vadd.f32 %v3511, %v3512
    %v3514 = vsel %vm3444, %v3386, 0.0
    %v3515 = vadd.f32 %v3513, %v3514
    %v3516 = vsel %vm3444, %v3387, 0.0
    %v3517 = vadd.f32 %v3515, %v3516
    %v3518 = vsel %vm3444, %v3388, 0.0
    %v3519 = vadd.f32 %v3517, %v3518
    %v3520 = vsel %vm3444, %v3389, 0.0
    %v3521 = vadd.f32 %v3519, %v3520
    %v3522 = vsel %vm3444, %v3390, 0.0
    %v3523 = vadd.f32 %v3521, %v3522
    %v3524 = vsel %vm3444, %v3391, 0.0
    %v3525 = vadd.f32 %v3523, %v3524
    %v3526 = vsel %vm3444, %v3392, 0.0
    %v3527 = vadd.f32 %v3525, %v3526
    %v3528 = vsel %vm3444, %v3393, 0.0
    %v3529 = vadd.f32 %v3527, %v3528
    %v3530 = vsel %vm3444, %v3394, 0.0
    %v3531 = vadd.f32 %v3529, %v3530
    %v3532 = vsel %vm3444, %v3395, 0.0
    %v3533 = vadd.f32 %v3531, %v3532
    %v3534 = vsel %vm3444, %v3396, 0.0
    %v3535 = vadd.f32 %v3533, %v3534
    %v3536 = vsel %vm3444, %v3397, 0.0
    %v3537 = vadd.f32 %v3535, %v3536
    %v3538 = vsel %vm3444, %v3398, 0.0
    %v3539 = vadd.f32 %v3537, %v3538
    %v3540 = vsel %vm3444, %v3399, 0.0
    %v3541 = vadd.f32 %v3539, %v3540
    %v3542 = vsel %vm3444, %v3400, 0.0
    %v3543 = vadd.f32 %v3541, %v3542
    %v3544 = vsel %vm3444, %v3401, 0.0
    %v3545 = vadd.f32 %v3543, %v3544
    %v3546 = vsel %vm3444, %v3402, 0.0
    %v3547 = vadd.f32 %v3545, %v3546
    %v3548 = vsel %vm3444, %v3403, 0.0
    %v3549 = vadd.f32 %v3547, %v3548
    %v3550 = vsel %vm3444, %v3404, 0.0
    %v3551 = vadd.f32 %v3549, %v3550
    %v3552 = vsel %vm3444, %v3405, 0.0
    %v3553 = vadd.f32 %v3551, %v3552
    %v3554 = vsel %vm3444, %v3406, 0.0
    %v3555 = vadd.f32 %v3553, %v3554
    %v3556 = vsel %vm3444, %v3407, 0.0
    %v3557 = vadd.f32 %v3555, %v3556
    %v3558 = vsel %vm3444, %v3408, 0.0
    %v3559 = vadd.f32 %v3557, %v3558
    %v3560 = vsel %vm3444, %v3409, 0.0
    %v3561 = vadd.f32 %v3559, %v3560
    %v3562 = vsel %vm3444, %v3410, 0.0
    %v3563 = vadd.f32 %v3561, %v3562
    %v3564 = vsel %vm3444, %v3411, 0.0
    %v3565 = vadd.f32 %v3563, %v3564
    %v3566 = vsel %vm3444, %v3412, 0.0
    %v3567 = vadd.f32 %v3565, %v3566
    %v3568 = vsel %vm3444, %v3413, 0.0
    %v3569 = vadd.f32 %v3567, %v3568
    %v3570 = vsel %vm3444, %v3414, 0.0
    %v3571 = vadd.f32 %v3569, %v3570
    %v3572 = vsel %vm3444, %v3415, 0.0
    %v3573 = vadd.f32 %v3571, %v3572
    %v3574 = vsel %vm3444, %v3416, 0.0
    %v3575 = vadd.f32 %v3573, %v3574
    %v3576 = vsel %vm3444, %v3417, 0.0
    %v3577 = vadd.f32 %v3575, %v3576
    %v3578 = vsel %vm3444, %v3418, 0.0
    %v3579 = vadd.f32 %v3577, %v3578
    %v3580 = vsel %vm3444, %v3419, 0.0
    %v3581 = vadd.f32 %v3579, %v3580
    %v3582 = vsel %vm3444, %v3420, 0.0
    %v3583 = vadd.f32 %v3581, %v3582
    %v3584 = vsel %vm3444, %v3421, 0.0
    %v3585 = vadd.f32 %v3583, %v3584
    %v3586 = vsel %vm3444, %v3422, 0.0
    %v3587 = vadd.f32 %v3585, %v3586
    %v3588 = vsel %vm3444, %v3423, 0.0
    %v3589 = vadd.f32 %v3587, %v3588
    %v3590 = vsel %vm3444, %v3424, 0.0
    %v3591 = vadd.f32 %v3589, %v3590
    %v3592 = vsel %vm3444, %v3425, 0.0
    %v3593 = vadd.f32 %v3591, %v3592
    %v3594 = vsel %vm3444, %v3426, 0.0
    %v3595 = vadd.f32 %v3593, %v3594
    %v3596 = vsel %vm3444, %v3427, 0.0
    %v3597 = vadd.f32 %v3595, %v3596
    %v3598 = vsel %vm3444, %v3428, 0.0
    %v3599 = vadd.f32 %v3597, %v3598
    %v3600 = vsel %vm3444, %v3429, 0.0
    %v3601 = vadd.f32 %v3599, %v3600
    %v3602 = vsel %vm3444, %v3430, 0.0
    %v3603 = vadd.f32 %v3601, %v3602
    %v3604 = vsel %vm3444, %v3431, 0.0
    %v3605 = vadd.f32 %v3603, %v3604
    %v3606 = vsel %vm3444, %v3432, 0.0
    %v3607 = vadd.f32 %v3605, %v3606
    %v3608 = vsel %vm3444, %v3433, 0.0
    %v3609 = vadd.f32 %v3607, %v3608
    %v3610 = vsel %vm3444, %v3434, 0.0
    %v3611 = vadd.f32 %v3609, %v3610
    %v3612 = vsel %vm3444, %v3435, 0.0
    %v3613 = vadd.f32 %v3611, %v3612
    %v3614 = vsel %vm3444, %v3436, 0.0
    %v3615 = vadd.f32 %v3613, %v3614
    %v3616 = vsel %vm3444, %v3437, 0.0
    %v3617 = vadd.f32 %v3615, %v3616
    %v3618 = vsel %vm3444, %v3438, 0.0
    %v3619 = vadd.f32 %v3617, %v3618
    %v3620 = vsel %vm3444, %v3439, 0.0
    %v3621 = vadd.f32 %v3619, %v3620
    %v3622 = vsel %vm3444, %v3440, 0.0
    %v3623 = vadd.f32 %v3621, %v3622
    %v3624 = vsel %vm3444, %v3441, 0.0
    %v3625 = vadd.f32 %v3623, %v3624
    %v3626 = vsel %vm3444, %v3442, 0.0
    %v3627 = vadd.f32 %v3625, %v3626
    %v3628 = vsel %vm3444, %v3443, 0.0
    %v3629 = vadd.f32 %v3627, %v3628
    %v3630 = vrot.slane %v3629, 4
    %v3631 = vadd.f32 %v3629, %v3630
    %v3632 = vrot.slane %v3631, 2
    %v3633 = vadd.f32 %v3631, %v3632
    %v3634 = vrot.slane %v3633, 1
    %v3635 = vadd.f32 %v3633, %v3634
    %v3636 = vadd.f32 %v3635, 0.0
    %v3637 = vmul.f32 %v3382, %v3382
    %v3638 = vmul.f32 %v3383, %v3383
    %v3639 = vmul.f32 %v3384, %v3384
    %v3640 = vmul.f32 %v3385, %v3385
    %v3641 = vmul.f32 %v3386, %v3386
    %v3642 = vmul.f32 %v3387, %v3387
    %v3643 = vmul.f32 %v3388, %v3388
    %v3644 = vmul.f32 %v3389, %v3389
    %v3645 = vmul.f32 %v3390, %v3390
    %v3646 = vmul.f32 %v3391, %v3391
    %v3647 = vmul.f32 %v3392, %v3392
    %v3648 = vmul.f32 %v3393, %v3393
    %v3649 = vmul.f32 %v3394, %v3394
    %v3650 = vmul.f32 %v3395, %v3395
    %v3651 = vmul.f32 %v3396, %v3396
    %v3652 = vmul.f32 %v3397, %v3397
    %v3653 = vmul.f32 %v3398, %v3398
    %v3654 = vmul.f32 %v3399, %v3399
    %v3655 = vmul.f32 %v3400, %v3400
    %v3656 = vmul.f32 %v3401, %v3401
    %v3657 = vmul.f32 %v3402, %v3402
    %v3658 = vmul.f32 %v3403, %v3403
    %v3659 = vmul.f32 %v3404, %v3404
    %v3660 = vmul.f32 %v3405, %v3405
    %v3661 = vmul.f32 %v3406, %v3406
    %v3662 = vmul.f32 %v3407, %v3407
    %v3663 = vmul.f32 %v3408, %v3408
    %v3664 = vmul.f32 %v3409, %v3409
    %v3665 = vmul.f32 %v3410, %v3410
    %v3666 = vmul.f32 %v3411, %v3411
    %v3667 = vmul.f32 %v3412, %v3412
    %v3668 = vmul.f32 %v3413, %v3413
    %v3669 = vmul.f32 %v3414, %v3414
    %v3670 = vmul.f32 %v3415, %v3415
    %v3671 = vmul.f32 %v3416, %v3416
    %v3672 = vmul.f32 %v3417, %v3417
    %v3673 = vmul.f32 %v3418, %v3418
    %v3674 = vmul.f32 %v3419, %v3419
    %v3675 = vmul.f32 %v3420, %v3420
    %v3676 = vmul.f32 %v3421, %v3421
    %v3677 = vmul.f32 %v3422, %v3422
    %v3678 = vmul.f32 %v3423, %v3423
    %v3679 = vmul.f32 %v3424, %v3424
    %v3680 = vmul.f32 %v3425, %v3425
    %v3681 = vmul.f32 %v3426, %v3426
    %v3682 = vmul.f32 %v3427, %v3427
    %v3683 = vmul.f32 %v3428, %v3428
    %v3684 = vmul.f32 %v3429, %v3429
    %v3685 = vmul.f32 %v3430, %v3430
    %v3686 = vmul.f32 %v3431, %v3431
    %v3687 = vmul.f32 %v3432, %v3432
    %v3688 = vmul.f32 %v3433, %v3433
    %v3689 = vmul.f32 %v3434, %v3434
    %v3690 = vmul.f32 %v3435, %v3435
    %v3691 = vmul.f32 %v3436, %v3436
    %v3692 = vmul.f32 %v3437, %v3437
    %v3693 = vmul.f32 %v3438, %v3438
    %v3694 = vmul.f32 %v3439, %v3439
    %v3695 = vmul.f32 %v3440, %v3440
    %v3696 = vmul.f32 %v3441, %v3441
    %v3697 = vmul.f32 %v3442, %v3442
    %v3698 = vmul.f32 %v3443, %v3443
    %v3699 = vsel %vm3444, %v3637, 0.0
    %v3700 = vsel %vm3444, %v3638, 0.0
    %v3701 = vadd.f32 %v3699, %v3700
    %v3702 = vsel %vm3444, %v3639, 0.0
    %v3703 = vadd.f32 %v3701, %v3702
    %v3704 = vsel %vm3444, %v3640, 0.0
    %v3705 = vadd.f32 %v3703, %v3704
    %v3706 = vsel %vm3444, %v3641, 0.0
    %v3707 = vadd.f32 %v3705, %v3706
    %v3708 = vsel %vm3444, %v3642, 0.0
    %v3709 = vadd.f32 %v3707, %v3708
    %v3710 = vsel %vm3444, %v3643, 0.0
    %v3711 = vadd.f32 %v3709, %v3710
    %v3712 = vsel %vm3444, %v3644, 0.0
    %v3713 = vadd.f32 %v3711, %v3712
    %v3714 = vsel %vm3444, %v3645, 0.0
    %v3715 = vadd.f32 %v3713, %v3714
    %v3716 = vsel %vm3444, %v3646, 0.0
    %v3717 = vadd.f32 %v3715, %v3716
    %v3718 = vsel %vm3444, %v3647, 0.0
    %v3719 = vadd.f32 %v3717, %v3718
    %v3720 = vsel %vm3444, %v3648, 0.0
    %v3721 = vadd.f32 %v3719, %v3720
    %v3722 = vsel %vm3444, %v3649, 0.0
    %v3723 = vadd.f32 %v3721, %v3722
    %v3724 = vsel %vm3444, %v3650, 0.0
    %v3725 = vadd.f32 %v3723, %v3724
    %v3726 = vsel %vm3444, %v3651, 0.0
    %v3727 = vadd.f32 %v3725, %v3726
    %v3728 = vsel %vm3444, %v3652, 0.0
    %v3729 = vadd.f32 %v3727, %v3728
    %v3730 = vsel %vm3444, %v3653, 0.0
    %v3731 = vadd.f32 %v3729, %v3730
    %v3732 = vsel %vm3444, %v3654, 0.0
    %v3733 = vadd.f32 %v3731, %v3732
    %v3734 = vsel %vm3444, %v3655, 0.0
    %v3735 = vadd.f32 %v3733, %v3734
    %v3736 = vsel %vm3444, %v3656, 0.0
    %v3737 = vadd.f32 %v3735, %v3736
    %v3738 = vsel %vm3444, %v3657, 0.0
    %v3739 = vadd.f32 %v3737, %v3738
    %v3740 = vsel %vm3444, %v3658, 0.0
    %v3741 = vadd.f32 %v3739, %v3740
    %v3742 = vsel %vm3444, %v3659, 0.0
    %v3743 = vadd.f32 %v3741, %v3742
    %v3744 = vsel %vm3444, %v3660, 0.0
    %v3745 = vadd.f32 %v3743, %v3744
    %v3746 = vsel %vm3444, %v3661, 0.0
    %v3747 = vadd.f32 %v3745, %v3746
    %v3748 = vsel %vm3444, %v3662, 0.0
    %v3749 = vadd.f32 %v3747, %v3748
    %v3750 = vsel %vm3444, %v3663, 0.0
    %v3751 = vadd.f32 %v3749, %v3750
    %v3752 = vsel %vm3444, %v3664, 0.0
    %v3753 = vadd.f32 %v3751, %v3752
    %v3754 = vsel %vm3444, %v3665, 0.0
    %v3755 = vadd.f32 %v3753, %v3754
    %v3756 = vsel %vm3444, %v3666, 0.0
    %v3757 = vadd.f32 %v3755, %v3756
    %v3758 = vsel %vm3444, %v3667, 0.0
    %v3759 = vadd.f32 %v3757, %v3758
    %v3760 = vsel %vm3444, %v3668, 0.0
    %v3761 = vadd.f32 %v3759, %v3760
    %v3762 = vsel %vm3444, %v3669, 0.0
    %v3763 = vadd.f32 %v3761, %v3762
    %v3764 = vsel %vm3444, %v3670, 0.0
    %v3765 = vadd.f32 %v3763, %v3764
    %v3766 = vsel %vm3444, %v3671, 0.0
    %v3767 = vadd.f32 %v3765, %v3766
    %v3768 = vsel %vm3444, %v3672, 0.0
    %v3769 = vadd.f32 %v3767, %v3768
    %v3770 = vsel %vm3444, %v3673, 0.0
    %v3771 = vadd.f32 %v3769, %v3770
    %v3772 = vsel %vm3444, %v3674, 0.0
    %v3773 = vadd.f32 %v3771, %v3772
    %v3774 = vsel %vm3444, %v3675, 0.0
    %v3775 = vadd.f32 %v3773, %v3774
    %v3776 = vsel %vm3444, %v3676, 0.0
    %v3777 = vadd.f32 %v3775, %v3776
    %v3778 = vsel %vm3444, %v3677, 0.0
    %v3779 = vadd.f32 %v3777, %v3778
    %v3780 = vsel %vm3444, %v3678, 0.0
    %v3781 = vadd.f32 %v3779, %v3780
    %v3782 = vsel %vm3444, %v3679, 0.0
    %v3783 = vadd.f32 %v3781, %v3782
    %v3784 = vsel %vm3444, %v3680, 0.0
    %v3785 = vadd.f32 %v3783, %v3784
    %v3786 = vsel %vm3444, %v3681, 0.0
    %v3787 = vadd.f32 %v3785, %v3786
    %v3788 = vsel %vm3444, %v3682, 0.0
    %v3789 = vadd.f32 %v3787, %v3788
    %v3790 = vsel %vm3444, %v3683, 0.0
    %v3791 = vadd.f32 %v3789, %v3790
    %v3792 = vsel %vm3444, %v3684, 0.0
    %v3793 = vadd.f32 %v3791, %v3792
    %v3794 = vsel %vm3444, %v3685, 0.0
    %v3795 = vadd.f32 %v3793, %v3794
    %v3796 = vsel %vm3444, %v3686, 0.0
    %v3797 = vadd.f32 %v3795, %v3796
    %v3798 = vsel %vm3444, %v3687, 0.0
    %v3799 = vadd.f32 %v3797, %v3798
    %v3800 = vsel %vm3444, %v3688, 0.0
    %v3801 = vadd.f32 %v3799, %v3800
    %v3802 = vsel %vm3444, %v3689, 0.0
    %v3803 = vadd.f32 %v3801, %v3802
    %v3804 = vsel %vm3444, %v3690, 0.0
    %v3805 = vadd.f32 %v3803, %v3804
    %v3806 = vsel %vm3444, %v3691, 0.0
    %v3807 = vadd.f32 %v3805, %v3806
    %v3808 = vsel %vm3444, %v3692, 0.0
    %v3809 = vadd.f32 %v3807, %v3808
    %v3810 = vsel %vm3444, %v3693, 0.0
    %v3811 = vadd.f32 %v3809, %v3810
    %v3812 = vsel %vm3444, %v3694, 0.0
    %v3813 = vadd.f32 %v3811, %v3812
    %v3814 = vsel %vm3444, %v3695, 0.0
    %v3815 = vadd.f32 %v3813, %v3814
    %v3816 = vsel %vm3444, %v3696, 0.0
    %v3817 = vadd.f32 %v3815, %v3816
    %v3818 = vsel %vm3444, %v3697, 0.0
    %v3819 = vadd.f32 %v3817, %v3818
    %v3820 = vsel %vm3444, %v3698, 0.0
    %v3821 = vadd.f32 %v3819, %v3820
    %v3822 = vrot.slane %v3821, 4
    %v3823 = vadd.f32 %v3821, %v3822
    %v3824 = vrot.slane %v3823, 2
    %v3825 = vadd.f32 %v3823, %v3824
    %v3826 = vrot.slane %v3825, 1
    %v3827 = vadd.f32 %v3825, %v3826
    %v3828 = vadd.f32 %v3827, 0.0
    %v3829 = vld [vmem:[%s0 + $0x1f4] sm:$0xff]
    %v3830 = vld [vmem:[%s0 + $0x1fc] sm:$0xff]
    %v3831 = vld [vmem:[%s0 + $0x204] sm:$0xff]
    %v3832 = vld [vmem:[%s0 + $0x20c] sm:$0xff]
    %v3833 = vld [vmem:[%s0 + $0x214] sm:$0xff]
    %v3834 = vld [vmem:[%s0 + $0x21c] sm:$0xff]
    %v3835 = vld [vmem:[%s0 + $0x224] sm:$0xff]
    %v3836 = vld [vmem:[%s0 + $0x22c] sm:$0xff]
    %v3837 = vld [vmem:[%s0 + $0x234] sm:$0xff]
    %v3838 = vld [vmem:[%s0 + $0x23c] sm:$0xff]
    %v3839 = vld [vmem:[%s0 + $0x244] sm:$0xff]
    %v3840 = vld [vmem:[%s0 + $0x24c] sm:$0xff]
    %v3841 = vld [vmem:[%s0 + $0x254] sm:$0xff]
    %v3842 = vld [vmem:[%s0 + $0x25c] sm:$0xff]
    %v3843 = vld [vmem:[%s0 + $0x264] sm:$0xff]
    %v3844 = vld [vmem:[%s0 + $0x26c] sm:$0xff]
    %v3845 = vld [vmem:[%s0 + $0x274] sm:$0xff]
    %v3846 = vld [vmem:[%s0 + $0x27c] sm:$0xff]
    %v3847 = vld [vmem:[%s0 + $0x284] sm:$0xff]
    %v3848 = vld [vmem:[%s0 + $0x28c] sm:$0xff]
    %v3849 = vld [vmem:[%s0 + $0x294] sm:$0xff]
    %v3850 = vld [vmem:[%s0 + $0x29c] sm:$0xff]
    %v3851 = vld [vmem:[%s0 + $0x2a4] sm:$0xff]
    %v3852 = vld [vmem:[%s0 + $0x2ac] sm:$0xff]
    %v3853 = vld [vmem:[%s0 + $0x2b4] sm:$0xff]
    %v3854 = vld [vmem:[%s0 + $0x2bc] sm:$0xff]
    %v3855 = vld [vmem:[%s0 + $0x2c4] sm:$0xff]
    %v3856 = vld [vmem:[%s0 + $0x2cc] sm:$0xff]
    %v3857 = vld [vmem:[%s0 + $0x2d4] sm:$0xff]
    %v3858 = vld [vmem:[%s0 + $0x2dc] sm:$0xff]
    %v3859 = vld [vmem:[%s0 + $0x2e4] sm:$0xff]
    %v3860 = vld [vmem:[%s0 + $0x2ec] sm:$0xff]
    %v3861 = vld [vmem:[%s0 + $0x2f4] sm:$0xff]
    %v3862 = vld [vmem:[%s0 + $0x2fc] sm:$0xff]
    %v3863 = vld [vmem:[%s0 + $0x304] sm:$0xff]
    %v3864 = vld [vmem:[%s0 + $0x30c] sm:$0xff]
    %v3865 = vld [vmem:[%s0 + $0x314] sm:$0xff]
    %v3866 = vld [vmem:[%s0 + $0x31c] sm:$0xff]
    %v3867 = vld [vmem:[%s0 + $0x324] sm:$0xff]
    %v3868 = vld [vmem:[%s0 + $0x32c] sm:$0xff]
    %v3869 = vld [vmem:[%s0 + $0x334] sm:$0xff]
    %v3870 = vld [vmem:[%s0 + $0x33c] sm:$0xff]
    %v3871 = vld [vmem:[%s0 + $0x344] sm:$0xff]
    %v3872 = vld [vmem:[%s0 + $0x34c] sm:$0xff]
    %v3873 = vld [vmem:[%s0 + $0x354] sm:$0xff]
    %v3874 = vld [vmem:[%s0 + $0x35c] sm:$0xff]
    %v3875 = vld [vmem:[%s0 + $0x364] sm:$0xff]
    %v3876 = vld [vmem:[%s0 + $0x36c] sm:$0xff]
    %v3877 = vld [vmem:[%s0 + $0x374] sm:$0xff]
    %v3878 = vld [vmem:[%s0 + $0x37c] sm:$0xff]
    %v3879 = vld [vmem:[%s0 + $0x384] sm:$0xff]
    %v3880 = vld [vmem:[%s0 + $0x38c] sm:$0xff]
    %v3881 = vld [vmem:[%s0 + $0x394] sm:$0xff]
    %v3882 = vld [vmem:[%s0 + $0x39c] sm:$0xff]
    %v3883 = vld [vmem:[%s0 + $0x3a4] sm:$0xff]
    %v3884 = vld [vmem:[%s0 + $0x3ac] sm:$0xff]
    %v3885 = vld [vmem:[%s0 + $0x3b4] sm:$0xff]
    %v3886 = vld [vmem:[%s0 + $0x3bc] sm:$0xff]
    %v3887 = vld [vmem:[%s0 + $0x3c4] sm:$0xff]
    %v3888 = vld [vmem:[%s0 + $0x3cc] sm:$0xff]
    %v3889 = vld [vmem:[%s0 + $0x3d4] sm:$0xff]
    %v3890 = vld [vmem:[%s0 + $0x3dc] sm:$0xff]
    %v3891 = vld [vmem:[%s1] sm:$0xff]
    %v3892 = vld [vmem:[%s1 + $0x8] sm:$0xff]
    %v3893 = vld [vmem:[%s0 + $0x1f5] sm:$0xff]
    %v3894 = vld [vmem:[%s0 + $0x1fd] sm:$0xff]
    %v3895 = vld [vmem:[%s0 + $0x205] sm:$0xff]
    %v3896 = vld [vmem:[%s0 + $0x20d] sm:$0xff]
    %v3897 = vld [vmem:[%s0 + $0x215] sm:$0xff]
    %v3898 = vld [vmem:[%s0 + $0x21d] sm:$0xff]
    %v3899 = vld [vmem:[%s0 + $0x225] sm:$0xff]
    %v3900 = vld [vmem:[%s0 + $0x22d] sm:$0xff]
    %v3901 = vld [vmem:[%s0 + $0x235] sm:$0xff]
    %v3902 = vld [vmem:[%s0 + $0x23d] sm:$0xff]
    %v3903 = vld [vmem:[%s0 + $0x245] sm:$0xff]
    %v3904 = vld [vmem:[%s0 + $0x24d] sm:$0xff]
    %v3905 = vld [vmem:[%s0 + $0x255] sm:$0xff]
    %v3906 = vld [vmem:[%s0 + $0x25d] sm:$0xff]
    %v3907 = vld [vmem:[%s0 + $0x265] sm:$0xff]
    %v3908 = vld [vmem:[%s0 + $0x26d] sm:$0xff]
    %v3909 = vld [vmem:[%s0 + $0x275] sm:$0xff]
    %v3910 = vld [vmem:[%s0 + $0x27d] sm:$0xff]
    %v3911 = vld [vmem:[%s0 + $0x285] sm:$0xff]
    %v3912 = vld [vmem:[%s0 + $0x28d] sm:$0xff]
    %v3913 = vld [vmem:[%s0 + $0x295] sm:$0xff]
    %v3914 = vld [vmem:[%s0 + $0x29d] sm:$0xff]
    %v3915 = vld [vmem:[%s0 + $0x2a5] sm:$0xff]
    %v3916 = vld [vmem:[%s0 + $0x2ad] sm:$0xff]
    %v3917 = vld [vmem:[%s0 + $0x2b5] sm:$0xff]
    %v3918 = vld [vmem:[%s0 + $0x2bd] sm:$0xff]
    %v3919 = vld [vmem:[%s0 + $0x2c5] sm:$0xff]
    %v3920 = vld [vmem:[%s0 + $0x2cd] sm:$0xff]
    %v3921 = vld [vmem:[%s0 + $0x2d5] sm:$0xff]
    %v3922 = vld [vmem:[%s0 + $0x2dd] sm:$0xff]
    %v3923 = vld [vmem:[%s0 + $0x2e5] sm:$0xff]
    %v3924 = vld [vmem:[%s0 + $0x2ed] sm:$0xff]
    %v3925 = vld [vmem:[%s0 + $0x2f5] sm:$0xff]
    %v3926 = vld [vmem:[%s0 + $0x2fd] sm:$0xff]
    %v3927 = vld [vmem:[%s0 + $0x305] sm:$0xff]
    %v3928 = vld [vmem:[%s0 + $0x30d] sm:$0xff]
    %v3929 = vld [vmem:[%s0 + $0x315] sm:$0xff]
    %v3930 = vld [vmem:[%s0 + $0x31d] sm:$0xff]
    %v3931 = vld [vmem:[%s0 + $0x325] sm:$0xff]
    %v3932 = vld [vmem:[%s0 + $0x32d] sm:$0xff]
    %v3933 = vld [vmem:[%s0 + $0x335] sm:$0xff]
    %v3934 = vld [vmem:[%s0 + $0x33d] sm:$0xff]
    %v3935 = vld [vmem:[%s0 + $0x345] sm:$0xff]
    %v3936 = vld [vmem:[%s0 + $0x34d] sm:$0xff]
    %v3937 = vld [vmem:[%s0 + $0x355] sm:$0xff]
    %v3938 = vld [vmem:[%s0 + $0x35d] sm:$0xff]
    %v3939 = vld [vmem:[%s0 + $0x365] sm:$0xff]
    %v3940 = vld [vmem:[%s0 + $0x36d] sm:$0xff]
    %v3941 = vld [vmem:[%s0 + $0x375] sm:$0xff]
    %v3942 = vld [vmem:[%s0 + $0x37d] sm:$0xff]
    %v3943 = vld [vmem:[%s0 + $0x385] sm:$0xff]
    %v3944 = vld [vmem:[%s0 + $0x38d] sm:$0xff]
    %v3945 = vld [vmem:[%s0 + $0x395] sm:$0xff]
    %v3946 = vld [vmem:[%s0 + $0x39d] sm:$0xff]
    %v3947 = vld [vmem:[%s0 + $0x3a5] sm:$0xff]
    %v3948 = vld [vmem:[%s0 + $0x3ad] sm:$0xff]
    %v3949 = vld [vmem:[%s0 + $0x3b5] sm:$0xff]
    %v3950 = vld [vmem:[%s0 + $0x3bd] sm:$0xff]
    %v3951 = vld [vmem:[%s0 + $0x3c5] sm:$0xff]
    %v3952 = vld [vmem:[%s0 + $0x3cd] sm:$0xff]
    %v3953 = vld [vmem:[%s0 + $0x3d5] sm:$0xff]
    %v3954 = vld [vmem:[%s0 + $0x3dd] sm:$0xff]
    %v3955 = vld [vmem:[%s1 + $0x10] sm:$0xff]
    %v3956 = vld [vmem:[%s1 + $0x18] sm:$0xff]
    %v3958 = vsel %vm191, %v3893, 0
    %v3961 = vsel %vm191, %v3894, 0
    %v3964 = vsel %vm191, %v3895, 0
    %v3967 = vsel %vm191, %v3896, 0
    %v3970 = vsel %vm191, %v3897, 0
    %v3973 = vsel %vm191, %v3898, 0
    %v3976 = vsel %vm191, %v3899, 0
    %v3979 = vsel %vm191, %v3900, 0
    %v3982 = vsel %vm191, %v3901, 0
    %v3985 = vsel %vm191, %v3902, 0
    %v3988 = vsel %vm191, %v3903, 0
    %v3991 = vsel %vm191, %v3904, 0
    %v3994 = vsel %vm191, %v3905, 0
    %v3997 = vsel %vm191, %v3906, 0
    %v4000 = vsel %vm191, %v3907, 0
    %v4003 = vsel %vm191, %v3908, 0
    %v4006 = vsel %vm191, %v3909, 0
    %v4009 = vsel %vm191, %v3910, 0
    %v4012 = vsel %vm191, %v3911, 0
    %v4015 = vsel %vm191, %v3912, 0
    %v4018 = vsel %vm191, %v3913, 0
    %v4021 = vsel %vm191, %v3914, 0
    %v4024 = vsel %vm191, %v3915, 0
    %v4027 = vsel %vm191, %v3916, 0
    %v4030 = vsel %vm191, %v3917, 0
    %v4033 = vsel %vm191, %v3918, 0
    %v4036 = vsel %vm191, %v3919, 0
    %v4039 = vsel %vm191, %v3920, 0
    %v4042 = vsel %vm191, %v3921, 0
    %v4045 = vsel %vm191, %v3922, 0
    %v4048 = vsel %vm191, %v3923, 0
    %v4051 = vsel %vm191, %v3924, 0
    %v4054 = vsel %vm191, %v3925, 0
    %v4057 = vsel %vm191, %v3926, 0
    %v4060 = vsel %vm191, %v3927, 0
    %v4063 = vsel %vm191, %v3928, 0
    %v4066 = vsel %vm191, %v3929, 0
    %v4069 = vsel %vm191, %v3930, 0
    %v4072 = vsel %vm191, %v3931, 0
    %v4075 = vsel %vm191, %v3932, 0
    %v4078 = vsel %vm191, %v3933, 0
    %v4081 = vsel %vm191, %v3934, 0
    %v4084 = vsel %vm191, %v3935, 0
    %v4087 = vsel %vm191, %v3936, 0
    %v4090 = vsel %vm191, %v3937, 0
    %v4093 = vsel %vm191, %v3938, 0
    %v4096 = vsel %vm191, %v3939, 0
    %v4099 = vsel %vm191, %v3940, 0
    %v4102 = vsel %vm191, %v3941, 0
    %v4105 = vsel %vm191, %v3942, 0
    %v4108 = vsel %vm191, %v3943, 0
    %v4111 = vsel %vm191, %v3944, 0
    %v4114 = vsel %vm191, %v3945, 0
    %v4117 = vsel %vm191, %v3946, 0
    %v4120 = vsel %vm191, %v3947, 0
    %v4123 = vsel %vm191, %v3948, 0
    %v4126 = vsel %vm191, %v3949, 0
    %v4129 = vsel %vm191, %v3950, 0
    %v4132 = vsel %vm191, %v3951, 0
    %v4135 = vsel %vm191, %v3952, 0
    %v4138 = vsel %vm191, %v3953, 0
    %v4141 = vsel %vm191, %v3954, 0
    %4143 = vmatprep.subr.mxu0 0.0
    %4144 = vmatpush1.msra.mxu0 %v3955
    %4145 = vmatprep.subr.mxu0 0.0
    %4146 = vmatpush1.msra.mxu0 %v3956
    %4147 = vmatprep.subr.mxu0 0.0
    %4148 = vmatpush1.msra.mxu0 0.0
    %4149 = vmatprep.subr.mxu0 0.0
    %4150 = vmatpush1.msra.mxu0 0.0
    %4151 = vmatprep.subr.mxu0 0.0
    %4152 = vmatpush1.msra.mxu0 0.0
    %4153 = vmatprep.subr.mxu0 0.0
    %4154 = vmatpush1.msra.mxu0 0.0
    %4155 = vmatprep.subr.mxu0 0.0
    %4156 = vmatpush1.msra.mxu0 0.0
    %4157 = vmatprep.subr.mxu0 0.0
    %4158 = vmatpush1.msra.mxu0 0.0
    %4159 = vmatprep.subr.mxu0 0.0
    %4160 = vmatpush1.msra.mxu0 0.0
    %4161 = vmatprep.subr.mxu0 0.0
    %4162 = vmatpush1.msra.mxu0 0.0
    %4163 = vmatprep.subr.mxu0 0.0
    %4164 = vmatpush1.msra.mxu0 0.0
    %4165 = vmatprep.subr.mxu0 0.0
    %4166 = vmatpush1.msra.mxu0 0.0
    %4167 = vmatprep.subr.mxu0 0.0
    %4168 = vmatpush1.msra.mxu0 0.0
    %4169 = vmatprep.subr.mxu0 0.0
    %4170 = vmatpush1.msra.mxu0 0.0
    %4171 = vmatprep.subr.mxu0 0.0
    %4172 = vmatpush1.msra.mxu0 0.0
    %4173 = vmatprep.subr.mxu0 0.0
    %4174 = vmatpush1.msra.mxu0 0.0
    %4175 = vmatprep.subr.mxu0 0.0
    %4176 = vmatpush1.msra.mxu0 0.0
    %4177 = vmatprep.subr.mxu0 0.0
    %4178 = vmatpush1.msra.mxu0 0.0
    %4179 = vmatprep.subr.mxu0 0.0
    %4180 = vmatpush1.msra.mxu0 0.0
    %4181 = vmatprep.subr.mxu0 0.0
    %4182 = vmatpush1.msra.mxu0 0.0
    %4183 = vmatprep.subr.mxu0 0.0
    %4184 = vmatpush1.msra.mxu0 0.0
    %4185 = vmatprep.subr.mxu0 0.0
    %4186 = vmatpush1.msra.mxu0 0.0
    %4187 = vmatprep.subr.mxu0 0.0
    %4188 = vmatpush1.msra.mxu0 0.0
    %4189 = vmatprep.subr.mxu0 0.0
    %4190 = vmatpush1.msra.mxu0 0.0
    %4191 = vmatprep.subr.mxu0 0.0
    %4192 = vmatpush1.msra.mxu0 0.0
    %4193 = vmatprep.subr.mxu0 0.0
    %4194 = vmatpush1.msra.mxu0 0.0
    %4195 = vmatprep.subr.mxu0 0.0
    %4196 = vmatpush1.msra.mxu0 0.0
    %4197 = vmatprep.subr.mxu0 0.0
    %4198 = vmatpush1.msra.mxu0 0.0
    %4199 = vmatprep.subr.mxu0 0.0
    %4200 = vmatpush1.msra.mxu0 0.0
    %4201 = vmatprep.subr.mxu0 0.0
    %4202 = vmatpush1.msra.mxu0 0.0
    %4203 = vmatprep.subr.mxu0 0.0
    %4204 = vmatpush1.msra.mxu0 0.0
    %4205 = vmatprep.subr.mxu0 0.0
    %4206 = vmatpush1.msra.mxu0 0.0
    %4207 = vmatprep.mubr.f32.mxu0 0.0
    %4208 = vmatmul.mubr.f32.gmra.mrb[0].mxu0 %v3958
    %v4209 = vpop.f32.mrb[0].mxu0
    %v4210 = vadd.f32 0.0, %v4209
    %v4211 = vpop.f32.mrb[0].mxu0
    %4212 = vmatprep.mubr.f32.mxu0 0.0
    %4213 = vmatmul.mubr.f32.gmra.mrb[0].mxu0 %v3961
    %v4214 = vpop.f32.mrb[0].mxu0
    %v4215 = vadd.f32 0.0, %v4214
    %v4216 = vpop.f32.mrb[0].mxu0
    %4217 = vmatprep.mubr.f32.mxu0 0.0
    %4218 = vmatmul.mubr.f32.gmra.mrb[0].mxu0 %v3964
    %v4219 = vpop.f32.mrb[0].mxu0
    %v4220 = vadd.f32 0.0, %v4219
    %v4221 = vpop.f32.mrb[0].mxu0
    %4222 = vmatprep.mubr.f32.mxu0 0.0
    %4223 = vmatmul.mubr.f32.gmra.mrb[0].mxu0 %v3967
    %v4224 = vpop.f32.mrb[0].mxu0
    %v4225 = vadd.f32 0.0, %v4224
    %v4226 = vpop.f32.mrb[0].mxu0
    %4227 = vmatprep.mubr.f32.mxu0 0.0
    %4228 = vmatmul.mubr.f32.gmra.mrb[0].mxu0 %v3970
    %v4229 = vpop.f32.mrb[0].mxu0
    %v4230 = vadd.f32 0.0, %v4229
    %v4231 = vpop.f32.mrb[0].mxu0
    %4232 = vmatprep.mubr.f32.mxu0 0.0
    %4233 = vmatmul.mubr.f32.gmra.mrb[0].mxu0 %v3973
    %v4234 = vpop.f32.mrb[0].mxu0
    %v4235 = vadd.f32 0.0, %v4234
    %v4236 = vpop.f32.mrb[0].mxu0
    %4237 = vmatprep.mubr.f32.mxu0 0.0
    %4238 = vmatmul.mubr.f32.gmra.mrb[0].mxu0 %v3976
    %v4239 = vpop.f32.mrb[0].mxu0
    %v4240 = vadd.f32 0.0, %v4239
    %v4241 = vpop.f32.mrb[0].mxu0
    %4242 = vmatprep.mubr.f32.mxu0 0.0
    %4243 = vmatmul.mubr.f32.gmra.mrb[0].mxu0 %v3979
    %v4244 = vpop.f32.mrb[0].mxu0
    %v4245 = vadd.f32 0.0, %v4244
    %v4246 = vpop.f32.mrb[0].mxu0
    %4247 = vmatprep.mubr.f32.mxu0 0.0
    %4248 = vmatmul.mubr.f32.gmra.mrb[0].mxu0 %v3982
    %v4249 = vpop.f32.mrb[0].mxu0
    %v4250 = vadd.f32 0.0, %v4249
    %v4251 = vpop.f32.mrb[0].mxu0
    %4252 = vmatprep.mubr.f32.mxu0 0.0
    %4253 = vmatmul.mubr.f32.gmra.mrb[0].mxu0 %v3985
    %v4254 = vpop.f32.mrb[0].mxu0
    %v4255 = vadd.f32 0.0, %v4254
    %v4256 = vpop.f32.mrb[0].mxu0
    %4257 = vmatprep.mubr.f32.mxu0 0.0
    %4258 = vmatmul.mubr.f32.gmra.mrb[0].mxu0 %v3988
    %v4259 = vpop.f32.mrb[0].mxu0
    %v4260 = vadd.f32 0.0, %v4259
    %v4261 = vpop.f32.mrb[0].mxu0
    %4262 = vmatprep.mubr.f32.mxu0 0.0
    %4263 = vmatmul.mubr.f32.gmra.mrb[0].mxu0 %v3991
    %v4264 = vpop.f32.mrb[0].mxu0
    %v4265 = vadd.f32 0.0, %v4264
    %v4266 = vpop.f32.mrb[0].mxu0
    %4267 = vmatprep.mubr.f32.mxu0 0.0
    %4268 = vmatmul.mubr.f32.gmra.mrb[0].mxu0 %v3994
    %v4269 = vpop.f32.mrb[0].mxu0
    %v4270 = vadd.f32 0.0, %v4269
    %v4271 = vpop.f32.mrb[0].mxu0
    %4272 = vmatprep.mubr.f32.mxu0 0.0
    %4273 = vmatmul.mubr.f32.gmra.mrb[0].mxu0 %v3997
    %v4274 = vpop.f32.mrb[0].mxu0
    %v4275 = vadd.f32 0.0, %v4274
    %v4276 = vpop.f32.mrb[0].mxu0
    %4277 = vmatprep.mubr.f32.mxu0 0.0
    %4278 = vmatmul.mubr.f32.gmra.mrb[0].mxu0 %v4000
    %v4279 = vpop.f32.mrb[0].mxu0
    %v4280 = vadd.f32 0.0, %v4279
    %v4281 = vpop.f32.mrb[0].mxu0
    %4282 = vmatprep.mubr.f32.mxu0 0.0
    %4283 = vmatmul.mubr.f32.gmra.mrb[0].mxu0 %v4003
    %v4284 = vpop.f32.mrb[0].mxu0
    %v4285 = vadd.f32 0.0, %v4284
    %v4286 = vpop.f32.mrb[0].mxu0
    %4287 = vmatprep.mubr.f32.mxu0 0.0
    %4288 = vmatmul.mubr.f32.gmra.mrb[0].mxu0 %v4006
    %v4289 = vpop.f32.mrb[0].mxu0
    %v4290 = vadd.f32 0.0, %v4289
    %v4291 = vpop.f32.mrb[0].mxu0
    %4292 = vmatprep.mubr.f32.mxu0 0.0
    %4293 = vmatmul.mubr.f32.gmra.mrb[0].mxu0 %v4009
    %v4294 = vpop.f32.mrb[0].mxu0
    %v4295 = vadd.f32 0.0, %v4294
    %v4296 = vpop.f32.mrb[0].mxu0
    %4297 = vmatprep.mubr.f32.mxu0 0.0
    %4298 = vmatmul.mubr.f32.gmra.mrb[0].mxu0 %v4012
    %v4299 = vpop.f32.mrb[0].mxu0
    %v4300 = vadd.f32 0.0, %v4299
    %v4301 = vpop.f32.mrb[0].mxu0
    %4302 = vmatprep.mubr.f32.mxu0 0.0
    %4303 = vmatmul.mubr.f32.gmra.mrb[0].mxu0 %v4015
    %v4304 = vpop.f32.mrb[0].mxu0
    %v4305 = vadd.f32 0.0, %v4304
    %v4306 = vpop.f32.mrb[0].mxu0
    %4307 = vmatprep.mubr.f32.mxu0 0.0
    %4308 = vmatmul.mubr.f32.gmra.mrb[0].mxu0 %v4018
    %v4309 = vpop.f32.mrb[0].mxu0
    %v4310 = vadd.f32 0.0, %v4309
    %v4311 = vpop.f32.mrb[0].mxu0
    %4312 = vmatprep.mubr.f32.mxu0 0.0
    %4313 = vmatmul.mubr.f32.gmra.mrb[0].mxu0 %v4021
    %v4314 = vpop.f32.mrb[0].mxu0
    %v4315 = vadd.f32 0.0, %v4314
    %v4316 = vpop.f32.mrb[0].mxu0
    %4317 = vmatprep.mubr.f32.mxu0 0.0
    %4318 = vmatmul.mubr.f32.gmra.mrb[0].mxu0 %v4024
    %v4319 = vpop.f32.mrb[0].mxu0
    %v4320 = vadd.f32 0.0, %v4319
    %v4321 = vpop.f32.mrb[0].mxu0
    %4322 = vmatprep.mubr.f32.mxu0 0.0
    %4323 = vmatmul.mubr.f32.gmra.mrb[0].mxu0 %v4027
    %v4324 = vpop.f32.mrb[0].mxu0
    %v4325 = vadd.f32 0.0, %v4324
    %v4326 = vpop.f32.mrb[0].mxu0
    %4327 = vmatprep.mubr.f32.mxu0 0.0
    %4328 = vmatmul.mubr.f32.gmra.mrb[0].mxu0 %v4030
    %v4329 = vpop.f32.mrb[0].mxu0
    %v4330 = vadd.f32 0.0, %v4329
    %v4331 = vpop.f32.mrb[0].mxu0
    %4332 = vmatprep.mubr.f32.mxu0 0.0
    %4333 = vmatmul.mubr.f32.gmra.mrb[0].mxu0 %v4033
    %v4334 = vpop.f32.mrb[0].mxu0
    %v4335 = vadd.f32 0.0, %v4334
    %v4336 = vpop.f32.mrb[0].mxu0
    %4337 = vmatprep.mubr.f32.mxu0 0.0
    %4338 = vmatmul.mubr.f32.gmra.mrb[0].mxu0 %v4036
    %v4339 = vpop.f32.mrb[0].mxu0
    %v4340 = vadd.f32 0.0, %v4339
    %v4341 = vpop.f32.mrb[0].mxu0
    %4342 = vmatprep.mubr.f32.mxu0 0.0
    %4343 = vmatmul.mubr.f32.gmra.mrb[0].mxu0 %v4039
    %v4344 = vpop.f32.mrb[0].mxu0
    %v4345 = vadd.f32 0.0, %v4344
    %v4346 = vpop.f32.mrb[0].mxu0
    %4347 = vmatprep.mubr.f32.mxu0 0.0
    %4348 = vmatmul.mubr.f32.gmra.mrb[0].mxu0 %v4042
    %v4349 = vpop.f32.mrb[0].mxu0
    %v4350 = vadd.f32 0.0, %v4349
    %v4351 = vpop.f32.mrb[0].mxu0
    %4352 = vmatprep.mubr.f32.mxu0 0.0
    %4353 = vmatmul.mubr.f32.gmra.mrb[0].mxu0 %v4045
    %v4354 = vpop.f32.mrb[0].mxu0
    %v4355 = vadd.f32 0.0, %v4354
    %v4356 = vpop.f32.mrb[0].mxu0
    %4357 = vmatprep.mubr.f32.mxu0 0.0
    %4358 = vmatmul.mubr.f32.gmra.mrb[0].mxu0 %v4048
    %v4359 = vpop.f32.mrb[0].mxu0
    %v4360 = vadd.f32 0.0, %v4359
    %v4361 = vpop.f32.mrb[0].mxu0
    %4362 = vmatprep.mubr.f32.mxu0 0.0
    %4363 = vmatmul.mubr.f32.gmra.mrb[0].mxu0 %v4051
    %v4364 = vpop.f32.mrb[0].mxu0
    %v4365 = vadd.f32 0.0, %v4364
    %v4366 = vpop.f32.mrb[0].mxu0
    %4367 = vmatprep.mubr.f32.mxu0 0.0
    %4368 = vmatmul.mubr.f32.gmra.mrb[0].mxu0 %v4054
    %v4369 = vpop.f32.mrb[0].mxu0
    %v4370 = vadd.f32 0.0, %v4369
    %v4371 = vpop.f32.mrb[0].mxu0
    %4372 = vmatprep.mubr.f32.mxu0 0.0
    %4373 = vmatmul.mubr.f32.gmra.mrb[0].mxu0 %v4057
    %v4374 = vpop.f32.mrb[0].mxu0
    %v4375 = vadd.f32 0.0, %v4374
    %v4376 = vpop.f32.mrb[0].mxu0
    %4377 = vmatprep.mubr.f32.mxu0 0.0
    %4378 = vmatmul.mubr.f32.gmra.mrb[0].mxu0 %v4060
    %v4379 = vpop.f32.mrb[0].mxu0
    %v4380 = vadd.f32 0.0, %v4379
    %v4381 = vpop.f32.mrb[0].mxu0
    %4382 = vmatprep.mubr.f32.mxu0 0.0
    %4383 = vmatmul.mubr.f32.gmra.mrb[0].mxu0 %v4063
    %v4384 = vpop.f32.mrb[0].mxu0
    %v4385 = vadd.f32 0.0, %v4384
    %v4386 = vpop.f32.mrb[0].mxu0
    %4387 = vmatprep.mubr.f32.mxu0 0.0
    %4388 = vmatmul.mubr.f32.gmra.mrb[0].mxu0 %v4066
    %v4389 = vpop.f32.mrb[0].mxu0
    %v4390 = vadd.f32 0.0, %v4389
    %v4391 = vpop.f32.mrb[0].mxu0
    %4392 = vmatprep.mubr.f32.mxu0 0.0
    %4393 = vmatmul.mubr.f32.gmra.mrb[0].mxu0 %v4069
    %v4394 = vpop.f32.mrb[0].mxu0
    %v4395 = vadd.f32 0.0, %v4394
    %v4396 = vpop.f32.mrb[0].mxu0
    %4397 = vmatprep.mubr.f32.mxu0 0.0
    %4398 = vmatmul.mubr.f32.gmra.mrb[0].mxu0 %v4072
    %v4399 = vpop.f32.mrb[0].mxu0
    %v4400 = vadd.f32 0.0, %v4399
    %v4401 = vpop.f32.mrb[0].mxu0
    %4402 = vmatprep.mubr.f32.mxu0 0.0
    %4403 = vmatmul.mubr.f32.gmra.mrb[0].mxu0 %v4075
    %v4404 = vpop.f32.mrb[0].mxu0
    %v4405 = vadd.f32 0.0, %v4404
    %v4406 = vpop.f32.mrb[0].mxu0
    %4407 = vmatprep.mubr.f32.mxu0 0.0
    %4408 = vmatmul.mubr.f32.gmra.mrb[0].mxu0 %v4078
    %v4409 = vpop.f32.mrb[0].mxu0
    %v4410 = vadd.f32 0.0, %v4409
    %v4411 = vpop.f32.mrb[0].mxu0
    %4412 = vmatprep.mubr.f32.mxu0 0.0
    %4413 = vmatmul.mubr.f32.gmra.mrb[0].mxu0 %v4081
    %v4414 = vpop.f32.mrb[0].mxu0
    %v4415 = vadd.f32 0.0, %v4414
    %v4416 = vpop.f32.mrb[0].mxu0
    %4417 = vmatprep.mubr.f32.mxu0 0.0
    %4418 = vmatmul.mubr.f32.gmra.mrb[0].mxu0 %v4084
    %v4419 = vpop.f32.mrb[0].mxu0
    %v4420 = vadd.f32 0.0, %v4419
    %v4421 = vpop.f32.mrb[0].mxu0
    %4422 = vmatprep.mubr.f32.mxu0 0.0
    %4423 = vmatmul.mubr.f32.gmra.mrb[0].mxu0 %v4087
    %v4424 = vpop.f32.mrb[0].mxu0
    %v4425 = vadd.f32 0.0, %v4424
    %v4426 = vpop.f32.mrb[0].mxu0
    %4427 = vmatprep.mubr.f32.mxu0 0.0
    %4428 = vmatmul.mubr.f32.gmra.mrb[0].mxu0 %v4090
    %v4429 = vpop.f32.mrb[0].mxu0
    %v4430 = vadd.f32 0.0, %v4429
    %v4431 = vpop.f32.mrb[0].mxu0
    %4432 = vmatprep.mubr.f32.mxu0 0.0
    %4433 = vmatmul.mubr.f32.gmra.mrb[0].mxu0 %v4093
    %v4434 = vpop.f32.mrb[0].mxu0
    %v4435 = vadd.f32 0.0, %v4434
    %v4436 = vpop.f32.mrb[0].mxu0
    %4437 = vmatprep.mubr.f32.mxu0 0.0
    %4438 = vmatmul.mubr.f32.gmra.mrb[0].mxu0 %v4096
    %v4439 = vpop.f32.mrb[0].mxu0
    %v4440 = vadd.f32 0.0, %v4439
    %v4441 = vpop.f32.mrb[0].mxu0
    %4442 = vmatprep.mubr.f32.mxu0 0.0
    %4443 = vmatmul.mubr.f32.gmra.mrb[0].mxu0 %v4099
    %v4444 = vpop.f32.mrb[0].mxu0
    %v4445 = vadd.f32 0.0, %v4444
    %v4446 = vpop.f32.mrb[0].mxu0
    %4447 = vmatprep.mubr.f32.mxu0 0.0
    %4448 = vmatmul.mubr.f32.gmra.mrb[0].mxu0 %v4102
    %v4449 = vpop.f32.mrb[0].mxu0
    %v4450 = vadd.f32 0.0, %v4449
    %v4451 = vpop.f32.mrb[0].mxu0
    %4452 = vmatprep.mubr.f32.mxu0 0.0
    %4453 = vmatmul.mubr.f32.gmra.mrb[0].mxu0 %v4105
    %v4454 = vpop.f32.mrb[0].mxu0
    %v4455 = vadd.f32 0.0, %v4454
    %v4456 = vpop.f32.mrb[0].mxu0
    %4457 = vmatprep.mubr.f32.mxu0 0.0
    %4458 = vmatmul.mubr.f32.gmra.mrb[0].mxu0 %v4108
    %v4459 = vpop.f32.mrb[0].mxu0
    %v4460 = vadd.f32 0.0, %v4459
    %v4461 = vpop.f32.mrb[0].mxu0
    %4462 = vmatprep.mubr.f32.mxu0 0.0
    %4463 = vmatmul.mubr.f32.gmra.mrb[0].mxu0 %v4111
    %v4464 = vpop.f32.mrb[0].mxu0
    %v4465 = vadd.f32 0.0, %v4464
    %v4466 = vpop.f32.mrb[0].mxu0
    %4467 = vmatprep.mubr.f32.mxu0 0.0
    %4468 = vmatmul.mubr.f32.gmra.mrb[0].mxu0 %v4114
    %v4469 = vpop.f32.mrb[0].mxu0
    %v4470 = vadd.f32 0.0, %v4469
    %v4471 = vpop.f32.mrb[0].mxu0
    %4472 = vmatprep.mubr.f32.mxu0 0.0
    %4473 = vmatmul.mubr.f32.gmra.mrb[0].mxu0 %v4117
    %v4474 = vpop.f32.mrb[0].mxu0
    %v4475 = vadd.f32 0.0, %v4474
    %v4476 = vpop.f32.mrb[0].mxu0
    %4477 = vmatprep.mubr.f32.mxu0 0.0
    %4478 = vmatmul.mubr.f32.gmra.mrb[0].mxu0 %v4120
    %v4479 = vpop.f32.mrb[0].mxu0
    %v4480 = vadd.f32 0.0, %v4479
    %v4481 = vpop.f32.mrb[0].mxu0
    %4482 = vmatprep.mubr.f32.mxu0 0.0
    %4483 = vmatmul.mubr.f32.gmra.mrb[0].mxu0 %v4123
    %v4484 = vpop.f32.mrb[0].mxu0
    %v4485 = vadd.f32 0.0, %v4484
    %v4486 = vpop.f32.mrb[0].mxu0
    %4487 = vmatprep.mubr.f32.mxu0 0.0
    %4488 = vmatmul.mubr.f32.gmra.mrb[0].mxu0 %v4126
    %v4489 = vpop.f32.mrb[0].mxu0
    %v4490 = vadd.f32 0.0, %v4489
    %v4491 = vpop.f32.mrb[0].mxu0
    %4492 = vmatprep.mubr.f32.mxu0 0.0
    %4493 = vmatmul.mubr.f32.gmra.mrb[0].mxu0 %v4129
    %v4494 = vpop.f32.mrb[0].mxu0
    %v4495 = vadd.f32 0.0, %v4494
    %v4496 = vpop.f32.mrb[0].mxu0
    %4497 = vmatprep.mubr.f32.mxu0 0.0
    %4498 = vmatmul.mubr.f32.gmra.mrb[0].mxu0 %v4132
    %v4499 = vpop.f32.mrb[0].mxu0
    %v4500 = vadd.f32 0.0, %v4499
    %v4501 = vpop.f32.mrb[0].mxu0
    %4502 = vmatprep.mubr.f32.mxu0 0.0
    %4503 = vmatmul.mubr.f32.gmra.mrb[0].mxu0 %v4135
    %v4504 = vpop.f32.mrb[0].mxu0
    %v4505 = vadd.f32 0.0, %v4504
    %v4506 = vpop.f32.mrb[0].mxu0
    %4507 = vmatprep.mubr.f32.mxu0 0.0
    %4508 = vmatmul.mubr.f32.gmra.mrb[0].mxu0 %v4138
    %v4509 = vpop.f32.mrb[0].mxu0
    %v4510 = vadd.f32 0.0, %v4509
    %v4511 = vpop.f32.mrb[0].mxu0
    %4512 = vmatprep.mubr.f32.mxu0 0.0
    %4513 = vmatmul.mubr.f32.gmra.mrb[0].mxu0 %v4141
    %v4514 = vpop.f32.mrb[0].mxu0
    %v4515 = vadd.f32 0.0, %v4514
    %v4516 = vpop.f32.mrb[0].mxu0
    %4517 = vdwg.mxu0
    %v4519 = vsel %vm191, %v3829, 0
    %v4522 = vsel %vm191, %v3830, 0
    %v4525 = vsel %vm191, %v3831, 0
    %v4528 = vsel %vm191, %v3832, 0
    %v4531 = vsel %vm191, %v3833, 0
    %v4534 = vsel %vm191, %v3834, 0
    %v4537 = vsel %vm191, %v3835, 0
    %v4540 = vsel %vm191, %v3836, 0
    %v4543 = vsel %vm191, %v3837, 0
    %v4546 = vsel %vm191, %v3838, 0
    %v4549 = vsel %vm191, %v3839, 0
    %v4552 = vsel %vm191, %v3840, 0
    %v4555 = vsel %vm191, %v3841, 0
    %v4558 = vsel %vm191, %v3842, 0
    %v4561 = vsel %vm191, %v3843, 0
    %v4564 = vsel %vm191, %v3844, 0
    %v4567 = vsel %vm191, %v3845, 0
    %v4570 = vsel %vm191, %v3846, 0
    %v4573 = vsel %vm191, %v3847, 0
    %v4576 = vsel %vm191, %v3848, 0
    %v4579 = vsel %vm191, %v3849, 0
    %v4582 = vsel %vm191, %v3850, 0
    %v4585 = vsel %vm191, %v3851, 0
    %v4588 = vsel %vm191, %v3852, 0
    %v4591 = vsel %vm191, %v3853, 0
    %v4594 = vsel %vm191, %v3854, 0
    %v4597 = vsel %vm191, %v3855, 0
    %v4600 = vsel %vm191, %v3856, 0
    %v4603 = vsel %vm191, %v3857, 0
    %v4606 = vsel %vm191, %v3858, 0
    %v4609 = vsel %vm191, %v3859, 0
    %v4612 = vsel %vm191, %v3860, 0
    %v4615 = vsel %vm191, %v3861, 0
    %v4618 = vsel %vm191, %v3862, 0
    %v4621 = vsel %vm191, %v3863, 0
    %v4624 = vsel %vm191, %v3864, 0
    %v4627 = vsel %vm191, %v3865, 0
    %v4630 = vsel %vm191, %v3866, 0
    %v4633 = vsel %vm191, %v3867, 0
    %v4636 = vsel %vm191, %v3868, 0
    %v4639 = vsel %vm191, %v3869, 0
    %v4642 = vsel %vm191, %v3870, 0
    %v4645 = vsel %vm191, %v3871, 0
    %v4648 = vsel %vm191, %v3872, 0
    %v4651 = vsel %vm191, %v3873, 0
    %v4654 = vsel %vm191, %v3874, 0
    %v4657 = vsel %vm191, %v3875, 0
    %v4660 = vsel %vm191, %v3876, 0
    %v4663 = vsel %vm191, %v3877, 0
    %v4666 = vsel %vm191, %v3878, 0
    %v4669 = vsel %vm191, %v3879, 0
    %v4672 = vsel %vm191, %v3880, 0
    %v4675 = vsel %vm191, %v3881, 0
    %v4678 = vsel %vm191, %v3882, 0
    %v4681 = vsel %vm191, %v3883, 0
    %v4684 = vsel %vm191, %v3884, 0
    %v4687 = vsel %vm191, %v3885, 0
    %v4690 = vsel %vm191, %v3886, 0
    %v4693 = vsel %vm191, %v3887, 0
    %v4696 = vsel %vm191, %v3888, 0
    %v4699 = vsel %vm191, %v3889, 0
    %v4702 = vsel %vm191, %v3890, 0
    %4704 = vmatprep.subr.mxu0 0.0
    %4705 = vmatpush1.msra.mxu0 %v3891
    %4706 = vmatprep.subr.mxu0 0.0
    %4707 = vmatpush1.msra.mxu0 %v3892
    %4708 = vmatprep.subr.mxu0 0.0
    %4709 = vmatpush1.msra.mxu0 0.0
    %4710 = vmatprep.subr.mxu0 0.0
    %4711 = vmatpush1.msra.mxu0 0.0
    %4712 = vmatprep.subr.mxu0 0.0
    %4713 = vmatpush1.msra.mxu0 0.0
    %4714 = vmatprep.subr.mxu0 0.0
    %4715 = vmatpush1.msra.mxu0 0.0
    %4716 = vmatprep.subr.mxu0 0.0
    %4717 = vmatpush1.msra.mxu0 0.0
    %4718 = vmatprep.subr.mxu0 0.0
    %4719 = vmatpush1.msra.mxu0 0.0
    %4720 = vmatprep.subr.mxu0 0.0
    %4721 = vmatpush1.msra.mxu0 0.0
    %4722 = vmatprep.subr.mxu0 0.0
    %4723 = vmatpush1.msra.mxu0 0.0
    %4724 = vmatprep.subr.mxu0 0.0
    %4725 = vmatpush1.msra.mxu0 0.0
    %4726 = vmatprep.subr.mxu0 0.0
    %4727 = vmatpush1.msra.mxu0 0.0
    %4728 = vmatprep.subr.mxu0 0.0
    %4729 = vmatpush1.msra.mxu0 0.0
    %4730 = vmatprep.subr.mxu0 0.0
    %4731 = vmatpush1.msra.mxu0 0.0
    %4732 = vmatprep.subr.mxu0 0.0
    %4733 = vmatpush1.msra.mxu0 0.0
    %4734 = vmatprep.subr.mxu0 0.0
    %4735 = vmatpush1.msra.mxu0 0.0
    %4736 = vmatprep.subr.mxu0 0.0
    %4737 = vmatpush1.msra.mxu0 0.0
    %4738 = vmatprep.subr.mxu0 0.0
    %4739 = vmatpush1.msra.mxu0 0.0
    %4740 = vmatprep.subr.mxu0 0.0
    %4741 = vmatpush1.msra.mxu0 0.0
    %4742 = vmatprep.subr.mxu0 0.0
    %4743 = vmatpush1.msra.mxu0 0.0
    %4744 = vmatprep.subr.mxu0 0.0
    %4745 = vmatpush1.msra.mxu0 0.0
    %4746 = vmatprep.subr.mxu0 0.0
    %4747 = vmatpush1.msra.mxu0 0.0
    %4748 = vmatprep.subr.mxu0 0.0
    %4749 = vmatpush1.msra.mxu0 0.0
    %4750 = vmatprep.subr.mxu0 0.0
    %4751 = vmatpush1.msra.mxu0 0.0
    %4752 = vmatprep.subr.mxu0 0.0
    %4753 = vmatpush1.msra.mxu0 0.0
    %4754 = vmatprep.subr.mxu0 0.0
    %4755 = vmatpush1.msra.mxu0 0.0
    %4756 = vmatprep.subr.mxu0 0.0
    %4757 = vmatpush1.msra.mxu0 0.0
    %4758 = vmatprep.subr.mxu0 0.0
    %4759 = vmatpush1.msra.mxu0 0.0
    %4760 = vmatprep.subr.mxu0 0.0
    %4761 = vmatpush1.msra.mxu0 0.0
    %4762 = vmatprep.subr.mxu0 0.0
    %4763 = vmatpush1.msra.mxu0 0.0
    %4764 = vmatprep.subr.mxu0 0.0
    %4765 = vmatpush1.msra.mxu0 0.0
    %4766 = vmatprep.subr.mxu0 0.0
    %4767 = vmatpush1.msra.mxu0 0.0
    %4768 = vmatprep.mubr.f32.mxu0 0.0
    %4769 = vmatmul.mubr.f32.gmra.mrb[0].mxu0 %v4519
    %v4770 = vpop.f32.mrb[0].mxu0
    %v4771 = vadd.f32 %v4210, %v4770
    %v4772 = vpop.f32.mrb[0].mxu0
    %4773 = vmatprep.mubr.f32.mxu0 0.0
    %4774 = vmatmul.mubr.f32.gmra.mrb[0].mxu0 %v4522
    %v4775 = vpop.f32.mrb[0].mxu0
    %v4776 = vadd.f32 %v4215, %v4775
    %v4777 = vpop.f32.mrb[0].mxu0
    %4778 = vmatprep.mubr.f32.mxu0 0.0
    %4779 = vmatmul.mubr.f32.gmra.mrb[0].mxu0 %v4525
    %v4780 = vpop.f32.mrb[0].mxu0
    %v4781 = vadd.f32 %v4220, %v4780
    %v4782 = vpop.f32.mrb[0].mxu0
    %4783 = vmatprep.mubr.f32.mxu0 0.0
    %4784 = vmatmul.mubr.f32.gmra.mrb[0].mxu0 %v4528
    %v4785 = vpop.f32.mrb[0].mxu0
    %v4786 = vadd.f32 %v4225, %v4785
    %v4787 = vpop.f32.mrb[0].mxu0
    %4788 = vmatprep.mubr.f32.mxu0 0.0
    %4789 = vmatmul.mubr.f32.gmra.mrb[0].mxu0 %v4531
    %v4790 = vpop.f32.mrb[0].mxu0
    %v4791 = vadd.f32 %v4230, %v4790
    %v4792 = vpop.f32.mrb[0].mxu0
    %4793 = vmatprep.mubr.f32.mxu0 0.0
    %4794 = vmatmul.mubr.f32.gmra.mrb[0].mxu0 %v4534
    %v4795 = vpop.f32.mrb[0].mxu0
    %v4796 = vadd.f32 %v4235, %v4795
    %v4797 = vpop.f32.mrb[0].mxu0
    %4798 = vmatprep.mubr.f32.mxu0 0.0
    %4799 = vmatmul.mubr.f32.gmra.mrb[0].mxu0 %v4537
    %v4800 = vpop.f32.mrb[0].mxu0
    %v4801 = vadd.f32 %v4240, %v4800
    %v4802 = vpop.f32.mrb[0].mxu0
    %4803 = vmatprep.mubr.f32.mxu0 0.0
    %4804 = vmatmul.mubr.f32.gmra.mrb[0].mxu0 %v4540
    %v4805 = vpop.f32.mrb[0].mxu0
    %v4806 = vadd.f32 %v4245, %v4805
    %v4807 = vpop.f32.mrb[0].mxu0
    %4808 = vmatprep.mubr.f32.mxu0 0.0
    %4809 = vmatmul.mubr.f32.gmra.mrb[0].mxu0 %v4543
    %v4810 = vpop.f32.mrb[0].mxu0
    %v4811 = vadd.f32 %v4250, %v4810
    %v4812 = vpop.f32.mrb[0].mxu0
    %4813 = vmatprep.mubr.f32.mxu0 0.0
    %4814 = vmatmul.mubr.f32.gmra.mrb[0].mxu0 %v4546
    %v4815 = vpop.f32.mrb[0].mxu0
    %v4816 = vadd.f32 %v4255, %v4815
    %v4817 = vpop.f32.mrb[0].mxu0
    %4818 = vmatprep.mubr.f32.mxu0 0.0
    %4819 = vmatmul.mubr.f32.gmra.mrb[0].mxu0 %v4549
    %v4820 = vpop.f32.mrb[0].mxu0
    %v4821 = vadd.f32 %v4260, %v4820
    %v4822 = vpop.f32.mrb[0].mxu0
    %4823 = vmatprep.mubr.f32.mxu0 0.0
    %4824 = vmatmul.mubr.f32.gmra.mrb[0].mxu0 %v4552
    %v4825 = vpop.f32.mrb[0].mxu0
    %v4826 = vadd.f32 %v4265, %v4825
    %v4827 = vpop.f32.mrb[0].mxu0
    %4828 = vmatprep.mubr.f32.mxu0 0.0
    %4829 = vmatmul.mubr.f32.gmra.mrb[0].mxu0 %v4555
    %v4830 = vpop.f32.mrb[0].mxu0
    %v4831 = vadd.f32 %v4270, %v4830
    %v4832 = vpop.f32.mrb[0].mxu0
    %4833 = vmatprep.mubr.f32.mxu0 0.0
    %4834 = vmatmul.mubr.f32.gmra.mrb[0].mxu0 %v4558
    %v4835 = vpop.f32.mrb[0].mxu0
    %v4836 = vadd.f32 %v4275, %v4835
    %v4837 = vpop.f32.mrb[0].mxu0
    %4838 = vmatprep.mubr.f32.mxu0 0.0
    %4839 = vmatmul.mubr.f32.gmra.mrb[0].mxu0 %v4561
    %v4840 = vpop.f32.mrb[0].mxu0
    %v4841 = vadd.f32 %v4280, %v4840
    %v4842 = vpop.f32.mrb[0].mxu0
    %4843 = vmatprep.mubr.f32.mxu0 0.0
    %4844 = vmatmul.mubr.f32.gmra.mrb[0].mxu0 %v4564
    %v4845 = vpop.f32.mrb[0].mxu0
    %v4846 = vadd.f32 %v4285, %v4845
    %v4847 = vpop.f32.mrb[0].mxu0
    %4848 = vmatprep.mubr.f32.mxu0 0.0
    %4849 = vmatmul.mubr.f32.gmra.mrb[0].mxu0 %v4567
    %v4850 = vpop.f32.mrb[0].mxu0
    %v4851 = vadd.f32 %v4290, %v4850
    %v4852 = vpop.f32.mrb[0].mxu0
    %4853 = vmatprep.mubr.f32.mxu0 0.0
    %4854 = vmatmul.mubr.f32.gmra.mrb[0].mxu0 %v4570
    %v4855 = vpop.f32.mrb[0].mxu0
    %v4856 = vadd.f32 %v4295, %v4855
    %v4857 = vpop.f32.mrb[0].mxu0
    %4858 = vmatprep.mubr.f32.mxu0 0.0
    %4859 = vmatmul.mubr.f32.gmra.mrb[0].mxu0 %v4573
    %v4860 = vpop.f32.mrb[0].mxu0
    %v4861 = vadd.f32 %v4300, %v4860
    %v4862 = vpop.f32.mrb[0].mxu0
    %4863 = vmatprep.mubr.f32.mxu0 0.0
    %4864 = vmatmul.mubr.f32.gmra.mrb[0].mxu0 %v4576
    %v4865 = vpop.f32.mrb[0].mxu0
    %v4866 = vadd.f32 %v4305, %v4865
    %v4867 = vpop.f32.mrb[0].mxu0
    %4868 = vmatprep.mubr.f32.mxu0 0.0
    %4869 = vmatmul.mubr.f32.gmra.mrb[0].mxu0 %v4579
    %v4870 = vpop.f32.mrb[0].mxu0
    %v4871 = vadd.f32 %v4310, %v4870
    %v4872 = vpop.f32.mrb[0].mxu0
    %4873 = vmatprep.mubr.f32.mxu0 0.0
    %4874 = vmatmul.mubr.f32.gmra.mrb[0].mxu0 %v4582
    %v4875 = vpop.f32.mrb[0].mxu0
    %v4876 = vadd.f32 %v4315, %v4875
    %v4877 = vpop.f32.mrb[0].mxu0
    %4878 = vmatprep.mubr.f32.mxu0 0.0
    %4879 = vmatmul.mubr.f32.gmra.mrb[0].mxu0 %v4585
    %v4880 = vpop.f32.mrb[0].mxu0
    %v4881 = vadd.f32 %v4320, %v4880
    %v4882 = vpop.f32.mrb[0].mxu0
    %4883 = vmatprep.mubr.f32.mxu0 0.0
    %4884 = vmatmul.mubr.f32.gmra.mrb[0].mxu0 %v4588
    %v4885 = vpop.f32.mrb[0].mxu0
    %v4886 = vadd.f32 %v4325, %v4885
    %v4887 = vpop.f32.mrb[0].mxu0
    %4888 = vmatprep.mubr.f32.mxu0 0.0
    %4889 = vmatmul.mubr.f32.gmra.mrb[0].mxu0 %v4591
    %v4890 = vpop.f32.mrb[0].mxu0
    %v4891 = vadd.f32 %v4330, %v4890
    %v4892 = vpop.f32.mrb[0].mxu0
    %4893 = vmatprep.mubr.f32.mxu0 0.0
    %4894 = vmatmul.mubr.f32.gmra.mrb[0].mxu0 %v4594
    %v4895 = vpop.f32.mrb[0].mxu0
    %v4896 = vadd.f32 %v4335, %v4895
    %v4897 = vpop.f32.mrb[0].mxu0
    %4898 = vmatprep.mubr.f32.mxu0 0.0
    %4899 = vmatmul.mubr.f32.gmra.mrb[0].mxu0 %v4597
    %v4900 = vpop.f32.mrb[0].mxu0
    %v4901 = vadd.f32 %v4340, %v4900
    %v4902 = vpop.f32.mrb[0].mxu0
    %4903 = vmatprep.mubr.f32.mxu0 0.0
    %4904 = vmatmul.mubr.f32.gmra.mrb[0].mxu0 %v4600
    %v4905 = vpop.f32.mrb[0].mxu0
    %v4906 = vadd.f32 %v4345, %v4905
    %v4907 = vpop.f32.mrb[0].mxu0
    %4908 = vmatprep.mubr.f32.mxu0 0.0
    %4909 = vmatmul.mubr.f32.gmra.mrb[0].mxu0 %v4603
    %v4910 = vpop.f32.mrb[0].mxu0
    %v4911 = vadd.f32 %v4350, %v4910
    %v4912 = vpop.f32.mrb[0].mxu0
    %4913 = vmatprep.mubr.f32.mxu0 0.0
    %4914 = vmatmul.mubr.f32.gmra.mrb[0].mxu0 %v4606
    %v4915 = vpop.f32.mrb[0].mxu0
    %v4916 = vadd.f32 %v4355, %v4915
    %v4917 = vpop.f32.mrb[0].mxu0
    %4918 = vmatprep.mubr.f32.mxu0 0.0
    %4919 = vmatmul.mubr.f32.gmra.mrb[0].mxu0 %v4609
    %v4920 = vpop.f32.mrb[0].mxu0
    %v4921 = vadd.f32 %v4360, %v4920
    %v4922 = vpop.f32.mrb[0].mxu0
    %4923 = vmatprep.mubr.f32.mxu0 0.0
    %4924 = vmatmul.mubr.f32.gmra.mrb[0].mxu0 %v4612
    %v4925 = vpop.f32.mrb[0].mxu0
    %v4926 = vadd.f32 %v4365, %v4925
    %v4927 = vpop.f32.mrb[0].mxu0
    %4928 = vmatprep.mubr.f32.mxu0 0.0
    %4929 = vmatmul.mubr.f32.gmra.mrb[0].mxu0 %v4615
    %v4930 = vpop.f32.mrb[0].mxu0
    %v4931 = vadd.f32 %v4370, %v4930
    %v4932 = vpop.f32.mrb[0].mxu0
    %4933 = vmatprep.mubr.f32.mxu0 0.0
    %4934 = vmatmul.mubr.f32.gmra.mrb[0].mxu0 %v4618
    %v4935 = vpop.f32.mrb[0].mxu0
    %v4936 = vadd.f32 %v4375, %v4935
    %v4937 = vpop.f32.mrb[0].mxu0
    %4938 = vmatprep.mubr.f32.mxu0 0.0
    %4939 = vmatmul.mubr.f32.gmra.mrb[0].mxu0 %v4621
    %v4940 = vpop.f32.mrb[0].mxu0
    %v4941 = vadd.f32 %v4380, %v4940
    %v4942 = vpop.f32.mrb[0].mxu0
    %4943 = vmatprep.mubr.f32.mxu0 0.0
    %4944 = vmatmul.mubr.f32.gmra.mrb[0].mxu0 %v4624
    %v4945 = vpop.f32.mrb[0].mxu0
    %v4946 = vadd.f32 %v4385, %v4945
    %v4947 = vpop.f32.mrb[0].mxu0
    %4948 = vmatprep.mubr.f32.mxu0 0.0
    %4949 = vmatmul.mubr.f32.gmra.mrb[0].mxu0 %v4627
    %v4950 = vpop.f32.mrb[0].mxu0
    %v4951 = vadd.f32 %v4390, %v4950
    %v4952 = vpop.f32.mrb[0].mxu0
    %4953 = vmatprep.mubr.f32.mxu0 0.0
    %4954 = vmatmul.mubr.f32.gmra.mrb[0].mxu0 %v4630
    %v4955 = vpop.f32.mrb[0].mxu0
    %v4956 = vadd.f32 %v4395, %v4955
    %v4957 = vpop.f32.mrb[0].mxu0
    %4958 = vmatprep.mubr.f32.mxu0 0.0
    %4959 = vmatmul.mubr.f32.gmra.mrb[0].mxu0 %v4633
    %v4960 = vpop.f32.mrb[0].mxu0
    %v4961 = vadd.f32 %v4400, %v4960
    %v4962 = vpop.f32.mrb[0].mxu0
    %4963 = vmatprep.mubr.f32.mxu0 0.0
    %4964 = vmatmul.mubr.f32.gmra.mrb[0].mxu0 %v4636
    %v4965 = vpop.f32.mrb[0].mxu0
    %v4966 = vadd.f32 %v4405, %v4965
    %v4967 = vpop.f32.mrb[0].mxu0
    %4968 = vmatprep.mubr.f32.mxu0 0.0
    %4969 = vmatmul.mubr.f32.gmra.mrb[0].mxu0 %v4639
    %v4970 = vpop.f32.mrb[0].mxu0
    %v4971 = vadd.f32 %v4410, %v4970
    %v4972 = vpop.f32.mrb[0].mxu0
    %4973 = vmatprep.mubr.f32.mxu0 0.0
    %4974 = vmatmul.mubr.f32.gmra.mrb[0].mxu0 %v4642
    %v4975 = vpop.f32.mrb[0].mxu0
    %v4976 = vadd.f32 %v4415, %v4975
    %v4977 = vpop.f32.mrb[0].mxu0
    %4978 = vmatprep.mubr.f32.mxu0 0.0
    %4979 = vmatmul.mubr.f32.gmra.mrb[0].mxu0 %v4645
    %v4980 = vpop.f32.mrb[0].mxu0
    %v4981 = vadd.f32 %v4420, %v4980
    %v4982 = vpop.f32.mrb[0].mxu0
    %4983 = vmatprep.mubr.f32.mxu0 0.0
    %4984 = vmatmul.mubr.f32.gmra.mrb[0].mxu0 %v4648
    %v4985 = vpop.f32.mrb[0].mxu0
    %v4986 = vadd.f32 %v4425, %v4985
    %v4987 = vpop.f32.mrb[0].mxu0
    %4988 = vmatprep.mubr.f32.mxu0 0.0
    %4989 = vmatmul.mubr.f32.gmra.mrb[0].mxu0 %v4651
    %v4990 = vpop.f32.mrb[0].mxu0
    %v4991 = vadd.f32 %v4430, %v4990
    %v4992 = vpop.f32.mrb[0].mxu0
    %4993 = vmatprep.mubr.f32.mxu0 0.0
    %4994 = vmatmul.mubr.f32.gmra.mrb[0].mxu0 %v4654
    %v4995 = vpop.f32.mrb[0].mxu0
    %v4996 = vadd.f32 %v4435, %v4995
    %v4997 = vpop.f32.mrb[0].mxu0
    %4998 = vmatprep.mubr.f32.mxu0 0.0
    %4999 = vmatmul.mubr.f32.gmra.mrb[0].mxu0 %v4657
    %v5000 = vpop.f32.mrb[0].mxu0
    %v5001 = vadd.f32 %v4440, %v5000
    %v5002 = vpop.f32.mrb[0].mxu0
    %5003 = vmatprep.mubr.f32.mxu0 0.0
    %5004 = vmatmul.mubr.f32.gmra.mrb[0].mxu0 %v4660
    %v5005 = vpop.f32.mrb[0].mxu0
    %v5006 = vadd.f32 %v4445, %v5005
    %v5007 = vpop.f32.mrb[0].mxu0
    %5008 = vmatprep.mubr.f32.mxu0 0.0
    %5009 = vmatmul.mubr.f32.gmra.mrb[0].mxu0 %v4663
    %v5010 = vpop.f32.mrb[0].mxu0
    %v5011 = vadd.f32 %v4450, %v5010
    %v5012 = vpop.f32.mrb[0].mxu0
    %5013 = vmatprep.mubr.f32.mxu0 0.0
    %5014 = vmatmul.mubr.f32.gmra.mrb[0].mxu0 %v4666
    %v5015 = vpop.f32.mrb[0].mxu0
    %v5016 = vadd.f32 %v4455, %v5015
    %v5017 = vpop.f32.mrb[0].mxu0
    %5018 = vmatprep.mubr.f32.mxu0 0.0
    %5019 = vmatmul.mubr.f32.gmra.mrb[0].mxu0 %v4669
    %v5020 = vpop.f32.mrb[0].mxu0
    %v5021 = vadd.f32 %v4460, %v5020
    %v5022 = vpop.f32.mrb[0].mxu0
    %5023 = vmatprep.mubr.f32.mxu0 0.0
    %5024 = vmatmul.mubr.f32.gmra.mrb[0].mxu0 %v4672
    %v5025 = vpop.f32.mrb[0].mxu0
    %v5026 = vadd.f32 %v4465, %v5025
    %v5027 = vpop.f32.mrb[0].mxu0
    %5028 = vmatprep.mubr.f32.mxu0 0.0
    %5029 = vmatmul.mubr.f32.gmra.mrb[0].mxu0 %v4675
    %v5030 = vpop.f32.mrb[0].mxu0
    %v5031 = vadd.f32 %v4470, %v5030
    %v5032 = vpop.f32.mrb[0].mxu0
    %5033 = vmatprep.mubr.f32.mxu0 0.0
    %5034 = vmatmul.mubr.f32.gmra.mrb[0].mxu0 %v4678
    %v5035 = vpop.f32.mrb[0].mxu0
    %v5036 = vadd.f32 %v4475, %v5035
    %v5037 = vpop.f32.mrb[0].mxu0
    %5038 = vmatprep.mubr.f32.mxu0 0.0
    %5039 = vmatmul.mubr.f32.gmra.mrb[0].mxu0 %v4681
    %v5040 = vpop.f32.mrb[0].mxu0
    %v5041 = vadd.f32 %v4480, %v5040
    %v5042 = vpop.f32.mrb[0].mxu0
    %5043 = vmatprep.mubr.f32.mxu0 0.0
    %5044 = vmatmul.mubr.f32.gmra.mrb[0].mxu0 %v4684
    %v5045 = vpop.f32.mrb[0].mxu0
    %v5046 = vadd.f32 %v4485, %v5045
    %v5047 = vpop.f32.mrb[0].mxu0
    %5048 = vmatprep.mubr.f32.mxu0 0.0
    %5049 = vmatmul.mubr.f32.gmra.mrb[0].mxu0 %v4687
    %v5050 = vpop.f32.mrb[0].mxu0
    %v5051 = vadd.f32 %v4490, %v5050
    %v5052 = vpop.f32.mrb[0].mxu0
    %5053 = vmatprep.mubr.f32.mxu0 0.0
    %5054 = vmatmul.mubr.f32.gmra.mrb[0].mxu0 %v4690
    %v5055 = vpop.f32.mrb[0].mxu0
    %v5056 = vadd.f32 %v4495, %v5055
    %v5057 = vpop.f32.mrb[0].mxu0
    %5058 = vmatprep.mubr.f32.mxu0 0.0
    %5059 = vmatmul.mubr.f32.gmra.mrb[0].mxu0 %v4693
    %v5060 = vpop.f32.mrb[0].mxu0
    %v5061 = vadd.f32 %v4500, %v5060
    %v5062 = vpop.f32.mrb[0].mxu0
    %5063 = vmatprep.mubr.f32.mxu0 0.0
    %5064 = vmatmul.mubr.f32.gmra.mrb[0].mxu0 %v4696
    %v5065 = vpop.f32.mrb[0].mxu0
    %v5066 = vadd.f32 %v4505, %v5065
    %v5067 = vpop.f32.mrb[0].mxu0
    %5068 = vmatprep.mubr.f32.mxu0 0.0
    %5069 = vmatmul.mubr.f32.gmra.mrb[0].mxu0 %v4699
    %v5070 = vpop.f32.mrb[0].mxu0
    %v5071 = vadd.f32 %v4510, %v5070
    %v5072 = vpop.f32.mrb[0].mxu0
    %5073 = vmatprep.mubr.f32.mxu0 0.0
    %5074 = vmatmul.mubr.f32.gmra.mrb[0].mxu0 %v4702
    %v5075 = vpop.f32.mrb[0].mxu0
    %v5076 = vadd.f32 %v4515, %v5075
    %v5077 = vpop.f32.mrb[0].mxu0
    %5078 = vdwg.mxu0
    %v5079 = vld [vmem:[%s0 + $0x1f6] sm:$0xff]
    %v5080 = vld [vmem:[%s0 + $0x1fe] sm:$0xff]
    %v5081 = vld [vmem:[%s0 + $0x206] sm:$0xff]
    %v5082 = vld [vmem:[%s0 + $0x20e] sm:$0xff]
    %v5083 = vld [vmem:[%s0 + $0x216] sm:$0xff]
    %v5084 = vld [vmem:[%s0 + $0x21e] sm:$0xff]
    %v5085 = vld [vmem:[%s0 + $0x226] sm:$0xff]
    %v5086 = vld [vmem:[%s0 + $0x22e] sm:$0xff]
    %v5087 = vld [vmem:[%s0 + $0x236] sm:$0xff]
    %v5088 = vld [vmem:[%s0 + $0x23e] sm:$0xff]
    %v5089 = vld [vmem:[%s0 + $0x246] sm:$0xff]
    %v5090 = vld [vmem:[%s0 + $0x24e] sm:$0xff]
    %v5091 = vld [vmem:[%s0 + $0x256] sm:$0xff]
    %v5092 = vld [vmem:[%s0 + $0x25e] sm:$0xff]
    %v5093 = vld [vmem:[%s0 + $0x266] sm:$0xff]
    %v5094 = vld [vmem:[%s0 + $0x26e] sm:$0xff]
    %v5095 = vld [vmem:[%s0 + $0x276] sm:$0xff]
    %v5096 = vld [vmem:[%s0 + $0x27e] sm:$0xff]
    %v5097 = vld [vmem:[%s0 + $0x286] sm:$0xff]
    %v5098 = vld [vmem:[%s0 + $0x28e] sm:$0xff]
    %v5099 = vld [vmem:[%s0 + $0x296] sm:$0xff]
    %v5100 = vld [vmem:[%s0 + $0x29e] sm:$0xff]
    %v5101 = vld [vmem:[%s0 + $0x2a6] sm:$0xff]
    %v5102 = vld [vmem:[%s0 + $0x2ae] sm:$0xff]
    %v5103 = vld [vmem:[%s0 + $0x2b6] sm:$0xff]
    %v5104 = vld [vmem:[%s0 + $0x2be] sm:$0xff]
    %v5105 = vld [vmem:[%s0 + $0x2c6] sm:$0xff]
    %v5106 = vld [vmem:[%s0 + $0x2ce] sm:$0xff]
    %v5107 = vld [vmem:[%s0 + $0x2d6] sm:$0xff]
    %v5108 = vld [vmem:[%s0 + $0x2de] sm:$0xff]
    %v5109 = vld [vmem:[%s0 + $0x2e6] sm:$0xff]
    %v5110 = vld [vmem:[%s0 + $0x2ee] sm:$0xff]
    %v5111 = vld [vmem:[%s0 + $0x2f6] sm:$0xff]
    %v5112 = vld [vmem:[%s0 + $0x2fe] sm:$0xff]
    %v5113 = vld [vmem:[%s0 + $0x306] sm:$0xff]
    %v5114 = vld [vmem:[%s0 + $0x30e] sm:$0xff]
    %v5115 = vld [vmem:[%s0 + $0x316] sm:$0xff]
    %v5116 = vld [vmem:[%s0 + $0x31e] sm:$0xff]
    %v5117 = vld [vmem:[%s0 + $0x326] sm:$0xff]
    %v5118 = vld [vmem:[%s0 + $0x32e] sm:$0xff]
    %v5119 = vld [vmem:[%s0 + $0x336] sm:$0xff]
    %v5120 = vld [vmem:[%s0 + $0x33e] sm:$0xff]
    %v5121 = vld [vmem:[%s0 + $0x346] sm:$0xff]
    %v5122 = vld [vmem:[%s0 + $0x34e] sm:$0xff]
    %v5123 = vld [vmem:[%s0 + $0x356] sm:$0xff]
    %v5124 = vld [vmem:[%s0 + $0x35e] sm:$0xff]
    %v5125 = vld [vmem:[%s0 + $0x366] sm:$0xff]
    %v5126 = vld [vmem:[%s0 + $0x36e] sm:$0xff]
    %v5127 = vld [vmem:[%s0 + $0x376] sm:$0xff]
    %v5128 = vld [vmem:[%s0 + $0x37e] sm:$0xff]
    %v5129 = vld [vmem:[%s0 + $0x386] sm:$0xff]
    %v5130 = vld [vmem:[%s0 + $0x38e] sm:$0xff]
    %v5131 = vld [vmem:[%s0 + $0x396] sm:$0xff]
    %v5132 = vld [vmem:[%s0 + $0x39e] sm:$0xff]
    %v5133 = vld [vmem:[%s0 + $0x3a6] sm:$0xff]
    %v5134 = vld [vmem:[%s0 + $0x3ae] sm:$0xff]
    %v5135 = vld [vmem:[%s0 + $0x3b6] sm:$0xff]
    %v5136 = vld [vmem:[%s0 + $0x3be] sm:$0xff]
    %v5137 = vld [vmem:[%s0 + $0x3c6] sm:$0xff]
    %v5138 = vld [vmem:[%s0 + $0x3ce] sm:$0xff]
    %v5139 = vld [vmem:[%s0 + $0x3d6] sm:$0xff]
    %v5140 = vld [vmem:[%s0 + $0x3de] sm:$0xff]
    %v5141 = vld [vmem:[%s1 + $0x20] sm:$0xff]
    %v5142 = vld [vmem:[%s1 + $0x28] sm:$0xff]
    %v5144 = vsel %vm191, %v5079, 0
    %v5147 = vsel %vm191, %v5080, 0
    %v5150 = vsel %vm191, %v5081, 0
    %v5153 = vsel %vm191, %v5082, 0
    %v5156 = vsel %vm191, %v5083, 0
    %v5159 = vsel %vm191, %v5084, 0
    %v5162 = vsel %vm191, %v5085, 0
    %v5165 = vsel %vm191, %v5086, 0
    %v5168 = vsel %vm191, %v5087, 0
    %v5171 = vsel %vm191, %v5088, 0
    %v5174 = vsel %vm191, %v5089, 0
    %v5177 = vsel %vm191, %v5090, 0
    %v5180 = vsel %vm191, %v5091, 0
    %v5183 = vsel %vm191, %v5092, 0
    %v5186 = vsel %vm191, %v5093, 0
    %v5189 = vsel %vm191, %v5094, 0
    %v5192 = vsel %vm191, %v5095, 0
    %v5195 = vsel %vm191, %v5096, 0
    %v5198 = vsel %vm191, %v5097, 0
    %v5201 = vsel %vm191, %v5098, 0
    %v5204 = vsel %vm191, %v5099, 0
    %v5207 = vsel %vm191, %v5100, 0
    %v5210 = vsel %vm191, %v5101, 0
    %v5213 = vsel %vm191, %v5102, 0
    %v5216 = vsel %vm191, %v5103, 0
    %v5219 = vsel %vm191, %v5104, 0
    %v5222 = vsel %vm191, %v5105, 0
    %v5225 = vsel %vm191, %v5106, 0
    %v5228 = vsel %vm191, %v5107, 0
    %v5231 = vsel %vm191, %v5108, 0
    %v5234 = vsel %vm191, %v5109, 0
    %v5237 = vsel %vm191, %v5110, 0
    %v5240 = vsel %vm191, %v5111, 0
    %v5243 = vsel %vm191, %v5112, 0
    %v5246 = vsel %vm191, %v5113, 0
    %v5249 = vsel %vm191, %v5114, 0
    %v5252 = vsel %vm191, %v5115, 0
    %v5255 = vsel %vm191, %v5116, 0
    %v5258 = vsel %vm191, %v5117, 0
    %v5261 = vsel %vm191, %v5118, 0
    %v5264 = vsel %vm191, %v5119, 0
    %v5267 = vsel %vm191, %v5120, 0
    %v5270 = vsel %vm191, %v5121, 0
    %v5273 = vsel %vm191, %v5122, 0
    %v5276 = vsel %vm191, %v5123, 0
    %v5279 = vsel %vm191, %v5124, 0
    %v5282 = vsel %vm191, %v5125, 0
    %v5285 = vsel %vm191, %v5126, 0
    %v5288 = vsel %vm191, %v5127, 0
    %v5291 = vsel %vm191, %v5128, 0
    %v5294 = vsel %vm191, %v5129, 0
    %v5297 = vsel %vm191, %v5130, 0
    %v5300 = vsel %vm191, %v5131, 0
    %v5303 = vsel %vm191, %v5132, 0
    %v5306 = vsel %vm191, %v5133, 0
    %v5309 = vsel %vm191, %v5134, 0
    %v5312 = vsel %vm191, %v5135, 0
    %v5315 = vsel %vm191, %v5136, 0
    %v5318 = vsel %vm191, %v5137, 0
    %v5321 = vsel %vm191, %v5138, 0
    %v5324 = vsel %vm191, %v5139, 0
    %v5327 = vsel %vm191, %v5140, 0
    %5329 = vmatprep.subr.mxu0 0.0
    %5330 = vmatpush1.msra.mxu0 %v5141
    %5331 = vmatprep.subr.mxu0 0.0
    %5332 = vmatpush1.msra.mxu0 %v5142
    %5333 = vmatprep.subr.mxu0 0.0
    %5334 = vmatpush1.msra.mxu0 0.0
    %5335 = vmatprep.subr.mxu0 0.0
    %5336 = vmatpush1.msra.mxu0 0.0
    %5337 = vmatprep.subr.mxu0 0.0
    %5338 = vmatpush1.msra.mxu0 0.0
    %5339 = vmatprep.subr.mxu0 0.0
    %5340 = vmatpush1.msra.mxu0 0.0
    %5341 = vmatprep.subr.mxu0 0.0
    %5342 = vmatpush1.msra.mxu0 0.0
    %5343 = vmatprep.subr.mxu0 0.0
    %5344 = vmatpush1.msra.mxu0 0.0
    %5345 = vmatprep.subr.mxu0 0.0
    %5346 = vmatpush1.msra.mxu0 0.0
    %5347 = vmatprep.subr.mxu0 0.0
    %5348 = vmatpush1.msra.mxu0 0.0
    %5349 = vmatprep.subr.mxu0 0.0
    %5350 = vmatpush1.msra.mxu0 0.0
    %5351 = vmatprep.subr.mxu0 0.0
    %5352 = vmatpush1.msra.mxu0 0.0
    %5353 = vmatprep.subr.mxu0 0.0
    %5354 = vmatpush1.msra.mxu0 0.0
    %5355 = vmatprep.subr.mxu0 0.0
    %5356 = vmatpush1.msra.mxu0 0.0
    %5357 = vmatprep.subr.mxu0 0.0
    %5358 = vmatpush1.msra.mxu0 0.0
    %5359 = vmatprep.subr.mxu0 0.0
    %5360 = vmatpush1.msra.mxu0 0.0
    %5361 = vmatprep.subr.mxu0 0.0
    %5362 = vmatpush1.msra.mxu0 0.0
    %5363 = vmatprep.subr.mxu0 0.0
    %5364 = vmatpush1.msra.mxu0 0.0
    %5365 = vmatprep.subr.mxu0 0.0
    %5366 = vmatpush1.msra.mxu0 0.0
    %5367 = vmatprep.subr.mxu0 0.0
    %5368 = vmatpush1.msra.mxu0 0.0
    %5369 = vmatprep.subr.mxu0 0.0
    %5370 = vmatpush1.msra.mxu0 0.0
    %5371 = vmatprep.subr.mxu0 0.0
    %5372 = vmatpush1.msra.mxu0 0.0
    %5373 = vmatprep.subr.mxu0 0.0
    %5374 = vmatpush1.msra.mxu0 0.0
    %5375 = vmatprep.subr.mxu0 0.0
    %5376 = vmatpush1.msra.mxu0 0.0
    %5377 = vmatprep.subr.mxu0 0.0
    %5378 = vmatpush1.msra.mxu0 0.0
    %5379 = vmatprep.subr.mxu0 0.0
    %5380 = vmatpush1.msra.mxu0 0.0
    %5381 = vmatprep.subr.mxu0 0.0
    %5382 = vmatpush1.msra.mxu0 0.0
    %5383 = vmatprep.subr.mxu0 0.0
    %5384 = vmatpush1.msra.mxu0 0.0
    %5385 = vmatprep.subr.mxu0 0.0
    %5386 = vmatpush1.msra.mxu0 0.0
    %5387 = vmatprep.subr.mxu0 0.0
    %5388 = vmatpush1.msra.mxu0 0.0
    %5389 = vmatprep.subr.mxu0 0.0
    %5390 = vmatpush1.msra.mxu0 0.0
    %5391 = vmatprep.subr.mxu0 0.0
    %5392 = vmatpush1.msra.mxu0 0.0
    %5393 = vmatprep.mubr.f32.mxu0 0.0
    %5394 = vmatmul.mubr.f32.gmra.mrb[0].mxu0 %v5144
    %v5395 = vpop.f32.mrb[0].mxu0
    %v5396 = vadd.f32 0.0, %v5395
    %v5397 = vpop.f32.mrb[0].mxu0
    %5398 = vmatprep.mubr.f32.mxu0 0.0
    %5399 = vmatmul.mubr.f32.gmra.mrb[0].mxu0 %v5147
    %v5400 = vpop.f32.mrb[0].mxu0
    %v5401 = vadd.f32 0.0, %v5400
    %v5402 = vpop.f32.mrb[0].mxu0
    %5403 = vmatprep.mubr.f32.mxu0 0.0
    %5404 = vmatmul.mubr.f32.gmra.mrb[0].mxu0 %v5150
    %v5405 = vpop.f32.mrb[0].mxu0
    %v5406 = vadd.f32 0.0, %v5405
    %v5407 = vpop.f32.mrb[0].mxu0
    %5408 = vmatprep.mubr.f32.mxu0 0.0
    %5409 = vmatmul.mubr.f32.gmra.mrb[0].mxu0 %v5153
    %v5410 = vpop.f32.mrb[0].mxu0
    %v5411 = vadd.f32 0.0, %v5410
    %v5412 = vpop.f32.mrb[0].mxu0
    %5413 = vmatprep.mubr.f32.mxu0 0.0
    %5414 = vmatmul.mubr.f32.gmra.mrb[0].mxu0 %v5156
    %v5415 = vpop.f32.mrb[0].mxu0
    %v5416 = vadd.f32 0.0, %v5415
    %v5417 = vpop.f32.mrb[0].mxu0
    %5418 = vmatprep.mubr.f32.mxu0 0.0
    %5419 = vmatmul.mubr.f32.gmra.mrb[0].mxu0 %v5159
    %v5420 = vpop.f32.mrb[0].mxu0
    %v5421 = vadd.f32 0.0, %v5420
    %v5422 = vpop.f32.mrb[0].mxu0
    %5423 = vmatprep.mubr.f32.mxu0 0.0
    %5424 = vmatmul.mubr.f32.gmra.mrb[0].mxu0 %v5162
    %v5425 = vpop.f32.mrb[0].mxu0
    %v5426 = vadd.f32 0.0, %v5425
    %v5427 = vpop.f32.mrb[0].mxu0
    %5428 = vmatprep.mubr.f32.mxu0 0.0
    %5429 = vmatmul.mubr.f32.gmra.mrb[0].mxu0 %v5165
    %v5430 = vpop.f32.mrb[0].mxu0
    %v5431 = vadd.f32 0.0, %v5430
    %v5432 = vpop.f32.mrb[0].mxu0
    %5433 = vmatprep.mubr.f32.mxu0 0.0
    %5434 = vmatmul.mubr.f32.gmra.mrb[0].mxu0 %v5168
    %v5435 = vpop.f32.mrb[0].mxu0
    %v5436 = vadd.f32 0.0, %v5435
    %v5437 = vpop.f32.mrb[0].mxu0
    %5438 = vmatprep.mubr.f32.mxu0 0.0
    %5439 = vmatmul.mubr.f32.gmra.mrb[0].mxu0 %v5171
    %v5440 = vpop.f32.mrb[0].mxu0
    %v5441 = vadd.f32 0.0, %v5440
    %v5442 = vpop.f32.mrb[0].mxu0
    %5443 = vmatprep.mubr.f32.mxu0 0.0
    %5444 = vmatmul.mubr.f32.gmra.mrb[0].mxu0 %v5174
    %v5445 = vpop.f32.mrb[0].mxu0
    %v5446 = vadd.f32 0.0, %v5445
    %v5447 = vpop.f32.mrb[0].mxu0
    %5448 = vmatprep.mubr.f32.mxu0 0.0
    %5449 = vmatmul.mubr.f32.gmra.mrb[0].mxu0 %v5177
    %v5450 = vpop.f32.mrb[0].mxu0
    %v5451 = vadd.f32 0.0, %v5450
    %v5452 = vpop.f32.mrb[0].mxu0
    %5453 = vmatprep.mubr.f32.mxu0 0.0
    %5454 = vmatmul.mubr.f32.gmra.mrb[0].mxu0 %v5180
    %v5455 = vpop.f32.mrb[0].mxu0
    %v5456 = vadd.f32 0.0, %v5455
    %v5457 = vpop.f32.mrb[0].mxu0
    %5458 = vmatprep.mubr.f32.mxu0 0.0
    %5459 = vmatmul.mubr.f32.gmra.mrb[0].mxu0 %v5183
    %v5460 = vpop.f32.mrb[0].mxu0
    %v5461 = vadd.f32 0.0, %v5460
    %v5462 = vpop.f32.mrb[0].mxu0
    %5463 = vmatprep.mubr.f32.mxu0 0.0
    %5464 = vmatmul.mubr.f32.gmra.mrb[0].mxu0 %v5186
    %v5465 = vpop.f32.mrb[0].mxu0
    %v5466 = vadd.f32 0.0, %v5465
    %v5467 = vpop.f32.mrb[0].mxu0
    %5468 = vmatprep.mubr.f32.mxu0 0.0
    %5469 = vmatmul.mubr.f32.gmra.mrb[0].mxu0 %v5189
    %v5470 = vpop.f32.mrb[0].mxu0
    %v5471 = vadd.f32 0.0, %v5470
    %v5472 = vpop.f32.mrb[0].mxu0
    %5473 = vmatprep.mubr.f32.mxu0 0.0
    %5474 = vmatmul.mubr.f32.gmra.mrb[0].mxu0 %v5192
    %v5475 = vpop.f32.mrb[0].mxu0
    %v5476 = vadd.f32 0.0, %v5475
    %v5477 = vpop.f32.mrb[0].mxu0
    %5478 = vmatprep.mubr.f32.mxu0 0.0
    %5479 = vmatmul.mubr.f32.gmra.mrb[0].mxu0 %v5195
    %v5480 = vpop.f32.mrb[0].mxu0
    %v5481 = vadd.f32 0.0, %v5480
    %v5482 = vpop.f32.mrb[0].mxu0
    %5483 = vmatprep.mubr.f32.mxu0 0.0
    %5484 = vmatmul.mubr.f32.gmra.mrb[0].mxu0 %v5198
    %v5485 = vpop.f32.mrb[0].mxu0
    %v5486 = vadd.f32 0.0, %v5485
    %v5487 = vpop.f32.mrb[0].mxu0
    %5488 = vmatprep.mubr.f32.mxu0 0.0
    %5489 = vmatmul.mubr.f32.gmra.mrb[0].mxu0 %v5201
    %v5490 = vpop.f32.mrb[0].mxu0
    %v5491 = vadd.f32 0.0, %v5490
    %v5492 = vpop.f32.mrb[0].mxu0
    %5493 = vmatprep.mubr.f32.mxu0 0.0
    %5494 = vmatmul.mubr.f32.gmra.mrb[0].mxu0 %v5204
    %v5495 = vpop.f32.mrb[0].mxu0
    %v5496 = vadd.f32 0.0, %v5495
    %v5497 = vpop.f32.mrb[0].mxu0
    %5498 = vmatprep.mubr.f32.mxu0 0.0
    %5499 = vmatmul.mubr.f32.gmra.mrb[0].mxu0 %v5207
    %v5500 = vpop.f32.mrb[0].mxu0
    %v5501 = vadd.f32 0.0, %v5500
    %v5502 = vpop.f32.mrb[0].mxu0
    %5503 = vmatprep.mubr.f32.mxu0 0.0
    %5504 = vmatmul.mubr.f32.gmra.mrb[0].mxu0 %v5210
    %v5505 = vpop.f32.mrb[0].mxu0
    %v5506 = vadd.f32 0.0, %v5505
    %v5507 = vpop.f32.mrb[0].mxu0
    %5508 = vmatprep.mubr.f32.mxu0 0.0
    %5509 = vmatmul.mubr.f32.gmra.mrb[0].mxu0 %v5213
    %v5510 = vpop.f32.mrb[0].mxu0
    %v5511 = vadd.f32 0.0, %v5510
    %v5512 = vpop.f32.mrb[0].mxu0
    %5513 = vmatprep.mubr.f32.mxu0 0.0
    %5514 = vmatmul.mubr.f32.gmra.mrb[0].mxu0 %v5216
    %v5515 = vpop.f32.mrb[0].mxu0
    %v5516 = vadd.f32 0.0, %v5515
    %v5517 = vpop.f32.mrb[0].mxu0
    %5518 = vmatprep.mubr.f32.mxu0 0.0
    %5519 = vmatmul.mubr.f32.gmra.mrb[0].mxu0 %v5219
    %v5520 = vpop.f32.mrb[0].mxu0
    %v5521 = vadd.f32 0.0, %v5520
    %v5522 = vpop.f32.mrb[0].mxu0
    %5523 = vmatprep.mubr.f32.mxu0 0.0
    %5524 = vmatmul.mubr.f32.gmra.mrb[0].mxu0 %v5222
    %v5525 = vpop.f32.mrb[0].mxu0
    %v5526 = vadd.f32 0.0, %v5525
    %v5527 = vpop.f32.mrb[0].mxu0
    %5528 = vmatprep.mubr.f32.mxu0 0.0
    %5529 = vmatmul.mubr.f32.gmra.mrb[0].mxu0 %v5225
    %v5530 = vpop.f32.mrb[0].mxu0
    %v5531 = vadd.f32 0.0, %v5530
    %v5532 = vpop.f32.mrb[0].mxu0
    %5533 = vmatprep.mubr.f32.mxu0 0.0
    %5534 = vmatmul.mubr.f32.gmra.mrb[0].mxu0 %v5228
    %v5535 = vpop.f32.mrb[0].mxu0
    %v5536 = vadd.f32 0.0, %v5535
    %v5537 = vpop.f32.mrb[0].mxu0
    %5538 = vmatprep.mubr.f32.mxu0 0.0
    %5539 = vmatmul.mubr.f32.gmra.mrb[0].mxu0 %v5231
    %v5540 = vpop.f32.mrb[0].mxu0
    %v5541 = vadd.f32 0.0, %v5540
    %v5542 = vpop.f32.mrb[0].mxu0
    %5543 = vmatprep.mubr.f32.mxu0 0.0
    %5544 = vmatmul.mubr.f32.gmra.mrb[0].mxu0 %v5234
    %v5545 = vpop.f32.mrb[0].mxu0
    %v5546 = vadd.f32 0.0, %v5545
    %v5547 = vpop.f32.mrb[0].mxu0
    %5548 = vmatprep.mubr.f32.mxu0 0.0
    %5549 = vmatmul.mubr.f32.gmra.mrb[0].mxu0 %v5237
    %v5550 = vpop.f32.mrb[0].mxu0
    %v5551 = vadd.f32 0.0, %v5550
    %v5552 = vpop.f32.mrb[0].mxu0
    %5553 = vmatprep.mubr.f32.mxu0 0.0
    %5554 = vmatmul.mubr.f32.gmra.mrb[0].mxu0 %v5240
    %v5555 = vpop.f32.mrb[0].mxu0
    %v5556 = vadd.f32 0.0, %v5555
    %v5557 = vpop.f32.mrb[0].mxu0
    %5558 = vmatprep.mubr.f32.mxu0 0.0
    %5559 = vmatmul.mubr.f32.gmra.mrb[0].mxu0 %v5243
    %v5560 = vpop.f32.mrb[0].mxu0
    %v5561 = vadd.f32 0.0, %v5560
    %v5562 = vpop.f32.mrb[0].mxu0
    %5563 = vmatprep.mubr.f32.mxu0 0.0
    %5564 = vmatmul.mubr.f32.gmra.mrb[0].mxu0 %v5246
    %v5565 = vpop.f32.mrb[0].mxu0
    %v5566 = vadd.f32 0.0, %v5565
    %v5567 = vpop.f32.mrb[0].mxu0
    %5568 = vmatprep.mubr.f32.mxu0 0.0
    %5569 = vmatmul.mubr.f32.gmra.mrb[0].mxu0 %v5249
    %v5570 = vpop.f32.mrb[0].mxu0
    %v5571 = vadd.f32 0.0, %v5570
    %v5572 = vpop.f32.mrb[0].mxu0
    %5573 = vmatprep.mubr.f32.mxu0 0.0
    %5574 = vmatmul.mubr.f32.gmra.mrb[0].mxu0 %v5252
    %v5575 = vpop.f32.mrb[0].mxu0
    %v5576 = vadd.f32 0.0, %v5575
    %v5577 = vpop.f32.mrb[0].mxu0
    %5578 = vmatprep.mubr.f32.mxu0 0.0
    %5579 = vmatmul.mubr.f32.gmra.mrb[0].mxu0 %v5255
    %v5580 = vpop.f32.mrb[0].mxu0
    %v5581 = vadd.f32 0.0, %v5580
    %v5582 = vpop.f32.mrb[0].mxu0
    %5583 = vmatprep.mubr.f32.mxu0 0.0
    %5584 = vmatmul.mubr.f32.gmra.mrb[0].mxu0 %v5258
    %v5585 = vpop.f32.mrb[0].mxu0
    %v5586 = vadd.f32 0.0, %v5585
    %v5587 = vpop.f32.mrb[0].mxu0
    %5588 = vmatprep.mubr.f32.mxu0 0.0
    %5589 = vmatmul.mubr.f32.gmra.mrb[0].mxu0 %v5261
    %v5590 = vpop.f32.mrb[0].mxu0
    %v5591 = vadd.f32 0.0, %v5590
    %v5592 = vpop.f32.mrb[0].mxu0
    %5593 = vmatprep.mubr.f32.mxu0 0.0
    %5594 = vmatmul.mubr.f32.gmra.mrb[0].mxu0 %v5264
    %v5595 = vpop.f32.mrb[0].mxu0
    %v5596 = vadd.f32 0.0, %v5595
    %v5597 = vpop.f32.mrb[0].mxu0
    %5598 = vmatprep.mubr.f32.mxu0 0.0
    %5599 = vmatmul.mubr.f32.gmra.mrb[0].mxu0 %v5267
    %v5600 = vpop.f32.mrb[0].mxu0
    %v5601 = vadd.f32 0.0, %v5600
    %v5602 = vpop.f32.mrb[0].mxu0
    %5603 = vmatprep.mubr.f32.mxu0 0.0
    %5604 = vmatmul.mubr.f32.gmra.mrb[0].mxu0 %v5270
    %v5605 = vpop.f32.mrb[0].mxu0
    %v5606 = vadd.f32 0.0, %v5605
    %v5607 = vpop.f32.mrb[0].mxu0
    %5608 = vmatprep.mubr.f32.mxu0 0.0
    %5609 = vmatmul.mubr.f32.gmra.mrb[0].mxu0 %v5273
    %v5610 = vpop.f32.mrb[0].mxu0
    %v5611 = vadd.f32 0.0, %v5610
    %v5612 = vpop.f32.mrb[0].mxu0
    %5613 = vmatprep.mubr.f32.mxu0 0.0
    %5614 = vmatmul.mubr.f32.gmra.mrb[0].mxu0 %v5276
    %v5615 = vpop.f32.mrb[0].mxu0
    %v5616 = vadd.f32 0.0, %v5615
    %v5617 = vpop.f32.mrb[0].mxu0
    %5618 = vmatprep.mubr.f32.mxu0 0.0
    %5619 = vmatmul.mubr.f32.gmra.mrb[0].mxu0 %v5279
    %v5620 = vpop.f32.mrb[0].mxu0
    %v5621 = vadd.f32 0.0, %v5620
    %v5622 = vpop.f32.mrb[0].mxu0
    %5623 = vmatprep.mubr.f32.mxu0 0.0
    %5624 = vmatmul.mubr.f32.gmra.mrb[0].mxu0 %v5282
    %v5625 = vpop.f32.mrb[0].mxu0
    %v5626 = vadd.f32 0.0, %v5625
    %v5627 = vpop.f32.mrb[0].mxu0
    %5628 = vmatprep.mubr.f32.mxu0 0.0
    %5629 = vmatmul.mubr.f32.gmra.mrb[0].mxu0 %v5285
    %v5630 = vpop.f32.mrb[0].mxu0
    %v5631 = vadd.f32 0.0, %v5630
    %v5632 = vpop.f32.mrb[0].mxu0
    %5633 = vmatprep.mubr.f32.mxu0 0.0
    %5634 = vmatmul.mubr.f32.gmra.mrb[0].mxu0 %v5288
    %v5635 = vpop.f32.mrb[0].mxu0
    %v5636 = vadd.f32 0.0, %v5635
    %v5637 = vpop.f32.mrb[0].mxu0
    %5638 = vmatprep.mubr.f32.mxu0 0.0
    %5639 = vmatmul.mubr.f32.gmra.mrb[0].mxu0 %v5291
    %v5640 = vpop.f32.mrb[0].mxu0
    %v5641 = vadd.f32 0.0, %v5640
    %v5642 = vpop.f32.mrb[0].mxu0
    %5643 = vmatprep.mubr.f32.mxu0 0.0
    %5644 = vmatmul.mubr.f32.gmra.mrb[0].mxu0 %v5294
    %v5645 = vpop.f32.mrb[0].mxu0
    %v5646 = vadd.f32 0.0, %v5645
    %v5647 = vpop.f32.mrb[0].mxu0
    %5648 = vmatprep.mubr.f32.mxu0 0.0
    %5649 = vmatmul.mubr.f32.gmra.mrb[0].mxu0 %v5297
    %v5650 = vpop.f32.mrb[0].mxu0
    %v5651 = vadd.f32 0.0, %v5650
    %v5652 = vpop.f32.mrb[0].mxu0
    %5653 = vmatprep.mubr.f32.mxu0 0.0
    %5654 = vmatmul.mubr.f32.gmra.mrb[0].mxu0 %v5300
    %v5655 = vpop.f32.mrb[0].mxu0
    %v5656 = vadd.f32 0.0, %v5655
    %v5657 = vpop.f32.mrb[0].mxu0
    %5658 = vmatprep.mubr.f32.mxu0 0.0
    %5659 = vmatmul.mubr.f32.gmra.mrb[0].mxu0 %v5303
    %v5660 = vpop.f32.mrb[0].mxu0
    %v5661 = vadd.f32 0.0, %v5660
    %v5662 = vpop.f32.mrb[0].mxu0
    %5663 = vmatprep.mubr.f32.mxu0 0.0
    %5664 = vmatmul.mubr.f32.gmra.mrb[0].mxu0 %v5306
    %v5665 = vpop.f32.mrb[0].mxu0
    %v5666 = vadd.f32 0.0, %v5665
    %v5667 = vpop.f32.mrb[0].mxu0
    %5668 = vmatprep.mubr.f32.mxu0 0.0
    %5669 = vmatmul.mubr.f32.gmra.mrb[0].mxu0 %v5309
    %v5670 = vpop.f32.mrb[0].mxu0
    %v5671 = vadd.f32 0.0, %v5670
    %v5672 = vpop.f32.mrb[0].mxu0
    %5673 = vmatprep.mubr.f32.mxu0 0.0
    %5674 = vmatmul.mubr.f32.gmra.mrb[0].mxu0 %v5312
    %v5675 = vpop.f32.mrb[0].mxu0
    %v5676 = vadd.f32 0.0, %v5675
    %v5677 = vpop.f32.mrb[0].mxu0
    %5678 = vmatprep.mubr.f32.mxu0 0.0
    %5679 = vmatmul.mubr.f32.gmra.mrb[0].mxu0 %v5315
    %v5680 = vpop.f32.mrb[0].mxu0
    %v5681 = vadd.f32 0.0, %v5680
    %v5682 = vpop.f32.mrb[0].mxu0
    %5683 = vmatprep.mubr.f32.mxu0 0.0
    %5684 = vmatmul.mubr.f32.gmra.mrb[0].mxu0 %v5318
    %v5685 = vpop.f32.mrb[0].mxu0
    %v5686 = vadd.f32 0.0, %v5685
    %v5687 = vpop.f32.mrb[0].mxu0
    %5688 = vmatprep.mubr.f32.mxu0 0.0
    %5689 = vmatmul.mubr.f32.gmra.mrb[0].mxu0 %v5321
    %v5690 = vpop.f32.mrb[0].mxu0
    %v5691 = vadd.f32 0.0, %v5690
    %v5692 = vpop.f32.mrb[0].mxu0
    %5693 = vmatprep.mubr.f32.mxu0 0.0
    %5694 = vmatmul.mubr.f32.gmra.mrb[0].mxu0 %v5324
    %v5695 = vpop.f32.mrb[0].mxu0
    %v5696 = vadd.f32 0.0, %v5695
    %v5697 = vpop.f32.mrb[0].mxu0
    %5698 = vmatprep.mubr.f32.mxu0 0.0
    %5699 = vmatmul.mubr.f32.gmra.mrb[0].mxu0 %v5327
    %v5700 = vpop.f32.mrb[0].mxu0
    %v5701 = vadd.f32 0.0, %v5700
    %v5702 = vpop.f32.mrb[0].mxu0
    %5703 = vdwg.mxu0
    %v5704 = vadd.f32 %v4771, %v5396
    %v5705 = vadd.f32 %v4776, %v5401
    %v5706 = vadd.f32 %v4781, %v5406
    %v5707 = vadd.f32 %v4786, %v5411
    %v5708 = vadd.f32 %v4791, %v5416
    %v5709 = vadd.f32 %v4796, %v5421
    %v5710 = vadd.f32 %v4801, %v5426
    %v5711 = vadd.f32 %v4806, %v5431
    %v5712 = vadd.f32 %v4811, %v5436
    %v5713 = vadd.f32 %v4816, %v5441
    %v5714 = vadd.f32 %v4821, %v5446
    %v5715 = vadd.f32 %v4826, %v5451
    %v5716 = vadd.f32 %v4831, %v5456
    %v5717 = vadd.f32 %v4836, %v5461
    %v5718 = vadd.f32 %v4841, %v5466
    %v5719 = vadd.f32 %v4846, %v5471
    %v5720 = vadd.f32 %v4851, %v5476
    %v5721 = vadd.f32 %v4856, %v5481
    %v5722 = vadd.f32 %v4861, %v5486
    %v5723 = vadd.f32 %v4866, %v5491
    %v5724 = vadd.f32 %v4871, %v5496
    %v5725 = vadd.f32 %v4876, %v5501
    %v5726 = vadd.f32 %v4881, %v5506
    %v5727 = vadd.f32 %v4886, %v5511
    %v5728 = vadd.f32 %v4891, %v5516
    %v5729 = vadd.f32 %v4896, %v5521
    %v5730 = vadd.f32 %v4901, %v5526
    %v5731 = vadd.f32 %v4906, %v5531
    %v5732 = vadd.f32 %v4911, %v5536
    %v5733 = vadd.f32 %v4916, %v5541
    %v5734 = vadd.f32 %v4921, %v5546
    %v5735 = vadd.f32 %v4926, %v5551
    %v5736 = vadd.f32 %v4931, %v5556
    %v5737 = vadd.f32 %v4936, %v5561
    %v5738 = vadd.f32 %v4941, %v5566
    %v5739 = vadd.f32 %v4946, %v5571
    %v5740 = vadd.f32 %v4951, %v5576
    %v5741 = vadd.f32 %v4956, %v5581
    %v5742 = vadd.f32 %v4961, %v5586
    %v5743 = vadd.f32 %v4966, %v5591
    %v5744 = vadd.f32 %v4971, %v5596
    %v5745 = vadd.f32 %v4976, %v5601
    %v5746 = vadd.f32 %v4981, %v5606
    %v5747 = vadd.f32 %v4986, %v5611
    %v5748 = vadd.f32 %v4991, %v5616
    %v5749 = vadd.f32 %v4996, %v5621
    %v5750 = vadd.f32 %v5001, %v5626
    %v5751 = vadd.f32 %v5006, %v5631
    %v5752 = vadd.f32 %v5011, %v5636
    %v5753 = vadd.f32 %v5016, %v5641
    %v5754 = vadd.f32 %v5021, %v5646
    %v5755 = vadd.f32 %v5026, %v5651
    %v5756 = vadd.f32 %v5031, %v5656
    %v5757 = vadd.f32 %v5036, %v5661
    %v5758 = vadd.f32 %v5041, %v5666
    %v5759 = vadd.f32 %v5046, %v5671
    %v5760 = vadd.f32 %v5051, %v5676
    %v5761 = vadd.f32 %v5056, %v5681
    %v5762 = vadd.f32 %v5061, %v5686
    %v5763 = vadd.f32 %v5066, %v5691
    %v5764 = vadd.f32 %v5071, %v5696
    %v5765 = vadd.f32 %v5076, %v5701
    %v5766 = vld [vmem:[%s0 + $0x1f7] sm:$0xff]
    %v5767 = vld [vmem:[%s0 + $0x1ff] sm:$0xff]
    %v5768 = vld [vmem:[%s0 + $0x207] sm:$0xff]
    %v5769 = vld [vmem:[%s0 + $0x20f] sm:$0xff]
    %v5770 = vld [vmem:[%s0 + $0x217] sm:$0xff]
    %v5771 = vld [vmem:[%s0 + $0x21f] sm:$0xff]
    %v5772 = vld [vmem:[%s0 + $0x227] sm:$0xff]
    %v5773 = vld [vmem:[%s0 + $0x22f] sm:$0xff]
    %v5774 = vld [vmem:[%s0 + $0x237] sm:$0xff]
    %v5775 = vld [vmem:[%s0 + $0x23f] sm:$0xff]
    %v5776 = vld [vmem:[%s0 + $0x247] sm:$0xff]
    %v5777 = vld [vmem:[%s0 + $0x24f] sm:$0xff]
    %v5778 = vld [vmem:[%s0 + $0x257] sm:$0xff]
    %v5779 = vld [vmem:[%s0 + $0x25f] sm:$0xff]
    %v5780 = vld [vmem:[%s0 + $0x267] sm:$0xff]
    %v5781 = vld [vmem:[%s0 + $0x26f] sm:$0xff]
    %v5782 = vld [vmem:[%s0 + $0x277] sm:$0xff]
    %v5783 = vld [vmem:[%s0 + $0x27f] sm:$0xff]
    %v5784 = vld [vmem:[%s0 + $0x287] sm:$0xff]
    %v5785 = vld [vmem:[%s0 + $0x28f] sm:$0xff]
    %v5786 = vld [vmem:[%s0 + $0x297] sm:$0xff]
    %v5787 = vld [vmem:[%s0 + $0x29f] sm:$0xff]
    %v5788 = vld [vmem:[%s0 + $0x2a7] sm:$0xff]
    %v5789 = vld [vmem:[%s0 + $0x2af] sm:$0xff]
    %v5790 = vld [vmem:[%s0 + $0x2b7] sm:$0xff]
    %v5791 = vld [vmem:[%s0 + $0x2bf] sm:$0xff]
    %v5792 = vld [vmem:[%s0 + $0x2c7] sm:$0xff]
    %v5793 = vld [vmem:[%s0 + $0x2cf] sm:$0xff]
    %v5794 = vld [vmem:[%s0 + $0x2d7] sm:$0xff]
    %v5795 = vld [vmem:[%s0 + $0x2df] sm:$0xff]
    %v5796 = vld [vmem:[%s0 + $0x2e7] sm:$0xff]
    %v5797 = vld [vmem:[%s0 + $0x2ef] sm:$0xff]
    %v5798 = vld [vmem:[%s0 + $0x2f7] sm:$0xff]
    %v5799 = vld [vmem:[%s0 + $0x2ff] sm:$0xff]
    %v5800 = vld [vmem:[%s0 + $0x307] sm:$0xff]
    %v5801 = vld [vmem:[%s0 + $0x30f] sm:$0xff]
    %v5802 = vld [vmem:[%s0 + $0x317] sm:$0xff]
    %v5803 = vld [vmem:[%s0 + $0x31f] sm:$0xff]
    %v5804 = vld [vmem:[%s0 + $0x327] sm:$0xff]
    %v5805 = vld [vmem:[%s0 + $0x32f] sm:$0xff]
    %v5806 = vld [vmem:[%s0 + $0x337] sm:$0xff]
    %v5807 = vld [vmem:[%s0 + $0x33f] sm:$0xff]
    %v5808 = vld [vmem:[%s0 + $0x347] sm:$0xff]
    %v5809 = vld [vmem:[%s0 + $0x34f] sm:$0xff]
    %v5810 = vld [vmem:[%s0 + $0x357] sm:$0xff]
    %v5811 = vld [vmem:[%s0 + $0x35f] sm:$0xff]
    %v5812 = vld [vmem:[%s0 + $0x367] sm:$0xff]
    %v5813 = vld [vmem:[%s0 + $0x36f] sm:$0xff]
    %v5814 = vld [vmem:[%s0 + $0x377] sm:$0xff]
    %v5815 = vld [vmem:[%s0 + $0x37f] sm:$0xff]
    %v5816 = vld [vmem:[%s0 + $0x387] sm:$0xff]
    %v5817 = vld [vmem:[%s0 + $0x38f] sm:$0xff]
    %v5818 = vld [vmem:[%s0 + $0x397] sm:$0xff]
    %v5819 = vld [vmem:[%s0 + $0x39f] sm:$0xff]
    %v5820 = vld [vmem:[%s0 + $0x3a7] sm:$0xff]
    %v5821 = vld [vmem:[%s0 + $0x3af] sm:$0xff]
    %v5822 = vld [vmem:[%s0 + $0x3b7] sm:$0xff]
    %v5823 = vld [vmem:[%s0 + $0x3bf] sm:$0xff]
    %v5824 = vld [vmem:[%s0 + $0x3c7] sm:$0xff]
    %v5825 = vld [vmem:[%s0 + $0x3cf] sm:$0xff]
    %v5826 = vld [vmem:[%s0 + $0x3d7] sm:$0xff]
    %v5827 = vld [vmem:[%s0 + $0x3df] sm:$0xff]
    %v5828 = vld [vmem:[%s1 + $0x30] sm:$0xff]
    %v5829 = vld [vmem:[%s1 + $0x38] sm:$0xff]
    %v5831 = vsel %vm191, %v5766, 0
    %v5834 = vsel %vm191, %v5767, 0
    %v5837 = vsel %vm191, %v5768, 0
    %v5840 = vsel %vm191, %v5769, 0
    %v5843 = vsel %vm191, %v5770, 0
    %v5846 = vsel %vm191, %v5771, 0
    %v5849 = vsel %vm191, %v5772, 0
    %v5852 = vsel %vm191, %v5773, 0
    %v5855 = vsel %vm191, %v5774, 0
    %v5858 = vsel %vm191, %v5775, 0
    %v5861 = vsel %vm191, %v5776, 0
    %v5864 = vsel %vm191, %v5777, 0
    %v5867 = vsel %vm191, %v5778, 0
    %v5870 = vsel %vm191, %v5779, 0
    %v5873 = vsel %vm191, %v5780, 0
    %v5876 = vsel %vm191, %v5781, 0
    %v5879 = vsel %vm191, %v5782, 0
    %v5882 = vsel %vm191, %v5783, 0
    %v5885 = vsel %vm191, %v5784, 0
    %v5888 = vsel %vm191, %v5785, 0
    %v5891 = vsel %vm191, %v5786, 0
    %v5894 = vsel %vm191, %v5787, 0
    %v5897 = vsel %vm191, %v5788, 0
    %v5900 = vsel %vm191, %v5789, 0
    %v5903 = vsel %vm191, %v5790, 0
    %v5906 = vsel %vm191, %v5791, 0
    %v5909 = vsel %vm191, %v5792, 0
    %v5912 = vsel %vm191, %v5793, 0
    %v5915 = vsel %vm191, %v5794, 0
    %v5918 = vsel %vm191, %v5795, 0
    %v5921 = vsel %vm191, %v5796, 0
    %v5924 = vsel %vm191, %v5797, 0
    %v5927 = vsel %vm191, %v5798, 0
    %v5930 = vsel %vm191, %v5799, 0
    %v5933 = vsel %vm191, %v5800, 0
    %v5936 = vsel %vm191, %v5801, 0
    %v5939 = vsel %vm191, %v5802, 0
    %v5942 = vsel %vm191, %v5803, 0
    %v5945 = vsel %vm191, %v5804, 0
    %v5948 = vsel %vm191, %v5805, 0
    %v5951 = vsel %vm191, %v5806, 0
    %v5954 = vsel %vm191, %v5807, 0
    %v5957 = vsel %vm191, %v5808, 0
    %v5960 = vsel %vm191, %v5809, 0
    %v5963 = vsel %vm191, %v5810, 0
    %v5966 = vsel %vm191, %v5811, 0
    %v5969 = vsel %vm191, %v5812, 0
    %v5972 = vsel %vm191, %v5813, 0
    %v5975 = vsel %vm191, %v5814, 0
    %v5978 = vsel %vm191, %v5815, 0
    %v5981 = vsel %vm191, %v5816, 0
    %v5984 = vsel %vm191, %v5817, 0
    %v5987 = vsel %vm191, %v5818, 0
    %v5990 = vsel %vm191, %v5819, 0
    %v5993 = vsel %vm191, %v5820, 0
    %v5996 = vsel %vm191, %v5821, 0
    %v5999 = vsel %vm191, %v5822, 0
    %v6002 = vsel %vm191, %v5823, 0
    %v6005 = vsel %vm191, %v5824, 0
    %v6008 = vsel %vm191, %v5825, 0
    %v6011 = vsel %vm191, %v5826, 0
    %v6014 = vsel %vm191, %v5827, 0
    %6016 = vmatprep.subr.mxu0 0.0
    %6017 = vmatpush1.msra.mxu0 %v5828
    %6018 = vmatprep.subr.mxu0 0.0
    %6019 = vmatpush1.msra.mxu0 %v5829
    %6020 = vmatprep.subr.mxu0 0.0
    %6021 = vmatpush1.msra.mxu0 0.0
    %6022 = vmatprep.subr.mxu0 0.0
    %6023 = vmatpush1.msra.mxu0 0.0
    %6024 = vmatprep.subr.mxu0 0.0
    %6025 = vmatpush1.msra.mxu0 0.0
    %6026 = vmatprep.subr.mxu0 0.0
    %6027 = vmatpush1.msra.mxu0 0.0
    %6028 = vmatprep.subr.mxu0 0.0
    %6029 = vmatpush1.msra.mxu0 0.0
    %6030 = vmatprep.subr.mxu0 0.0
    %6031 = vmatpush1.msra.mxu0 0.0
    %6032 = vmatprep.subr.mxu0 0.0
    %6033 = vmatpush1.msra.mxu0 0.0
    %6034 = vmatprep.subr.mxu0 0.0
    %6035 = vmatpush1.msra.mxu0 0.0
    %6036 = vmatprep.subr.mxu0 0.0
    %6037 = vmatpush1.msra.mxu0 0.0
    %6038 = vmatprep.subr.mxu0 0.0
    %6039 = vmatpush1.msra.mxu0 0.0
    %6040 = vmatprep.subr.mxu0 0.0
    %6041 = vmatpush1.msra.mxu0 0.0
    %6042 = vmatprep.subr.mxu0 0.0
    %6043 = vmatpush1.msra.mxu0 0.0
    %6044 = vmatprep.subr.mxu0 0.0
    %6045 = vmatpush1.msra.mxu0 0.0
    %6046 = vmatprep.subr.mxu0 0.0
    %6047 = vmatpush1.msra.mxu0 0.0
    %6048 = vmatprep.subr.mxu0 0.0
    %6049 = vmatpush1.msra.mxu0 0.0
    %6050 = vmatprep.subr.mxu0 0.0
    %6051 = vmatpush1.msra.mxu0 0.0
    %6052 = vmatprep.subr.mxu0 0.0
    %6053 = vmatpush1.msra.mxu0 0.0
    %6054 = vmatprep.subr.mxu0 0.0
    %6055 = vmatpush1.msra.mxu0 0.0
    %6056 = vmatprep.subr.mxu0 0.0
    %6057 = vmatpush1.msra.mxu0 0.0
    %6058 = vmatprep.subr.mxu0 0.0
    %6059 = vmatpush1.msra.mxu0 0.0
    %6060 = vmatprep.subr.mxu0 0.0
    %6061 = vmatpush1.msra.mxu0 0.0
    %6062 = vmatprep.subr.mxu0 0.0
    %6063 = vmatpush1.msra.mxu0 0.0
    %6064 = vmatprep.subr.mxu0 0.0
    %6065 = vmatpush1.msra.mxu0 0.0
    %6066 = vmatprep.subr.mxu0 0.0
    %6067 = vmatpush1.msra.mxu0 0.0
    %6068 = vmatprep.subr.mxu0 0.0
    %6069 = vmatpush1.msra.mxu0 0.0
    %6070 = vmatprep.subr.mxu0 0.0
    %6071 = vmatpush1.msra.mxu0 0.0
    %6072 = vmatprep.subr.mxu0 0.0
    %6073 = vmatpush1.msra.mxu0 0.0
    %6074 = vmatprep.subr.mxu0 0.0
    %6075 = vmatpush1.msra.mxu0 0.0
    %6076 = vmatprep.subr.mxu0 0.0
    %6077 = vmatpush1.msra.mxu0 0.0
    %6078 = vmatprep.subr.mxu0 0.0
    %6079 = vmatpush1.msra.mxu0 0.0
    %6080 = vmatprep.mubr.f32.mxu0 0.0
    %6081 = vmatmul.mubr.f32.gmra.mrb[0].mxu0 %v5831
    %v6082 = vpop.f32.mrb[0].mxu0
    %v6083 = vadd.f32 0.0, %v6082
    %v6084 = vpop.f32.mrb[0].mxu0
    %6085 = vmatprep.mubr.f32.mxu0 0.0
    %6086 = vmatmul.mubr.f32.gmra.mrb[0].mxu0 %v5834
    %v6087 = vpop.f32.mrb[0].mxu0
    %v6088 = vadd.f32 0.0, %v6087
    %v6089 = vpop.f32.mrb[0].mxu0
    %6090 = vmatprep.mubr.f32.mxu0 0.0
    %6091 = vmatmul.mubr.f32.gmra.mrb[0].mxu0 %v5837
    %v6092 = vpop.f32.mrb[0].mxu0
    %v6093 = vadd.f32 0.0, %v6092
    %v6094 = vpop.f32.mrb[0].mxu0
    %6095 = vmatprep.mubr.f32.mxu0 0.0
    %6096 = vmatmul.mubr.f32.gmra.mrb[0].mxu0 %v5840
    %v6097 = vpop.f32.mrb[0].mxu0
    %v6098 = vadd.f32 0.0, %v6097
    %v6099 = vpop.f32.mrb[0].mxu0
    %6100 = vmatprep.mubr.f32.mxu0 0.0
    %6101 = vmatmul.mubr.f32.gmra.mrb[0].mxu0 %v5843
    %v6102 = vpop.f32.mrb[0].mxu0
    %v6103 = vadd.f32 0.0, %v6102
    %v6104 = vpop.f32.mrb[0].mxu0
    %6105 = vmatprep.mubr.f32.mxu0 0.0
    %6106 = vmatmul.mubr.f32.gmra.mrb[0].mxu0 %v5846
    %v6107 = vpop.f32.mrb[0].mxu0
    %v6108 = vadd.f32 0.0, %v6107
    %v6109 = vpop.f32.mrb[0].mxu0
    %6110 = vmatprep.mubr.f32.mxu0 0.0
    %6111 = vmatmul.mubr.f32.gmra.mrb[0].mxu0 %v5849
    %v6112 = vpop.f32.mrb[0].mxu0
    %v6113 = vadd.f32 0.0, %v6112
    %v6114 = vpop.f32.mrb[0].mxu0
    %6115 = vmatprep.mubr.f32.mxu0 0.0
    %6116 = vmatmul.mubr.f32.gmra.mrb[0].mxu0 %v5852
    %v6117 = vpop.f32.mrb[0].mxu0
    %v6118 = vadd.f32 0.0, %v6117
    %v6119 = vpop.f32.mrb[0].mxu0
    %6120 = vmatprep.mubr.f32.mxu0 0.0
    %6121 = vmatmul.mubr.f32.gmra.mrb[0].mxu0 %v5855
    %v6122 = vpop.f32.mrb[0].mxu0
    %v6123 = vadd.f32 0.0, %v6122
    %v6124 = vpop.f32.mrb[0].mxu0
    %6125 = vmatprep.mubr.f32.mxu0 0.0
    %6126 = vmatmul.mubr.f32.gmra.mrb[0].mxu0 %v5858
    %v6127 = vpop.f32.mrb[0].mxu0
    %v6128 = vadd.f32 0.0, %v6127
    %v6129 = vpop.f32.mrb[0].mxu0
    %6130 = vmatprep.mubr.f32.mxu0 0.0
    %6131 = vmatmul.mubr.f32.gmra.mrb[0].mxu0 %v5861
    %v6132 = vpop.f32.mrb[0].mxu0
    %v6133 = vadd.f32 0.0, %v6132
    %v6134 = vpop.f32.mrb[0].mxu0
    %6135 = vmatprep.mubr.f32.mxu0 0.0
    %6136 = vmatmul.mubr.f32.gmra.mrb[0].mxu0 %v5864
    %v6137 = vpop.f32.mrb[0].mxu0
    %v6138 = vadd.f32 0.0, %v6137
    %v6139 = vpop.f32.mrb[0].mxu0
    %6140 = vmatprep.mubr.f32.mxu0 0.0
    %6141 = vmatmul.mubr.f32.gmra.mrb[0].mxu0 %v5867
    %v6142 = vpop.f32.mrb[0].mxu0
    %v6143 = vadd.f32 0.0, %v6142
    %v6144 = vpop.f32.mrb[0].mxu0
    %6145 = vmatprep.mubr.f32.mxu0 0.0
    %6146 = vmatmul.mubr.f32.gmra.mrb[0].mxu0 %v5870
    %v6147 = vpop.f32.mrb[0].mxu0
    %v6148 = vadd.f32 0.0, %v6147
    %v6149 = vpop.f32.mrb[0].mxu0
    %6150 = vmatprep.mubr.f32.mxu0 0.0
    %6151 = vmatmul.mubr.f32.gmra.mrb[0].mxu0 %v5873
    %v6152 = vpop.f32.mrb[0].mxu0
    %v6153 = vadd.f32 0.0, %v6152
    %v6154 = vpop.f32.mrb[0].mxu0
    %6155 = vmatprep.mubr.f32.mxu0 0.0
    %6156 = vmatmul.mubr.f32.gmra.mrb[0].mxu0 %v5876
    %v6157 = vpop.f32.mrb[0].mxu0
    %v6158 = vadd.f32 0.0, %v6157
    %v6159 = vpop.f32.mrb[0].mxu0
    %6160 = vmatprep.mubr.f32.mxu0 0.0
    %6161 = vmatmul.mubr.f32.gmra.mrb[0].mxu0 %v5879
    %v6162 = vpop.f32.mrb[0].mxu0
    %v6163 = vadd.f32 0.0, %v6162
    %v6164 = vpop.f32.mrb[0].mxu0
    %6165 = vmatprep.mubr.f32.mxu0 0.0
    %6166 = vmatmul.mubr.f32.gmra.mrb[0].mxu0 %v5882
    %v6167 = vpop.f32.mrb[0].mxu0
    %v6168 = vadd.f32 0.0, %v6167
    %v6169 = vpop.f32.mrb[0].mxu0
    %6170 = vmatprep.mubr.f32.mxu0 0.0
    %6171 = vmatmul.mubr.f32.gmra.mrb[0].mxu0 %v5885
    %v6172 = vpop.f32.mrb[0].mxu0
    %v6173 = vadd.f32 0.0, %v6172
    %v6174 = vpop.f32.mrb[0].mxu0
    %6175 = vmatprep.mubr.f32.mxu0 0.0
    %6176 = vmatmul.mubr.f32.gmra.mrb[0].mxu0 %v5888
    %v6177 = vpop.f32.mrb[0].mxu0
    %v6178 = vadd.f32 0.0, %v6177
    %v6179 = vpop.f32.mrb[0].mxu0
    %6180 = vmatprep.mubr.f32.mxu0 0.0
    %6181 = vmatmul.mubr.f32.gmra.mrb[0].mxu0 %v5891
    %v6182 = vpop.f32.mrb[0].mxu0
    %v6183 = vadd.f32 0.0, %v6182
    %v6184 = vpop.f32.mrb[0].mxu0
    %6185 = vmatprep.mubr.f32.mxu0 0.0
    %6186 = vmatmul.mubr.f32.gmra.mrb[0].mxu0 %v5894
    %v6187 = vpop.f32.mrb[0].mxu0
    %v6188 = vadd.f32 0.0, %v6187
    %v6189 = vpop.f32.mrb[0].mxu0
    %6190 = vmatprep.mubr.f32.mxu0 0.0
    %6191 = vmatmul.mubr.f32.gmra.mrb[0].mxu0 %v5897
    %v6192 = vpop.f32.mrb[0].mxu0
    %v6193 = vadd.f32 0.0, %v6192
    %v6194 = vpop.f32.mrb[0].mxu0
    %6195 = vmatprep.mubr.f32.mxu0 0.0
    %6196 = vmatmul.mubr.f32.gmra.mrb[0].mxu0 %v5900
    %v6197 = vpop.f32.mrb[0].mxu0
    %v6198 = vadd.f32 0.0, %v6197
    %v6199 = vpop.f32.mrb[0].mxu0
    %6200 = vmatprep.mubr.f32.mxu0 0.0
    %6201 = vmatmul.mubr.f32.gmra.mrb[0].mxu0 %v5903
    %v6202 = vpop.f32.mrb[0].mxu0
    %v6203 = vadd.f32 0.0, %v6202
    %v6204 = vpop.f32.mrb[0].mxu0
    %6205 = vmatprep.mubr.f32.mxu0 0.0
    %6206 = vmatmul.mubr.f32.gmra.mrb[0].mxu0 %v5906
    %v6207 = vpop.f32.mrb[0].mxu0
    %v6208 = vadd.f32 0.0, %v6207
    %v6209 = vpop.f32.mrb[0].mxu0
    %6210 = vmatprep.mubr.f32.mxu0 0.0
    %6211 = vmatmul.mubr.f32.gmra.mrb[0].mxu0 %v5909
    %v6212 = vpop.f32.mrb[0].mxu0
    %v6213 = vadd.f32 0.0, %v6212
    %v6214 = vpop.f32.mrb[0].mxu0
    %6215 = vmatprep.mubr.f32.mxu0 0.0
    %6216 = vmatmul.mubr.f32.gmra.mrb[0].mxu0 %v5912
    %v6217 = vpop.f32.mrb[0].mxu0
    %v6218 = vadd.f32 0.0, %v6217
    %v6219 = vpop.f32.mrb[0].mxu0
    %6220 = vmatprep.mubr.f32.mxu0 0.0
    %6221 = vmatmul.mubr.f32.gmra.mrb[0].mxu0 %v5915
    %v6222 = vpop.f32.mrb[0].mxu0
    %v6223 = vadd.f32 0.0, %v6222
    %v6224 = vpop.f32.mrb[0].mxu0
    %6225 = vmatprep.mubr.f32.mxu0 0.0
    %6226 = vmatmul.mubr.f32.gmra.mrb[0].mxu0 %v5918
    %v6227 = vpop.f32.mrb[0].mxu0
    %v6228 = vadd.f32 0.0, %v6227
    %v6229 = vpop.f32.mrb[0].mxu0
    %6230 = vmatprep.mubr.f32.mxu0 0.0
    %6231 = vmatmul.mubr.f32.gmra.mrb[0].mxu0 %v5921
    %v6232 = vpop.f32.mrb[0].mxu0
    %v6233 = vadd.f32 0.0, %v6232
    %v6234 = vpop.f32.mrb[0].mxu0
    %6235 = vmatprep.mubr.f32.mxu0 0.0
    %6236 = vmatmul.mubr.f32.gmra.mrb[0].mxu0 %v5924
    %v6237 = vpop.f32.mrb[0].mxu0
    %v6238 = vadd.f32 0.0, %v6237
    %v6239 = vpop.f32.mrb[0].mxu0
    %6240 = vmatprep.mubr.f32.mxu0 0.0
    %6241 = vmatmul.mubr.f32.gmra.mrb[0].mxu0 %v5927
    %v6242 = vpop.f32.mrb[0].mxu0
    %v6243 = vadd.f32 0.0, %v6242
    %v6244 = vpop.f32.mrb[0].mxu0
    %6245 = vmatprep.mubr.f32.mxu0 0.0
    %6246 = vmatmul.mubr.f32.gmra.mrb[0].mxu0 %v5930
    %v6247 = vpop.f32.mrb[0].mxu0
    %v6248 = vadd.f32 0.0, %v6247
    %v6249 = vpop.f32.mrb[0].mxu0
    %6250 = vmatprep.mubr.f32.mxu0 0.0
    %6251 = vmatmul.mubr.f32.gmra.mrb[0].mxu0 %v5933
    %v6252 = vpop.f32.mrb[0].mxu0
    %v6253 = vadd.f32 0.0, %v6252
    %v6254 = vpop.f32.mrb[0].mxu0
    %6255 = vmatprep.mubr.f32.mxu0 0.0
    %6256 = vmatmul.mubr.f32.gmra.mrb[0].mxu0 %v5936
    %v6257 = vpop.f32.mrb[0].mxu0
    %v6258 = vadd.f32 0.0, %v6257
    %v6259 = vpop.f32.mrb[0].mxu0
    %6260 = vmatprep.mubr.f32.mxu0 0.0
    %6261 = vmatmul.mubr.f32.gmra.mrb[0].mxu0 %v5939
    %v6262 = vpop.f32.mrb[0].mxu0
    %v6263 = vadd.f32 0.0, %v6262
    %v6264 = vpop.f32.mrb[0].mxu0
    %6265 = vmatprep.mubr.f32.mxu0 0.0
    %6266 = vmatmul.mubr.f32.gmra.mrb[0].mxu0 %v5942
    %v6267 = vpop.f32.mrb[0].mxu0
    %v6268 = vadd.f32 0.0, %v6267
    %v6269 = vpop.f32.mrb[0].mxu0
    %6270 = vmatprep.mubr.f32.mxu0 0.0
    %6271 = vmatmul.mubr.f32.gmra.mrb[0].mxu0 %v5945
    %v6272 = vpop.f32.mrb[0].mxu0
    %v6273 = vadd.f32 0.0, %v6272
    %v6274 = vpop.f32.mrb[0].mxu0
    %6275 = vmatprep.mubr.f32.mxu0 0.0
    %6276 = vmatmul.mubr.f32.gmra.mrb[0].mxu0 %v5948
    %v6277 = vpop.f32.mrb[0].mxu0
    %v6278 = vadd.f32 0.0, %v6277
    %v6279 = vpop.f32.mrb[0].mxu0
    %6280 = vmatprep.mubr.f32.mxu0 0.0
    %6281 = vmatmul.mubr.f32.gmra.mrb[0].mxu0 %v5951
    %v6282 = vpop.f32.mrb[0].mxu0
    %v6283 = vadd.f32 0.0, %v6282
    %v6284 = vpop.f32.mrb[0].mxu0
    %6285 = vmatprep.mubr.f32.mxu0 0.0
    %6286 = vmatmul.mubr.f32.gmra.mrb[0].mxu0 %v5954
    %v6287 = vpop.f32.mrb[0].mxu0
    %v6288 = vadd.f32 0.0, %v6287
    %v6289 = vpop.f32.mrb[0].mxu0
    %6290 = vmatprep.mubr.f32.mxu0 0.0
    %6291 = vmatmul.mubr.f32.gmra.mrb[0].mxu0 %v5957
    %v6292 = vpop.f32.mrb[0].mxu0
    %v6293 = vadd.f32 0.0, %v6292
    %v6294 = vpop.f32.mrb[0].mxu0
    %6295 = vmatprep.mubr.f32.mxu0 0.0
    %6296 = vmatmul.mubr.f32.gmra.mrb[0].mxu0 %v5960
    %v6297 = vpop.f32.mrb[0].mxu0
    %v6298 = vadd.f32 0.0, %v6297
    %v6299 = vpop.f32.mrb[0].mxu0
    %6300 = vmatprep.mubr.f32.mxu0 0.0
    %6301 = vmatmul.mubr.f32.gmra.mrb[0].mxu0 %v5963
    %v6302 = vpop.f32.mrb[0].mxu0
    %v6303 = vadd.f32 0.0, %v6302
    %v6304 = vpop.f32.mrb[0].mxu0
    %6305 = vmatprep.mubr.f32.mxu0 0.0
    %6306 = vmatmul.mubr.f32.gmra.mrb[0].mxu0 %v5966
    %v6307 = vpop.f32.mrb[0].mxu0
    %v6308 = vadd.f32 0.0, %v6307
    %v6309 = vpop.f32.mrb[0].mxu0
    %6310 = vmatprep.mubr.f32.mxu0 0.0
    %6311 = vmatmul.mubr.f32.gmra.mrb[0].mxu0 %v5969
    %v6312 = vpop.f32.mrb[0].mxu0
    %v6313 = vadd.f32 0.0, %v6312
    %v6314 = vpop.f32.mrb[0].mxu0
    %6315 = vmatprep.mubr.f32.mxu0 0.0
    %6316 = vmatmul.mubr.f32.gmra.mrb[0].mxu0 %v5972
    %v6317 = vpop.f32.mrb[0].mxu0
    %v6318 = vadd.f32 0.0, %v6317
    %v6319 = vpop.f32.mrb[0].mxu0
    %6320 = vmatprep.mubr.f32.mxu0 0.0
    %6321 = vmatmul.mubr.f32.gmra.mrb[0].mxu0 %v5975
    %v6322 = vpop.f32.mrb[0].mxu0
    %v6323 = vadd.f32 0.0, %v6322
    %v6324 = vpop.f32.mrb[0].mxu0
    %6325 = vmatprep.mubr.f32.mxu0 0.0
    %6326 = vmatmul.mubr.f32.gmra.mrb[0].mxu0 %v5978
    %v6327 = vpop.f32.mrb[0].mxu0
    %v6328 = vadd.f32 0.0, %v6327
    %v6329 = vpop.f32.mrb[0].mxu0
    %6330 = vmatprep.mubr.f32.mxu0 0.0
    %6331 = vmatmul.mubr.f32.gmra.mrb[0].mxu0 %v5981
    %v6332 = vpop.f32.mrb[0].mxu0
    %v6333 = vadd.f32 0.0, %v6332
    %v6334 = vpop.f32.mrb[0].mxu0
    %6335 = vmatprep.mubr.f32.mxu0 0.0
    %6336 = vmatmul.mubr.f32.gmra.mrb[0].mxu0 %v5984
    %v6337 = vpop.f32.mrb[0].mxu0
    %v6338 = vadd.f32 0.0, %v6337
    %v6339 = vpop.f32.mrb[0].mxu0
    %6340 = vmatprep.mubr.f32.mxu0 0.0
    %6341 = vmatmul.mubr.f32.gmra.mrb[0].mxu0 %v5987
    %v6342 = vpop.f32.mrb[0].mxu0
    %v6343 = vadd.f32 0.0, %v6342
    %v6344 = vpop.f32.mrb[0].mxu0
    %6345 = vmatprep.mubr.f32.mxu0 0.0
    %6346 = vmatmul.mubr.f32.gmra.mrb[0].mxu0 %v5990
    %v6347 = vpop.f32.mrb[0].mxu0
    %v6348 = vadd.f32 0.0, %v6347
    %v6349 = vpop.f32.mrb[0].mxu0
    %6350 = vmatprep.mubr.f32.mxu0 0.0
    %6351 = vmatmul.mubr.f32.gmra.mrb[0].mxu0 %v5993
    %v6352 = vpop.f32.mrb[0].mxu0
    %v6353 = vadd.f32 0.0, %v6352
    %v6354 = vpop.f32.mrb[0].mxu0
    %6355 = vmatprep.mubr.f32.mxu0 0.0
    %6356 = vmatmul.mubr.f32.gmra.mrb[0].mxu0 %v5996
    %v6357 = vpop.f32.mrb[0].mxu0
    %v6358 = vadd.f32 0.0, %v6357
    %v6359 = vpop.f32.mrb[0].mxu0
    %6360 = vmatprep.mubr.f32.mxu0 0.0
    %6361 = vmatmul.mubr.f32.gmra.mrb[0].mxu0 %v5999
    %v6362 = vpop.f32.mrb[0].mxu0
    %v6363 = vadd.f32 0.0, %v6362
    %v6364 = vpop.f32.mrb[0].mxu0
    %6365 = vmatprep.mubr.f32.mxu0 0.0
    %6366 = vmatmul.mubr.f32.gmra.mrb[0].mxu0 %v6002
    %v6367 = vpop.f32.mrb[0].mxu0
    %v6368 = vadd.f32 0.0, %v6367
    %v6369 = vpop.f32.mrb[0].mxu0
    %6370 = vmatprep.mubr.f32.mxu0 0.0
    %6371 = vmatmul.mubr.f32.gmra.mrb[0].mxu0 %v6005
    %v6372 = vpop.f32.mrb[0].mxu0
    %v6373 = vadd.f32 0.0, %v6372
    %v6374 = vpop.f32.mrb[0].mxu0
    %6375 = vmatprep.mubr.f32.mxu0 0.0
    %6376 = vmatmul.mubr.f32.gmra.mrb[0].mxu0 %v6008
    %v6377 = vpop.f32.mrb[0].mxu0
    %v6378 = vadd.f32 0.0, %v6377
    %v6379 = vpop.f32.mrb[0].mxu0
    %6380 = vmatprep.mubr.f32.mxu0 0.0
    %6381 = vmatmul.mubr.f32.gmra.mrb[0].mxu0 %v6011
    %v6382 = vpop.f32.mrb[0].mxu0
    %v6383 = vadd.f32 0.0, %v6382
    %v6384 = vpop.f32.mrb[0].mxu0
    %6385 = vmatprep.mubr.f32.mxu0 0.0
    %6386 = vmatmul.mubr.f32.gmra.mrb[0].mxu0 %v6014
    %v6387 = vpop.f32.mrb[0].mxu0
    %v6388 = vadd.f32 0.0, %v6387
    %v6389 = vpop.f32.mrb[0].mxu0
    %6390 = vdwg.mxu0
    %v6391 = vadd.f32 %v5704, %v6083
    %v6392 = vadd.f32 %v5705, %v6088
    %v6393 = vadd.f32 %v5706, %v6093
    %v6394 = vadd.f32 %v5707, %v6098
    %v6395 = vadd.f32 %v5708, %v6103
    %v6396 = vadd.f32 %v5709, %v6108
    %v6397 = vadd.f32 %v5710, %v6113
    %v6398 = vadd.f32 %v5711, %v6118
    %v6399 = vadd.f32 %v5712, %v6123
    %v6400 = vadd.f32 %v5713, %v6128
    %v6401 = vadd.f32 %v5714, %v6133
    %v6402 = vadd.f32 %v5715, %v6138
    %v6403 = vadd.f32 %v5716, %v6143
    %v6404 = vadd.f32 %v5717, %v6148
    %v6405 = vadd.f32 %v5718, %v6153
    %v6406 = vadd.f32 %v5719, %v6158
    %v6407 = vadd.f32 %v5720, %v6163
    %v6408 = vadd.f32 %v5721, %v6168
    %v6409 = vadd.f32 %v5722, %v6173
    %v6410 = vadd.f32 %v5723, %v6178
    %v6411 = vadd.f32 %v5724, %v6183
    %v6412 = vadd.f32 %v5725, %v6188
    %v6413 = vadd.f32 %v5726, %v6193
    %v6414 = vadd.f32 %v5727, %v6198
    %v6415 = vadd.f32 %v5728, %v6203
    %v6416 = vadd.f32 %v5729, %v6208
    %v6417 = vadd.f32 %v5730, %v6213
    %v6418 = vadd.f32 %v5731, %v6218
    %v6419 = vadd.f32 %v5732, %v6223
    %v6420 = vadd.f32 %v5733, %v6228
    %v6421 = vadd.f32 %v5734, %v6233
    %v6422 = vadd.f32 %v5735, %v6238
    %v6423 = vadd.f32 %v5736, %v6243
    %v6424 = vadd.f32 %v5737, %v6248
    %v6425 = vadd.f32 %v5738, %v6253
    %v6426 = vadd.f32 %v5739, %v6258
    %v6427 = vadd.f32 %v5740, %v6263
    %v6428 = vadd.f32 %v5741, %v6268
    %v6429 = vadd.f32 %v5742, %v6273
    %v6430 = vadd.f32 %v5743, %v6278
    %v6431 = vadd.f32 %v5744, %v6283
    %v6432 = vadd.f32 %v5745, %v6288
    %v6433 = vadd.f32 %v5746, %v6293
    %v6434 = vadd.f32 %v5747, %v6298
    %v6435 = vadd.f32 %v5748, %v6303
    %v6436 = vadd.f32 %v5749, %v6308
    %v6437 = vadd.f32 %v5750, %v6313
    %v6438 = vadd.f32 %v5751, %v6318
    %v6439 = vadd.f32 %v5752, %v6323
    %v6440 = vadd.f32 %v5753, %v6328
    %v6441 = vadd.f32 %v5754, %v6333
    %v6442 = vadd.f32 %v5755, %v6338
    %v6443 = vadd.f32 %v5756, %v6343
    %v6444 = vadd.f32 %v5757, %v6348
    %v6445 = vadd.f32 %v5758, %v6353
    %v6446 = vadd.f32 %v5759, %v6358
    %v6447 = vadd.f32 %v5760, %v6363
    %v6448 = vadd.f32 %v5761, %v6368
    %v6449 = vadd.f32 %v5762, %v6373
    %v6450 = vadd.f32 %v5763, %v6378
    %v6451 = vadd.f32 %v5764, %v6383
    %v6452 = vadd.f32 %v5765, %v6388
    %v6453 = vld [vmem:[%s0 + $0x1f8] sm:$0xff]
    %v6454 = vld [vmem:[%s0 + $0x200] sm:$0xff]
    %v6455 = vld [vmem:[%s0 + $0x208] sm:$0xff]
    %v6456 = vld [vmem:[%s0 + $0x210] sm:$0xff]
    %v6457 = vld [vmem:[%s0 + $0x218] sm:$0xff]
    %v6458 = vld [vmem:[%s0 + $0x220] sm:$0xff]
    %v6459 = vld [vmem:[%s0 + $0x228] sm:$0xff]
    %v6460 = vld [vmem:[%s0 + $0x230] sm:$0xff]
    %v6461 = vld [vmem:[%s0 + $0x238] sm:$0xff]
    %v6462 = vld [vmem:[%s0 + $0x240] sm:$0xff]
    %v6463 = vld [vmem:[%s0 + $0x248] sm:$0xff]
    %v6464 = vld [vmem:[%s0 + $0x250] sm:$0xff]
    %v6465 = vld [vmem:[%s0 + $0x258] sm:$0xff]
    %v6466 = vld [vmem:[%s0 + $0x260] sm:$0xff]
    %v6467 = vld [vmem:[%s0 + $0x268] sm:$0xff]
    %v6468 = vld [vmem:[%s0 + $0x270] sm:$0xff]
    %v6469 = vld [vmem:[%s0 + $0x278] sm:$0xff]
    %v6470 = vld [vmem:[%s0 + $0x280] sm:$0xff]
    %v6471 = vld [vmem:[%s0 + $0x288] sm:$0xff]
    %v6472 = vld [vmem:[%s0 + $0x290] sm:$0xff]
    %v6473 = vld [vmem:[%s0 + $0x298] sm:$0xff]
    %v6474 = vld [vmem:[%s0 + $0x2a0] sm:$0xff]
    %v6475 = vld [vmem:[%s0 + $0x2a8] sm:$0xff]
    %v6476 = vld [vmem:[%s0 + $0x2b0] sm:$0xff]
    %v6477 = vld [vmem:[%s0 + $0x2b8] sm:$0xff]
    %v6478 = vld [vmem:[%s0 + $0x2c0] sm:$0xff]
    %v6479 = vld [vmem:[%s0 + $0x2c8] sm:$0xff]
    %v6480 = vld [vmem:[%s0 + $0x2d0] sm:$0xff]
    %v6481 = vld [vmem:[%s0 + $0x2d8] sm:$0xff]
    %v6482 = vld [vmem:[%s0 + $0x2e0] sm:$0xff]
    %v6483 = vld [vmem:[%s0 + $0x2e8] sm:$0xff]
    %v6484 = vld [vmem:[%s0 + $0x2f0] sm:$0xff]
    %v6485 = vld [vmem:[%s0 + $0x2f8] sm:$0xff]
    %v6486 = vld [vmem:[%s0 + $0x300] sm:$0xff]
    %v6487 = vld [vmem:[%s0 + $0x308] sm:$0xff]
    %v6488 = vld [vmem:[%s0 + $0x310] sm:$0xff]
    %v6489 = vld [vmem:[%s0 + $0x318] sm:$0xff]
    %v6490 = vld [vmem:[%s0 + $0x320] sm:$0xff]
    %v6491 = vld [vmem:[%s0 + $0x328] sm:$0xff]
    %v6492 = vld [vmem:[%s0 + $0x330] sm:$0xff]
    %v6493 = vld [vmem:[%s0 + $0x338] sm:$0xff]
    %v6494 = vld [vmem:[%s0 + $0x340] sm:$0xff]
    %v6495 = vld [vmem:[%s0 + $0x348] sm:$0xff]
    %v6496 = vld [vmem:[%s0 + $0x350] sm:$0xff]
    %v6497 = vld [vmem:[%s0 + $0x358] sm:$0xff]
    %v6498 = vld [vmem:[%s0 + $0x360] sm:$0xff]
    %v6499 = vld [vmem:[%s0 + $0x368] sm:$0xff]
    %v6500 = vld [vmem:[%s0 + $0x370] sm:$0xff]
    %v6501 = vld [vmem:[%s0 + $0x378] sm:$0xff]
    %v6502 = vld [vmem:[%s0 + $0x380] sm:$0xff]
    %v6503 = vld [vmem:[%s0 + $0x388] sm:$0xff]
    %v6504 = vld [vmem:[%s0 + $0x390] sm:$0xff]
    %v6505 = vld [vmem:[%s0 + $0x398] sm:$0xff]
    %v6506 = vld [vmem:[%s0 + $0x3a0] sm:$0xff]
    %v6507 = vld [vmem:[%s0 + $0x3a8] sm:$0xff]
    %v6508 = vld [vmem:[%s0 + $0x3b0] sm:$0xff]
    %v6509 = vld [vmem:[%s0 + $0x3b8] sm:$0xff]
    %v6510 = vld [vmem:[%s0 + $0x3c0] sm:$0xff]
    %v6511 = vld [vmem:[%s0 + $0x3c8] sm:$0xff]
    %v6512 = vld [vmem:[%s0 + $0x3d0] sm:$0xff]
    %v6513 = vld [vmem:[%s0 + $0x3d8] sm:$0xff]
    %v6514 = vld [vmem:[%s0 + $0x3e0] sm:$0xff]
    %v6515 = vld [vmem:[%s1 + $0x40] sm:$0xff]
    %v6516 = vld [vmem:[%s1 + $0x48] sm:$0xff]
    %v6518 = vsel %vm191, %v6453, 0
    %v6521 = vsel %vm191, %v6454, 0
    %v6524 = vsel %vm191, %v6455, 0
    %v6527 = vsel %vm191, %v6456, 0
    %v6530 = vsel %vm191, %v6457, 0
    %v6533 = vsel %vm191, %v6458, 0
    %v6536 = vsel %vm191, %v6459, 0
    %v6539 = vsel %vm191, %v6460, 0
    %v6542 = vsel %vm191, %v6461, 0
    %v6545 = vsel %vm191, %v6462, 0
    %v6548 = vsel %vm191, %v6463, 0
    %v6551 = vsel %vm191, %v6464, 0
    %v6554 = vsel %vm191, %v6465, 0
    %v6557 = vsel %vm191, %v6466, 0
    %v6560 = vsel %vm191, %v6467, 0
    %v6563 = vsel %vm191, %v6468, 0
    %v6566 = vsel %vm191, %v6469, 0
    %v6569 = vsel %vm191, %v6470, 0
    %v6572 = vsel %vm191, %v6471, 0
    %v6575 = vsel %vm191, %v6472, 0
    %v6578 = vsel %vm191, %v6473, 0
    %v6581 = vsel %vm191, %v6474, 0
    %v6584 = vsel %vm191, %v6475, 0
    %v6587 = vsel %vm191, %v6476, 0
    %v6590 = vsel %vm191, %v6477, 0
    %v6593 = vsel %vm191, %v6478, 0
    %v6596 = vsel %vm191, %v6479, 0
    %v6599 = vsel %vm191, %v6480, 0
    %v6602 = vsel %vm191, %v6481, 0
    %v6605 = vsel %vm191, %v6482, 0
    %v6608 = vsel %vm191, %v6483, 0
    %v6611 = vsel %vm191, %v6484, 0
    %v6614 = vsel %vm191, %v6485, 0
    %v6617 = vsel %vm191, %v6486, 0
    %v6620 = vsel %vm191, %v6487, 0
    %v6623 = vsel %vm191, %v6488, 0
    %v6626 = vsel %vm191, %v6489, 0
    %v6629 = vsel %vm191, %v6490, 0
    %v6632 = vsel %vm191, %v6491, 0
    %v6635 = vsel %vm191, %v6492, 0
    %v6638 = vsel %vm191, %v6493, 0
    %v6641 = vsel %vm191, %v6494, 0
    %v6644 = vsel %vm191, %v6495, 0
    %v6647 = vsel %vm191, %v6496, 0
    %v6650 = vsel %vm191, %v6497, 0
    %v6653 = vsel %vm191, %v6498, 0
    %v6656 = vsel %vm191, %v6499, 0
    %v6659 = vsel %vm191, %v6500, 0
    %v6662 = vsel %vm191, %v6501, 0
    %v6665 = vsel %vm191, %v6502, 0
    %v6668 = vsel %vm191, %v6503, 0
    %v6671 = vsel %vm191, %v6504, 0
    %v6674 = vsel %vm191, %v6505, 0
    %v6677 = vsel %vm191, %v6506, 0
    %v6680 = vsel %vm191, %v6507, 0
    %v6683 = vsel %vm191, %v6508, 0
    %v6686 = vsel %vm191, %v6509, 0
    %v6689 = vsel %vm191, %v6510, 0
    %v6692 = vsel %vm191, %v6511, 0
    %v6695 = vsel %vm191, %v6512, 0
    %v6698 = vsel %vm191, %v6513, 0
    %v6701 = vsel %vm191, %v6514, 0
    %6703 = vmatprep.subr.mxu0 0.0
    %6704 = vmatpush1.msra.mxu0 %v6515
    %6705 = vmatprep.subr.mxu0 0.0
    %6706 = vmatpush1.msra.mxu0 %v6516
    %6707 = vmatprep.subr.mxu0 0.0
    %6708 = vmatpush1.msra.mxu0 0.0
    %6709 = vmatprep.subr.mxu0 0.0
    %6710 = vmatpush1.msra.mxu0 0.0
    %6711 = vmatprep.subr.mxu0 0.0
    %6712 = vmatpush1.msra.mxu0 0.0
    %6713 = vmatprep.subr.mxu0 0.0
    %6714 = vmatpush1.msra.mxu0 0.0
    %6715 = vmatprep.subr.mxu0 0.0
    %6716 = vmatpush1.msra.mxu0 0.0
    %6717 = vmatprep.subr.mxu0 0.0
    %6718 = vmatpush1.msra.mxu0 0.0
    %6719 = vmatprep.subr.mxu0 0.0
    %6720 = vmatpush1.msra.mxu0 0.0
    %6721 = vmatprep.subr.mxu0 0.0
    %6722 = vmatpush1.msra.mxu0 0.0
    %6723 = vmatprep.subr.mxu0 0.0
    %6724 = vmatpush1.msra.mxu0 0.0
    %6725 = vmatprep.subr.mxu0 0.0
    %6726 = vmatpush1.msra.mxu0 0.0
    %6727 = vmatprep.subr.mxu0 0.0
    %6728 = vmatpush1.msra.mxu0 0.0
    %6729 = vmatprep.subr.mxu0 0.0
    %6730 = vmatpush1.msra.mxu0 0.0
    %6731 = vmatprep.subr.mxu0 0.0
    %6732 = vmatpush1.msra.mxu0 0.0
    %6733 = vmatprep.subr.mxu0 0.0
    %6734 = vmatpush1.msra.mxu0 0.0
    %6735 = vmatprep.subr.mxu0 0.0
    %6736 = vmatpush1.msra.mxu0 0.0
    %6737 = vmatprep.subr.mxu0 0.0
    %6738 = vmatpush1.msra.mxu0 0.0
    %6739 = vmatprep.subr.mxu0 0.0
    %6740 = vmatpush1.msra.mxu0 0.0
    %6741 = vmatprep.subr.mxu0 0.0
    %6742 = vmatpush1.msra.mxu0 0.0
    %6743 = vmatprep.subr.mxu0 0.0
    %6744 = vmatpush1.msra.mxu0 0.0
    %6745 = vmatprep.subr.mxu0 0.0
    %6746 = vmatpush1.msra.mxu0 0.0
    %6747 = vmatprep.subr.mxu0 0.0
    %6748 = vmatpush1.msra.mxu0 0.0
    %6749 = vmatprep.subr.mxu0 0.0
    %6750 = vmatpush1.msra.mxu0 0.0
    %6751 = vmatprep.subr.mxu0 0.0
    %6752 = vmatpush1.msra.mxu0 0.0
    %6753 = vmatprep.subr.mxu0 0.0
    %6754 = vmatpush1.msra.mxu0 0.0
    %6755 = vmatprep.subr.mxu0 0.0
    %6756 = vmatpush1.msra.mxu0 0.0
    %6757 = vmatprep.subr.mxu0 0.0
    %6758 = vmatpush1.msra.mxu0 0.0
    %6759 = vmatprep.subr.mxu0 0.0
    %6760 = vmatpush1.msra.mxu0 0.0
    %6761 = vmatprep.subr.mxu0 0.0
    %6762 = vmatpush1.msra.mxu0 0.0
    %6763 = vmatprep.subr.mxu0 0.0
    %6764 = vmatpush1.msra.mxu0 0.0
    %6765 = vmatprep.subr.mxu0 0.0
    %6766 = vmatpush1.msra.mxu0 0.0
    %6767 = vmatprep.mubr.f32.mxu0 0.0
    %6768 = vmatmul.mubr.f32.gmra.mrb[0].mxu0 %v6518
    %v6769 = vpop.f32.mrb[0].mxu0
    %v6770 = vadd.f32 0.0, %v6769
    %v6771 = vpop.f32.mrb[0].mxu0
    %6772 = vmatprep.mubr.f32.mxu0 0.0
    %6773 = vmatmul.mubr.f32.gmra.mrb[0].mxu0 %v6521
    %v6774 = vpop.f32.mrb[0].mxu0
    %v6775 = vadd.f32 0.0, %v6774
    %v6776 = vpop.f32.mrb[0].mxu0
    %6777 = vmatprep.mubr.f32.mxu0 0.0
    %6778 = vmatmul.mubr.f32.gmra.mrb[0].mxu0 %v6524
    %v6779 = vpop.f32.mrb[0].mxu0
    %v6780 = vadd.f32 0.0, %v6779
    %v6781 = vpop.f32.mrb[0].mxu0
    %6782 = vmatprep.mubr.f32.mxu0 0.0
    %6783 = vmatmul.mubr.f32.gmra.mrb[0].mxu0 %v6527
    %v6784 = vpop.f32.mrb[0].mxu0
    %v6785 = vadd.f32 0.0, %v6784
    %v6786 = vpop.f32.mrb[0].mxu0
    %6787 = vmatprep.mubr.f32.mxu0 0.0
    %6788 = vmatmul.mubr.f32.gmra.mrb[0].mxu0 %v6530
    %v6789 = vpop.f32.mrb[0].mxu0
    %v6790 = vadd.f32 0.0, %v6789
    %v6791 = vpop.f32.mrb[0].mxu0
    %6792 = vmatprep.mubr.f32.mxu0 0.0
    %6793 = vmatmul.mubr.f32.gmra.mrb[0].mxu0 %v6533
    %v6794 = vpop.f32.mrb[0].mxu0
    %v6795 = vadd.f32 0.0, %v6794
    %v6796 = vpop.f32.mrb[0].mxu0
    %6797 = vmatprep.mubr.f32.mxu0 0.0
    %6798 = vmatmul.mubr.f32.gmra.mrb[0].mxu0 %v6536
    %v6799 = vpop.f32.mrb[0].mxu0
    %v6800 = vadd.f32 0.0, %v6799
    %v6801 = vpop.f32.mrb[0].mxu0
    %6802 = vmatprep.mubr.f32.mxu0 0.0
    %6803 = vmatmul.mubr.f32.gmra.mrb[0].mxu0 %v6539
    %v6804 = vpop.f32.mrb[0].mxu0
    %v6805 = vadd.f32 0.0, %v6804
    %v6806 = vpop.f32.mrb[0].mxu0
    %6807 = vmatprep.mubr.f32.mxu0 0.0
    %6808 = vmatmul.mubr.f32.gmra.mrb[0].mxu0 %v6542
    %v6809 = vpop.f32.mrb[0].mxu0
    %v6810 = vadd.f32 0.0, %v6809
    %v6811 = vpop.f32.mrb[0].mxu0
    %6812 = vmatprep.mubr.f32.mxu0 0.0
    %6813 = vmatmul.mubr.f32.gmra.mrb[0].mxu0 %v6545
    %v6814 = vpop.f32.mrb[0].mxu0
    %v6815 = vadd.f32 0.0, %v6814
    %v6816 = vpop.f32.mrb[0].mxu0
    %6817 = vmatprep.mubr.f32.mxu0 0.0
    %6818 = vmatmul.mubr.f32.gmra.mrb[0].mxu0 %v6548
    %v6819 = vpop.f32.mrb[0].mxu0
    %v6820 = vadd.f32 0.0, %v6819
    %v6821 = vpop.f32.mrb[0].mxu0
    %6822 = vmatprep.mubr.f32.mxu0 0.0
    %6823 = vmatmul.mubr.f32.gmra.mrb[0].mxu0 %v6551
    %v6824 = vpop.f32.mrb[0].mxu0
    %v6825 = vadd.f32 0.0, %v6824
    %v6826 = vpop.f32.mrb[0].mxu0
    %6827 = vmatprep.mubr.f32.mxu0 0.0
    %6828 = vmatmul.mubr.f32.gmra.mrb[0].mxu0 %v6554
    %v6829 = vpop.f32.mrb[0].mxu0
    %v6830 = vadd.f32 0.0, %v6829
    %v6831 = vpop.f32.mrb[0].mxu0
    %6832 = vmatprep.mubr.f32.mxu0 0.0
    %6833 = vmatmul.mubr.f32.gmra.mrb[0].mxu0 %v6557
    %v6834 = vpop.f32.mrb[0].mxu0
    %v6835 = vadd.f32 0.0, %v6834
    %v6836 = vpop.f32.mrb[0].mxu0
    %6837 = vmatprep.mubr.f32.mxu0 0.0
    %6838 = vmatmul.mubr.f32.gmra.mrb[0].mxu0 %v6560
    %v6839 = vpop.f32.mrb[0].mxu0
    %v6840 = vadd.f32 0.0, %v6839
    %v6841 = vpop.f32.mrb[0].mxu0
    %6842 = vmatprep.mubr.f32.mxu0 0.0
    %6843 = vmatmul.mubr.f32.gmra.mrb[0].mxu0 %v6563
    %v6844 = vpop.f32.mrb[0].mxu0
    %v6845 = vadd.f32 0.0, %v6844
    %v6846 = vpop.f32.mrb[0].mxu0
    %6847 = vmatprep.mubr.f32.mxu0 0.0
    %6848 = vmatmul.mubr.f32.gmra.mrb[0].mxu0 %v6566
    %v6849 = vpop.f32.mrb[0].mxu0
    %v6850 = vadd.f32 0.0, %v6849
    %v6851 = vpop.f32.mrb[0].mxu0
    %6852 = vmatprep.mubr.f32.mxu0 0.0
    %6853 = vmatmul.mubr.f32.gmra.mrb[0].mxu0 %v6569
    %v6854 = vpop.f32.mrb[0].mxu0
    %v6855 = vadd.f32 0.0, %v6854
    %v6856 = vpop.f32.mrb[0].mxu0
    %6857 = vmatprep.mubr.f32.mxu0 0.0
    %6858 = vmatmul.mubr.f32.gmra.mrb[0].mxu0 %v6572
    %v6859 = vpop.f32.mrb[0].mxu0
    %v6860 = vadd.f32 0.0, %v6859
    %v6861 = vpop.f32.mrb[0].mxu0
    %6862 = vmatprep.mubr.f32.mxu0 0.0
    %6863 = vmatmul.mubr.f32.gmra.mrb[0].mxu0 %v6575
    %v6864 = vpop.f32.mrb[0].mxu0
    %v6865 = vadd.f32 0.0, %v6864
    %v6866 = vpop.f32.mrb[0].mxu0
    %6867 = vmatprep.mubr.f32.mxu0 0.0
    %6868 = vmatmul.mubr.f32.gmra.mrb[0].mxu0 %v6578
    %v6869 = vpop.f32.mrb[0].mxu0
    %v6870 = vadd.f32 0.0, %v6869
    %v6871 = vpop.f32.mrb[0].mxu0
    %6872 = vmatprep.mubr.f32.mxu0 0.0
    %6873 = vmatmul.mubr.f32.gmra.mrb[0].mxu0 %v6581
    %v6874 = vpop.f32.mrb[0].mxu0
    %v6875 = vadd.f32 0.0, %v6874
    %v6876 = vpop.f32.mrb[0].mxu0
    %6877 = vmatprep.mubr.f32.mxu0 0.0
    %6878 = vmatmul.mubr.f32.gmra.mrb[0].mxu0 %v6584
    %v6879 = vpop.f32.mrb[0].mxu0
    %v6880 = vadd.f32 0.0, %v6879
    %v6881 = vpop.f32.mrb[0].mxu0
    %6882 = vmatprep.mubr.f32.mxu0 0.0
    %6883 = vmatmul.mubr.f32.gmra.mrb[0].mxu0 %v6587
    %v6884 = vpop.f32.mrb[0].mxu0
    %v6885 = vadd.f32 0.0, %v6884
    %v6886 = vpop.f32.mrb[0].mxu0
    %6887 = vmatprep.mubr.f32.mxu0 0.0
    %6888 = vmatmul.mubr.f32.gmra.mrb[0].mxu0 %v6590
    %v6889 = vpop.f32.mrb[0].mxu0
    %v6890 = vadd.f32 0.0, %v6889
    %v6891 = vpop.f32.mrb[0].mxu0
    %6892 = vmatprep.mubr.f32.mxu0 0.0
    %6893 = vmatmul.mubr.f32.gmra.mrb[0].mxu0 %v6593
    %v6894 = vpop.f32.mrb[0].mxu0
    %v6895 = vadd.f32 0.0, %v6894
    %v6896 = vpop.f32.mrb[0].mxu0
    %6897 = vmatprep.mubr.f32.mxu0 0.0
    %6898 = vmatmul.mubr.f32.gmra.mrb[0].mxu0 %v6596
    %v6899 = vpop.f32.mrb[0].mxu0
    %v6900 = vadd.f32 0.0, %v6899
    %v6901 = vpop.f32.mrb[0].mxu0
    %6902 = vmatprep.mubr.f32.mxu0 0.0
    %6903 = vmatmul.mubr.f32.gmra.mrb[0].mxu0 %v6599
    %v6904 = vpop.f32.mrb[0].mxu0
    %v6905 = vadd.f32 0.0, %v6904
    %v6906 = vpop.f32.mrb[0].mxu0
    %6907 = vmatprep.mubr.f32.mxu0 0.0
    %6908 = vmatmul.mubr.f32.gmra.mrb[0].mxu0 %v6602
    %v6909 = vpop.f32.mrb[0].mxu0
    %v6910 = vadd.f32 0.0, %v6909
    %v6911 = vpop.f32.mrb[0].mxu0
    %6912 = vmatprep.mubr.f32.mxu0 0.0
    %6913 = vmatmul.mubr.f32.gmra.mrb[0].mxu0 %v6605
    %v6914 = vpop.f32.mrb[0].mxu0
    %v6915 = vadd.f32 0.0, %v6914
    %v6916 = vpop.f32.mrb[0].mxu0
    %6917 = vmatprep.mubr.f32.mxu0 0.0
    %6918 = vmatmul.mubr.f32.gmra.mrb[0].mxu0 %v6608
    %v6919 = vpop.f32.mrb[0].mxu0
    %v6920 = vadd.f32 0.0, %v6919
    %v6921 = vpop.f32.mrb[0].mxu0
    %6922 = vmatprep.mubr.f32.mxu0 0.0
    %6923 = vmatmul.mubr.f32.gmra.mrb[0].mxu0 %v6611
    %v6924 = vpop.f32.mrb[0].mxu0
    %v6925 = vadd.f32 0.0, %v6924
    %v6926 = vpop.f32.mrb[0].mxu0
    %6927 = vmatprep.mubr.f32.mxu0 0.0
    %6928 = vmatmul.mubr.f32.gmra.mrb[0].mxu0 %v6614
    %v6929 = vpop.f32.mrb[0].mxu0
    %v6930 = vadd.f32 0.0, %v6929
    %v6931 = vpop.f32.mrb[0].mxu0
    %6932 = vmatprep.mubr.f32.mxu0 0.0
    %6933 = vmatmul.mubr.f32.gmra.mrb[0].mxu0 %v6617
    %v6934 = vpop.f32.mrb[0].mxu0
    %v6935 = vadd.f32 0.0, %v6934
    %v6936 = vpop.f32.mrb[0].mxu0
    %6937 = vmatprep.mubr.f32.mxu0 0.0
    %6938 = vmatmul.mubr.f32.gmra.mrb[0].mxu0 %v6620
    %v6939 = vpop.f32.mrb[0].mxu0
    %v6940 = vadd.f32 0.0, %v6939
    %v6941 = vpop.f32.mrb[0].mxu0
    %6942 = vmatprep.mubr.f32.mxu0 0.0
    %6943 = vmatmul.mubr.f32.gmra.mrb[0].mxu0 %v6623
    %v6944 = vpop.f32.mrb[0].mxu0
    %v6945 = vadd.f32 0.0, %v6944
    %v6946 = vpop.f32.mrb[0].mxu0
    %6947 = vmatprep.mubr.f32.mxu0 0.0
    %6948 = vmatmul.mubr.f32.gmra.mrb[0].mxu0 %v6626
    %v6949 = vpop.f32.mrb[0].mxu0
    %v6950 = vadd.f32 0.0, %v6949
    %v6951 = vpop.f32.mrb[0].mxu0
    %6952 = vmatprep.mubr.f32.mxu0 0.0
    %6953 = vmatmul.mubr.f32.gmra.mrb[0].mxu0 %v6629
    %v6954 = vpop.f32.mrb[0].mxu0
    %v6955 = vadd.f32 0.0, %v6954
    %v6956 = vpop.f32.mrb[0].mxu0
    %6957 = vmatprep.mubr.f32.mxu0 0.0
    %6958 = vmatmul.mubr.f32.gmra.mrb[0].mxu0 %v6632
    %v6959 = vpop.f32.mrb[0].mxu0
    %v6960 = vadd.f32 0.0, %v6959
    %v6961 = vpop.f32.mrb[0].mxu0
    %6962 = vmatprep.mubr.f32.mxu0 0.0
    %6963 = vmatmul.mubr.f32.gmra.mrb[0].mxu0 %v6635
    %v6964 = vpop.f32.mrb[0].mxu0
    %v6965 = vadd.f32 0.0, %v6964
    %v6966 = vpop.f32.mrb[0].mxu0
    %6967 = vmatprep.mubr.f32.mxu0 0.0
    %6968 = vmatmul.mubr.f32.gmra.mrb[0].mxu0 %v6638
    %v6969 = vpop.f32.mrb[0].mxu0
    %v6970 = vadd.f32 0.0, %v6969
    %v6971 = vpop.f32.mrb[0].mxu0
    %6972 = vmatprep.mubr.f32.mxu0 0.0
    %6973 = vmatmul.mubr.f32.gmra.mrb[0].mxu0 %v6641
    %v6974 = vpop.f32.mrb[0].mxu0
    %v6975 = vadd.f32 0.0, %v6974
    %v6976 = vpop.f32.mrb[0].mxu0
    %6977 = vmatprep.mubr.f32.mxu0 0.0
    %6978 = vmatmul.mubr.f32.gmra.mrb[0].mxu0 %v6644
    %v6979 = vpop.f32.mrb[0].mxu0
    %v6980 = vadd.f32 0.0, %v6979
    %v6981 = vpop.f32.mrb[0].mxu0
    %6982 = vmatprep.mubr.f32.mxu0 0.0
    %6983 = vmatmul.mubr.f32.gmra.mrb[0].mxu0 %v6647
    %v6984 = vpop.f32.mrb[0].mxu0
    %v6985 = vadd.f32 0.0, %v6984
    %v6986 = vpop.f32.mrb[0].mxu0
    %6987 = vmatprep.mubr.f32.mxu0 0.0
    %6988 = vmatmul.mubr.f32.gmra.mrb[0].mxu0 %v6650
    %v6989 = vpop.f32.mrb[0].mxu0
    %v6990 = vadd.f32 0.0, %v6989
    %v6991 = vpop.f32.mrb[0].mxu0
    %6992 = vmatprep.mubr.f32.mxu0 0.0
    %6993 = vmatmul.mubr.f32.gmra.mrb[0].mxu0 %v6653
    %v6994 = vpop.f32.mrb[0].mxu0
    %v6995 = vadd.f32 0.0, %v6994
    %v6996 = vpop.f32.mrb[0].mxu0
    %6997 = vmatprep.mubr.f32.mxu0 0.0
    %6998 = vmatmul.mubr.f32.gmra.mrb[0].mxu0 %v6656
    %v6999 = vpop.f32.mrb[0].mxu0
    %v7000 = vadd.f32 0.0, %v6999
    %v7001 = vpop.f32.mrb[0].mxu0
    %7002 = vmatprep.mubr.f32.mxu0 0.0
    %7003 = vmatmul.mubr.f32.gmra.mrb[0].mxu0 %v6659
    %v7004 = vpop.f32.mrb[0].mxu0
    %v7005 = vadd.f32 0.0, %v7004
    %v7006 = vpop.f32.mrb[0].mxu0
    %7007 = vmatprep.mubr.f32.mxu0 0.0
    %7008 = vmatmul.mubr.f32.gmra.mrb[0].mxu0 %v6662
    %v7009 = vpop.f32.mrb[0].mxu0
    %v7010 = vadd.f32 0.0, %v7009
    %v7011 = vpop.f32.mrb[0].mxu0
    %7012 = vmatprep.mubr.f32.mxu0 0.0
    %7013 = vmatmul.mubr.f32.gmra.mrb[0].mxu0 %v6665
    %v7014 = vpop.f32.mrb[0].mxu0
    %v7015 = vadd.f32 0.0, %v7014
    %v7016 = vpop.f32.mrb[0].mxu0
    %7017 = vmatprep.mubr.f32.mxu0 0.0
    %7018 = vmatmul.mubr.f32.gmra.mrb[0].mxu0 %v6668
    %v7019 = vpop.f32.mrb[0].mxu0
    %v7020 = vadd.f32 0.0, %v7019
    %v7021 = vpop.f32.mrb[0].mxu0
    %7022 = vmatprep.mubr.f32.mxu0 0.0
    %7023 = vmatmul.mubr.f32.gmra.mrb[0].mxu0 %v6671
    %v7024 = vpop.f32.mrb[0].mxu0
    %v7025 = vadd.f32 0.0, %v7024
    %v7026 = vpop.f32.mrb[0].mxu0
    %7027 = vmatprep.mubr.f32.mxu0 0.0
    %7028 = vmatmul.mubr.f32.gmra.mrb[0].mxu0 %v6674
    %v7029 = vpop.f32.mrb[0].mxu0
    %v7030 = vadd.f32 0.0, %v7029
    %v7031 = vpop.f32.mrb[0].mxu0
    %7032 = vmatprep.mubr.f32.mxu0 0.0
    %7033 = vmatmul.mubr.f32.gmra.mrb[0].mxu0 %v6677
    %v7034 = vpop.f32.mrb[0].mxu0
    %v7035 = vadd.f32 0.0, %v7034
    %v7036 = vpop.f32.mrb[0].mxu0
    %7037 = vmatprep.mubr.f32.mxu0 0.0
    %7038 = vmatmul.mubr.f32.gmra.mrb[0].mxu0 %v6680
    %v7039 = vpop.f32.mrb[0].mxu0
    %v7040 = vadd.f32 0.0, %v7039
    %v7041 = vpop.f32.mrb[0].mxu0
    %7042 = vmatprep.mubr.f32.mxu0 0.0
    %7043 = vmatmul.mubr.f32.gmra.mrb[0].mxu0 %v6683
    %v7044 = vpop.f32.mrb[0].mxu0
    %v7045 = vadd.f32 0.0, %v7044
    %v7046 = vpop.f32.mrb[0].mxu0
    %7047 = vmatprep.mubr.f32.mxu0 0.0
    %7048 = vmatmul.mubr.f32.gmra.mrb[0].mxu0 %v6686
    %v7049 = vpop.f32.mrb[0].mxu0
    %v7050 = vadd.f32 0.0, %v7049
    %v7051 = vpop.f32.mrb[0].mxu0
    %7052 = vmatprep.mubr.f32.mxu0 0.0
    %7053 = vmatmul.mubr.f32.gmra.mrb[0].mxu0 %v6689
    %v7054 = vpop.f32.mrb[0].mxu0
    %v7055 = vadd.f32 0.0, %v7054
    %v7056 = vpop.f32.mrb[0].mxu0
    %7057 = vmatprep.mubr.f32.mxu0 0.0
    %7058 = vmatmul.mubr.f32.gmra.mrb[0].mxu0 %v6692
    %v7059 = vpop.f32.mrb[0].mxu0
    %v7060 = vadd.f32 0.0, %v7059
    %v7061 = vpop.f32.mrb[0].mxu0
    %7062 = vmatprep.mubr.f32.mxu0 0.0
    %7063 = vmatmul.mubr.f32.gmra.mrb[0].mxu0 %v6695
    %v7064 = vpop.f32.mrb[0].mxu0
    %v7065 = vadd.f32 0.0, %v7064
    %v7066 = vpop.f32.mrb[0].mxu0
    %7067 = vmatprep.mubr.f32.mxu0 0.0
    %7068 = vmatmul.mubr.f32.gmra.mrb[0].mxu0 %v6698
    %v7069 = vpop.f32.mrb[0].mxu0
    %v7070 = vadd.f32 0.0, %v7069
    %v7071 = vpop.f32.mrb[0].mxu0
    %7072 = vmatprep.mubr.f32.mxu0 0.0
    %7073 = vmatmul.mubr.f32.gmra.mrb[0].mxu0 %v6701
    %v7074 = vpop.f32.mrb[0].mxu0
    %v7075 = vadd.f32 0.0, %v7074
    %v7076 = vpop.f32.mrb[0].mxu0
    %7077 = vdwg.mxu0
    %v7078 = vadd.f32 %v6391, %v6770
    %v7079 = vadd.f32 %v6392, %v6775
    %v7080 = vadd.f32 %v6393, %v6780
    %v7081 = vadd.f32 %v6394, %v6785
    %v7082 = vadd.f32 %v6395, %v6790
    %v7083 = vadd.f32 %v6396, %v6795
    %v7084 = vadd.f32 %v6397, %v6800
    %v7085 = vadd.f32 %v6398, %v6805
    %v7086 = vadd.f32 %v6399, %v6810
    %v7087 = vadd.f32 %v6400, %v6815
    %v7088 = vadd.f32 %v6401, %v6820
    %v7089 = vadd.f32 %v6402, %v6825
    %v7090 = vadd.f32 %v6403, %v6830
    %v7091 = vadd.f32 %v6404, %v6835
    %v7092 = vadd.f32 %v6405, %v6840
    %v7093 = vadd.f32 %v6406, %v6845
    %v7094 = vadd.f32 %v6407, %v6850
    %v7095 = vadd.f32 %v6408, %v6855
    %v7096 = vadd.f32 %v6409, %v6860
    %v7097 = vadd.f32 %v6410, %v6865
    %v7098 = vadd.f32 %v6411, %v6870
    %v7099 = vadd.f32 %v6412, %v6875
    %v7100 = vadd.f32 %v6413, %v6880
    %v7101 = vadd.f32 %v6414, %v6885
    %v7102 = vadd.f32 %v6415, %v6890
    %v7103 = vadd.f32 %v6416, %v6895
    %v7104 = vadd.f32 %v6417, %v6900
    %v7105 = vadd.f32 %v6418, %v6905
    %v7106 = vadd.f32 %v6419, %v6910
    %v7107 = vadd.f32 %v6420, %v6915
    %v7108 = vadd.f32 %v6421, %v6920
    %v7109 = vadd.f32 %v6422, %v6925
    %v7110 = vadd.f32 %v6423, %v6930
    %v7111 = vadd.f32 %v6424, %v6935
    %v7112 = vadd.f32 %v6425, %v6940
    %v7113 = vadd.f32 %v6426, %v6945
    %v7114 = vadd.f32 %v6427, %v6950
    %v7115 = vadd.f32 %v6428, %v6955
    %v7116 = vadd.f32 %v6429, %v6960
    %v7117 = vadd.f32 %v6430, %v6965
    %v7118 = vadd.f32 %v6431, %v6970
    %v7119 = vadd.f32 %v6432, %v6975
    %v7120 = vadd.f32 %v6433, %v6980
    %v7121 = vadd.f32 %v6434, %v6985
    %v7122 = vadd.f32 %v6435, %v6990
    %v7123 = vadd.f32 %v6436, %v6995
    %v7124 = vadd.f32 %v6437, %v7000
    %v7125 = vadd.f32 %v6438, %v7005
    %v7126 = vadd.f32 %v6439, %v7010
    %v7127 = vadd.f32 %v6440, %v7015
    %v7128 = vadd.f32 %v6441, %v7020
    %v7129 = vadd.f32 %v6442, %v7025
    %v7130 = vadd.f32 %v6443, %v7030
    %v7131 = vadd.f32 %v6444, %v7035
    %v7132 = vadd.f32 %v6445, %v7040
    %v7133 = vadd.f32 %v6446, %v7045
    %v7134 = vadd.f32 %v6447, %v7050
    %v7135 = vadd.f32 %v6448, %v7055
    %v7136 = vadd.f32 %v6449, %v7060
    %v7137 = vadd.f32 %v6450, %v7065
    %v7138 = vadd.f32 %v6451, %v7070
    %v7139 = vadd.f32 %v6452, %v7075
    %v7140 = vld [vmem:[%s2] sm:$0x1]
    %v7142 = vlaneseq
    %v7143 = vshrl.u32 %v7142, 7
    %v7144 = vsub.s32 0, %v7143
    %v7145 = vrot.slane %v7140, %v7144
    %v7147 = vadd.f32 %v7078, %v7145
    %v7148 = vadd.f32 %v7079, %v7145
    %v7149 = vadd.f32 %v7080, %v7145
    %v7150 = vadd.f32 %v7081, %v7145
    %v7151 = vadd.f32 %v7082, %v7145
    %v7152 = vadd.f32 %v7083, %v7145
    %v7153 = vadd.f32 %v7084, %v7145
    %v7154 = vadd.f32 %v7085, %v7145
    %v7155 = vadd.f32 %v7086, %v7145
    %v7156 = vadd.f32 %v7087, %v7145
    %v7157 = vadd.f32 %v7088, %v7145
    %v7158 = vadd.f32 %v7089, %v7145
    %v7159 = vadd.f32 %v7090, %v7145
    %v7160 = vadd.f32 %v7091, %v7145
    %v7161 = vadd.f32 %v7092, %v7145
    %v7162 = vadd.f32 %v7093, %v7145
    %v7163 = vadd.f32 %v7094, %v7145
    %v7164 = vadd.f32 %v7095, %v7145
    %v7165 = vadd.f32 %v7096, %v7145
    %v7166 = vadd.f32 %v7097, %v7145
    %v7167 = vadd.f32 %v7098, %v7145
    %v7168 = vadd.f32 %v7099, %v7145
    %v7169 = vadd.f32 %v7100, %v7145
    %v7170 = vadd.f32 %v7101, %v7145
    %v7171 = vadd.f32 %v7102, %v7145
    %v7172 = vadd.f32 %v7103, %v7145
    %v7173 = vadd.f32 %v7104, %v7145
    %v7174 = vadd.f32 %v7105, %v7145
    %v7175 = vadd.f32 %v7106, %v7145
    %v7176 = vadd.f32 %v7107, %v7145
    %v7177 = vadd.f32 %v7108, %v7145
    %v7178 = vadd.f32 %v7109, %v7145
    %v7179 = vadd.f32 %v7110, %v7145
    %v7180 = vadd.f32 %v7111, %v7145
    %v7181 = vadd.f32 %v7112, %v7145
    %v7182 = vadd.f32 %v7113, %v7145
    %v7183 = vadd.f32 %v7114, %v7145
    %v7184 = vadd.f32 %v7115, %v7145
    %v7185 = vadd.f32 %v7116, %v7145
    %v7186 = vadd.f32 %v7117, %v7145
    %v7187 = vadd.f32 %v7118, %v7145
    %v7188 = vadd.f32 %v7119, %v7145
    %v7189 = vadd.f32 %v7120, %v7145
    %v7190 = vadd.f32 %v7121, %v7145
    %v7191 = vadd.f32 %v7122, %v7145
    %v7192 = vadd.f32 %v7123, %v7145
    %v7193 = vadd.f32 %v7124, %v7145
    %v7194 = vadd.f32 %v7125, %v7145
    %v7195 = vadd.f32 %v7126, %v7145
    %v7196 = vadd.f32 %v7127, %v7145
    %v7197 = vadd.f32 %v7128, %v7145
    %v7198 = vadd.f32 %v7129, %v7145
    %v7199 = vadd.f32 %v7130, %v7145
    %v7200 = vadd.f32 %v7131, %v7145
    %v7201 = vadd.f32 %v7132, %v7145
    %v7202 = vadd.f32 %v7133, %v7145
    %v7203 = vadd.f32 %v7134, %v7145
    %v7204 = vadd.f32 %v7135, %v7145
    %v7205 = vadd.f32 %v7136, %v7145
    %v7206 = vadd.f32 %v7137, %v7145
    %v7207 = vadd.f32 %v7138, %v7145
    %v7208 = vadd.f32 %v7139, %v7145
    %7209 = vst.msk [vmem:[#allocation2 + $0x1f0] sm:$0xff] %vm3444, %v7147
    %7210 = vst.msk [vmem:[#allocation2 + $0x1f8] sm:$0xff] %vm3444, %v7148
    %7211 = vst.msk [vmem:[#allocation2 + $0x200] sm:$0xff] %vm3444, %v7149
    %7212 = vst.msk [vmem:[#allocation2 + $0x208] sm:$0xff] %vm3444, %v7150
    %7213 = vst.msk [vmem:[#allocation2 + $0x210] sm:$0xff] %vm3444, %v7151
    %7214 = vst.msk [vmem:[#allocation2 + $0x218] sm:$0xff] %vm3444, %v7152
    %7215 = vst.msk [vmem:[#allocation2 + $0x220] sm:$0xff] %vm3444, %v7153
    %7216 = vst.msk [vmem:[#allocation2 + $0x228] sm:$0xff] %vm3444, %v7154
    %7217 = vst.msk [vmem:[#allocation2 + $0x230] sm:$0xff] %vm3444, %v7155
    %7218 = vst.msk [vmem:[#allocation2 + $0x238] sm:$0xff] %vm3444, %v7156
    %7219 = vst.msk [vmem:[#allocation2 + $0x240] sm:$0xff] %vm3444, %v7157
    %7220 = vst.msk [vmem:[#allocation2 + $0x248] sm:$0xff] %vm3444, %v7158
    %7221 = vst.msk [vmem:[#allocation2 + $0x250] sm:$0xff] %vm3444, %v7159
    %7222 = vst.msk [vmem:[#allocation2 + $0x258] sm:$0xff] %vm3444, %v7160
    %7223 = vst.msk [vmem:[#allocation2 + $0x260] sm:$0xff] %vm3444, %v7161
    %7224 = vst.msk [vmem:[#allocation2 + $0x268] sm:$0xff] %vm3444, %v7162
    %7225 = vst.msk [vmem:[#allocation2 + $0x270] sm:$0xff] %vm3444, %v7163
    %7226 = vst.msk [vmem:[#allocation2 + $0x278] sm:$0xff] %vm3444, %v7164
    %7227 = vst.msk [vmem:[#allocation2 + $0x280] sm:$0xff] %vm3444, %v7165
    %7228 = vst.msk [vmem:[#allocation2 + $0x288] sm:$0xff] %vm3444, %v7166
    %7229 = vst.msk [vmem:[#allocation2 + $0x290] sm:$0xff] %vm3444, %v7167
    %7230 = vst.msk [vmem:[#allocation2 + $0x298] sm:$0xff] %vm3444, %v7168
    %7231 = vst.msk [vmem:[#allocation2 + $0x2a0] sm:$0xff] %vm3444, %v7169
    %7232 = vst.msk [vmem:[#allocation2 + $0x2a8] sm:$0xff] %vm3444, %v7170
    %7233 = vst.msk [vmem:[#allocation2 + $0x2b0] sm:$0xff] %vm3444, %v7171
    %7234 = vst.msk [vmem:[#allocation2 + $0x2b8] sm:$0xff] %vm3444, %v7172
    %7235 = vst.msk [vmem:[#allocation2 + $0x2c0] sm:$0xff] %vm3444, %v7173
    %7236 = vst.msk [vmem:[#allocation2 + $0x2c8] sm:$0xff] %vm3444, %v7174
    %7237 = vst.msk [vmem:[#allocation2 + $0x2d0] sm:$0xff] %vm3444, %v7175
    %7238 = vst.msk [vmem:[#allocation2 + $0x2d8] sm:$0xff] %vm3444, %v7176
    %7239 = vst.msk [vmem:[#allocation2 + $0x2e0] sm:$0xff] %vm3444, %v7177
    %7240 = vst.msk [vmem:[#allocation2 + $0x2e8] sm:$0xff] %vm3444, %v7178
    %7241 = vst.msk [vmem:[#allocation2 + $0x2f0] sm:$0xff] %vm3444, %v7179
    %7242 = vst.msk [vmem:[#allocation2 + $0x2f8] sm:$0xff] %vm3444, %v7180
    %7243 = vst.msk [vmem:[#allocation2 + $0x300] sm:$0xff] %vm3444, %v7181
    %7244 = vst.msk [vmem:[#allocation2 + $0x308] sm:$0xff] %vm3444, %v7182
    %7245 = vst.msk [vmem:[#allocation2 + $0x310] sm:$0xff] %vm3444, %v7183
    %7246 = vst.msk [vmem:[#allocation2 + $0x318] sm:$0xff] %vm3444, %v7184
    %7247 = vst.msk [vmem:[#allocation2 + $0x320] sm:$0xff] %vm3444, %v7185
    %7248 = vst.msk [vmem:[#allocation2 + $0x328] sm:$0xff] %vm3444, %v7186
    %7249 = vst.msk [vmem:[#allocation2 + $0x330] sm:$0xff] %vm3444, %v7187
    %7250 = vst.msk [vmem:[#allocation2 + $0x338] sm:$0xff] %vm3444, %v7188
    %7251 = vst.msk [vmem:[#allocation2 + $0x340] sm:$0xff] %vm3444, %v7189
    %7252 = vst.msk [vmem:[#allocation2 + $0x348] sm:$0xff] %vm3444, %v7190
    %7253 = vst.msk [vmem:[#allocation2 + $0x350] sm:$0xff] %vm3444, %v7191
    %7254 = vst.msk [vmem:[#allocation2 + $0x358] sm:$0xff] %vm3444, %v7192
    %7255 = vst.msk [vmem:[#allocation2 + $0x360] sm:$0xff] %vm3444, %v7193
    %7256 = vst.msk [vmem:[#allocation2 + $0x368] sm:$0xff] %vm3444, %v7194
    %7257 = vst.msk [vmem:[#allocation2 + $0x370] sm:$0xff] %vm3444, %v7195
    %7258 = vst.msk [vmem:[#allocation2 + $0x378] sm:$0xff] %vm3444, %v7196
    %7259 = vst.msk [vmem:[#allocation2 + $0x380] sm:$0xff] %vm3444, %v7197
    %7260 = vst.msk [vmem:[#allocation2 + $0x388] sm:$0xff] %vm3444, %v7198
    %7261 = vst.msk [vmem:[#allocation2 + $0x390] sm:$0xff] %vm3444, %v7199
    %7262 = vst.msk [vmem:[#allocation2 + $0x398] sm:$0xff] %vm3444, %v7200
    %7263 = vst.msk [vmem:[#allocation2 + $0x3a0] sm:$0xff] %vm3444, %v7201
    %7264 = vst.msk [vmem:[#allocation2 + $0x3a8] sm:$0xff] %vm3444, %v7202
    %7265 = vst.msk [vmem:[#allocation2 + $0x3b0] sm:$0xff] %vm3444, %v7203
    %7266 = vst.msk [vmem:[#allocation2 + $0x3b8] sm:$0xff] %vm3444, %v7204
    %7267 = vst.msk [vmem:[#allocation2 + $0x3c0] sm:$0xff] %vm3444, %v7205
    %7268 = vst.msk [vmem:[#allocation2 + $0x3c8] sm:$0xff] %vm3444, %v7206
    %7269 = vst.msk [vmem:[#allocation2 + $0x3d0] sm:$0xff] %vm3444, %v7207
    %7270 = vst.msk [vmem:[#allocation2 + $0x3d8] sm:$0xff] %vm3444, %v7208
    %v7271 = vsel %vm3444, %v7147, 0.0
    %v7272 = vsel %vm3444, %v7148, 0.0
    %v7273 = vadd.f32 %v7271, %v7272
    %v7274 = vsel %vm3444, %v7149, 0.0
    %v7275 = vadd.f32 %v7273, %v7274
    %v7276 = vsel %vm3444, %v7150, 0.0
    %v7277 = vadd.f32 %v7275, %v7276
    %v7278 = vsel %vm3444, %v7151, 0.0
    %v7279 = vadd.f32 %v7277, %v7278
    %v7280 = vsel %vm3444, %v7152, 0.0
    %v7281 = vadd.f32 %v7279, %v7280
    %v7282 = vsel %vm3444, %v7153, 0.0
    %v7283 = vadd.f32 %v7281, %v7282
    %v7284 = vsel %vm3444, %v7154, 0.0
    %v7285 = vadd.f32 %v7283, %v7284
    %v7286 = vsel %vm3444, %v7155, 0.0
    %v7287 = vadd.f32 %v7285, %v7286
    %v7288 = vsel %vm3444, %v7156, 0.0
    %v7289 = vadd.f32 %v7287, %v7288
    %v7290 = vsel %vm3444, %v7157, 0.0
    %v7291 = vadd.f32 %v7289, %v7290
    %v7292 = vsel %vm3444, %v7158, 0.0
    %v7293 = vadd.f32 %v7291, %v7292
    %v7294 = vsel %vm3444, %v7159, 0.0
    %v7295 = vadd.f32 %v7293, %v7294
    %v7296 = vsel %vm3444, %v7160, 0.0
    %v7297 = vadd.f32 %v7295, %v7296
    %v7298 = vsel %vm3444, %v7161, 0.0
    %v7299 = vadd.f32 %v7297, %v7298
    %v7300 = vsel %vm3444, %v7162, 0.0
    %v7301 = vadd.f32 %v7299, %v7300
    %v7302 = vsel %vm3444, %v7163, 0.0
    %v7303 = vadd.f32 %v7301, %v7302
    %v7304 = vsel %vm3444, %v7164, 0.0
    %v7305 = vadd.f32 %v7303, %v7304
    %v7306 = vsel %vm3444, %v7165, 0.0
    %v7307 = vadd.f32 %v7305, %v7306
    %v7308 = vsel %vm3444, %v7166, 0.0
    %v7309 = vadd.f32 %v7307, %v7308
    %v7310 = vsel %vm3444, %v7167, 0.0
    %v7311 = vadd.f32 %v7309, %v7310
    %v7312 = vsel %vm3444, %v7168, 0.0
    %v7313 = vadd.f32 %v7311, %v7312
    %v7314 = vsel %vm3444, %v7169, 0.0
    %v7315 = vadd.f32 %v7313, %v7314
    %v7316 = vsel %vm3444, %v7170, 0.0
    %v7317 = vadd.f32 %v7315, %v7316
    %v7318 = vsel %vm3444, %v7171, 0.0
    %v7319 = vadd.f32 %v7317, %v7318
    %v7320 = vsel %vm3444, %v7172, 0.0
    %v7321 = vadd.f32 %v7319, %v7320
    %v7322 = vsel %vm3444, %v7173, 0.0
    %v7323 = vadd.f32 %v7321, %v7322
    %v7324 = vsel %vm3444, %v7174, 0.0
    %v7325 = vadd.f32 %v7323, %v7324
    %v7326 = vsel %vm3444, %v7175, 0.0
    %v7327 = vadd.f32 %v7325, %v7326
    %v7328 = vsel %vm3444, %v7176, 0.0
    %v7329 = vadd.f32 %v7327, %v7328
    %v7330 = vsel %vm3444, %v7177, 0.0
    %v7331 = vadd.f32 %v7329, %v7330
    %v7332 = vsel %vm3444, %v7178, 0.0
    %v7333 = vadd.f32 %v7331, %v7332
    %v7334 = vsel %vm3444, %v7179, 0.0
    %v7335 = vadd.f32 %v7333, %v7334
    %v7336 = vsel %vm3444, %v7180, 0.0
    %v7337 = vadd.f32 %v7335, %v7336
    %v7338 = vsel %vm3444, %v7181, 0.0
    %v7339 = vadd.f32 %v7337, %v7338
    %v7340 = vsel %vm3444, %v7182, 0.0
    %v7341 = vadd.f32 %v7339, %v7340
    %v7342 = vsel %vm3444, %v7183, 0.0
    %v7343 = vadd.f32 %v7341, %v7342
    %v7344 = vsel %vm3444, %v7184, 0.0
    %v7345 = vadd.f32 %v7343, %v7344
    %v7346 = vsel %vm3444, %v7185, 0.0
    %v7347 = vadd.f32 %v7345, %v7346
    %v7348 = vsel %vm3444, %v7186, 0.0
    %v7349 = vadd.f32 %v7347, %v7348
    %v7350 = vsel %vm3444, %v7187, 0.0
    %v7351 = vadd.f32 %v7349, %v7350
    %v7352 = vsel %vm3444, %v7188, 0.0
    %v7353 = vadd.f32 %v7351, %v7352
    %v7354 = vsel %vm3444, %v7189, 0.0
    %v7355 = vadd.f32 %v7353, %v7354
    %v7356 = vsel %vm3444, %v7190, 0.0
    %v7357 = vadd.f32 %v7355, %v7356
    %v7358 = vsel %vm3444, %v7191, 0.0
    %v7359 = vadd.f32 %v7357, %v7358
    %v7360 = vsel %vm3444, %v7192, 0.0
    %v7361 = vadd.f32 %v7359, %v7360
    %v7362 = vsel %vm3444, %v7193, 0.0
    %v7363 = vadd.f32 %v7361, %v7362
    %v7364 = vsel %vm3444, %v7194, 0.0
    %v7365 = vadd.f32 %v7363, %v7364
    %v7366 = vsel %vm3444, %v7195, 0.0
    %v7367 = vadd.f32 %v7365, %v7366
    %v7368 = vsel %vm3444, %v7196, 0.0
    %v7369 = vadd.f32 %v7367, %v7368
    %v7370 = vsel %vm3444, %v7197, 0.0
    %v7371 = vadd.f32 %v7369, %v7370
    %v7372 = vsel %vm3444, %v7198, 0.0
    %v7373 = vadd.f32 %v7371, %v7372
    %v7374 = vsel %vm3444, %v7199, 0.0
    %v7375 = vadd.f32 %v7373, %v7374
    %v7376 = vsel %vm3444, %v7200, 0.0
    %v7377 = vadd.f32 %v7375, %v7376
    %v7378 = vsel %vm3444, %v7201, 0.0
    %v7379 = vadd.f32 %v7377, %v7378
    %v7380 = vsel %vm3444, %v7202, 0.0
    %v7381 = vadd.f32 %v7379, %v7380
    %v7382 = vsel %vm3444, %v7203, 0.0
    %v7383 = vadd.f32 %v7381, %v7382
    %v7384 = vsel %vm3444, %v7204, 0.0
    %v7385 = vadd.f32 %v7383, %v7384
    %v7386 = vsel %vm3444, %v7205, 0.0
    %v7387 = vadd.f32 %v7385, %v7386
    %v7388 = vsel %vm3444, %v7206, 0.0
    %v7389 = vadd.f32 %v7387, %v7388
    %v7390 = vsel %vm3444, %v7207, 0.0
    %v7391 = vadd.f32 %v7389, %v7390
    %v7392 = vsel %vm3444, %v7208, 0.0
    %v7393 = vadd.f32 %v7391, %v7392
    %v7394 = vrot.slane %v7393, 4
    %v7395 = vadd.f32 %v7393, %v7394
    %v7396 = vrot.slane %v7395, 2
    %v7397 = vadd.f32 %v7395, %v7396
    %v7398 = vrot.slane %v7397, 1
    %v7399 = vadd.f32 %v7397, %v7398
    %v7400 = vadd.f32 %v3636, %v7399
    %v7401 = vmul.f32 %v7147, %v7147
    %v7402 = vmul.f32 %v7148, %v7148
    %v7403 = vmul.f32 %v7149, %v7149
    %v7404 = vmul.f32 %v7150, %v7150
    %v7405 = vmul.f32 %v7151, %v7151
    %v7406 = vmul.f32 %v7152, %v7152
    %v7407 = vmul.f32 %v7153, %v7153
    %v7408 = vmul.f32 %v7154, %v7154
    %v7409 = vmul.f32 %v7155, %v7155
    %v7410 = vmul.f32 %v7156, %v7156
    %v7411 = vmul.f32 %v7157, %v7157
    %v7412 = vmul.f32 %v7158, %v7158
    %v7413 = vmul.f32 %v7159, %v7159
    %v7414 = vmul.f32 %v7160, %v7160
    %v7415 = vmul.f32 %v7161, %v7161
    %v7416 = vmul.f32 %v7162, %v7162
    %v7417 = vmul.f32 %v7163, %v7163
    %v7418 = vmul.f32 %v7164, %v7164
    %v7419 = vmul.f32 %v7165, %v7165
    %v7420 = vmul.f32 %v7166, %v7166
    %v7421 = vmul.f32 %v7167, %v7167
    %v7422 = vmul.f32 %v7168, %v7168
    %v7423 = vmul.f32 %v7169, %v7169
    %v7424 = vmul.f32 %v7170, %v7170
    %v7425 = vmul.f32 %v7171, %v7171
    %v7426 = vmul.f32 %v7172, %v7172
    %v7427 = vmul.f32 %v7173, %v7173
    %v7428 = vmul.f32 %v7174, %v7174
    %v7429 = vmul.f32 %v7175, %v7175
    %v7430 = vmul.f32 %v7176, %v7176
    %v7431 = vmul.f32 %v7177, %v7177
    %v7432 = vmul.f32 %v7178, %v7178
    %v7433 = vmul.f32 %v7179, %v7179
    %v7434 = vmul.f32 %v7180, %v7180
    %v7435 = vmul.f32 %v7181, %v7181
    %v7436 = vmul.f32 %v7182, %v7182
    %v7437 = vmul.f32 %v7183, %v7183
    %v7438 = vmul.f32 %v7184, %v7184
    %v7439 = vmul.f32 %v7185, %v7185
    %v7440 = vmul.f32 %v7186, %v7186
    %v7441 = vmul.f32 %v7187, %v7187
    %v7442 = vmul.f32 %v7188, %v7188
    %v7443 = vmul.f32 %v7189, %v7189
    %v7444 = vmul.f32 %v7190, %v7190
    %v7445 = vmul.f32 %v7191, %v7191
    %v7446 = vmul.f32 %v7192, %v7192
    %v7447 = vmul.f32 %v7193, %v7193
    %v7448 = vmul.f32 %v7194, %v7194
    %v7449 = vmul.f32 %v7195, %v7195
    %v7450 = vmul.f32 %v7196, %v7196
    %v7451 = vmul.f32 %v7197, %v7197
    %v7452 = vmul.f32 %v7198, %v7198
    %v7453 = vmul.f32 %v7199, %v7199
    %v7454 = vmul.f32 %v7200, %v7200
    %v7455 = vmul.f32 %v7201, %v7201
    %v7456 = vmul.f32 %v7202, %v7202
    %v7457 = vmul.f32 %v7203, %v7203
    %v7458 = vmul.f32 %v7204, %v7204
    %v7459 = vmul.f32 %v7205, %v7205
    %v7460 = vmul.f32 %v7206, %v7206
    %v7461 = vmul.f32 %v7207, %v7207
    %v7462 = vmul.f32 %v7208, %v7208
    %v7463 = vsel %vm3444, %v7401, 0.0
    %v7464 = vsel %vm3444, %v7402, 0.0
    %v7465 = vadd.f32 %v7463, %v7464
    %v7466 = vsel %vm3444, %v7403, 0.0
    %v7467 = vadd.f32 %v7465, %v7466
    %v7468 = vsel %vm3444, %v7404, 0.0
    %v7469 = vadd.f32 %v7467, %v7468
    %v7470 = vsel %vm3444, %v7405, 0.0
    %v7471 = vadd.f32 %v7469, %v7470
    %v7472 = vsel %vm3444, %v7406, 0.0
    %v7473 = vadd.f32 %v7471, %v7472
    %v7474 = vsel %vm3444, %v7407, 0.0
    %v7475 = vadd.f32 %v7473, %v7474
    %v7476 = vsel %vm3444, %v7408, 0.0
    %v7477 = vadd.f32 %v7475, %v7476
    %v7478 = vsel %vm3444, %v7409, 0.0
    %v7479 = vadd.f32 %v7477, %v7478
    %v7480 = vsel %vm3444, %v7410, 0.0
    %v7481 = vadd.f32 %v7479, %v7480
    %v7482 = vsel %vm3444, %v7411, 0.0
    %v7483 = vadd.f32 %v7481, %v7482
    %v7484 = vsel %vm3444, %v7412, 0.0
    %v7485 = vadd.f32 %v7483, %v7484
    %v7486 = vsel %vm3444, %v7413, 0.0
    %v7487 = vadd.f32 %v7485, %v7486
    %v7488 = vsel %vm3444, %v7414, 0.0
    %v7489 = vadd.f32 %v7487, %v7488
    %v7490 = vsel %vm3444, %v7415, 0.0
    %v7491 = vadd.f32 %v7489, %v7490
    %v7492 = vsel %vm3444, %v7416, 0.0
    %v7493 = vadd.f32 %v7491, %v7492
    %v7494 = vsel %vm3444, %v7417, 0.0
    %v7495 = vadd.f32 %v7493, %v7494
    %v7496 = vsel %vm3444, %v7418, 0.0
    %v7497 = vadd.f32 %v7495, %v7496
    %v7498 = vsel %vm3444, %v7419, 0.0
    %v7499 = vadd.f32 %v7497, %v7498
    %v7500 = vsel %vm3444, %v7420, 0.0
    %v7501 = vadd.f32 %v7499, %v7500
    %v7502 = vsel %vm3444, %v7421, 0.0
    %v7503 = vadd.f32 %v7501, %v7502
    %v7504 = vsel %vm3444, %v7422, 0.0
    %v7505 = vadd.f32 %v7503, %v7504
    %v7506 = vsel %vm3444, %v7423, 0.0
    %v7507 = vadd.f32 %v7505, %v7506
    %v7508 = vsel %vm3444, %v7424, 0.0
    %v7509 = vadd.f32 %v7507, %v7508
    %v7510 = vsel %vm3444, %v7425, 0.0
    %v7511 = vadd.f32 %v7509, %v7510
    %v7512 = vsel %vm3444, %v7426, 0.0
    %v7513 = vadd.f32 %v7511, %v7512
    %v7514 = vsel %vm3444, %v7427, 0.0
    %v7515 = vadd.f32 %v7513, %v7514
    %v7516 = vsel %vm3444, %v7428, 0.0
    %v7517 = vadd.f32 %v7515, %v7516
    %v7518 = vsel %vm3444, %v7429, 0.0
    %v7519 = vadd.f32 %v7517, %v7518
    %v7520 = vsel %vm3444, %v7430, 0.0
    %v7521 = vadd.f32 %v7519, %v7520
    %v7522 = vsel %vm3444, %v7431, 0.0
    %v7523 = vadd.f32 %v7521, %v7522
    %v7524 = vsel %vm3444, %v7432, 0.0
    %v7525 = vadd.f32 %v7523, %v7524
    %v7526 = vsel %vm3444, %v7433, 0.0
    %v7527 = vadd.f32 %v7525, %v7526
    %v7528 = vsel %vm3444, %v7434, 0.0
    %v7529 = vadd.f32 %v7527, %v7528
    %v7530 = vsel %vm3444, %v7435, 0.0
    %v7531 = vadd.f32 %v7529, %v7530
    %v7532 = vsel %vm3444, %v7436, 0.0
    %v7533 = vadd.f32 %v7531, %v7532
    %v7534 = vsel %vm3444, %v7437, 0.0
    %v7535 = vadd.f32 %v7533, %v7534
    %v7536 = vsel %vm3444, %v7438, 0.0
    %v7537 = vadd.f32 %v7535, %v7536
    %v7538 = vsel %vm3444, %v7439, 0.0
    %v7539 = vadd.f32 %v7537, %v7538
    %v7540 = vsel %vm3444, %v7440, 0.0
    %v7541 = vadd.f32 %v7539, %v7540
    %v7542 = vsel %vm3444, %v7441, 0.0
    %v7543 = vadd.f32 %v7541, %v7542
    %v7544 = vsel %vm3444, %v7442, 0.0
    %v7545 = vadd.f32 %v7543, %v7544
    %v7546 = vsel %vm3444, %v7443, 0.0
    %v7547 = vadd.f32 %v7545, %v7546
    %v7548 = vsel %vm3444, %v7444, 0.0
    %v7549 = vadd.f32 %v7547, %v7548
    %v7550 = vsel %vm3444, %v7445, 0.0
    %v7551 = vadd.f32 %v7549, %v7550
    %v7552 = vsel %vm3444, %v7446, 0.0
    %v7553 = vadd.f32 %v7551, %v7552
    %v7554 = vsel %vm3444, %v7447, 0.0
    %v7555 = vadd.f32 %v7553, %v7554
    %v7556 = vsel %vm3444, %v7448, 0.0
    %v7557 = vadd.f32 %v7555, %v7556
    %v7558 = vsel %vm3444, %v7449, 0.0
    %v7559 = vadd.f32 %v7557, %v7558
    %v7560 = vsel %vm3444, %v7450, 0.0
    %v7561 = vadd.f32 %v7559, %v7560
    %v7562 = vsel %vm3444, %v7451, 0.0
    %v7563 = vadd.f32 %v7561, %v7562
    %v7564 = vsel %vm3444, %v7452, 0.0
    %v7565 = vadd.f32 %v7563, %v7564
    %v7566 = vsel %vm3444, %v7453, 0.0
    %v7567 = vadd.f32 %v7565, %v7566
    %v7568 = vsel %vm3444, %v7454, 0.0
    %v7569 = vadd.f32 %v7567, %v7568
    %v7570 = vsel %vm3444, %v7455, 0.0
    %v7571 = vadd.f32 %v7569, %v7570
    %v7572 = vsel %vm3444, %v7456, 0.0
    %v7573 = vadd.f32 %v7571, %v7572
    %v7574 = vsel %vm3444, %v7457, 0.0
    %v7575 = vadd.f32 %v7573, %v7574
    %v7576 = vsel %vm3444, %v7458, 0.0
    %v7577 = vadd.f32 %v7575, %v7576
    %v7578 = vsel %vm3444, %v7459, 0.0
    %v7579 = vadd.f32 %v7577, %v7578
    %v7580 = vsel %vm3444, %v7460, 0.0
    %v7581 = vadd.f32 %v7579, %v7580
    %v7582 = vsel %vm3444, %v7461, 0.0
    %v7583 = vadd.f32 %v7581, %v7582
    %v7584 = vsel %vm3444, %v7462, 0.0
    %v7585 = vadd.f32 %v7583, %v7584
    %v7586 = vrot.slane %v7585, 4
    %v7587 = vadd.f32 %v7585, %v7586
    %v7588 = vrot.slane %v7587, 2
    %v7589 = vadd.f32 %v7587, %v7588
    %v7590 = vrot.slane %v7589, 1
    %v7591 = vadd.f32 %v7589, %v7590
    %v7592 = vadd.f32 %v3828, %v7591
    %v7593 = vmul.f32 %v7400, 0.0010080645
    %v7594 = vmul.f32 %v7592, 0.0010080645
    %v7595 = vmul.f32 %v7593, %v7593
    %v7596 = vsub.f32 %v7594, %v7595
    %v7597 = vld [vmem:[%s3] sm:$0x1]
    %v7598 = vadd.f32 %v7596, 1e-05
    %v7599 = vrsqrt.pop %v7598
    %v7600 = vmul.f32 %v7597, %v7599
    %v7601 = vld [vmem:[%s4] sm:$0x1]
    %v7602 = vmul.f32 %v7593, %v7600
    %v7603 = vsub.f32 %v7601, %v7602
    %v7604 = vld [vmem:[#allocation2] ss:$4 sm:$0xff]
    %s7605 = scalar_lea.vmem [#allocation2], 32
    %v7606 = vld [vmem:[%s7605] ss:$4 sm:$0xff]
    %s7607 = scalar_lea.vmem [#allocation2], 64
    %v7608 = vld [vmem:[%s7607] ss:$4 sm:$0xff]
    %s7609 = scalar_lea.vmem [#allocation2], 96
    %v7610 = vld [vmem:[%s7609] ss:$4 sm:$0xff]
    %s7611 = scalar_lea.vmem [#allocation2], 128
    %v7612 = vld [vmem:[%s7611] ss:$4 sm:$0xff]
    %s7613 = scalar_lea.vmem [#allocation2], 160
    %v7614 = vld [vmem:[%s7613] ss:$4 sm:$0xff]
    %s7615 = scalar_lea.vmem [#allocation2], 192
    %v7616 = vld [vmem:[%s7615] ss:$4 sm:$0xff]
    %s7617 = scalar_lea.vmem [#allocation2], 224
    %v7618 = vld [vmem:[%s7617] ss:$4 sm:$0xff]
    %s7619 = scalar_lea.vmem [#allocation2], 256
    %v7620 = vld [vmem:[%s7619] ss:$4 sm:$0xff]
    %s7621 = scalar_lea.vmem [#allocation2], 288
    %v7622 = vld [vmem:[%s7621] ss:$4 sm:$0xff]
    %s7623 = scalar_lea.vmem [#allocation2], 320
    %v7624 = vld [vmem:[%s7623] ss:$4 sm:$0xff]
    %s7625 = scalar_lea.vmem [#allocation2], 352
    %v7626 = vld [vmem:[%s7625] ss:$4 sm:$0xff]
    %s7627 = scalar_lea.vmem [#allocation2], 384
    %v7628 = vld [vmem:[%s7627] ss:$4 sm:$0xff]
    %s7629 = scalar_lea.vmem [#allocation2], 416
    %v7630 = vld [vmem:[%s7629] ss:$4 sm:$0xff]
    %s7631 = scalar_lea.vmem [#allocation2], 448
    %v7632 = vld [vmem:[%s7631] ss:$4 sm:$0xff]
    %s7633 = scalar_lea.vmem [#allocation2], 480
    %v7634 = vld [vmem:[%s7633] ss:$4 sm:$0xf]
    %v7636 = vlaneseq
    %v7637 = vshrl.u32 %v7636, 7
    %v7638 = vsub.s32 0, %v7637
    %v7639 = vrot.slane %v7600, %v7638
    %v7641 = vmul.f32 %v7604, %v7639
    %v7642 = vmul.f32 %v7606, %v7639
    %v7643 = vmul.f32 %v7608, %v7639
    %v7644 = vmul.f32 %v7610, %v7639
    %v7645 = vmul.f32 %v7612, %v7639
    %v7646 = vmul.f32 %v7614, %v7639
    %v7647 = vmul.f32 %v7616, %v7639
    %v7648 = vmul.f32 %v7618, %v7639
    %v7649 = vmul.f32 %v7620, %v7639
    %v7650 = vmul.f32 %v7622, %v7639
    %v7651 = vmul.f32 %v7624, %v7639
    %v7652 = vmul.f32 %v7626, %v7639
    %v7653 = vmul.f32 %v7628, %v7639
    %v7654 = vmul.f32 %v7630, %v7639
    %v7655 = vmul.f32 %v7632, %v7639
    %v7656 = vmul.f32 %v7634, %v7639
    %v7658 = vlaneseq
    %v7659 = vshrl.u32 %v7658, 7
    %v7660 = vsub.s32 0, %v7659
    %v7661 = vrot.slane %v7603, %v7660
    %v7663 = vadd.f32 %v7641, %v7661
    %v7664 = vadd.f32 %v7642, %v7661
    %v7665 = vadd.f32 %v7643, %v7661
    %v7666 = vadd.f32 %v7644, %v7661
    %v7667 = vadd.f32 %v7645, %v7661
    %v7668 = vadd.f32 %v7646, %v7661
    %v7669 = vadd.f32 %v7647, %v7661
    %v7670 = vadd.f32 %v7648, %v7661
    %v7671 = vadd.f32 %v7649, %v7661
    %v7672 = vadd.f32 %v7650, %v7661
    %v7673 = vadd.f32 %v7651, %v7661
    %v7674 = vadd.f32 %v7652, %v7661
    %v7675 = vadd.f32 %v7653, %v7661
    %v7676 = vadd.f32 %v7654, %v7661
    %v7677 = vadd.f32 %v7655, %v7661
    %v7678 = vadd.f32 %v7656, %v7661
    %v7679 = vmax.f32 %v7663, 0.0
    %v7680 = vmax.f32 %v7664, 0.0
    %v7681 = vmax.f32 %v7665, 0.0
    %v7682 = vmax.f32 %v7666, 0.0
    %v7683 = vmax.f32 %v7667, 0.0
    %v7684 = vmax.f32 %v7668, 0.0
    %v7685 = vmax.f32 %v7669, 0.0
    %v7686 = vmax.f32 %v7670, 0.0
    %v7687 = vmax.f32 %v7671, 0.0
    %v7688 = vmax.f32 %v7672, 0.0
    %v7689 = vmax.f32 %v7673, 0.0
    %v7690 = vmax.f32 %v7674, 0.0
    %v7691 = vmax.f32 %v7675, 0.0
    %v7692 = vmax.f32 %v7676, 0.0
    %v7693 = vmax.f32 %v7677, 0.0
    %v7694 = vmax.f32 %v7678, 0.0
    %s7695 = scalar_lea.vmem [#allocation2], 1
    %v7696 = vld [vmem:[%s7695] ss:$4 sm:$0xff]
    %s7697 = scalar_lea.vmem [#allocation2], 33
    %v7698 = vld [vmem:[%s7697] ss:$4 sm:$0xff]
    %s7699 = scalar_lea.vmem [#allocation2], 65
    %v7700 = vld [vmem:[%s7699] ss:$4 sm:$0xff]
    %s7701 = scalar_lea.vmem [#allocation2], 97
    %v7702 = vld [vmem:[%s7701] ss:$4 sm:$0xff]
    %s7703 = scalar_lea.vmem [#allocation2], 129
    %v7704 = vld [vmem:[%s7703] ss:$4 sm:$0xff]
    %s7705 = scalar_lea.vmem [#allocation2], 161
    %v7706 = vld [vmem:[%s7705] ss:$4 sm:$0xff]
    %s7707 = scalar_lea.vmem [#allocation2], 193
    %v7708 = vld [vmem:[%s7707] ss:$4 sm:$0xff]
    %s7709 = scalar_lea.vmem [#allocation2], 225
    %v7710 = vld [vmem:[%s7709] ss:$4 sm:$0xff]
    %s7711 = scalar_lea.vmem [#allocation2], 257
    %v7712 = vld [vmem:[%s7711] ss:$4 sm:$0xff]
    %s7713 = scalar_lea.vmem [#allocation2], 289
    %v7714 = vld [vmem:[%s7713] ss:$4 sm:$0xff]
    %s7715 = scalar_lea.vmem [#allocation2], 321
    %v7716 = vld [vmem:[%s7715] ss:$4 sm:$0xff]
    %s7717 = scalar_lea.vmem [#allocation2], 353
    %v7718 = vld [vmem:[%s7717] ss:$4 sm:$0xff]
    %s7719 = scalar_lea.vmem [#allocation2], 385
    %v7720 = vld [vmem:[%s7719] ss:$4 sm:$0xff]
    %s7721 = scalar_lea.vmem [#allocation2], 417
    %v7722 = vld [vmem:[%s7721] ss:$4 sm:$0xff]
    %s7723 = scalar_lea.vmem [#allocation2], 449
    %v7724 = vld [vmem:[%s7723] ss:$4 sm:$0xff]
    %s7725 = scalar_lea.vmem [#allocation2], 481
    %v7726 = vld [vmem:[%s7725] ss:$4 sm:$0xf]
    %v7727 = vmul.f32 %v7696, %v7639
    %v7728 = vmul.f32 %v7698, %v7639
    %v7729 = vmul.f32 %v7700, %v7639
    %v7730 = vmul.f32 %v7702, %v7639
    %v7731 = vmul.f32 %v7704, %v7639
    %v7732 = vmul.f32 %v7706, %v7639
    %v7733 = vmul.f32 %v7708, %v7639
    %v7734 = vmul.f32 %v7710, %v7639
    %v7735 = vmul.f32 %v7712, %v7639
    %v7736 = vmul.f32 %v7714, %v7639
    %v7737 = vmul.f32 %v7716, %v7639
    %v7738 = vmul.f32 %v7718, %v7639
    %v7739 = vmul.f32 %v7720, %v7639
    %v7740 = vmul.f32 %v7722, %v7639
    %v7741 = vmul.f32 %v7724, %v7639
    %v7742 = vmul.f32 %v7726, %v7639
    %v7743 = vadd.f32 %v7727, %v7661
    %v7744 = vadd.f32 %v7728, %v7661
    %v7745 = vadd.f32 %v7729, %v7661
    %v7746 = vadd.f32 %v7730, %v7661
    %v7747 = vadd.f32 %v7731, %v7661
    %v7748 = vadd.f32 %v7732, %v7661
    %v7749 = vadd.f32 %v7733, %v7661
    %v7750 = vadd.f32 %v7734, %v7661
    %v7751 = vadd.f32 %v7735, %v7661
    %v7752 = vadd.f32 %v7736, %v7661
    %v7753 = vadd.f32 %v7737, %v7661
    %v7754 = vadd.f32 %v7738, %v7661
    %v7755 = vadd.f32 %v7739, %v7661
    %v7756 = vadd.f32 %v7740, %v7661
    %v7757 = vadd.f32 %v7741, %v7661
    %v7758 = vadd.f32 %v7742, %v7661
    %v7759 = vmax.f32 %v7743, 0.0
    %v7760 = vmax.f32 %v7744, 0.0
    %v7761 = vmax.f32 %v7745, 0.0
    %v7762 = vmax.f32 %v7746, 0.0
    %v7763 = vmax.f32 %v7747, 0.0
    %v7764 = vmax.f32 %v7748, 0.0
    %v7765 = vmax.f32 %v7749, 0.0
    %v7766 = vmax.f32 %v7750, 0.0
    %v7767 = vmax.f32 %v7751, 0.0
    %v7768 = vmax.f32 %v7752, 0.0
    %v7769 = vmax.f32 %v7753, 0.0
    %v7770 = vmax.f32 %v7754, 0.0
    %v7771 = vmax.f32 %v7755, 0.0
    %v7772 = vmax.f32 %v7756, 0.0
    %v7773 = vmax.f32 %v7757, 0.0
    %v7774 = vmax.f32 %v7758, 0.0
    %v7775 = vmax.f32 %v7679, %v7759
    %v7776 = vmax.f32 %v7680, %v7760
    %v7777 = vmax.f32 %v7681, %v7761
    %v7778 = vmax.f32 %v7682, %v7762
    %v7779 = vmax.f32 %v7683, %v7763
    %v7780 = vmax.f32 %v7684, %v7764
    %v7781 = vmax.f32 %v7685, %v7765
    %v7782 = vmax.f32 %v7686, %v7766
    %v7783 = vmax.f32 %v7687, %v7767
    %v7784 = vmax.f32 %v7688, %v7768
    %v7785 = vmax.f32 %v7689, %v7769
    %v7786 = vmax.f32 %v7690, %v7770
    %v7787 = vmax.f32 %v7691, %v7771
    %v7788 = vmax.f32 %v7692, %v7772
    %v7789 = vmax.f32 %v7693, %v7773
    %v7790 = vmax.f32 %v7694, %v7774
    %s7791 = scalar_lea.vmem [#allocation2], 2
    %v7792 = vld [vmem:[%s7791] ss:$4 sm:$0xff]
    %s7793 = scalar_lea.vmem [#allocation2], 34
    %v7794 = vld [vmem:[%s7793] ss:$4 sm:$0xff]
    %s7795 = scalar_lea.vmem [#allocation2], 66
    %v7796 = vld [vmem:[%s7795] ss:$4 sm:$0xff]
    %s7797 = scalar_lea.vmem [#allocation2], 98
    %v7798 = vld [vmem:[%s7797] ss:$4 sm:$0xff]
    %s7799 = scalar_lea.vmem [#allocation2], 130
    %v7800 = vld [vmem:[%s7799] ss:$4 sm:$0xff]
    %s7801 = scalar_lea.vmem [#allocation2], 162
    %v7802 = vld [vmem:[%s7801] ss:$4 sm:$0xff]
    %s7803 = scalar_lea.vmem [#allocation2], 194
    %v7804 = vld [vmem:[%s7803] ss:$4 sm:$0xff]
    %s7805 = scalar_lea.vmem [#allocation2], 226
    %v7806 = vld [vmem:[%s7805] ss:$4 sm:$0xff]
    %s7807 = scalar_lea.vmem [#allocation2], 258
    %v7808 = vld [vmem:[%s7807] ss:$4 sm:$0xff]
    %s7809 = scalar_lea.vmem [#allocation2], 290
    %v7810 = vld [vmem:[%s7809] ss:$4 sm:$0xff]
    %s7811 = scalar_lea.vmem [#allocation2], 322
    %v7812 = vld [vmem:[%s7811] ss:$4 sm:$0xff]
    %s7813 = scalar_lea.vmem [#allocation2], 354
    %v7814 = vld [vmem:[%s7813] ss:$4 sm:$0xff]
    %s7815 = scalar_lea.vmem [#allocation2], 386
    %v7816 = vld [vmem:[%s7815] ss:$4 sm:$0xff]
    %s7817 = scalar_lea.vmem [#allocation2], 418
    %v7818 = vld [vmem:[%s7817] ss:$4 sm:$0xff]
    %s7819 = scalar_lea.vmem [#allocation2], 450
    %v7820 = vld [vmem:[%s7819] ss:$4 sm:$0xff]
    %s7821 = scalar_lea.vmem [#allocation2], 482
    %v7822 = vld [vmem:[%s7821] ss:$4 sm:$0xf]
    %v7823 = vmul.f32 %v7792, %v7639
    %v7824 = vmul.f32 %v7794, %v7639
    %v7825 = vmul.f32 %v7796, %v7639
    %v7826 = vmul.f32 %v7798, %v7639
    %v7827 = vmul.f32 %v7800, %v7639
    %v7828 = vmul.f32 %v7802, %v7639
    %v7829 = vmul.f32 %v7804, %v7639
    %v7830 = vmul.f32 %v7806, %v7639
    %v7831 = vmul.f32 %v7808, %v7639
    %v7832 = vmul.f32 %v7810, %v7639
    %v7833 = vmul.f32 %v7812, %v7639
    %v7834 = vmul.f32 %v7814, %v7639
    %v7835 = vmul.f32 %v7816, %v7639
    %v7836 = vmul.f32 %v7818, %v7639
    %v7837 = vmul.f32 %v7820, %v7639
    %v7838 = vmul.f32 %v7822, %v7639
    %v7839 = vadd.f32 %v7823, %v7661
    %v7840 = vadd.f32 %v7824, %v7661
    %v7841 = vadd.f32 %v7825, %v7661
    %v7842 = vadd.f32 %v7826, %v7661
    %v7843 = vadd.f32 %v7827, %v7661
    %v7844 = vadd.f32 %v7828, %v7661
    %v7845 = vadd.f32 %v7829, %v7661
    %v7846 = vadd.f32 %v7830, %v7661
    %v7847 = vadd.f32 %v7831, %v7661
    %v7848 = vadd.f32 %v7832, %v7661
    %v7849 = vadd.f32 %v7833, %v7661
    %v7850 = vadd.f32 %v7834, %v7661
    %v7851 = vadd.f32 %v7835, %v7661
    %v7852 = vadd.f32 %v7836, %v7661
    %v7853 = vadd.f32 %v7837, %v7661
    %v7854 = vadd.f32 %v7838, %v7661
    %v7855 = vmax.f32 %v7839, 0.0
    %v7856 = vmax.f32 %v7840, 0.0
    %v7857 = vmax.f32 %v7841, 0.0
    %v7858 = vmax.f32 %v7842, 0.0
    %v7859 = vmax.f32 %v7843, 0.0
    %v7860 = vmax.f32 %v7844, 0.0
    %v7861 = vmax.f32 %v7845, 0.0
    %v7862 = vmax.f32 %v7846, 0.0
    %v7863 = vmax.f32 %v7847, 0.0
    %v7864 = vmax.f32 %v7848, 0.0
    %v7865 = vmax.f32 %v7849, 0.0
    %v7866 = vmax.f32 %v7850, 0.0
    %v7867 = vmax.f32 %v7851, 0.0
    %v7868 = vmax.f32 %v7852, 0.0
    %v7869 = vmax.f32 %v7853, 0.0
    %v7870 = vmax.f32 %v7854, 0.0
    %v7871 = vmax.f32 %v7775, %v7855
    %v7872 = vmax.f32 %v7776, %v7856
    %v7873 = vmax.f32 %v7777, %v7857
    %v7874 = vmax.f32 %v7778, %v7858
    %v7875 = vmax.f32 %v7779, %v7859
    %v7876 = vmax.f32 %v7780, %v7860
    %v7877 = vmax.f32 %v7781, %v7861
    %v7878 = vmax.f32 %v7782, %v7862
    %v7879 = vmax.f32 %v7783, %v7863
    %v7880 = vmax.f32 %v7784, %v7864
    %v7881 = vmax.f32 %v7785, %v7865
    %v7882 = vmax.f32 %v7786, %v7866
    %v7883 = vmax.f32 %v7787, %v7867
    %v7884 = vmax.f32 %v7788, %v7868
    %v7885 = vmax.f32 %v7789, %v7869
    %v7886 = vmax.f32 %v7790, %v7870
    %s7887 = scalar_lea.vmem [#allocation2], 3
    %v7888 = vld [vmem:[%s7887] ss:$4 sm:$0xff]
    %s7889 = scalar_lea.vmem [#allocation2], 35
    %v7890 = vld [vmem:[%s7889] ss:$4 sm:$0xff]
    %s7891 = scalar_lea.vmem [#allocation2], 67
    %v7892 = vld [vmem:[%s7891] ss:$4 sm:$0xff]
    %s7893 = scalar_lea.vmem [#allocation2], 99
    %v7894 = vld [vmem:[%s7893] ss:$4 sm:$0xff]
    %s7895 = scalar_lea.vmem [#allocation2], 131
    %v7896 = vld [vmem:[%s7895] ss:$4 sm:$0xff]
    %s7897 = scalar_lea.vmem [#allocation2], 163
    %v7898 = vld [vmem:[%s7897] ss:$4 sm:$0xff]
    %s7899 = scalar_lea.vmem [#allocation2], 195
    %v7900 = vld [vmem:[%s7899] ss:$4 sm:$0xff]
    %s7901 = scalar_lea.vmem [#allocation2], 227
    %v7902 = vld [vmem:[%s7901] ss:$4 sm:$0xff]
    %s7903 = scalar_lea.vmem [#allocation2], 259
    %v7904 = vld [vmem:[%s7903] ss:$4 sm:$0xff]
    %s7905 = scalar_lea.vmem [#allocation2], 291
    %v7906 = vld [vmem:[%s7905] ss:$4 sm:$0xff]
    %s7907 = scalar_lea.vmem [#allocation2], 323
    %v7908 = vld [vmem:[%s7907] ss:$4 sm:$0xff]
    %s7909 = scalar_lea.vmem [#allocation2], 355
    %v7910 = vld [vmem:[%s7909] ss:$4 sm:$0xff]
    %s7911 = scalar_lea.vmem [#allocation2], 387
    %v7912 = vld [vmem:[%s7911] ss:$4 sm:$0xff]
    %s7913 = scalar_lea.vmem [#allocation2], 419
    %v7914 = vld [vmem:[%s7913] ss:$4 sm:$0xff]
    %s7915 = scalar_lea.vmem [#allocation2], 451
    %v7916 = vld [vmem:[%s7915] ss:$4 sm:$0xff]
    %s7917 = scalar_lea.vmem [#allocation2], 483
    %v7918 = vld [vmem:[%s7917] ss:$4 sm:$0xf]
    %v7919 = vmul.f32 %v7888, %v7639
    %v7920 = vmul.f32 %v7890, %v7639
    %v7921 = vmul.f32 %v7892, %v7639
    %v7922 = vmul.f32 %v7894, %v7639
    %v7923 = vmul.f32 %v7896, %v7639
    %v7924 = vmul.f32 %v7898, %v7639
    %v7925 = vmul.f32 %v7900, %v7639
    %v7926 = vmul.f32 %v7902, %v7639
    %v7927 = vmul.f32 %v7904, %v7639
    %v7928 = vmul.f32 %v7906, %v7639
    %v7929 = vmul.f32 %v7908, %v7639
    %v7930 = vmul.f32 %v7910, %v7639
    %v7931 = vmul.f32 %v7912, %v7639
    %v7932 = vmul.f32 %v7914, %v7639
    %v7933 = vmul.f32 %v7916, %v7639
    %v7934 = vmul.f32 %v7918, %v7639
    %v7935 = vadd.f32 %v7919, %v7661
    %v7936 = vadd.f32 %v7920, %v7661
    %v7937 = vadd.f32 %v7921, %v7661
    %v7938 = vadd.f32 %v7922, %v7661
    %v7939 = vadd.f32 %v7923, %v7661
    %v7940 = vadd.f32 %v7924, %v7661
    %v7941 = vadd.f32 %v7925, %v7661
    %v7942 = vadd.f32 %v7926, %v7661
    %v7943 = vadd.f32 %v7927, %v7661
    %v7944 = vadd.f32 %v7928, %v7661
    %v7945 = vadd.f32 %v7929, %v7661
    %v7946 = vadd.f32 %v7930, %v7661
    %v7947 = vadd.f32 %v7931, %v7661
    %v7948 = vadd.f32 %v7932, %v7661
    %v7949 = vadd.f32 %v7933, %v7661
    %v7950 = vadd.f32 %v7934, %v7661
    %v7951 = vmax.f32 %v7935, 0.0
    %v7952 = vmax.f32 %v7936, 0.0
    %v7953 = vmax.f32 %v7937, 0.0
    %v7954 = vmax.f32 %v7938, 0.0
    %v7955 = vmax.f32 %v7939, 0.0
    %v7956 = vmax.f32 %v7940, 0.0
    %v7957 = vmax.f32 %v7941, 0.0
    %v7958 = vmax.f32 %v7942, 0.0
    %v7959 = vmax.f32 %v7943, 0.0
    %v7960 = vmax.f32 %v7944, 0.0
    %v7961 = vmax.f32 %v7945, 0.0
    %v7962 = vmax.f32 %v7946, 0.0
    %v7963 = vmax.f32 %v7947, 0.0
    %v7964 = vmax.f32 %v7948, 0.0
    %v7965 = vmax.f32 %v7949, 0.0
    %v7966 = vmax.f32 %v7950, 0.0
    %v7967 = vmax.f32 %v7871, %v7951
    %v7968 = vmax.f32 %v7872, %v7952
    %v7969 = vmax.f32 %v7873, %v7953
    %v7970 = vmax.f32 %v7874, %v7954
    %v7971 = vmax.f32 %v7875, %v7955
    %v7972 = vmax.f32 %v7876, %v7956
    %v7973 = vmax.f32 %v7877, %v7957
    %v7974 = vmax.f32 %v7878, %v7958
    %v7975 = vmax.f32 %v7879, %v7959
    %v7976 = vmax.f32 %v7880, %v7960
    %v7977 = vmax.f32 %v7881, %v7961
    %v7978 = vmax.f32 %v7882, %v7962
    %v7979 = vmax.f32 %v7883, %v7963
    %v7980 = vmax.f32 %v7884, %v7964
    %v7981 = vmax.f32 %v7885, %v7965
    %v7982 = vmax.f32 %v7886, %v7966
    %7983 = vst.msk [vmem:[#allocation3] sm:$0xff] %vm3444, %v7967
    %7984 = vst.msk [vmem:[#allocation3 + $0x8] sm:$0xff] %vm3444, %v7968
    %7985 = vst.msk [vmem:[#allocation3 + $0x10] sm:$0xff] %vm3444, %v7969
    %7986 = vst.msk [vmem:[#allocation3 + $0x18] sm:$0xff] %vm3444, %v7970
    %7987 = vst.msk [vmem:[#allocation3 + $0x20] sm:$0xff] %vm3444, %v7971
    %7988 = vst.msk [vmem:[#allocation3 + $0x28] sm:$0xff] %vm3444, %v7972
    %7989 = vst.msk [vmem:[#allocation3 + $0x30] sm:$0xff] %vm3444, %v7973
    %7990 = vst.msk [vmem:[#allocation3 + $0x38] sm:$0xff] %vm3444, %v7974
    %7991 = vst.msk [vmem:[#allocation3 + $0x40] sm:$0xff] %vm3444, %v7975
    %7992 = vst.msk [vmem:[#allocation3 + $0x48] sm:$0xff] %vm3444, %v7976
    %7993 = vst.msk [vmem:[#allocation3 + $0x50] sm:$0xff] %vm3444, %v7977
    %7994 = vst.msk [vmem:[#allocation3 + $0x58] sm:$0xff] %vm3444, %v7978
    %7995 = vst.msk [vmem:[#allocation3 + $0x60] sm:$0xff] %vm3444, %v7979
    %7996 = vst.msk [vmem:[#allocation3 + $0x68] sm:$0xff] %vm3444, %v7980
    %7997 = vst.msk [vmem:[#allocation3 + $0x70] sm:$0xff] %vm3444, %v7981
    %vm7998 = vcmask 257024
    %7999 = vst.msk [vmem:[#allocation3 + $0x78] sm:$0xf] %vm7998, %v7982
    %s8000 = scalar_lea.vmem [#allocation2], 496
    %v8001 = vld [vmem:[%s8000] ss:$4 sm:$0xff]
    %s8002 = scalar_lea.vmem [#allocation2], 528
    %v8003 = vld [vmem:[%s8002] ss:$4 sm:$0xff]
    %s8004 = scalar_lea.vmem [#allocation2], 560
    %v8005 = vld [vmem:[%s8004] ss:$4 sm:$0xff]
    %s8006 = scalar_lea.vmem [#allocation2], 592
    %v8007 = vld [vmem:[%s8006] ss:$4 sm:$0xff]
    %s8008 = scalar_lea.vmem [#allocation2], 624
    %v8009 = vld [vmem:[%s8008] ss:$4 sm:$0xff]
    %s8010 = scalar_lea.vmem [#allocation2], 656
    %v8011 = vld [vmem:[%s8010] ss:$4 sm:$0xff]
    %s8012 = scalar_lea.vmem [#allocation2], 688
    %v8013 = vld [vmem:[%s8012] ss:$4 sm:$0xff]
    %s8014 = scalar_lea.vmem [#allocation2], 720
    %v8015 = vld [vmem:[%s8014] ss:$4 sm:$0xff]
    %s8016 = scalar_lea.vmem [#allocation2], 752
    %v8017 = vld [vmem:[%s8016] ss:$4 sm:$0xff]
    %s8018 = scalar_lea.vmem [#allocation2], 784
    %v8019 = vld [vmem:[%s8018] ss:$4 sm:$0xff]
    %s8020 = scalar_lea.vmem [#allocation2], 816
    %v8021 = vld [vmem:[%s8020] ss:$4 sm:$0xff]
    %s8022 = scalar_lea.vmem [#allocation2], 848
    %v8023 = vld [vmem:[%s8022] ss:$4 sm:$0xff]
    %s8024 = scalar_lea.vmem [#allocation2], 880
    %v8025 = vld [vmem:[%s8024] ss:$4 sm:$0xff]
    %s8026 = scalar_lea.vmem [#allocation2], 912
    %v8027 = vld [vmem:[%s8026] ss:$4 sm:$0xff]
    %s8028 = scalar_lea.vmem [#allocation2], 944
    %v8029 = vld [vmem:[%s8028] ss:$4 sm:$0xff]
    %s8030 = scalar_lea.vmem [#allocation2], 976
    %v8031 = vld [vmem:[%s8030] ss:$4 sm:$0xf]
    %v8032 = vmul.f32 %v8001, %v7639
    %v8033 = vmul.f32 %v8003, %v7639
    %v8034 = vmul.f32 %v8005, %v7639
    %v8035 = vmul.f32 %v8007, %v7639
    %v8036 = vmul.f32 %v8009, %v7639
    %v8037 = vmul.f32 %v8011, %v7639
    %v8038 = vmul.f32 %v8013, %v7639
    %v8039 = vmul.f32 %v8015, %v7639
    %v8040 = vmul.f32 %v8017, %v7639
    %v8041 = vmul.f32 %v8019, %v7639
    %v8042 = vmul.f32 %v8021, %v7639
    %v8043 = vmul.f32 %v8023, %v7639
    %v8044 = vmul.f32 %v8025, %v7639
    %v8045 = vmul.f32 %v8027, %v7639
    %v8046 = vmul.f32 %v8029, %v7639
    %v8047 = vmul.f32 %v8031, %v7639
    %v8048 = vadd.f32 %v8032, %v7661
    %v8049 = vadd.f32 %v8033, %v7661
    %v8050 = vadd.f32 %v8034, %v7661
    %v8051 = vadd.f32 %v8035, %v7661
    %v8052 = vadd.f32 %v8036, %v7661
    %v8053 = vadd.f32 %v8037, %v7661
    %v8054 = vadd.f32 %v8038, %v7661
    %v8055 = vadd.f32 %v8039, %v7661
    %v8056 = vadd.f32 %v8040, %v7661
    %v8057 = vadd.f32 %v8041, %v7661
    %v8058 = vadd.f32 %v8042, %v7661
    %v8059 = vadd.f32 %v8043, %v7661
    %v8060 = vadd.f32 %v8044, %v7661
    %v8061 = vadd.f32 %v8045, %v7661
    %v8062 = vadd.f32 %v8046, %v7661
    %v8063 = vadd.f32 %v8047, %v7661
    %v8064 = vmax.f32 %v8048, 0.0
    %v8065 = vmax.f32 %v8049, 0.0
    %v8066 = vmax.f32 %v8050, 0.0
    %v8067 = vmax.f32 %v8051, 0.0
    %v8068 = vmax.f32 %v8052, 0.0
    %v8069 = vmax.f32 %v8053, 0.0
    %v8070 = vmax.f32 %v8054, 0.0
    %v8071 = vmax.f32 %v8055, 0.0
    %v8072 = vmax.f32 %v8056, 0.0
    %v8073 = vmax.f32 %v8057, 0.0
    %v8074 = vmax.f32 %v8058, 0.0
    %v8075 = vmax.f32 %v8059, 0.0
    %v8076 = vmax.f32 %v8060, 0.0
    %v8077 = vmax.f32 %v8061, 0.0
    %v8078 = vmax.f32 %v8062, 0.0
    %v8079 = vmax.f32 %v8063, 0.0
    %s8080 = scalar_lea.vmem [#allocation2], 497
    %v8081 = vld [vmem:[%s8080] ss:$4 sm:$0xff]
    %s8082 = scalar_lea.vmem [#allocation2], 529
    %v8083 = vld [vmem:[%s8082] ss:$4 sm:$0xff]
    %s8084 = scalar_lea.vmem [#allocation2], 561
    %v8085 = vld [vmem:[%s8084] ss:$4 sm:$0xff]
    %s8086 = scalar_lea.vmem [#allocation2], 593
    %v8087 = vld [vmem:[%s8086] ss:$4 sm:$0xff]
    %s8088 = scalar_lea.vmem [#allocation2], 625
    %v8089 = vld [vmem:[%s8088] ss:$4 sm:$0xff]
    %s8090 = scalar_lea.vmem [#allocation2], 657
    %v8091 = vld [vmem:[%s8090] ss:$4 sm:$0xff]
    %s8092 = scalar_lea.vmem [#allocation2], 689
    %v8093 = vld [vmem:[%s8092] ss:$4 sm:$0xff]
    %s8094 = scalar_lea.vmem [#allocation2], 721
    %v8095 = vld [vmem:[%s8094] ss:$4 sm:$0xff]
    %s8096 = scalar_lea.vmem [#allocation2], 753
    %v8097 = vld [vmem:[%s8096] ss:$4 sm:$0xff]
    %s8098 = scalar_lea.vmem [#allocation2], 785
    %v8099 = vld [vmem:[%s8098] ss:$4 sm:$0xff]
    %s8100 = scalar_lea.vmem [#allocation2], 817
    %v8101 = vld [vmem:[%s8100] ss:$4 sm:$0xff]
    %s8102 = scalar_lea.vmem [#allocation2], 849
    %v8103 = vld [vmem:[%s8102] ss:$4 sm:$0xff]
    %s8104 = scalar_lea.vmem [#allocation2], 881
    %v8105 = vld [vmem:[%s8104] ss:$4 sm:$0xff]
    %s8106 = scalar_lea.vmem [#allocation2], 913
    %v8107 = vld [vmem:[%s8106] ss:$4 sm:$0xff]
    %s8108 = scalar_lea.vmem [#allocation2], 945
    %v8109 = vld [vmem:[%s8108] ss:$4 sm:$0xff]
    %s8110 = scalar_lea.vmem [#allocation2], 977
    %v8111 = vld [vmem:[%s8110] ss:$4 sm:$0xf]
    %v8112 = vmul.f32 %v8081, %v7639
    %v8113 = vmul.f32 %v8083, %v7639
    %v8114 = vmul.f32 %v8085, %v7639
    %v8115 = vmul.f32 %v8087, %v7639
    %v8116 = vmul.f32 %v8089, %v7639
    %v8117 = vmul.f32 %v8091, %v7639
    %v8118 = vmul.f32 %v8093, %v7639
    %v8119 = vmul.f32 %v8095, %v7639
    %v8120 = vmul.f32 %v8097, %v7639
    %v8121 = vmul.f32 %v8099, %v7639
    %v8122 = vmul.f32 %v8101, %v7639
    %v8123 = vmul.f32 %v8103, %v7639
    %v8124 = vmul.f32 %v8105, %v7639
    %v8125 = vmul.f32 %v8107, %v7639
    %v8126 = vmul.f32 %v8109, %v7639
    %v8127 = vmul.f32 %v8111, %v7639
    %v8128 = vadd.f32 %v8112, %v7661
    %v8129 = vadd.f32 %v8113, %v7661
    %v8130 = vadd.f32 %v8114, %v7661
    %v8131 = vadd.f32 %v8115, %v7661
    %v8132 = vadd.f32 %v8116, %v7661
    %v8133 = vadd.f32 %v8117, %v7661
    %v8134 = vadd.f32 %v8118, %v7661
    %v8135 = vadd.f32 %v8119, %v7661
    %v8136 = vadd.f32 %v8120, %v7661
    %v8137 = vadd.f32 %v8121, %v7661
    %v8138 = vadd.f32 %v8122, %v7661
    %v8139 = vadd.f32 %v8123, %v7661
    %v8140 = vadd.f32 %v8124, %v7661
    %v8141 = vadd.f32 %v8125, %v7661
    %v8142 = vadd.f32 %v8126, %v7661
    %v8143 = vadd.f32 %v8127, %v7661
    %v8144 = vmax.f32 %v8128, 0.0
    %v8145 = vmax.f32 %v8129, 0.0
    %v8146 = vmax.f32 %v8130, 0.0
    %v8147 = vmax.f32 %v8131, 0.0
    %v8148 = vmax.f32 %v8132, 0.0
    %v8149 = vmax.f32 %v8133, 0.0
    %v8150 = vmax.f32 %v8134, 0.0
    %v8151 = vmax.f32 %v8135, 0.0
    %v8152 = vmax.f32 %v8136, 0.0
    %v8153 = vmax.f32 %v8137, 0.0
    %v8154 = vmax.f32 %v8138, 0.0
    %v8155 = vmax.f32 %v8139, 0.0
    %v8156 = vmax.f32 %v8140, 0.0
    %v8157 = vmax.f32 %v8141, 0.0
    %v8158 = vmax.f32 %v8142, 0.0
    %v8159 = vmax.f32 %v8143, 0.0
    %v8160 = vmax.f32 %v8064, %v8144
    %v8161 = vmax.f32 %v8065, %v8145
    %v8162 = vmax.f32 %v8066, %v8146
    %v8163 = vmax.f32 %v8067, %v8147
    %v8164 = vmax.f32 %v8068, %v8148
    %v8165 = vmax.f32 %v8069, %v8149
    %v8166 = vmax.f32 %v8070, %v8150
    %v8167 = vmax.f32 %v8071, %v8151
    %v8168 = vmax.f32 %v8072, %v8152
    %v8169 = vmax.f32 %v8073, %v8153
    %v8170 = vmax.f32 %v8074, %v8154
    %v8171 = vmax.f32 %v8075, %v8155
    %v8172 = vmax.f32 %v8076, %v8156
    %v8173 = vmax.f32 %v8077, %v8157
    %v8174 = vmax.f32 %v8078, %v8158
    %v8175 = vmax.f32 %v8079, %v8159
    %s8176 = scalar_lea.vmem [#allocation2], 498
    %v8177 = vld [vmem:[%s8176] ss:$4 sm:$0xff]
    %s8178 = scalar_lea.vmem [#allocation2], 530
    %v8179 = vld [vmem:[%s8178] ss:$4 sm:$0xff]
    %s8180 = scalar_lea.vmem [#allocation2], 562
    %v8181 = vld [vmem:[%s8180] ss:$4 sm:$0xff]
    %s8182 = scalar_lea.vmem [#allocation2], 594
    %v8183 = vld [vmem:[%s8182] ss:$4 sm:$0xff]
    %s8184 = scalar_lea.vmem [#allocation2], 626
    %v8185 = vld [vmem:[%s8184] ss:$4 sm:$0xff]
    %s8186 = scalar_lea.vmem [#allocation2], 658
    %v8187 = vld [vmem:[%s8186] ss:$4 sm:$0xff]
    %s8188 = scalar_lea.vmem [#allocation2], 690
    %v8189 = vld [vmem:[%s8188] ss:$4 sm:$0xff]
    %s8190 = scalar_lea.vmem [#allocation2], 722
    %v8191 = vld [vmem:[%s8190] ss:$4 sm:$0xff]
    %s8192 = scalar_lea.vmem [#allocation2], 754
    %v8193 = vld [vmem:[%s8192] ss:$4 sm:$0xff]
    %s8194 = scalar_lea.vmem [#allocation2], 786
    %v8195 = vld [vmem:[%s8194] ss:$4 sm:$0xff]
    %s8196 = scalar_lea.vmem [#allocation2], 818
    %v8197 = vld [vmem:[%s8196] ss:$4 sm:$0xff]
    %s8198 = scalar_lea.vmem [#allocation2], 850
    %v8199 = vld [vmem:[%s8198] ss:$4 sm:$0xff]
    %s8200 = scalar_lea.vmem [#allocation2], 882
    %v8201 = vld [vmem:[%s8200] ss:$4 sm:$0xff]
    %s8202 = scalar_lea.vmem [#allocation2], 914
    %v8203 = vld [vmem:[%s8202] ss:$4 sm:$0xff]
    %s8204 = scalar_lea.vmem [#allocation2], 946
    %v8205 = vld [vmem:[%s8204] ss:$4 sm:$0xff]
    %s8206 = scalar_lea.vmem [#allocation2], 978
    %v8207 = vld [vmem:[%s8206] ss:$4 sm:$0xf]
    %v8208 = vmul.f32 %v8177, %v7639
    %v8209 = vmul.f32 %v8179, %v7639
    %v8210 = vmul.f32 %v8181, %v7639
    %v8211 = vmul.f32 %v8183, %v7639
    %v8212 = vmul.f32 %v8185, %v7639
    %v8213 = vmul.f32 %v8187, %v7639
    %v8214 = vmul.f32 %v8189, %v7639
    %v8215 = vmul.f32 %v8191, %v7639
    %v8216 = vmul.f32 %v8193, %v7639
    %v8217 = vmul.f32 %v8195, %v7639
    %v8218 = vmul.f32 %v8197, %v7639
    %v8219 = vmul.f32 %v8199, %v7639
    %v8220 = vmul.f32 %v8201, %v7639
    %v8221 = vmul.f32 %v8203, %v7639
    %v8222 = vmul.f32 %v8205, %v7639
    %v8223 = vmul.f32 %v8207, %v7639
    %v8224 = vadd.f32 %v8208, %v7661
    %v8225 = vadd.f32 %v8209, %v7661
    %v8226 = vadd.f32 %v8210, %v7661
    %v8227 = vadd.f32 %v8211, %v7661
    %v8228 = vadd.f32 %v8212, %v7661
    %v8229 = vadd.f32 %v8213, %v7661
    %v8230 = vadd.f32 %v8214, %v7661
    %v8231 = vadd.f32 %v8215, %v7661
    %v8232 = vadd.f32 %v8216, %v7661
    %v8233 = vadd.f32 %v8217, %v7661
    %v8234 = vadd.f32 %v8218, %v7661
    %v8235 = vadd.f32 %v8219, %v7661
    %v8236 = vadd.f32 %v8220, %v7661
    %v8237 = vadd.f32 %v8221, %v7661
    %v8238 = vadd.f32 %v8222, %v7661
    %v8239 = vadd.f32 %v8223, %v7661
    %v8240 = vmax.f32 %v8224, 0.0
    %v8241 = vmax.f32 %v8225, 0.0
    %v8242 = vmax.f32 %v8226, 0.0
    %v8243 = vmax.f32 %v8227, 0.0
    %v8244 = vmax.f32 %v8228, 0.0
    %v8245 = vmax.f32 %v8229, 0.0
    %v8246 = vmax.f32 %v8230, 0.0
    %v8247 = vmax.f32 %v8231, 0.0
    %v8248 = vmax.f32 %v8232, 0.0
    %v8249 = vmax.f32 %v8233, 0.0
    %v8250 = vmax.f32 %v8234, 0.0
    %v8251 = vmax.f32 %v8235, 0.0
    %v8252 = vmax.f32 %v8236, 0.0
    %v8253 = vmax.f32 %v8237, 0.0
    %v8254 = vmax.f32 %v8238, 0.0
    %v8255 = vmax.f32 %v8239, 0.0
    %v8256 = vmax.f32 %v8160, %v8240
    %v8257 = vmax.f32 %v8161, %v8241
    %v8258 = vmax.f32 %v8162, %v8242
    %v8259 = vmax.f32 %v8163, %v8243
    %v8260 = vmax.f32 %v8164, %v8244
    %v8261 = vmax.f32 %v8165, %v8245
    %v8262 = vmax.f32 %v8166, %v8246
    %v8263 = vmax.f32 %v8167, %v8247
    %v8264 = vmax.f32 %v8168, %v8248
    %v8265 = vmax.f32 %v8169, %v8249
    %v8266 = vmax.f32 %v8170, %v8250
    %v8267 = vmax.f32 %v8171, %v8251
    %v8268 = vmax.f32 %v8172, %v8252
    %v8269 = vmax.f32 %v8173, %v8253
    %v8270 = vmax.f32 %v8174, %v8254
    %v8271 = vmax.f32 %v8175, %v8255
    %s8272 = scalar_lea.vmem [#allocation2], 499
    %v8273 = vld [vmem:[%s8272] ss:$4 sm:$0xff]
    %s8274 = scalar_lea.vmem [#allocation2], 531
    %v8275 = vld [vmem:[%s8274] ss:$4 sm:$0xff]
    %s8276 = scalar_lea.vmem [#allocation2], 563
    %v8277 = vld [vmem:[%s8276] ss:$4 sm:$0xff]
    %s8278 = scalar_lea.vmem [#allocation2], 595
    %v8279 = vld [vmem:[%s8278] ss:$4 sm:$0xff]
    %s8280 = scalar_lea.vmem [#allocation2], 627
    %v8281 = vld [vmem:[%s8280] ss:$4 sm:$0xff]
    %s8282 = scalar_lea.vmem [#allocation2], 659
    %v8283 = vld [vmem:[%s8282] ss:$4 sm:$0xff]
    %s8284 = scalar_lea.vmem [#allocation2], 691
    %v8285 = vld [vmem:[%s8284] ss:$4 sm:$0xff]
    %s8286 = scalar_lea.vmem [#allocation2], 723
    %v8287 = vld [vmem:[%s8286] ss:$4 sm:$0xff]
    %s8288 = scalar_lea.vmem [#allocation2], 755
    %v8289 = vld [vmem:[%s8288] ss:$4 sm:$0xff]
    %s8290 = scalar_lea.vmem [#allocation2], 787
    %v8291 = vld [vmem:[%s8290] ss:$4 sm:$0xff]
    %s8292 = scalar_lea.vmem [#allocation2], 819
    %v8293 = vld [vmem:[%s8292] ss:$4 sm:$0xff]
    %s8294 = scalar_lea.vmem [#allocation2], 851
    %v8295 = vld [vmem:[%s8294] ss:$4 sm:$0xff]
    %s8296 = scalar_lea.vmem [#allocation2], 883
    %v8297 = vld [vmem:[%s8296] ss:$4 sm:$0xff]
    %s8298 = scalar_lea.vmem [#allocation2], 915
    %v8299 = vld [vmem:[%s8298] ss:$4 sm:$0xff]
    %s8300 = scalar_lea.vmem [#allocation2], 947
    %v8301 = vld [vmem:[%s8300] ss:$4 sm:$0xff]
    %s8302 = scalar_lea.vmem [#allocation2], 979
    %v8303 = vld [vmem:[%s8302] ss:$4 sm:$0xf]
    %v8304 = vmul.f32 %v8273, %v7639
    %v8305 = vmul.f32 %v8275, %v7639
    %v8306 = vmul.f32 %v8277, %v7639
    %v8307 = vmul.f32 %v8279, %v7639
    %v8308 = vmul.f32 %v8281, %v7639
    %v8309 = vmul.f32 %v8283, %v7639
    %v8310 = vmul.f32 %v8285, %v7639
    %v8311 = vmul.f32 %v8287, %v7639
    %v8312 = vmul.f32 %v8289, %v7639
    %v8313 = vmul.f32 %v8291, %v7639
    %v8314 = vmul.f32 %v8293, %v7639
    %v8315 = vmul.f32 %v8295, %v7639
    %v8316 = vmul.f32 %v8297, %v7639
    %v8317 = vmul.f32 %v8299, %v7639
    %v8318 = vmul.f32 %v8301, %v7639
    %v8319 = vmul.f32 %v8303, %v7639
    %v8320 = vadd.f32 %v8304, %v7661
    %v8321 = vadd.f32 %v8305, %v7661
    %v8322 = vadd.f32 %v8306, %v7661
    %v8323 = vadd.f32 %v8307, %v7661
    %v8324 = vadd.f32 %v8308, %v7661
    %v8325 = vadd.f32 %v8309, %v7661
    %v8326 = vadd.f32 %v8310, %v7661
    %v8327 = vadd.f32 %v8311, %v7661
    %v8328 = vadd.f32 %v8312, %v7661
    %v8329 = vadd.f32 %v8313, %v7661
    %v8330 = vadd.f32 %v8314, %v7661
    %v8331 = vadd.f32 %v8315, %v7661
    %v8332 = vadd.f32 %v8316, %v7661
    %v8333 = vadd.f32 %v8317, %v7661
    %v8334 = vadd.f32 %v8318, %v7661
    %v8335 = vadd.f32 %v8319, %v7661
    %v8336 = vmax.f32 %v8320, 0.0
    %v8337 = vmax.f32 %v8321, 0.0
    %v8338 = vmax.f32 %v8322, 0.0
    %v8339 = vmax.f32 %v8323, 0.0
    %v8340 = vmax.f32 %v8324, 0.0
    %v8341 = vmax.f32 %v8325, 0.0
    %v8342 = vmax.f32 %v8326, 0.0
    %v8343 = vmax.f32 %v8327, 0.0
    %v8344 = vmax.f32 %v8328, 0.0
    %v8345 = vmax.f32 %v8329, 0.0
    %v8346 = vmax.f32 %v8330, 0.0
    %v8347 = vmax.f32 %v8331, 0.0
    %v8348 = vmax.f32 %v8332, 0.0
    %v8349 = vmax.f32 %v8333, 0.0
    %v8350 = vmax.f32 %v8334, 0.0
    %v8351 = vmax.f32 %v8335, 0.0
    %v8352 = vmax.f32 %v8256, %v8336
    %v8353 = vmax.f32 %v8257, %v8337
    %v8354 = vmax.f32 %v8258, %v8338
    %v8355 = vmax.f32 %v8259, %v8339
    %v8356 = vmax.f32 %v8260, %v8340
    %v8357 = vmax.f32 %v8261, %v8341
    %v8358 = vmax.f32 %v8262, %v8342
    %v8359 = vmax.f32 %v8263, %v8343
    %v8360 = vmax.f32 %v8264, %v8344
    %v8361 = vmax.f32 %v8265, %v8345
    %v8362 = vmax.f32 %v8266, %v8346
    %v8363 = vmax.f32 %v8267, %v8347
    %v8364 = vmax.f32 %v8268, %v8348
    %v8365 = vmax.f32 %v8269, %v8349
    %v8366 = vmax.f32 %v8270, %v8350
    %v8367 = vmax.f32 %v8271, %v8351
    %8368 = vst.msk [vmem:[#allocation3 + $0x7c] sm:$0xff] %vm3444, %v8352
    %8369 = vst.msk [vmem:[#allocation3 + $0x84] sm:$0xff] %vm3444, %v8353
    %8370 = vst.msk [vmem:[#allocation3 + $0x8c] sm:$0xff] %vm3444, %v8354
    %8371 = vst.msk [vmem:[#allocation3 + $0x94] sm:$0xff] %vm3444, %v8355
    %8372 = vst.msk [vmem:[#allocation3 + $0x9c] sm:$0xff] %vm3444, %v8356
    %8373 = vst.msk [vmem:[#allocation3 + $0xa4] sm:$0xff] %vm3444, %v8357
    %8374 = vst.msk [vmem:[#allocation3 + $0xac] sm:$0xff] %vm3444, %v8358
    %8375 = vst.msk [vmem:[#allocation3 + $0xb4] sm:$0xff] %vm3444, %v8359
    %8376 = vst.msk [vmem:[#allocation3 + $0xbc] sm:$0xff] %vm3444, %v8360
    %8377 = vst.msk [vmem:[#allocation3 + $0xc4] sm:$0xff] %vm3444, %v8361
    %8378 = vst.msk [vmem:[#allocation3 + $0xcc] sm:$0xff] %vm3444, %v8362
    %8379 = vst.msk [vmem:[#allocation3 + $0xd4] sm:$0xff] %vm3444, %v8363
    %8380 = vst.msk [vmem:[#allocation3 + $0xdc] sm:$0xff] %vm3444, %v8364
    %8381 = vst.msk [vmem:[#allocation3 + $0xe4] sm:$0xff] %vm3444, %v8365
    %8382 = vst.msk [vmem:[#allocation3 + $0xec] sm:$0xff] %vm3444, %v8366
    %8383 = vst.msk [vmem:[#allocation3 + $0xf4] sm:$0xf] %vm7998, %v8367
    %v8384 = vld [vmem:[#allocation3] sm:$0xff]
    %v8385 = vld [vmem:[#allocation3 + $0x8] sm:$0xff]
    %v8386 = vld [vmem:[#allocation3 + $0x10] sm:$0xff]
    %v8387 = vld [vmem:[#allocation3 + $0x18] sm:$0xff]
    %v8388 = vld [vmem:[#allocation3 + $0x20] sm:$0xff]
    %v8389 = vld [vmem:[#allocation3 + $0x28] sm:$0xff]
    %v8390 = vld [vmem:[#allocation3 + $0x30] sm:$0xff]
    %v8391 = vld [vmem:[#allocation3 + $0x38] sm:$0xff]
    %v8392 = vld [vmem:[#allocation3 + $0x40] sm:$0xff]
    %v8393 = vld [vmem:[#allocation3 + $0x48] sm:$0xff]
    %v8394 = vld [vmem:[#allocation3 + $0x50] sm:$0xff]
    %v8395 = vld [vmem:[#allocation3 + $0x58] sm:$0xff]
    %v8396 = vld [vmem:[#allocation3 + $0x60] sm:$0xff]
    %v8397 = vld [vmem:[#allocation3 + $0x68] sm:$0xff]
    %v8398 = vld [vmem:[#allocation3 + $0x70] sm:$0xff]
    %v8399 = vld [vmem:[#allocation3 + $0x78] sm:$0x3]
    %v8400 = vld [vmem:[%s5] sm:$0xff]
    %v8401 = vld [vmem:[%s5 + $0x8] sm:$0xff]
    %v8402 = vld [vmem:[%s5 + $0x10] sm:$0xff]
    %v8403 = vld [vmem:[%s5 + $0x18] sm:$0xff]
    %v8404 = vld [vmem:[#allocation3 + $0x1] sm:$0xff]
    %v8405 = vld [vmem:[#allocation3 + $0x9] sm:$0xff]
    %v8406 = vld [vmem:[#allocation3 + $0x11] sm:$0xff]
    %v8407 = vld [vmem:[#allocation3 + $0x19] sm:$0xff]
    %v8408 = vld [vmem:[#allocation3 + $0x21] sm:$0xff]
    %v8409 = vld [vmem:[#allocation3 + $0x29] sm:$0xff]
    %v8410 = vld [vmem:[#allocation3 + $0x31] sm:$0xff]
    %v8411 = vld [vmem:[#allocation3 + $0x39] sm:$0xff]
    %v8412 = vld [vmem:[#allocation3 + $0x41] sm:$0xff]
    %v8413 = vld [vmem:[#allocation3 + $0x49] sm:$0xff]
    %v8414 = vld [vmem:[#allocation3 + $0x51] sm:$0xff]
    %v8415 = vld [vmem:[#allocation3 + $0x59] sm:$0xff]
    %v8416 = vld [vmem:[#allocation3 + $0x61] sm:$0xff]
    %v8417 = vld [vmem:[#allocation3 + $0x69] sm:$0xff]
    %v8418 = vld [vmem:[#allocation3 + $0x71] sm:$0xff]
    %v8419 = vld [vmem:[#allocation3 + $0x79] sm:$0x3]
    %s8420 = scalar_lea.vmem %s5, 32
    %v8421 = vld [vmem:[%s8420] sm:$0xff]
    %v8422 = vld [vmem:[%s8420 + $0x8] sm:$0xff]
    %v8423 = vld [vmem:[%s8420 + $0x10] sm:$0xff]
    %v8424 = vld [vmem:[%s8420 + $0x18] sm:$0xff]
    %v8426 = vsel %vm3444, %v8404, 0
    %v8429 = vsel %vm3444, %v8405, 0
    %v8432 = vsel %vm3444, %v8406, 0
    %v8435 = vsel %vm3444, %v8407, 0
    %v8438 = vsel %vm3444, %v8408, 0
    %v8441 = vsel %vm3444, %v8409, 0
    %v8444 = vsel %vm3444, %v8410, 0
    %v8447 = vsel %vm3444, %v8411, 0
    %v8450 = vsel %vm3444, %v8412, 0
    %v8453 = vsel %vm3444, %v8413, 0
    %v8456 = vsel %vm3444, %v8414, 0
    %v8459 = vsel %vm3444, %v8415, 0
    %v8462 = vsel %vm3444, %v8416, 0
    %v8465 = vsel %vm3444, %v8417, 0
    %v8468 = vsel %vm3444, %v8418, 0
    %v8471 = vsel %vm3444, %v8419, 0
    %8473 = vmatprep.subr.mxu0 0.0
    %8474 = vmatpush1.msra.mxu0 %v8421
    %8475 = vmatprep.subr.mxu0 0.0
    %8476 = vmatpush1.msra.mxu0 %v8422
    %8477 = vmatprep.subr.mxu0 0.0
    %8478 = vmatpush1.msra.mxu0 %v8423
    %8479 = vmatprep.subr.mxu0 0.0
    %8480 = vmatpush1.msra.mxu0 %v8424
    %8481 = vmatprep.subr.mxu0 0.0
    %8482 = vmatpush1.msra.mxu0 0.0
    %8483 = vmatprep.subr.mxu0 0.0
    %8484 = vmatpush1.msra.mxu0 0.0
    %8485 = vmatprep.subr.mxu0 0.0
    %8486 = vmatpush1.msra.mxu0 0.0
    %8487 = vmatprep.subr.mxu0 0.0
    %8488 = vmatpush1.msra.mxu0 0.0
    %8489 = vmatprep.subr.mxu0 0.0
    %8490 = vmatpush1.msra.mxu0 0.0
    %8491 = vmatprep.subr.mxu0 0.0
    %8492 = vmatpush1.msra.mxu0 0.0
    %8493 = vmatprep.subr.mxu0 0.0
    %8494 = vmatpush1.msra.mxu0 0.0
    %8495 = vmatprep.subr.mxu0 0.0
    %8496 = vmatpush1.msra.mxu0 0.0
    %8497 = vmatprep.subr.mxu0 0.0
    %8498 = vmatpush1.msra.mxu0 0.0
    %8499 = vmatprep.subr.mxu0 0.0
    %8500 = vmatpush1.msra.mxu0 0.0
    %8501 = vmatprep.subr.mxu0 0.0
    %8502 = vmatpush1.msra.mxu0 0.0
    %8503 = vmatprep.subr.mxu0 0.0
    %8504 = vmatpush1.msra.mxu0 0.0
    %8505 = vmatprep.subr.mxu0 0.0
    %8506 = vmatpush1.msra.mxu0 0.0
    %8507 = vmatprep.subr.mxu0 0.0
    %8508 = vmatpush1.msra.mxu0 0.0
    %8509 = vmatprep.subr.mxu0 0.0
    %8510 = vmatpush1.msra.mxu0 0.0
    %8511 = vmatprep.subr.mxu0 0.0
    %8512 = vmatpush1.msra.mxu0 0.0
    %8513 = vmatprep.subr.mxu0 0.0
    %8514 = vmatpush1.msra.mxu0 0.0
    %8515 = vmatprep.subr.mxu0 0.0
    %8516 = vmatpush1.msra.mxu0 0.0
    %8517 = vmatprep.subr.mxu0 0.0
    %8518 = vmatpush1.msra.mxu0 0.0
    %8519 = vmatprep.subr.mxu0 0.0
    %8520 = vmatpush1.msra.mxu0 0.0
    %8521 = vmatprep.subr.mxu0 0.0
    %8522 = vmatpush1.msra.mxu0 0.0
    %8523 = vmatprep.subr.mxu0 0.0
    %8524 = vmatpush1.msra.mxu0 0.0
    %8525 = vmatprep.subr.mxu0 0.0
    %8526 = vmatpush1.msra.mxu0 0.0
    %8527 = vmatprep.subr.mxu0 0.0
    %8528 = vmatpush1.msra.mxu0 0.0
    %8529 = vmatprep.subr.mxu0 0.0
    %8530 = vmatpush1.msra.mxu0 0.0
    %8531 = vmatprep.subr.mxu0 0.0
    %8532 = vmatpush1.msra.mxu0 0.0
    %8533 = vmatprep.subr.mxu0 0.0
    %8534 = vmatpush1.msra.mxu0 0.0
    %8535 = vmatprep.subr.mxu0 0.0
    %8536 = vmatpush1.msra.mxu0 0.0
    %8537 = vmatprep.mubr.f32.mxu0 0.0
    %8538 = vmatmul.mubr.f32.gmra.mrb[0].mxu0 %v8426
    %v8539 = vpop.f32.mrb[0].mxu0
    %v8540 = vadd.f32 0.0, %v8539
    %v8541 = vpop.f32.mrb[0].mxu0
    %8542 = vmatprep.mubr.f32.mxu0 0.0
    %8543 = vmatmul.mubr.f32.gmra.mrb[0].mxu0 %v8429
    %v8544 = vpop.f32.mrb[0].mxu0
    %v8545 = vadd.f32 0.0, %v8544
    %v8546 = vpop.f32.mrb[0].mxu0
    %8547 = vmatprep.mubr.f32.mxu0 0.0
    %8548 = vmatmul.mubr.f32.gmra.mrb[0].mxu0 %v8432
    %v8549 = vpop.f32.mrb[0].mxu0
    %v8550 = vadd.f32 0.0, %v8549
    %v8551 = vpop.f32.mrb[0].mxu0
    %8552 = vmatprep.mubr.f32.mxu0 0.0
    %8553 = vmatmul.mubr.f32.gmra.mrb[0].mxu0 %v8435
    %v8554 = vpop.f32.mrb[0].mxu0
    %v8555 = vadd.f32 0.0, %v8554
    %v8556 = vpop.f32.mrb[0].mxu0
    %8557 = vmatprep.mubr.f32.mxu0 0.0
    %8558 = vmatmul.mubr.f32.gmra.mrb[0].mxu0 %v8438
    %v8559 = vpop.f32.mrb[0].mxu0
    %v8560 = vadd.f32 0.0, %v8559
    %v8561 = vpop.f32.mrb[0].mxu0
    %8562 = vmatprep.mubr.f32.mxu0 0.0
    %8563 = vmatmul.mubr.f32.gmra.mrb[0].mxu0 %v8441
    %v8564 = vpop.f32.mrb[0].mxu0
    %v8565 = vadd.f32 0.0, %v8564
    %v8566 = vpop.f32.mrb[0].mxu0
    %8567 = vmatprep.mubr.f32.mxu0 0.0
    %8568 = vmatmul.mubr.f32.gmra.mrb[0].mxu0 %v8444
    %v8569 = vpop.f32.mrb[0].mxu0
    %v8570 = vadd.f32 0.0, %v8569
    %v8571 = vpop.f32.mrb[0].mxu0
    %8572 = vmatprep.mubr.f32.mxu0 0.0
    %8573 = vmatmul.mubr.f32.gmra.mrb[0].mxu0 %v8447
    %v8574 = vpop.f32.mrb[0].mxu0
    %v8575 = vadd.f32 0.0, %v8574
    %v8576 = vpop.f32.mrb[0].mxu0
    %8577 = vmatprep.mubr.f32.mxu0 0.0
    %8578 = vmatmul.mubr.f32.gmra.mrb[0].mxu0 %v8450
    %v8579 = vpop.f32.mrb[0].mxu0
    %v8580 = vadd.f32 0.0, %v8579
    %v8581 = vpop.f32.mrb[0].mxu0
    %8582 = vmatprep.mubr.f32.mxu0 0.0
    %8583 = vmatmul.mubr.f32.gmra.mrb[0].mxu0 %v8453
    %v8584 = vpop.f32.mrb[0].mxu0
    %v8585 = vadd.f32 0.0, %v8584
    %v8586 = vpop.f32.mrb[0].mxu0
    %8587 = vmatprep.mubr.f32.mxu0 0.0
    %8588 = vmatmul.mubr.f32.gmra.mrb[0].mxu0 %v8456
    %v8589 = vpop.f32.mrb[0].mxu0
    %v8590 = vadd.f32 0.0, %v8589
    %v8591 = vpop.f32.mrb[0].mxu0
    %8592 = vmatprep.mubr.f32.mxu0 0.0
    %8593 = vmatmul.mubr.f32.gmra.mrb[0].mxu0 %v8459
    %v8594 = vpop.f32.mrb[0].mxu0
    %v8595 = vadd.f32 0.0, %v8594
    %v8596 = vpop.f32.mrb[0].mxu0
    %8597 = vmatprep.mubr.f32.mxu0 0.0
    %8598 = vmatmul.mubr.f32.gmra.mrb[0].mxu0 %v8462
    %v8599 = vpop.f32.mrb[0].mxu0
    %v8600 = vadd.f32 0.0, %v8599
    %v8601 = vpop.f32.mrb[0].mxu0
    %8602 = vmatprep.mubr.f32.mxu0 0.0
    %8603 = vmatmul.mubr.f32.gmra.mrb[0].mxu0 %v8465
    %v8604 = vpop.f32.mrb[0].mxu0
    %v8605 = vadd.f32 0.0, %v8604
    %v8606 = vpop.f32.mrb[0].mxu0
    %8607 = vmatprep.mubr.f32.mxu0 0.0
    %8608 = vmatmul.mubr.f32.gmra.mrb[0].mxu0 %v8468
    %v8609 = vpop.f32.mrb[0].mxu0
    %v8610 = vadd.f32 0.0, %v8609
    %v8611 = vpop.f32.mrb[0].mxu0
    %8612 = vmatprep.mubr.f32.mxu0 0.0
    %8613 = vmatmul.mubr.f32.gmra.mrb[0].mxu0 %v8471
    %v8614 = vpop.f32.mrb[0].mxu0
    %v8615 = vadd.f32 0.0, %v8614
    %v8616 = vpop.f32.mrb[0].mxu0
    %8617 = vdwg.mxu0
    %v8619 = vsel %vm3444, %v8384, 0
    %v8622 = vsel %vm3444, %v8385, 0
    %v8625 = vsel %vm3444, %v8386, 0
    %v8628 = vsel %vm3444, %v8387, 0
    %v8631 = vsel %vm3444, %v8388, 0
    %v8634 = vsel %vm3444, %v8389, 0
    %v8637 = vsel %vm3444, %v8390, 0
    %v8640 = vsel %vm3444, %v8391, 0
    %v8643 = vsel %vm3444, %v8392, 0
    %v8646 = vsel %vm3444, %v8393, 0
    %v8649 = vsel %vm3444, %v8394, 0
    %v8652 = vsel %vm3444, %v8395, 0
    %v8655 = vsel %vm3444, %v8396, 0
    %v8658 = vsel %vm3444, %v8397, 0
    %v8661 = vsel %vm3444, %v8398, 0
    %v8664 = vsel %vm3444, %v8399, 0
    %8666 = vmatprep.subr.mxu0 0.0
    %8667 = vmatpush1.msra.mxu0 %v8400
    %8668 = vmatprep.subr.mxu0 0.0
    %8669 = vmatpush1.msra.mxu0 %v8401
    %8670 = vmatprep.subr.mxu0 0.0
    %8671 = vmatpush1.msra.mxu0 %v8402
    %8672 = vmatprep.subr.mxu0 0.0
    %8673 = vmatpush1.msra.mxu0 %v8403
    %8674 = vmatprep.subr.mxu0 0.0
    %8675 = vmatpush1.msra.mxu0 0.0
    %8676 = vmatprep.subr.mxu0 0.0
    %8677 = vmatpush1.msra.mxu0 0.0
    %8678 = vmatprep.subr.mxu0 0.0
    %8679 = vmatpush1.msra.mxu0 0.0
    %8680 = vmatprep.subr.mxu0 0.0
    %8681 = vmatpush1.msra.mxu0 0.0
    %8682 = vmatprep.subr.mxu0 0.0
    %8683 = vmatpush1.msra.mxu0 0.0
    %8684 = vmatprep.subr.mxu0 0.0
    %8685 = vmatpush1.msra.mxu0 0.0
    %8686 = vmatprep.subr.mxu0 0.0
    %8687 = vmatpush1.msra.mxu0 0.0
    %8688 = vmatprep.subr.mxu0 0.0
    %8689 = vmatpush1.msra.mxu0 0.0
    %8690 = vmatprep.subr.mxu0 0.0
    %8691 = vmatpush1.msra.mxu0 0.0
    %8692 = vmatprep.subr.mxu0 0.0
    %8693 = vmatpush1.msra.mxu0 0.0
    %8694 = vmatprep.subr.mxu0 0.0
    %8695 = vmatpush1.msra.mxu0 0.0
    %8696 = vmatprep.subr.mxu0 0.0
    %8697 = vmatpush1.msra.mxu0 0.0
    %8698 = vmatprep.subr.mxu0 0.0
    %8699 = vmatpush1.msra.mxu0 0.0
    %8700 = vmatprep.subr.mxu0 0.0
    %8701 = vmatpush1.msra.mxu0 0.0
    %8702 = vmatprep.subr.mxu0 0.0
    %8703 = vmatpush1.msra.mxu0 0.0
    %8704 = vmatprep.subr.mxu0 0.0
    %8705 = vmatpush1.msra.mxu0 0.0
    %8706 = vmatprep.subr.mxu0 0.0
    %8707 = vmatpush1.msra.mxu0 0.0
    %8708 = vmatprep.subr.mxu0 0.0
    %8709 = vmatpush1.msra.mxu0 0.0
    %8710 = vmatprep.subr.mxu0 0.0
    %8711 = vmatpush1.msra.mxu0 0.0
    %8712 = vmatprep.subr.mxu0 0.0
    %8713 = vmatpush1.msra.mxu0 0.0
    %8714 = vmatprep.subr.mxu0 0.0
    %8715 = vmatpush1.msra.mxu0 0.0
    %8716 = vmatprep.subr.mxu0 0.0
    %8717 = vmatpush1.msra.mxu0 0.0
    %8718 = vmatprep.subr.mxu0 0.0
    %8719 = vmatpush1.msra.mxu0 0.0
    %8720 = vmatprep.subr.mxu0 0.0
    %8721 = vmatpush1.msra.mxu0 0.0
    %8722 = vmatprep.subr.mxu0 0.0
    %8723 = vmatpush1.msra.mxu0 0.0
    %8724 = vmatprep.subr.mxu0 0.0
    %8725 = vmatpush1.msra.mxu0 0.0
    %8726 = vmatprep.subr.mxu0 0.0
    %8727 = vmatpush1.msra.mxu0 0.0
    %8728 = vmatprep.subr.mxu0 0.0
    %8729 = vmatpush1.msra.mxu0 0.0
    %8730 = vmatprep.mubr.f32.mxu0 0.0
    %8731 = vmatmul.mubr.f32.gmra.mrb[0].mxu0 %v8619
    %v8732 = vpop.f32.mrb[0].mxu0
    %v8733 = vadd.f32 %v8540, %v8732
    %v8734 = vpop.f32.mrb[0].mxu0
    %8735 = vmatprep.mubr.f32.mxu0 0.0
    %8736 = vmatmul.mubr.f32.gmra.mrb[0].mxu0 %v8622
    %v8737 = vpop.f32.mrb[0].mxu0
    %v8738 = vadd.f32 %v8545, %v8737
    %v8739 = vpop.f32.mrb[0].mxu0
    %8740 = vmatprep.mubr.f32.mxu0 0.0
    %8741 = vmatmul.mubr.f32.gmra.mrb[0].mxu0 %v8625
    %v8742 = vpop.f32.mrb[0].mxu0
    %v8743 = vadd.f32 %v8550, %v8742
    %v8744 = vpop.f32.mrb[0].mxu0
    %8745 = vmatprep.mubr.f32.mxu0 0.0
    %8746 = vmatmul.mubr.f32.gmra.mrb[0].mxu0 %v8628
    %v8747 = vpop.f32.mrb[0].mxu0
    %v8748 = vadd.f32 %v8555, %v8747
    %v8749 = vpop.f32.mrb[0].mxu0
    %8750 = vmatprep.mubr.f32.mxu0 0.0
    %8751 = vmatmul.mubr.f32.gmra.mrb[0].mxu0 %v8631
    %v8752 = vpop.f32.mrb[0].mxu0
    %v8753 = vadd.f32 %v8560, %v8752
    %v8754 = vpop.f32.mrb[0].mxu0
    %8755 = vmatprep.mubr.f32.mxu0 0.0
    %8756 = vmatmul.mubr.f32.gmra.mrb[0].mxu0 %v8634
    %v8757 = vpop.f32.mrb[0].mxu0
    %v8758 = vadd.f32 %v8565, %v8757
    %v8759 = vpop.f32.mrb[0].mxu0
    %8760 = vmatprep.mubr.f32.mxu0 0.0
    %8761 = vmatmul.mubr.f32.gmra.mrb[0].mxu0 %v8637
    %v8762 = vpop.f32.mrb[0].mxu0
    %v8763 = vadd.f32 %v8570, %v8762
    %v8764 = vpop.f32.mrb[0].mxu0
    %8765 = vmatprep.mubr.f32.mxu0 0.0
    %8766 = vmatmul.mubr.f32.gmra.mrb[0].mxu0 %v8640
    %v8767 = vpop.f32.mrb[0].mxu0
    %v8768 = vadd.f32 %v8575, %v8767
    %v8769 = vpop.f32.mrb[0].mxu0
    %8770 = vmatprep.mubr.f32.mxu0 0.0
    %8771 = vmatmul.mubr.f32.gmra.mrb[0].mxu0 %v8643
    %v8772 = vpop.f32.mrb[0].mxu0
    %v8773 = vadd.f32 %v8580, %v8772
    %v8774 = vpop.f32.mrb[0].mxu0
    %8775 = vmatprep.mubr.f32.mxu0 0.0
    %8776 = vmatmul.mubr.f32.gmra.mrb[0].mxu0 %v8646
    %v8777 = vpop.f32.mrb[0].mxu0
    %v8778 = vadd.f32 %v8585, %v8777
    %v8779 = vpop.f32.mrb[0].mxu0
    %8780 = vmatprep.mubr.f32.mxu0 0.0
    %8781 = vmatmul.mubr.f32.gmra.mrb[0].mxu0 %v8649
    %v8782 = vpop.f32.mrb[0].mxu0
    %v8783 = vadd.f32 %v8590, %v8782
    %v8784 = vpop.f32.mrb[0].mxu0
    %8785 = vmatprep.mubr.f32.mxu0 0.0
    %8786 = vmatmul.mubr.f32.gmra.mrb[0].mxu0 %v8652
    %v8787 = vpop.f32.mrb[0].mxu0
    %v8788 = vadd.f32 %v8595, %v8787
    %v8789 = vpop.f32.mrb[0].mxu0
    %8790 = vmatprep.mubr.f32.mxu0 0.0
    %8791 = vmatmul.mubr.f32.gmra.mrb[0].mxu0 %v8655
    %v8792 = vpop.f32.mrb[0].mxu0
    %v8793 = vadd.f32 %v8600, %v8792
    %v8794 = vpop.f32.mrb[0].mxu0
    %8795 = vmatprep.mubr.f32.mxu0 0.0
    %8796 = vmatmul.mubr.f32.gmra.mrb[0].mxu0 %v8658
    %v8797 = vpop.f32.mrb[0].mxu0
    %v8798 = vadd.f32 %v8605, %v8797
    %v8799 = vpop.f32.mrb[0].mxu0
    %8800 = vmatprep.mubr.f32.mxu0 0.0
    %8801 = vmatmul.mubr.f32.gmra.mrb[0].mxu0 %v8661
    %v8802 = vpop.f32.mrb[0].mxu0
    %v8803 = vadd.f32 %v8610, %v8802
    %v8804 = vpop.f32.mrb[0].mxu0
    %8805 = vmatprep.mubr.f32.mxu0 0.0
    %8806 = vmatmul.mubr.f32.gmra.mrb[0].mxu0 %v8664
    %v8807 = vpop.f32.mrb[0].mxu0
    %v8808 = vadd.f32 %v8615, %v8807
    %v8809 = vpop.f32.mrb[0].mxu0
    %8810 = vdwg.mxu0
    %v8811 = vld [vmem:[#allocation3 + $0x2] sm:$0xff]
    %v8812 = vld [vmem:[#allocation3 + $0xa] sm:$0xff]
    %v8813 = vld [vmem:[#allocation3 + $0x12] sm:$0xff]
    %v8814 = vld [vmem:[#allocation3 + $0x1a] sm:$0xff]
    %v8815 = vld [vmem:[#allocation3 + $0x22] sm:$0xff]
    %v8816 = vld [vmem:[#allocation3 + $0x2a] sm:$0xff]
    %v8817 = vld [vmem:[#allocation3 + $0x32] sm:$0xff]
    %v8818 = vld [vmem:[#allocation3 + $0x3a] sm:$0xff]
    %v8819 = vld [vmem:[#allocation3 + $0x42] sm:$0xff]
    %v8820 = vld [vmem:[#allocation3 + $0x4a] sm:$0xff]
    %v8821 = vld [vmem:[#allocation3 + $0x52] sm:$0xff]
    %v8822 = vld [vmem:[#allocation3 + $0x5a] sm:$0xff]
    %v8823 = vld [vmem:[#allocation3 + $0x62] sm:$0xff]
    %v8824 = vld [vmem:[#allocation3 + $0x6a] sm:$0xff]
    %v8825 = vld [vmem:[#allocation3 + $0x72] sm:$0xff]
    %v8826 = vld [vmem:[#allocation3 + $0x7a] sm:$0x3]
    %s8827 = scalar_lea.vmem %s5, 64
    %v8828 = vld [vmem:[%s8827] sm:$0xff]
    %v8829 = vld [vmem:[%s8827 + $0x8] sm:$0xff]
    %v8830 = vld [vmem:[%s8827 + $0x10] sm:$0xff]
    %v8831 = vld [vmem:[%s8827 + $0x18] sm:$0xff]
    %v8833 = vsel %vm3444, %v8811, 0
    %v8836 = vsel %vm3444, %v8812, 0
    %v8839 = vsel %vm3444, %v8813, 0
    %v8842 = vsel %vm3444, %v8814, 0
    %v8845 = vsel %vm3444, %v8815, 0
    %v8848 = vsel %vm3444, %v8816, 0
    %v8851 = vsel %vm3444, %v8817, 0
    %v8854 = vsel %vm3444, %v8818, 0
    %v8857 = vsel %vm3444, %v8819, 0
    %v8860 = vsel %vm3444, %v8820, 0
    %v8863 = vsel %vm3444, %v8821, 0
    %v8866 = vsel %vm3444, %v8822, 0
    %v8869 = vsel %vm3444, %v8823, 0
    %v8872 = vsel %vm3444, %v8824, 0
    %v8875 = vsel %vm3444, %v8825, 0
    %v8878 = vsel %vm3444, %v8826, 0
    %8880 = vmatprep.subr.mxu0 0.0
    %8881 = vmatpush1.msra.mxu0 %v8828
    %8882 = vmatprep.subr.mxu0 0.0
    %8883 = vmatpush1.msra.mxu0 %v8829
    %8884 = vmatprep.subr.mxu0 0.0
    %8885 = vmatpush1.msra.mxu0 %v8830
    %8886 = vmatprep.subr.mxu0 0.0
    %8887 = vmatpush1.msra.mxu0 %v8831
    %8888 = vmatprep.subr.mxu0 0.0
    %8889 = vmatpush1.msra.mxu0 0.0
    %8890 = vmatprep.subr.mxu0 0.0
    %8891 = vmatpush1.msra.mxu0 0.0
    %8892 = vmatprep.subr.mxu0 0.0
    %8893 = vmatpush1.msra.mxu0 0.0
    %8894 = vmatprep.subr.mxu0 0.0
    %8895 = vmatpush1.msra.mxu0 0.0
    %8896 = vmatprep.subr.mxu0 0.0
    %8897 = vmatpush1.msra.mxu0 0.0
    %8898 = vmatprep.subr.mxu0 0.0
    %8899 = vmatpush1.msra.mxu0 0.0
    %8900 = vmatprep.subr.mxu0 0.0
    %8901 = vmatpush1.msra.mxu0 0.0
    %8902 = vmatprep.subr.mxu0 0.0
    %8903 = vmatpush1.msra.mxu0 0.0
    %8904 = vmatprep.subr.mxu0 0.0
    %8905 = vmatpush1.msra.mxu0 0.0
    %8906 = vmatprep.subr.mxu0 0.0
    %8907 = vmatpush1.msra.mxu0 0.0
    %8908 = vmatprep.subr.mxu0 0.0
    %8909 = vmatpush1.msra.mxu0 0.0
    %8910 = vmatprep.subr.mxu0 0.0
    %8911 = vmatpush1.msra.mxu0 0.0
    %8912 = vmatprep.subr.mxu0 0.0
    %8913 = vmatpush1.msra.mxu0 0.0
    %8914 = vmatprep.subr.mxu0 0.0
    %8915 = vmatpush1.msra.mxu0 0.0
    %8916 = vmatprep.subr.mxu0 0.0
    %8917 = vmatpush1.msra.mxu0 0.0
    %8918 = vmatprep.subr.mxu0 0.0
    %8919 = vmatpush1.msra.mxu0 0.0
    %8920 = vmatprep.subr.mxu0 0.0
    %8921 = vmatpush1.msra.mxu0 0.0
    %8922 = vmatprep.subr.mxu0 0.0
    %8923 = vmatpush1.msra.mxu0 0.0
    %8924 = vmatprep.subr.mxu0 0.0
    %8925 = vmatpush1.msra.mxu0 0.0
    %8926 = vmatprep.subr.mxu0 0.0
    %8927 = vmatpush1.msra.mxu0 0.0
    %8928 = vmatprep.subr.mxu0 0.0
    %8929 = vmatpush1.msra.mxu0 0.0
    %8930 = vmatprep.subr.mxu0 0.0
    %8931 = vmatpush1.msra.mxu0 0.0
    %8932 = vmatprep.subr.mxu0 0.0
    %8933 = vmatpush1.msra.mxu0 0.0
    %8934 = vmatprep.subr.mxu0 0.0
    %8935 = vmatpush1.msra.mxu0 0.0
    %8936 = vmatprep.subr.mxu0 0.0
    %8937 = vmatpush1.msra.mxu0 0.0
    %8938 = vmatprep.subr.mxu0 0.0
    %8939 = vmatpush1.msra.mxu0 0.0
    %8940 = vmatprep.subr.mxu0 0.0
    %8941 = vmatpush1.msra.mxu0 0.0
    %8942 = vmatprep.subr.mxu0 0.0
    %8943 = vmatpush1.msra.mxu0 0.0
    %8944 = vmatprep.mubr.f32.mxu0 0.0
    %8945 = vmatmul.mubr.f32.gmra.mrb[0].mxu0 %v8833
    %v8946 = vpop.f32.mrb[0].mxu0
    %v8947 = vadd.f32 0.0, %v8946
    %v8948 = vpop.f32.mrb[0].mxu0
    %8949 = vmatprep.mubr.f32.mxu0 0.0
    %8950 = vmatmul.mubr.f32.gmra.mrb[0].mxu0 %v8836
    %v8951 = vpop.f32.mrb[0].mxu0
    %v8952 = vadd.f32 0.0, %v8951
    %v8953 = vpop.f32.mrb[0].mxu0
    %8954 = vmatprep.mubr.f32.mxu0 0.0
    %8955 = vmatmul.mubr.f32.gmra.mrb[0].mxu0 %v8839
    %v8956 = vpop.f32.mrb[0].mxu0
    %v8957 = vadd.f32 0.0, %v8956
    %v8958 = vpop.f32.mrb[0].mxu0
    %8959 = vmatprep.mubr.f32.mxu0 0.0
    %8960 = vmatmul.mubr.f32.gmra.mrb[0].mxu0 %v8842
    %v8961 = vpop.f32.mrb[0].mxu0
    %v8962 = vadd.f32 0.0, %v8961
    %v8963 = vpop.f32.mrb[0].mxu0
    %8964 = vmatprep.mubr.f32.mxu0 0.0
    %8965 = vmatmul.mubr.f32.gmra.mrb[0].mxu0 %v8845
    %v8966 = vpop.f32.mrb[0].mxu0
    %v8967 = vadd.f32 0.0, %v8966
    %v8968 = vpop.f32.mrb[0].mxu0
    %8969 = vmatprep.mubr.f32.mxu0 0.0
    %8970 = vmatmul.mubr.f32.gmra.mrb[0].mxu0 %v8848
    %v8971 = vpop.f32.mrb[0].mxu0
    %v8972 = vadd.f32 0.0, %v8971
    %v8973 = vpop.f32.mrb[0].mxu0
    %8974 = vmatprep.mubr.f32.mxu0 0.0
    %8975 = vmatmul.mubr.f32.gmra.mrb[0].mxu0 %v8851
    %v8976 = vpop.f32.mrb[0].mxu0
    %v8977 = vadd.f32 0.0, %v8976
    %v8978 = vpop.f32.mrb[0].mxu0
    %8979 = vmatprep.mubr.f32.mxu0 0.0
    %8980 = vmatmul.mubr.f32.gmra.mrb[0].mxu0 %v8854
    %v8981 = vpop.f32.mrb[0].mxu0
    %v8982 = vadd.f32 0.0, %v8981
    %v8983 = vpop.f32.mrb[0].mxu0
    %8984 = vmatprep.mubr.f32.mxu0 0.0
    %8985 = vmatmul.mubr.f32.gmra.mrb[0].mxu0 %v8857
    %v8986 = vpop.f32.mrb[0].mxu0
    %v8987 = vadd.f32 0.0, %v8986
    %v8988 = vpop.f32.mrb[0].mxu0
    %8989 = vmatprep.mubr.f32.mxu0 0.0
    %8990 = vmatmul.mubr.f32.gmra.mrb[0].mxu0 %v8860
    %v8991 = vpop.f32.mrb[0].mxu0
    %v8992 = vadd.f32 0.0, %v8991
    %v8993 = vpop.f32.mrb[0].mxu0
    %8994 = vmatprep.mubr.f32.mxu0 0.0
    %8995 = vmatmul.mubr.f32.gmra.mrb[0].mxu0 %v8863
    %v8996 = vpop.f32.mrb[0].mxu0
    %v8997 = vadd.f32 0.0, %v8996
    %v8998 = vpop.f32.mrb[0].mxu0
    %8999 = vmatprep.mubr.f32.mxu0 0.0
    %9000 = vmatmul.mubr.f32.gmra.mrb[0].mxu0 %v8866
    %v9001 = vpop.f32.mrb[0].mxu0
    %v9002 = vadd.f32 0.0, %v9001
    %v9003 = vpop.f32.mrb[0].mxu0
    %9004 = vmatprep.mubr.f32.mxu0 0.0
    %9005 = vmatmul.mubr.f32.gmra.mrb[0].mxu0 %v8869
    %v9006 = vpop.f32.mrb[0].mxu0
    %v9007 = vadd.f32 0.0, %v9006
    %v9008 = vpop.f32.mrb[0].mxu0
    %9009 = vmatprep.mubr.f32.mxu0 0.0
    %9010 = vmatmul.mubr.f32.gmra.mrb[0].mxu0 %v8872
    %v9011 = vpop.f32.mrb[0].mxu0
    %v9012 = vadd.f32 0.0, %v9011
    %v9013 = vpop.f32.mrb[0].mxu0
    %9014 = vmatprep.mubr.f32.mxu0 0.0
    %9015 = vmatmul.mubr.f32.gmra.mrb[0].mxu0 %v8875
    %v9016 = vpop.f32.mrb[0].mxu0
    %v9017 = vadd.f32 0.0, %v9016
    %v9018 = vpop.f32.mrb[0].mxu0
    %9019 = vmatprep.mubr.f32.mxu0 0.0
    %9020 = vmatmul.mubr.f32.gmra.mrb[0].mxu0 %v8878
    %v9021 = vpop.f32.mrb[0].mxu0
    %v9022 = vadd.f32 0.0, %v9021
    %v9023 = vpop.f32.mrb[0].mxu0
    %9024 = vdwg.mxu0
    %v9025 = vadd.f32 %v8733, %v8947
    %v9026 = vadd.f32 %v8738, %v8952
    %v9027 = vadd.f32 %v8743, %v8957
    %v9028 = vadd.f32 %v8748, %v8962
    %v9029 = vadd.f32 %v8753, %v8967
    %v9030 = vadd.f32 %v8758, %v8972
    %v9031 = vadd.f32 %v8763, %v8977
    %v9032 = vadd.f32 %v8768, %v8982
    %v9033 = vadd.f32 %v8773, %v8987
    %v9034 = vadd.f32 %v8778, %v8992
    %v9035 = vadd.f32 %v8783, %v8997
    %v9036 = vadd.f32 %v8788, %v9002
    %v9037 = vadd.f32 %v8793, %v9007
    %v9038 = vadd.f32 %v8798, %v9012
    %v9039 = vadd.f32 %v8803, %v9017
    %v9040 = vadd.f32 %v8808, %v9022
    %v9041 = vld [vmem:[%s6] sm:$0x1]
    %v9043 = vlaneseq
    %v9044 = vshrl.u32 %v9043, 7
    %v9045 = vsub.s32 0, %v9044
    %v9046 = vrot.slane %v9041, %v9045
    %v9048 = vadd.f32 %v9025, %v9046
    %v9049 = vadd.f32 %v9026, %v9046
    %v9050 = vadd.f32 %v9027, %v9046
    %v9051 = vadd.f32 %v9028, %v9046
    %v9052 = vadd.f32 %v9029, %v9046
    %v9053 = vadd.f32 %v9030, %v9046
    %v9054 = vadd.f32 %v9031, %v9046
    %v9055 = vadd.f32 %v9032, %v9046
    %v9056 = vadd.f32 %v9033, %v9046
    %v9057 = vadd.f32 %v9034, %v9046
    %v9058 = vadd.f32 %v9035, %v9046
    %v9059 = vadd.f32 %v9036, %v9046
    %v9060 = vadd.f32 %v9037, %v9046
    %v9061 = vadd.f32 %v9038, %v9046
    %v9062 = vadd.f32 %v9039, %v9046
    %v9063 = vadd.f32 %v9040, %v9046
    %9064 = vst.msk [vmem:[#allocation4] sm:$0xff] %vm3444, %v9048
    %9065 = vst.msk [vmem:[#allocation4 + $0x8] sm:$0xff] %vm3444, %v9049
    %9066 = vst.msk [vmem:[#allocation4 + $0x10] sm:$0xff] %vm3444, %v9050
    %9067 = vst.msk [vmem:[#allocation4 + $0x18] sm:$0xff] %vm3444, %v9051
    %9068 = vst.msk [vmem:[#allocation4 + $0x20] sm:$0xff] %vm3444, %v9052
    %9069 = vst.msk [vmem:[#allocation4 + $0x28] sm:$0xff] %vm3444, %v9053
    %9070 = vst.msk [vmem:[#allocation4 + $0x30] sm:$0xff] %vm3444, %v9054
    %9071 = vst.msk [vmem:[#allocation4 + $0x38] sm:$0xff] %vm3444, %v9055
    %9072 = vst.msk [vmem:[#allocation4 + $0x40] sm:$0xff] %vm3444, %v9056
    %9073 = vst.msk [vmem:[#allocation4 + $0x48] sm:$0xff] %vm3444, %v9057
    %9074 = vst.msk [vmem:[#allocation4 + $0x50] sm:$0xff] %vm3444, %v9058
    %9075 = vst.msk [vmem:[#allocation4 + $0x58] sm:$0xff] %vm3444, %v9059
    %9076 = vst.msk [vmem:[#allocation4 + $0x60] sm:$0xff] %vm3444, %v9060
    %9077 = vst.msk [vmem:[#allocation4 + $0x68] sm:$0xff] %vm3444, %v9061
    %9078 = vst.msk [vmem:[#allocation4 + $0x70] sm:$0xff] %vm3444, %v9062
    %vm9079 = vcmask 254976
    %9080 = vst.msk [vmem:[#allocation4 + $0x78] sm:$0x3] %vm9079, %v9063
    %v9081 = vsel %vm3444, %v9048, 0.0
    %v9082 = vsel %vm3444, %v9049, 0.0
    %v9083 = vadd.f32 %v9081, %v9082
    %v9084 = vsel %vm3444, %v9050, 0.0
    %v9085 = vadd.f32 %v9083, %v9084
    %v9086 = vsel %vm3444, %v9051, 0.0
    %v9087 = vadd.f32 %v9085, %v9086
    %v9088 = vsel %vm3444, %v9052, 0.0
    %v9089 = vadd.f32 %v9087, %v9088
    %v9090 = vsel %vm3444, %v9053, 0.0
    %v9091 = vadd.f32 %v9089, %v9090
    %v9092 = vsel %vm3444, %v9054, 0.0
    %v9093 = vadd.f32 %v9091, %v9092
    %v9094 = vsel %vm3444, %v9055, 0.0
    %v9095 = vadd.f32 %v9093, %v9094
    %v9096 = vsel %vm3444, %v9056, 0.0
    %v9097 = vadd.f32 %v9095, %v9096
    %v9098 = vsel %vm3444, %v9057, 0.0
    %v9099 = vadd.f32 %v9097, %v9098
    %v9100 = vsel %vm3444, %v9058, 0.0
    %v9101 = vadd.f32 %v9099, %v9100
    %v9102 = vsel %vm3444, %v9059, 0.0
    %v9103 = vadd.f32 %v9101, %v9102
    %v9104 = vsel %vm3444, %v9060, 0.0
    %v9105 = vadd.f32 %v9103, %v9104
    %v9106 = vsel %vm3444, %v9061, 0.0
    %v9107 = vadd.f32 %v9105, %v9106
    %v9108 = vsel %vm3444, %v9062, 0.0
    %v9109 = vadd.f32 %v9107, %v9108
    %v9110 = vsel %vm9079, %v9063, 0.0
    %v9111 = vadd.f32 %v9109, %v9110
    %v9112 = vrot.slane %v9111, 4
    %v9113 = vadd.f32 %v9111, %v9112
    %v9114 = vrot.slane %v9113, 2
    %v9115 = vadd.f32 %v9113, %v9114
    %v9116 = vrot.slane %v9115, 1
    %v9117 = vadd.f32 %v9115, %v9116
    %v9118 = vadd.f32 %v9117, 0.0
    %v9119 = vmul.f32 %v9048, %v9048
    %v9120 = vmul.f32 %v9049, %v9049
    %v9121 = vmul.f32 %v9050, %v9050
    %v9122 = vmul.f32 %v9051, %v9051
    %v9123 = vmul.f32 %v9052, %v9052
    %v9124 = vmul.f32 %v9053, %v9053
    %v9125 = vmul.f32 %v9054, %v9054
    %v9126 = vmul.f32 %v9055, %v9055
    %v9127 = vmul.f32 %v9056, %v9056
    %v9128 = vmul.f32 %v9057, %v9057
    %v9129 = vmul.f32 %v9058, %v9058
    %v9130 = vmul.f32 %v9059, %v9059
    %v9131 = vmul.f32 %v9060, %v9060
    %v9132 = vmul.f32 %v9061, %v9061
    %v9133 = vmul.f32 %v9062, %v9062
    %v9134 = vmul.f32 %v9063, %v9063
    %v9135 = vsel %vm3444, %v9119, 0.0
    %v9136 = vsel %vm3444, %v9120, 0.0
    %v9137 = vadd.f32 %v9135, %v9136
    %v9138 = vsel %vm3444, %v9121, 0.0
    %v9139 = vadd.f32 %v9137, %v9138
    %v9140 = vsel %vm3444, %v9122, 0.0
    %v9141 = vadd.f32 %v9139, %v9140
    %v9142 = vsel %vm3444, %v9123, 0.0
    %v9143 = vadd.f32 %v9141, %v9142
    %v9144 = vsel %vm3444, %v9124, 0.0
    %v9145 = vadd.f32 %v9143, %v9144
    %v9146 = vsel %vm3444, %v9125, 0.0
    %v9147 = vadd.f32 %v9145, %v9146
    %v9148 = vsel %vm3444, %v9126, 0.0
    %v9149 = vadd.f32 %v9147, %v9148
    %v9150 = vsel %vm3444, %v9127, 0.0
    %v9151 = vadd.f32 %v9149, %v9150
    %v9152 = vsel %vm3444, %v9128, 0.0
    %v9153 = vadd.f32 %v9151, %v9152
    %v9154 = vsel %vm3444, %v9129, 0.0
    %v9155 = vadd.f32 %v9153, %v9154
    %v9156 = vsel %vm3444, %v9130, 0.0
    %v9157 = vadd.f32 %v9155, %v9156
    %v9158 = vsel %vm3444, %v9131, 0.0
    %v9159 = vadd.f32 %v9157, %v9158
    %v9160 = vsel %vm3444, %v9132, 0.0
    %v9161 = vadd.f32 %v9159, %v9160
    %v9162 = vsel %vm3444, %v9133, 0.0
    %v9163 = vadd.f32 %v9161, %v9162
    %v9164 = vsel %vm9079, %v9134, 0.0
    %v9165 = vadd.f32 %v9163, %v9164
    %v9166 = vrot.slane %v9165, 4
    %v9167 = vadd.f32 %v9165, %v9166
    %v9168 = vrot.slane %v9167, 2
    %v9169 = vadd.f32 %v9167, %v9168
    %v9170 = vrot.slane %v9169, 1
    %v9171 = vadd.f32 %v9169, %v9170
    %v9172 = vadd.f32 %v9171, 0.0
    %v9173 = vld [vmem:[#allocation3 + $0x7c] sm:$0xff]
    %v9174 = vld [vmem:[#allocation3 + $0x84] sm:$0xff]
    %v9175 = vld [vmem:[#allocation3 + $0x8c] sm:$0xff]
    %v9176 = vld [vmem:[#allocation3 + $0x94] sm:$0xff]
    %v9177 = vld [vmem:[#allocation3 + $0x9c] sm:$0xff]
    %v9178 = vld [vmem:[#allocation3 + $0xa4] sm:$0xff]
    %v9179 = vld [vmem:[#allocation3 + $0xac] sm:$0xff]
    %v9180 = vld [vmem:[#allocation3 + $0xb4] sm:$0xff]
    %v9181 = vld [vmem:[#allocation3 + $0xbc] sm:$0xff]
    %v9182 = vld [vmem:[#allocation3 + $0xc4] sm:$0xff]
    %v9183 = vld [vmem:[#allocation3 + $0xcc] sm:$0xff]
    %v9184 = vld [vmem:[#allocation3 + $0xd4] sm:$0xff]
    %v9185 = vld [vmem:[#allocation3 + $0xdc] sm:$0xff]
    %v9186 = vld [vmem:[#allocation3 + $0xe4] sm:$0xff]
    %v9187 = vld [vmem:[#allocation3 + $0xec] sm:$0xff]
    %v9188 = vld [vmem:[#allocation3 + $0xf4] sm:$0x3]
    %v9189 = vld [vmem:[%s5] sm:$0xff]
    %v9190 = vld [vmem:[%s5 + $0x8] sm:$0xff]
    %v9191 = vld [vmem:[%s5 + $0x10] sm:$0xff]
    %v9192 = vld [vmem:[%s5 + $0x18] sm:$0xff]
    %v9193 = vld [vmem:[#allocation3 + $0x7d] sm:$0xff]
    %v9194 = vld [vmem:[#allocation3 + $0x85] sm:$0xff]
    %v9195 = vld [vmem:[#allocation3 + $0x8d] sm:$0xff]
    %v9196 = vld [vmem:[#allocation3 + $0x95] sm:$0xff]
    %v9197 = vld [vmem:[#allocation3 + $0x9d] sm:$0xff]
    %v9198 = vld [vmem:[#allocation3 + $0xa5] sm:$0xff]
    %v9199 = vld [vmem:[#allocation3 + $0xad] sm:$0xff]
    %v9200 = vld [vmem:[#allocation3 + $0xb5] sm:$0xff]
    %v9201 = vld [vmem:[#allocation3 + $0xbd] sm:$0xff]
    %v9202 = vld [vmem:[#allocation3 + $0xc5] sm:$0xff]
    %v9203 = vld [vmem:[#allocation3 + $0xcd] sm:$0xff]
    %v9204 = vld [vmem:[#allocation3 + $0xd5] sm:$0xff]
    %v9205 = vld [vmem:[#allocation3 + $0xdd] sm:$0xff]
    %v9206 = vld [vmem:[#allocation3 + $0xe5] sm:$0xff]
    %v9207 = vld [vmem:[#allocation3 + $0xed] sm:$0xff]
    %v9208 = vld [vmem:[#allocation3 + $0xf5] sm:$0x3]
    %v9209 = vld [vmem:[%s8420] sm:$0xff]
    %v9210 = vld [vmem:[%s8420 + $0x8] sm:$0xff]
    %v9211 = vld [vmem:[%s8420 + $0x10] sm:$0xff]
    %v9212 = vld [vmem:[%s8420 + $0x18] sm:$0xff]
    %v9214 = vsel %vm3444, %v9193, 0
    %v9217 = vsel %vm3444, %v9194, 0
    %v9220 = vsel %vm3444, %v9195, 0
    %v9223 = vsel %vm3444, %v9196, 0
    %v9226 = vsel %vm3444, %v9197, 0
    %v9229 = vsel %vm3444, %v9198, 0
    %v9232 = vsel %vm3444, %v9199, 0
    %v9235 = vsel %vm3444, %v9200, 0
    %v9238 = vsel %vm3444, %v9201, 0
    %v9241 = vsel %vm3444, %v9202, 0
    %v9244 = vsel %vm3444, %v9203, 0
    %v9247 = vsel %vm3444, %v9204, 0
    %v9250 = vsel %vm3444, %v9205, 0
    %v9253 = vsel %vm3444, %v9206, 0
    %v9256 = vsel %vm3444, %v9207, 0
    %v9259 = vsel %vm3444, %v9208, 0
    %9261 = vmatprep.subr.mxu0 0.0
    %9262 = vmatpush1.msra.mxu0 %v9209
    %9263 = vmatprep.subr.mxu0 0.0
    %9264 = vmatpush1.msra.mxu0 %v9210
    %9265 = vmatprep.subr.mxu0 0.0
    %9266 = vmatpush1.msra.mxu0 %v9211
    %9267 = vmatprep.subr.mxu0 0.0
    %9268 = vmatpush1.msra.mxu0 %v9212
    %9269 = vmatprep.subr.mxu0 0.0
    %9270 = vmatpush1.msra.mxu0 0.0
    %9271 = vmatprep.subr.mxu0 0.0
    %9272 = vmatpush1.msra.mxu0 0.0
    %9273 = vmatprep.subr.mxu0 0.0
    %9274 = vmatpush1.msra.mxu0 0.0
    %9275 = vmatprep.subr.mxu0 0.0
    %9276 = vmatpush1.msra.mxu0 0.0
    %9277 = vmatprep.subr.mxu0 0.0
    %9278 = vmatpush1.msra.mxu0 0.0
    %9279 = vmatprep.subr.mxu0 0.0
    %9280 = vmatpush1.msra.mxu0 0.0
    %9281 = vmatprep.subr.mxu0 0.0
    %9282 = vmatpush1.msra.mxu0 0.0
    %9283 = vmatprep.subr.mxu0 0.0
    %9284 = vmatpush1.msra.mxu0 0.0
    %9285 = vmatprep.subr.mxu0 0.0
    %9286 = vmatpush1.msra.mxu0 0.0
    %9287 = vmatprep.subr.mxu0 0.0
    %9288 = vmatpush1.msra.mxu0 0.0
    %9289 = vmatprep.subr.mxu0 0.0
    %9290 = vmatpush1.msra.mxu0 0.0
    %9291 = vmatprep.subr.mxu0 0.0
    %9292 = vmatpush1.msra.mxu0 0.0
    %9293 = vmatprep.subr.mxu0 0.0
    %9294 = vmatpush1.msra.mxu0 0.0
    %9295 = vmatprep.subr.mxu0 0.0
    %9296 = vmatpush1.msra.mxu0 0.0
    %9297 = vmatprep.subr.mxu0 0.0
    %9298 = vmatpush1.msra.mxu0 0.0
    %9299 = vmatprep.subr.mxu0 0.0
    %9300 = vmatpush1.msra.mxu0 0.0
    %9301 = vmatprep.subr.mxu0 0.0
    %9302 = vmatpush1.msra.mxu0 0.0
    %9303 = vmatprep.subr.mxu0 0.0
    %9304 = vmatpush1.msra.mxu0 0.0
    %9305 = vmatprep.subr.mxu0 0.0
    %9306 = vmatpush1.msra.mxu0 0.0
    %9307 = vmatprep.subr.mxu0 0.0
    %9308 = vmatpush1.msra.mxu0 0.0
    %9309 = vmatprep.subr.mxu0 0.0
    %9310 = vmatpush1.msra.mxu0 0.0
    %9311 = vmatprep.subr.mxu0 0.0
    %9312 = vmatpush1.msra.mxu0 0.0
    %9313 = vmatprep.subr.mxu0 0.0
    %9314 = vmatpush1.msra.mxu0 0.0
    %9315 = vmatprep.subr.mxu0 0.0
    %9316 = vmatpush1.msra.mxu0 0.0
    %9317 = vmatprep.subr.mxu0 0.0
    %9318 = vmatpush1.msra.mxu0 0.0
    %9319 = vmatprep.subr.mxu0 0.0
    %9320 = vmatpush1.msra.mxu0 0.0
    %9321 = vmatprep.subr.mxu0 0.0
    %9322 = vmatpush1.msra.mxu0 0.0
    %9323 = vmatprep.subr.mxu0 0.0
    %9324 = vmatpush1.msra.mxu0 0.0
    %9325 = vmatprep.mubr.f32.mxu0 0.0
    %9326 = vmatmul.mubr.f32.gmra.mrb[0].mxu0 %v9214
    %v9327 = vpop.f32.mrb[0].mxu0
    %v9328 = vadd.f32 0.0, %v9327
    %v9329 = vpop.f32.mrb[0].mxu0
    %9330 = vmatprep.mubr.f32.mxu0 0.0
    %9331 = vmatmul.mubr.f32.gmra.mrb[0].mxu0 %v9217
    %v9332 = vpop.f32.mrb[0].mxu0
    %v9333 = vadd.f32 0.0, %v9332
    %v9334 = vpop.f32.mrb[0].mxu0
    %9335 = vmatprep.mubr.f32.mxu0 0.0
    %9336 = vmatmul.mubr.f32.gmra.mrb[0].mxu0 %v9220
    %v9337 = vpop.f32.mrb[0].mxu0
    %v9338 = vadd.f32 0.0, %v9337
    %v9339 = vpop.f32.mrb[0].mxu0
    %9340 = vmatprep.mubr.f32.mxu0 0.0
    %9341 = vmatmul.mubr.f32.gmra.mrb[0].mxu0 %v9223
    %v9342 = vpop.f32.mrb[0].mxu0
    %v9343 = vadd.f32 0.0, %v9342
    %v9344 = vpop.f32.mrb[0].mxu0
    %9345 = vmatprep.mubr.f32.mxu0 0.0
    %9346 = vmatmul.mubr.f32.gmra.mrb[0].mxu0 %v9226
    %v9347 = vpop.f32.mrb[0].mxu0
    %v9348 = vadd.f32 0.0, %v9347
    %v9349 = vpop.f32.mrb[0].mxu0
    %9350 = vmatprep.mubr.f32.mxu0 0.0
    %9351 = vmatmul.mubr.f32.gmra.mrb[0].mxu0 %v9229
    %v9352 = vpop.f32.mrb[0].mxu0
    %v9353 = vadd.f32 0.0, %v9352
    %v9354 = vpop.f32.mrb[0].mxu0
    %9355 = vmatprep.mubr.f32.mxu0 0.0
    %9356 = vmatmul.mubr.f32.gmra.mrb[0].mxu0 %v9232
    %v9357 = vpop.f32.mrb[0].mxu0
    %v9358 = vadd.f32 0.0, %v9357
    %v9359 = vpop.f32.mrb[0].mxu0
    %9360 = vmatprep.mubr.f32.mxu0 0.0
    %9361 = vmatmul.mubr.f32.gmra.mrb[0].mxu0 %v9235
    %v9362 = vpop.f32.mrb[0].mxu0
    %v9363 = vadd.f32 0.0, %v9362
    %v9364 = vpop.f32.mrb[0].mxu0
    %9365 = vmatprep.mubr.f32.mxu0 0.0
    %9366 = vmatmul.mubr.f32.gmra.mrb[0].mxu0 %v9238
    %v9367 = vpop.f32.mrb[0].mxu0
    %v9368 = vadd.f32 0.0, %v9367
    %v9369 = vpop.f32.mrb[0].mxu0
    %9370 = vmatprep.mubr.f32.mxu0 0.0
    %9371 = vmatmul.mubr.f32.gmra.mrb[0].mxu0 %v9241
    %v9372 = vpop.f32.mrb[0].mxu0
    %v9373 = vadd.f32 0.0, %v9372
    %v9374 = vpop.f32.mrb[0].mxu0
    %9375 = vmatprep.mubr.f32.mxu0 0.0
    %9376 = vmatmul.mubr.f32.gmra.mrb[0].mxu0 %v9244
    %v9377 = vpop.f32.mrb[0].mxu0
    %v9378 = vadd.f32 0.0, %v9377
    %v9379 = vpop.f32.mrb[0].mxu0
    %9380 = vmatprep.mubr.f32.mxu0 0.0
    %9381 = vmatmul.mubr.f32.gmra.mrb[0].mxu0 %v9247
    %v9382 = vpop.f32.mrb[0].mxu0
    %v9383 = vadd.f32 0.0, %v9382
    %v9384 = vpop.f32.mrb[0].mxu0
    %9385 = vmatprep.mubr.f32.mxu0 0.0
    %9386 = vmatmul.mubr.f32.gmra.mrb[0].mxu0 %v9250
    %v9387 = vpop.f32.mrb[0].mxu0
    %v9388 = vadd.f32 0.0, %v9387
    %v9389 = vpop.f32.mrb[0].mxu0
    %9390 = vmatprep.mubr.f32.mxu0 0.0
    %9391 = vmatmul.mubr.f32.gmra.mrb[0].mxu0 %v9253
    %v9392 = vpop.f32.mrb[0].mxu0
    %v9393 = vadd.f32 0.0, %v9392
    %v9394 = vpop.f32.mrb[0].mxu0
    %9395 = vmatprep.mubr.f32.mxu0 0.0
    %9396 = vmatmul.mubr.f32.gmra.mrb[0].mxu0 %v9256
    %v9397 = vpop.f32.mrb[0].mxu0
    %v9398 = vadd.f32 0.0, %v9397
    %v9399 = vpop.f32.mrb[0].mxu0
    %9400 = vmatprep.mubr.f32.mxu0 0.0
    %9401 = vmatmul.mubr.f32.gmra.mrb[0].mxu0 %v9259
    %v9402 = vpop.f32.mrb[0].mxu0
    %v9403 = vadd.f32 0.0, %v9402
    %v9404 = vpop.f32.mrb[0].mxu0
    %9405 = vdwg.mxu0
    %v9407 = vsel %vm3444, %v9173, 0
    %v9410 = vsel %vm3444, %v9174, 0
    %v9413 = vsel %vm3444, %v9175, 0
    %v9416 = vsel %vm3444, %v9176, 0
    %v9419 = vsel %vm3444, %v9177, 0
    %v9422 = vsel %vm3444, %v9178, 0
    %v9425 = vsel %vm3444, %v9179, 0
    %v9428 = vsel %vm3444, %v9180, 0
    %v9431 = vsel %vm3444, %v9181, 0
    %v9434 = vsel %vm3444, %v9182, 0
    %v9437 = vsel %vm3444, %v9183, 0
    %v9440 = vsel %vm3444, %v9184, 0
    %v9443 = vsel %vm3444, %v9185, 0
    %v9446 = vsel %vm3444, %v9186, 0
    %v9449 = vsel %vm3444, %v9187, 0
    %v9452 = vsel %vm3444, %v9188, 0
    %9454 = vmatprep.subr.mxu0 0.0
    %9455 = vmatpush1.msra.mxu0 %v9189
    %9456 = vmatprep.subr.mxu0 0.0
    %9457 = vmatpush1.msra.mxu0 %v9190
    %9458 = vmatprep.subr.mxu0 0.0
    %9459 = vmatpush1.msra.mxu0 %v9191
    %9460 = vmatprep.subr.mxu0 0.0
    %9461 = vmatpush1.msra.mxu0 %v9192
    %9462 = vmatprep.subr.mxu0 0.0
    %9463 = vmatpush1.msra.mxu0 0.0
    %9464 = vmatprep.subr.mxu0 0.0
    %9465 = vmatpush1.msra.mxu0 0.0
    %9466 = vmatprep.subr.mxu0 0.0
    %9467 = vmatpush1.msra.mxu0 0.0
    %9468 = vmatprep.subr.mxu0 0.0
    %9469 = vmatpush1.msra.mxu0 0.0
    %9470 = vmatprep.subr.mxu0 0.0
    %9471 = vmatpush1.msra.mxu0 0.0
    %9472 = vmatprep.subr.mxu0 0.0
    %9473 = vmatpush1.msra.mxu0 0.0
    %9474 = vmatprep.subr.mxu0 0.0
    %9475 = vmatpush1.msra.mxu0 0.0
    %9476 = vmatprep.subr.mxu0 0.0
    %9477 = vmatpush1.msra.mxu0 0.0
    %9478 = vmatprep.subr.mxu0 0.0
    %9479 = vmatpush1.msra.mxu0 0.0
    %9480 = vmatprep.subr.mxu0 0.0
    %9481 = vmatpush1.msra.mxu0 0.0
    %9482 = vmatprep.subr.mxu0 0.0
    %9483 = vmatpush1.msra.mxu0 0.0
    %9484 = vmatprep.subr.mxu0 0.0
    %9485 = vmatpush1.msra.mxu0 0.0
    %9486 = vmatprep.subr.mxu0 0.0
    %9487 = vmatpush1.msra.mxu0 0.0
    %9488 = vmatprep.subr.mxu0 0.0
    %9489 = vmatpush1.msra.mxu0 0.0
    %9490 = vmatprep.subr.mxu0 0.0
    %9491 = vmatpush1.msra.mxu0 0.0
    %9492 = vmatprep.subr.mxu0 0.0
    %9493 = vmatpush1.msra.mxu0 0.0
    %9494 = vmatprep.subr.mxu0 0.0
    %9495 = vmatpush1.msra.mxu0 0.0
    %9496 = vmatprep.subr.mxu0 0.0
    %9497 = vmatpush1.msra.mxu0 0.0
    %9498 = vmatprep.subr.mxu0 0.0
    %9499 = vmatpush1.msra.mxu0 0.0
    %9500 = vmatprep.subr.mxu0 0.0
    %9501 = vmatpush1.msra.mxu0 0.0
    %9502 = vmatprep.subr.mxu0 0.0
    %9503 = vmatpush1.msra.mxu0 0.0
    %9504 = vmatprep.subr.mxu0 0.0
    %9505 = vmatpush1.msra.mxu0 0.0
    %9506 = vmatprep.subr.mxu0 0.0
    %9507 = vmatpush1.msra.mxu0 0.0
    %9508 = vmatprep.subr.mxu0 0.0
    %9509 = vmatpush1.msra.mxu0 0.0
    %9510 = vmatprep.subr.mxu0 0.0
    %9511 = vmatpush1.msra.mxu0 0.0
    %9512 = vmatprep.subr.mxu0 0.0
    %9513 = vmatpush1.msra.mxu0 0.0
    %9514 = vmatprep.subr.mxu0 0.0
    %9515 = vmatpush1.msra.mxu0 0.0
    %9516 = vmatprep.subr.mxu0 0.0
    %9517 = vmatpush1.msra.mxu0 0.0
    %9518 = vmatprep.mubr.f32.mxu0 0.0
    %9519 = vmatmul.mubr.f32.gmra.mrb[0].mxu0 %v9407
    %v9520 = vpop.f32.mrb[0].mxu0
    %v9521 = vadd.f32 %v9328, %v9520
    %v9522 = vpop.f32.mrb[0].mxu0
    %9523 = vmatprep.mubr.f32.mxu0 0.0
    %9524 = vmatmul.mubr.f32.gmra.mrb[0].mxu0 %v9410
    %v9525 = vpop.f32.mrb[0].mxu0
    %v9526 = vadd.f32 %v9333, %v9525
    %v9527 = vpop.f32.mrb[0].mxu0
    %9528 = vmatprep.mubr.f32.mxu0 0.0
    %9529 = vmatmul.mubr.f32.gmra.mrb[0].mxu0 %v9413
    %v9530 = vpop.f32.mrb[0].mxu0
    %v9531 = vadd.f32 %v9338, %v9530
    %v9532 = vpop.f32.mrb[0].mxu0
    %9533 = vmatprep.mubr.f32.mxu0 0.0
    %9534 = vmatmul.mubr.f32.gmra.mrb[0].mxu0 %v9416
    %v9535 = vpop.f32.mrb[0].mxu0
    %v9536 = vadd.f32 %v9343, %v9535
    %v9537 = vpop.f32.mrb[0].mxu0
    %9538 = vmatprep.mubr.f32.mxu0 0.0
    %9539 = vmatmul.mubr.f32.gmra.mrb[0].mxu0 %v9419
    %v9540 = vpop.f32.mrb[0].mxu0
    %v9541 = vadd.f32 %v9348, %v9540
    %v9542 = vpop.f32.mrb[0].mxu0
    %9543 = vmatprep.mubr.f32.mxu0 0.0
    %9544 = vmatmul.mubr.f32.gmra.mrb[0].mxu0 %v9422
    %v9545 = vpop.f32.mrb[0].mxu0
    %v9546 = vadd.f32 %v9353, %v9545
    %v9547 = vpop.f32.mrb[0].mxu0
    %9548 = vmatprep.mubr.f32.mxu0 0.0
    %9549 = vmatmul.mubr.f32.gmra.mrb[0].mxu0 %v9425
    %v9550 = vpop.f32.mrb[0].mxu0
    %v9551 = vadd.f32 %v9358, %v9550
    %v9552 = vpop.f32.mrb[0].mxu0
    %9553 = vmatprep.mubr.f32.mxu0 0.0
    %9554 = vmatmul.mubr.f32.gmra.mrb[0].mxu0 %v9428
    %v9555 = vpop.f32.mrb[0].mxu0
    %v9556 = vadd.f32 %v9363, %v9555
    %v9557 = vpop.f32.mrb[0].mxu0
    %9558 = vmatprep.mubr.f32.mxu0 0.0
    %9559 = vmatmul.mubr.f32.gmra.mrb[0].mxu0 %v9431
    %v9560 = vpop.f32.mrb[0].mxu0
    %v9561 = vadd.f32 %v9368, %v9560
    %v9562 = vpop.f32.mrb[0].mxu0
    %9563 = vmatprep.mubr.f32.mxu0 0.0
    %9564 = vmatmul.mubr.f32.gmra.mrb[0].mxu0 %v9434
    %v9565 = vpop.f32.mrb[0].mxu0
    %v9566 = vadd.f32 %v9373, %v9565
    %v9567 = vpop.f32.mrb[0].mxu0
    %9568 = vmatprep.mubr.f32.mxu0 0.0
    %9569 = vmatmul.mubr.f32.gmra.mrb[0].mxu0 %v9437
    %v9570 = vpop.f32.mrb[0].mxu0
    %v9571 = vadd.f32 %v9378, %v9570
    %v9572 = vpop.f32.mrb[0].mxu0
    %9573 = vmatprep.mubr.f32.mxu0 0.0
    %9574 = vmatmul.mubr.f32.gmra.mrb[0].mxu0 %v9440
    %v9575 = vpop.f32.mrb[0].mxu0
    %v9576 = vadd.f32 %v9383, %v9575
    %v9577 = vpop.f32.mrb[0].mxu0
    %9578 = vmatprep.mubr.f32.mxu0 0.0
    %9579 = vmatmul.mubr.f32.gmra.mrb[0].mxu0 %v9443
    %v9580 = vpop.f32.mrb[0].mxu0
    %v9581 = vadd.f32 %v9388, %v9580
    %v9582 = vpop.f32.mrb[0].mxu0
    %9583 = vmatprep.mubr.f32.mxu0 0.0
    %9584 = vmatmul.mubr.f32.gmra.mrb[0].mxu0 %v9446
    %v9585 = vpop.f32.mrb[0].mxu0
    %v9586 = vadd.f32 %v9393, %v9585
    %v9587 = vpop.f32.mrb[0].mxu0
    %9588 = vmatprep.mubr.f32.mxu0 0.0
    %9589 = vmatmul.mubr.f32.gmra.mrb[0].mxu0 %v9449
    %v9590 = vpop.f32.mrb[0].mxu0
    %v9591 = vadd.f32 %v9398, %v9590
    %v9592 = vpop.f32.mrb[0].mxu0
    %9593 = vmatprep.mubr.f32.mxu0 0.0
    %9594 = vmatmul.mubr.f32.gmra.mrb[0].mxu0 %v9452
    %v9595 = vpop.f32.mrb[0].mxu0
    %v9596 = vadd.f32 %v9403, %v9595
    %v9597 = vpop.f32.mrb[0].mxu0
    %9598 = vdwg.mxu0
    %v9599 = vld [vmem:[#allocation3 + $0x7e] sm:$0xff]
    %v9600 = vld [vmem:[#allocation3 + $0x86] sm:$0xff]
    %v9601 = vld [vmem:[#allocation3 + $0x8e] sm:$0xff]
    %v9602 = vld [vmem:[#allocation3 + $0x96] sm:$0xff]
    %v9603 = vld [vmem:[#allocation3 + $0x9e] sm:$0xff]
    %v9604 = vld [vmem:[#allocation3 + $0xa6] sm:$0xff]
    %v9605 = vld [vmem:[#allocation3 + $0xae] sm:$0xff]
    %v9606 = vld [vmem:[#allocation3 + $0xb6] sm:$0xff]
    %v9607 = vld [vmem:[#allocation3 + $0xbe] sm:$0xff]
    %v9608 = vld [vmem:[#allocation3 + $0xc6] sm:$0xff]
    %v9609 = vld [vmem:[#allocation3 + $0xce] sm:$0xff]
    %v9610 = vld [vmem:[#allocation3 + $0xd6] sm:$0xff]
    %v9611 = vld [vmem:[#allocation3 + $0xde] sm:$0xff]
    %v9612 = vld [vmem:[#allocation3 + $0xe6] sm:$0xff]
    %v9613 = vld [vmem:[#allocation3 + $0xee] sm:$0xff]
    %v9614 = vld [vmem:[#allocation3 + $0xf6] sm:$0x3]
    %v9615 = vld [vmem:[%s8827] sm:$0xff]
    %v9616 = vld [vmem:[%s8827 + $0x8] sm:$0xff]
    %v9617 = vld [vmem:[%s8827 + $0x10] sm:$0xff]
    %v9618 = vld [vmem:[%s8827 + $0x18] sm:$0xff]
    %v9620 = vsel %vm3444, %v9599, 0
    %v9623 = vsel %vm3444, %v9600, 0
    %v9626 = vsel %vm3444, %v9601, 0
    %v9629 = vsel %vm3444, %v9602, 0
    %v9632 = vsel %vm3444, %v9603, 0
    %v9635 = vsel %vm3444, %v9604, 0
    %v9638 = vsel %vm3444, %v9605, 0
    %v9641 = vsel %vm3444, %v9606, 0
    %v9644 = vsel %vm3444, %v9607, 0
    %v9647 = vsel %vm3444, %v9608, 0
    %v9650 = vsel %vm3444, %v9609, 0
    %v9653 = vsel %vm3444, %v9610, 0
    %v9656 = vsel %vm3444, %v9611, 0
    %v9659 = vsel %vm3444, %v9612, 0
    %v9662 = vsel %vm3444, %v9613, 0
    %v9665 = vsel %vm3444, %v9614, 0
    %9667 = vmatprep.subr.mxu0 0.0
    %9668 = vmatpush1.msra.mxu0 %v9615
    %9669 = vmatprep.subr.mxu0 0.0
    %9670 = vmatpush1.msra.mxu0 %v9616
    %9671 = vmatprep.subr.mxu0 0.0
    %9672 = vmatpush1.msra.mxu0 %v9617
    %9673 = vmatprep.subr.mxu0 0.0
    %9674 = vmatpush1.msra.mxu0 %v9618
    %9675 = vmatprep.subr.mxu0 0.0
    %9676 = vmatpush1.msra.mxu0 0.0
    %9677 = vmatprep.subr.mxu0 0.0
    %9678 = vmatpush1.msra.mxu0 0.0
    %9679 = vmatprep.subr.mxu0 0.0
    %9680 = vmatpush1.msra.mxu0 0.0
    %9681 = vmatprep.subr.mxu0 0.0
    %9682 = vmatpush1.msra.mxu0 0.0
    %9683 = vmatprep.subr.mxu0 0.0
    %9684 = vmatpush1.msra.mxu0 0.0
    %9685 = vmatprep.subr.mxu0 0.0
    %9686 = vmatpush1.msra.mxu0 0.0
    %9687 = vmatprep.subr.mxu0 0.0
    %9688 = vmatpush1.msra.mxu0 0.0
    %9689 = vmatprep.subr.mxu0 0.0
    %9690 = vmatpush1.msra.mxu0 0.0
    %9691 = vmatprep.subr.mxu0 0.0
    %9692 = vmatpush1.msra.mxu0 0.0
    %9693 = vmatprep.subr.mxu0 0.0
    %9694 = vmatpush1.msra.mxu0 0.0
    %9695 = vmatprep.subr.mxu0 0.0
    %9696 = vmatpush1.msra.mxu0 0.0
    %9697 = vmatprep.subr.mxu0 0.0
    %9698 = vmatpush1.msra.mxu0 0.0
    %9699 = vmatprep.subr.mxu0 0.0
    %9700 = vmatpush1.msra.mxu0 0.0
    %9701 = vmatprep.subr.mxu0 0.0
    %9702 = vmatpush1.msra.mxu0 0.0
    %9703 = vmatprep.subr.mxu0 0.0
    %9704 = vmatpush1.msra.mxu0 0.0
    %9705 = vmatprep.subr.mxu0 0.0
    %9706 = vmatpush1.msra.mxu0 0.0
    %9707 = vmatprep.subr.mxu0 0.0
    %9708 = vmatpush1.msra.mxu0 0.0
    %9709 = vmatprep.subr.mxu0 0.0
    %9710 = vmatpush1.msra.mxu0 0.0
    %9711 = vmatprep.subr.mxu0 0.0
    %9712 = vmatpush1.msra.mxu0 0.0
    %9713 = vmatprep.subr.mxu0 0.0
    %9714 = vmatpush1.msra.mxu0 0.0
    %9715 = vmatprep.subr.mxu0 0.0
    %9716 = vmatpush1.msra.mxu0 0.0
    %9717 = vmatprep.subr.mxu0 0.0
    %9718 = vmatpush1.msra.mxu0 0.0
    %9719 = vmatprep.subr.mxu0 0.0
    %9720 = vmatpush1.msra.mxu0 0.0
    %9721 = vmatprep.subr.mxu0 0.0
    %9722 = vmatpush1.msra.mxu0 0.0
    %9723 = vmatprep.subr.mxu0 0.0
    %9724 = vmatpush1.msra.mxu0 0.0
    %9725 = vmatprep.subr.mxu0 0.0
    %9726 = vmatpush1.msra.mxu0 0.0
    %9727 = vmatprep.subr.mxu0 0.0
    %9728 = vmatpush1.msra.mxu0 0.0
    %9729 = vmatprep.subr.mxu0 0.0
    %9730 = vmatpush1.msra.mxu0 0.0
    %9731 = vmatprep.mubr.f32.mxu0 0.0
    %9732 = vmatmul.mubr.f32.gmra.mrb[0].mxu0 %v9620
    %v9733 = vpop.f32.mrb[0].mxu0
    %v9734 = vadd.f32 0.0, %v9733
    %v9735 = vpop.f32.mrb[0].mxu0
    %9736 = vmatprep.mubr.f32.mxu0 0.0
    %9737 = vmatmul.mubr.f32.gmra.mrb[0].mxu0 %v9623
    %v9738 = vpop.f32.mrb[0].mxu0
    %v9739 = vadd.f32 0.0, %v9738
    %v9740 = vpop.f32.mrb[0].mxu0
    %9741 = vmatprep.mubr.f32.mxu0 0.0
    %9742 = vmatmul.mubr.f32.gmra.mrb[0].mxu0 %v9626
    %v9743 = vpop.f32.mrb[0].mxu0
    %v9744 = vadd.f32 0.0, %v9743
    %v9745 = vpop.f32.mrb[0].mxu0
    %9746 = vmatprep.mubr.f32.mxu0 0.0
    %9747 = vmatmul.mubr.f32.gmra.mrb[0].mxu0 %v9629
    %v9748 = vpop.f32.mrb[0].mxu0
    %v9749 = vadd.f32 0.0, %v9748
    %v9750 = vpop.f32.mrb[0].mxu0
    %9751 = vmatprep.mubr.f32.mxu0 0.0
    %9752 = vmatmul.mubr.f32.gmra.mrb[0].mxu0 %v9632
    %v9753 = vpop.f32.mrb[0].mxu0
    %v9754 = vadd.f32 0.0, %v9753
    %v9755 = vpop.f32.mrb[0].mxu0
    %9756 = vmatprep.mubr.f32.mxu0 0.0
    %9757 = vmatmul.mubr.f32.gmra.mrb[0].mxu0 %v9635
    %v9758 = vpop.f32.mrb[0].mxu0
    %v9759 = vadd.f32 0.0, %v9758
    %v9760 = vpop.f32.mrb[0].mxu0
    %9761 = vmatprep.mubr.f32.mxu0 0.0
    %9762 = vmatmul.mubr.f32.gmra.mrb[0].mxu0 %v9638
    %v9763 = vpop.f32.mrb[0].mxu0
    %v9764 = vadd.f32 0.0, %v9763
    %v9765 = vpop.f32.mrb[0].mxu0
    %9766 = vmatprep.mubr.f32.mxu0 0.0
    %9767 = vmatmul.mubr.f32.gmra.mrb[0].mxu0 %v9641
    %v9768 = vpop.f32.mrb[0].mxu0
    %v9769 = vadd.f32 0.0, %v9768
    %v9770 = vpop.f32.mrb[0].mxu0
    %9771 = vmatprep.mubr.f32.mxu0 0.0
    %9772 = vmatmul.mubr.f32.gmra.mrb[0].mxu0 %v9644
    %v9773 = vpop.f32.mrb[0].mxu0
    %v9774 = vadd.f32 0.0, %v9773
    %v9775 = vpop.f32.mrb[0].mxu0
    %9776 = vmatprep.mubr.f32.mxu0 0.0
    %9777 = vmatmul.mubr.f32.gmra.mrb[0].mxu0 %v9647
    %v9778 = vpop.f32.mrb[0].mxu0
    %v9779 = vadd.f32 0.0, %v9778
    %v9780 = vpop.f32.mrb[0].mxu0
    %9781 = vmatprep.mubr.f32.mxu0 0.0
    %9782 = vmatmul.mubr.f32.gmra.mrb[0].mxu0 %v9650
    %v9783 = vpop.f32.mrb[0].mxu0
    %v9784 = vadd.f32 0.0, %v9783
    %v9785 = vpop.f32.mrb[0].mxu0
    %9786 = vmatprep.mubr.f32.mxu0 0.0
    %9787 = vmatmul.mubr.f32.gmra.mrb[0].mxu0 %v9653
    %v9788 = vpop.f32.mrb[0].mxu0
    %v9789 = vadd.f32 0.0, %v9788
    %v9790 = vpop.f32.mrb[0].mxu0
    %9791 = vmatprep.mubr.f32.mxu0 0.0
    %9792 = vmatmul.mubr.f32.gmra.mrb[0].mxu0 %v9656
    %v9793 = vpop.f32.mrb[0].mxu0
    %v9794 = vadd.f32 0.0, %v9793
    %v9795 = vpop.f32.mrb[0].mxu0
    %9796 = vmatprep.mubr.f32.mxu0 0.0
    %9797 = vmatmul.mubr.f32.gmra.mrb[0].mxu0 %v9659
    %v9798 = vpop.f32.mrb[0].mxu0
    %v9799 = vadd.f32 0.0, %v9798
    %v9800 = vpop.f32.mrb[0].mxu0
    %9801 = vmatprep.mubr.f32.mxu0 0.0
    %9802 = vmatmul.mubr.f32.gmra.mrb[0].mxu0 %v9662
    %v9803 = vpop.f32.mrb[0].mxu0
    %v9804 = vadd.f32 0.0, %v9803
    %v9805 = vpop.f32.mrb[0].mxu0
    %9806 = vmatprep.mubr.f32.mxu0 0.0
    %9807 = vmatmul.mubr.f32.gmra.mrb[0].mxu0 %v9665
    %v9808 = vpop.f32.mrb[0].mxu0
    %v9809 = vadd.f32 0.0, %v9808
    %v9810 = vpop.f32.mrb[0].mxu0
    %9811 = vdwg.mxu0
    %v9812 = vadd.f32 %v9521, %v9734
    %v9813 = vadd.f32 %v9526, %v9739
    %v9814 = vadd.f32 %v9531, %v9744
    %v9815 = vadd.f32 %v9536, %v9749
    %v9816 = vadd.f32 %v9541, %v9754
    %v9817 = vadd.f32 %v9546, %v9759
    %v9818 = vadd.f32 %v9551, %v9764
    %v9819 = vadd.f32 %v9556, %v9769
    %v9820 = vadd.f32 %v9561, %v9774
    %v9821 = vadd.f32 %v9566, %v9779
    %v9822 = vadd.f32 %v9571, %v9784
    %v9823 = vadd.f32 %v9576, %v9789
    %v9824 = vadd.f32 %v9581, %v9794
    %v9825 = vadd.f32 %v9586, %v9799
    %v9826 = vadd.f32 %v9591, %v9804
    %v9827 = vadd.f32 %v9596, %v9809
    %v9828 = vld [vmem:[%s6] sm:$0x1]
    %v9830 = vlaneseq
    %v9831 = vshrl.u32 %v9830, 7
    %v9832 = vsub.s32 0, %v9831
    %v9833 = vrot.slane %v9828, %v9832
    %v9835 = vadd.f32 %v9812, %v9833
    %v9836 = vadd.f32 %v9813, %v9833
    %v9837 = vadd.f32 %v9814, %v9833
    %v9838 = vadd.f32 %v9815, %v9833
    %v9839 = vadd.f32 %v9816, %v9833
    %v9840 = vadd.f32 %v9817, %v9833
    %v9841 = vadd.f32 %v9818, %v9833
    %v9842 = vadd.f32 %v9819, %v9833
    %v9843 = vadd.f32 %v9820, %v9833
    %v9844 = vadd.f32 %v9821, %v9833
    %v9845 = vadd.f32 %v9822, %v9833
    %v9846 = vadd.f32 %v9823, %v9833
    %v9847 = vadd.f32 %v9824, %v9833
    %v9848 = vadd.f32 %v9825, %v9833
    %v9849 = vadd.f32 %v9826, %v9833
    %v9850 = vadd.f32 %v9827, %v9833
    %9851 = vst.msk [vmem:[#allocation4 + $0x7a] sm:$0xff] %vm3444, %v9835
    %9852 = vst.msk [vmem:[#allocation4 + $0x82] sm:$0xff] %vm3444, %v9836
    %9853 = vst.msk [vmem:[#allocation4 + $0x8a] sm:$0xff] %vm3444, %v9837
    %9854 = vst.msk [vmem:[#allocation4 + $0x92] sm:$0xff] %vm3444, %v9838
    %9855 = vst.msk [vmem:[#allocation4 + $0x9a] sm:$0xff] %vm3444, %v9839
    %9856 = vst.msk [vmem:[#allocation4 + $0xa2] sm:$0xff] %vm3444, %v9840
    %9857 = vst.msk [vmem:[#allocation4 + $0xaa] sm:$0xff] %vm3444, %v9841
    %9858 = vst.msk [vmem:[#allocation4 + $0xb2] sm:$0xff] %vm3444, %v9842
    %9859 = vst.msk [vmem:[#allocation4 + $0xba] sm:$0xff] %vm3444, %v9843
    %9860 = vst.msk [vmem:[#allocation4 + $0xc2] sm:$0xff] %vm3444, %v9844
    %9861 = vst.msk [vmem:[#allocation4 + $0xca] sm:$0xff] %vm3444, %v9845
    %9862 = vst.msk [vmem:[#allocation4 + $0xd2] sm:$0xff] %vm3444, %v9846
    %9863 = vst.msk [vmem:[#allocation4 + $0xda] sm:$0xff] %vm3444, %v9847
    %9864 = vst.msk [vmem:[#allocation4 + $0xe2] sm:$0xff] %vm3444, %v9848
    %9865 = vst.msk [vmem:[#allocation4 + $0xea] sm:$0xff] %vm3444, %v9849
    %9866 = vst.msk [vmem:[#allocation4 + $0xf2] sm:$0x3] %vm9079, %v9850
    %v9867 = vsel %vm3444, %v9835, 0.0
    %v9868 = vsel %vm3444, %v9836, 0.0
    %v9869 = vadd.f32 %v9867, %v9868
    %v9870 = vsel %vm3444, %v9837, 0.0
    %v9871 = vadd.f32 %v9869, %v9870
    %v9872 = vsel %vm3444, %v9838, 0.0
    %v9873 = vadd.f32 %v9871, %v9872
    %v9874 = vsel %vm3444, %v9839, 0.0
    %v9875 = vadd.f32 %v9873, %v9874
    %v9876 = vsel %vm3444, %v9840, 0.0
    %v9877 = vadd.f32 %v9875, %v9876
    %v9878 = vsel %vm3444, %v9841, 0.0
    %v9879 = vadd.f32 %v9877, %v9878
    %v9880 = vsel %vm3444, %v9842, 0.0
    %v9881 = vadd.f32 %v9879, %v9880
    %v9882 = vsel %vm3444, %v9843, 0.0
    %v9883 = vadd.f32 %v9881, %v9882
    %v9884 = vsel %vm3444, %v9844, 0.0
    %v9885 = vadd.f32 %v9883, %v9884
    %v9886 = vsel %vm3444, %v9845, 0.0
    %v9887 = vadd.f32 %v9885, %v9886
    %v9888 = vsel %vm3444, %v9846, 0.0
    %v9889 = vadd.f32 %v9887, %v9888
    %v9890 = vsel %vm3444, %v9847, 0.0
    %v9891 = vadd.f32 %v9889, %v9890
    %v9892 = vsel %vm3444, %v9848, 0.0
    %v9893 = vadd.f32 %v9891, %v9892
    %v9894 = vsel %vm3444, %v9849, 0.0
    %v9895 = vadd.f32 %v9893, %v9894
    %v9896 = vsel %vm9079, %v9850, 0.0
    %v9897 = vadd.f32 %v9895, %v9896
    %v9898 = vrot.slane %v9897, 4
    %v9899 = vadd.f32 %v9897, %v9898
    %v9900 = vrot.slane %v9899, 2
    %v9901 = vadd.f32 %v9899, %v9900
    %v9902 = vrot.slane %v9901, 1
    %v9903 = vadd.f32 %v9901, %v9902
    %v9904 = vadd.f32 %v9118, %v9903
    %v9905 = vmul.f32 %v9835, %v9835
    %v9906 = vmul.f32 %v9836, %v9836
    %v9907 = vmul.f32 %v9837, %v9837
    %v9908 = vmul.f32 %v9838, %v9838
    %v9909 = vmul.f32 %v9839, %v9839
    %v9910 = vmul.f32 %v9840, %v9840
    %v9911 = vmul.f32 %v9841, %v9841
    %v9912 = vmul.f32 %v9842, %v9842
    %v9913 = vmul.f32 %v9843, %v9843
    %v9914 = vmul.f32 %v9844, %v9844
    %v9915 = vmul.f32 %v9845, %v9845
    %v9916 = vmul.f32 %v9846, %v9846
    %v9917 = vmul.f32 %v9847, %v9847
    %v9918 = vmul.f32 %v9848, %v9848
    %v9919 = vmul.f32 %v9849, %v9849
    %v9920 = vmul.f32 %v9850, %v9850
    %v9921 = vsel %vm3444, %v9905, 0.0
    %v9922 = vsel %vm3444, %v9906, 0.0
    %v9923 = vadd.f32 %v9921, %v9922
    %v9924 = vsel %vm3444, %v9907, 0.0
    %v9925 = vadd.f32 %v9923, %v9924
    %v9926 = vsel %vm3444, %v9908, 0.0
    %v9927 = vadd.f32 %v9925, %v9926
    %v9928 = vsel %vm3444, %v9909, 0.0
    %v9929 = vadd.f32 %v9927, %v9928
    %v9930 = vsel %vm3444, %v9910, 0.0
    %v9931 = vadd.f32 %v9929, %v9930
    %v9932 = vsel %vm3444, %v9911, 0.0
    %v9933 = vadd.f32 %v9931, %v9932
    %v9934 = vsel %vm3444, %v9912, 0.0
    %v9935 = vadd.f32 %v9933, %v9934
    %v9936 = vsel %vm3444, %v9913, 0.0
    %v9937 = vadd.f32 %v9935, %v9936
    %v9938 = vsel %vm3444, %v9914, 0.0
    %v9939 = vadd.f32 %v9937, %v9938
    %v9940 = vsel %vm3444, %v9915, 0.0
    %v9941 = vadd.f32 %v9939, %v9940
    %v9942 = vsel %vm3444, %v9916, 0.0
    %v9943 = vadd.f32 %v9941, %v9942
    %v9944 = vsel %vm3444, %v9917, 0.0
    %v9945 = vadd.f32 %v9943, %v9944
    %v9946 = vsel %vm3444, %v9918, 0.0
    %v9947 = vadd.f32 %v9945, %v9946
    %v9948 = vsel %vm3444, %v9919, 0.0
    %v9949 = vadd.f32 %v9947, %v9948
    %v9950 = vsel %vm9079, %v9920, 0.0
    %v9951 = vadd.f32 %v9949, %v9950
    %v9952 = vrot.slane %v9951, 4
    %v9953 = vadd.f32 %v9951, %v9952
    %v9954 = vrot.slane %v9953, 2
    %v9955 = vadd.f32 %v9953, %v9954
    %v9956 = vrot.slane %v9955, 1
    %v9957 = vadd.f32 %v9955, %v9956
    %v9958 = vadd.f32 %v9172, %v9957
    %v9959 = vmul.f32 %v9904, 0.0040983604
    %v9960 = vmul.f32 %v9958, 0.0040983604
    %v9961 = vmul.f32 %v9959, %v9959
    %v9962 = vsub.f32 %v9960, %v9961
    %v9963 = vld [vmem:[%s7] sm:$0x1]
    %v9964 = vadd.f32 %v9962, 1e-05
    %v9965 = vrsqrt.pop %v9964
    %v9966 = vmul.f32 %v9963, %v9965
    %v9967 = vld [vmem:[%s8] sm:$0x1]
    %v9968 = vmul.f32 %v9959, %v9966
    %v9969 = vsub.f32 %v9967, %v9968
    %v9970 = vld [vmem:[#allocation4] ss:$4 sm:$0xff]
    %s9971 = scalar_lea.vmem [#allocation4], 32
    %v9972 = vld [vmem:[%s9971] ss:$4 sm:$0xff]
    %s9973 = scalar_lea.vmem [#allocation4], 64
    %v9974 = vld [vmem:[%s9973] ss:$4 sm:$0xff]
    %s9975 = scalar_lea.vmem [#allocation4], 96
    %v9976 = vld [vmem:[%s9975] ss:$4 sm:$0x3f]
    %v9978 = vlaneseq
    %v9979 = vshrl.u32 %v9978, 7
    %v9980 = vsub.s32 0, %v9979
    %v9981 = vrot.slane %v9966, %v9980
    %v9983 = vmul.f32 %v9970, %v9981
    %v9984 = vmul.f32 %v9972, %v9981
    %v9985 = vmul.f32 %v9974, %v9981
    %v9986 = vmul.f32 %v9976, %v9981
    %v9988 = vlaneseq
    %v9989 = vshrl.u32 %v9988, 7
    %v9990 = vsub.s32 0, %v9989
    %v9991 = vrot.slane %v9969, %v9990
    %v9993 = vadd.f32 %v9983, %v9991
    %v9994 = vadd.f32 %v9984, %v9991
    %v9995 = vadd.f32 %v9985, %v9991
    %v9996 = vadd.f32 %v9986, %v9991
    %v9997 = vmax.f32 %v9993, 0.0
    %v9998 = vmax.f32 %v9994, 0.0
    %v9999 = vmax.f32 %v9995, 0.0
    %v10000 = vmax.f32 %v9996, 0.0
    %s10001 = scalar_lea.vmem [#allocation4], 1
    %v10002 = vld [vmem:[%s10001] ss:$4 sm:$0xff]
    %s10003 = scalar_lea.vmem [#allocation4], 33
    %v10004 = vld [vmem:[%s10003] ss:$4 sm:$0xff]
    %s10005 = scalar_lea.vmem [#allocation4], 65
    %v10006 = vld [vmem:[%s10005] ss:$4 sm:$0xff]
    %s10007 = scalar_lea.vmem [#allocation4], 97
    %v10008 = vld [vmem:[%s10007] ss:$4 sm:$0x3f]
    %v10009 = vmul.f32 %v10002, %v9981
    %v10010 = vmul.f32 %v10004, %v9981
    %v10011 = vmul.f32 %v10006, %v9981
    %v10012 = vmul.f32 %v10008, %v9981
    %v10013 = vadd.f32 %v10009, %v9991
    %v10014 = vadd.f32 %v10010, %v9991
    %v10015 = vadd.f32 %v10011, %v9991
    %v10016 = vadd.f32 %v10012, %v9991
    %v10017 = vmax.f32 %v10013, 0.0
    %v10018 = vmax.f32 %v10014, 0.0
    %v10019 = vmax.f32 %v10015, 0.0
    %v10020 = vmax.f32 %v10016, 0.0
    %v10021 = vmax.f32 %v9997, %v10017
    %v10022 = vmax.f32 %v9998, %v10018
    %v10023 = vmax.f32 %v9999, %v10019
    %v10024 = vmax.f32 %v10000, %v10020
    %s10025 = scalar_lea.vmem [#allocation4], 2
    %v10026 = vld [vmem:[%s10025] ss:$4 sm:$0xff]
    %s10027 = scalar_lea.vmem [#allocation4], 34
    %v10028 = vld [vmem:[%s10027] ss:$4 sm:$0xff]
    %s10029 = scalar_lea.vmem [#allocation4], 66
    %v10030 = vld [vmem:[%s10029] ss:$4 sm:$0xff]
    %s10031 = scalar_lea.vmem [#allocation4], 98
    %v10032 = vld [vmem:[%s10031] ss:$4 sm:$0x3f]
    %v10033 = vmul.f32 %v10026, %v9981
    %v10034 = vmul.f32 %v10028, %v9981
    %v10035 = vmul.f32 %v10030, %v9981
    %v10036 = vmul.f32 %v10032, %v9981
    %v10037 = vadd.f32 %v10033, %v9991
    %v10038 = vadd.f32 %v10034, %v9991
    %v10039 = vadd.f32 %v10035, %v9991
    %v10040 = vadd.f32 %v10036, %v9991
    %v10041 = vmax.f32 %v10037, 0.0
    %v10042 = vmax.f32 %v10038, 0.0
    %v10043 = vmax.f32 %v10039, 0.0
    %v10044 = vmax.f32 %v10040, 0.0
    %v10045 = vmax.f32 %v10021, %v10041
    %v10046 = vmax.f32 %v10022, %v10042
    %v10047 = vmax.f32 %v10023, %v10043
    %v10048 = vmax.f32 %v10024, %v10044
    %s10049 = scalar_lea.vmem [#allocation4], 3
    %v10050 = vld [vmem:[%s10049] ss:$4 sm:$0xff]
    %s10051 = scalar_lea.vmem [#allocation4], 35
    %v10052 = vld [vmem:[%s10051] ss:$4 sm:$0xff]
    %s10053 = scalar_lea.vmem [#allocation4], 67
    %v10054 = vld [vmem:[%s10053] ss:$4 sm:$0xff]
    %s10055 = scalar_lea.vmem [#allocation4], 99
    %v10056 = vld [vmem:[%s10055] ss:$4 sm:$0x3f]
    %v10057 = vmul.f32 %v10050, %v9981
    %v10058 = vmul.f32 %v10052, %v9981
    %v10059 = vmul.f32 %v10054, %v9981
    %v10060 = vmul.f32 %v10056, %v9981
    %v10061 = vadd.f32 %v10057, %v9991
    %v10062 = vadd.f32 %v10058, %v9991
    %v10063 = vadd.f32 %v10059, %v9991
    %v10064 = vadd.f32 %v10060, %v9991
    %v10065 = vmax.f32 %v10061, 0.0
    %v10066 = vmax.f32 %v10062, 0.0
    %v10067 = vmax.f32 %v10063, 0.0
    %v10068 = vmax.f32 %v10064, 0.0
    %v10069 = vmax.f32 %v10045, %v10065
    %v10070 = vmax.f32 %v10046, %v10066
    %v10071 = vmax.f32 %v10047, %v10067
    %v10072 = vmax.f32 %v10048, %v10068
    %10073 = vst.msk [vmem:[#allocation5] sm:$0xff] %vm3444, %v10069
    %10074 = vst.msk [vmem:[#allocation5 + $0x8] sm:$0xff] %vm3444, %v10070
    %10075 = vst.msk [vmem:[#allocation5 + $0x10] sm:$0xff] %vm3444, %v10071
    %vm10076 = vcmask 259072
    %10077 = vst.msk [vmem:[#allocation5 + $0x18] sm:$0x3f] %vm10076, %v10072
    %s10078 = scalar_lea.vmem [#allocation4], 122
    %v10079 = vld [vmem:[%s10078] ss:$4 sm:$0xff]
    %s10080 = scalar_lea.vmem [#allocation4], 154
    %v10081 = vld [vmem:[%s10080] ss:$4 sm:$0xff]
    %s10082 = scalar_lea.vmem [#allocation4], 186
    %v10083 = vld [vmem:[%s10082] ss:$4 sm:$0xff]
    %s10084 = scalar_lea.vmem [#allocation4], 218
    %v10085 = vld [vmem:[%s10084] ss:$4 sm:$0x3f]
    %v10086 = vmul.f32 %v10079, %v9981
    %v10087 = vmul.f32 %v10081, %v9981
    %v10088 = vmul.f32 %v10083, %v9981
    %v10089 = vmul.f32 %v10085, %v9981
    %v10090 = vadd.f32 %v10086, %v9991
    %v10091 = vadd.f32 %v10087, %v9991
    %v10092 = vadd.f32 %v10088, %v9991
    %v10093 = vadd.f32 %v10089, %v9991
    %v10094 = vmax.f32 %v10090, 0.0
    %v10095 = vmax.f32 %v10091, 0.0
    %v10096 = vmax.f32 %v10092, 0.0
    %v10097 = vmax.f32 %v10093, 0.0
    %s10098 = scalar_lea.vmem [#allocation4], 123
    %v10099 = vld [vmem:[%s10098] ss:$4 sm:$0xff]
    %s10100 = scalar_lea.vmem [#allocation4], 155
    %v10101 = vld [vmem:[%s10100] ss:$4 sm:$0xff]
    %s10102 = scalar_lea.vmem [#allocation4], 187
    %v10103 = vld [vmem:[%s10102] ss:$4 sm:$0xff]
    %s10104 = scalar_lea.vmem [#allocation4], 219
    %v10105 = vld [vmem:[%s10104] ss:$4 sm:$0x3f]
    %v10106 = vmul.f32 %v10099, %v9981
    %v10107 = vmul.f32 %v10101, %v9981
    %v10108 = vmul.f32 %v10103, %v9981
    %v10109 = vmul.f32 %v10105, %v9981
    %v10110 = vadd.f32 %v10106, %v9991
    %v10111 = vadd.f32 %v10107, %v9991
    %v10112 = vadd.f32 %v10108, %v9991
    %v10113 = vadd.f32 %v10109, %v9991
    %v10114 = vmax.f32 %v10110, 0.0
    %v10115 = vmax.f32 %v10111, 0.0
    %v10116 = vmax.f32 %v10112, 0.0
    %v10117 = vmax.f32 %v10113, 0.0
    %v10118 = vmax.f32 %v10094, %v10114
    %v10119 = vmax.f32 %v10095, %v10115
    %v10120 = vmax.f32 %v10096, %v10116
    %v10121 = vmax.f32 %v10097, %v10117
    %s10122 = scalar_lea.vmem [#allocation4], 124
    %v10123 = vld [vmem:[%s10122] ss:$4 sm:$0xff]
    %s10124 = scalar_lea.vmem [#allocation4], 156
    %v10125 = vld [vmem:[%s10124] ss:$4 sm:$0xff]
    %s10126 = scalar_lea.vmem [#allocation4], 188
    %v10127 = vld [vmem:[%s10126] ss:$4 sm:$0xff]
    %s10128 = scalar_lea.vmem [#allocation4], 220
    %v10129 = vld [vmem:[%s10128] ss:$4 sm:$0x3f]
    %v10130 = vmul.f32 %v10123, %v9981
    %v10131 = vmul.f32 %v10125, %v9981
    %v10132 = vmul.f32 %v10127, %v9981
    %v10133 = vmul.f32 %v10129, %v9981
    %v10134 = vadd.f32 %v10130, %v9991
    %v10135 = vadd.f32 %v10131, %v9991
    %v10136 = vadd.f32 %v10132, %v9991
    %v10137 = vadd.f32 %v10133, %v9991
    %v10138 = vmax.f32 %v10134, 0.0
    %v10139 = vmax.f32 %v10135, 0.0
    %v10140 = vmax.f32 %v10136, 0.0
    %v10141 = vmax.f32 %v10137, 0.0
    %v10142 = vmax.f32 %v10118, %v10138
    %v10143 = vmax.f32 %v10119, %v10139
    %v10144 = vmax.f32 %v10120, %v10140
    %v10145 = vmax.f32 %v10121, %v10141
    %s10146 = scalar_lea.vmem [#allocation4], 125
    %v10147 = vld [vmem:[%s10146] ss:$4 sm:$0xff]
    %s10148 = scalar_lea.vmem [#allocation4], 157
    %v10149 = vld [vmem:[%s10148] ss:$4 sm:$0xff]
    %s10150 = scalar_lea.vmem [#allocation4], 189
    %v10151 = vld [vmem:[%s10150] ss:$4 sm:$0xff]
    %s10152 = scalar_lea.vmem [#allocation4], 221
    %v10153 = vld [vmem:[%s10152] ss:$4 sm:$0x3f]
    %v10154 = vmul.f32 %v10147, %v9981
    %v10155 = vmul.f32 %v10149, %v9981
    %v10156 = vmul.f32 %v10151, %v9981
    %v10157 = vmul.f32 %v10153, %v9981
    %v10158 = vadd.f32 %v10154, %v9991
    %v10159 = vadd.f32 %v10155, %v9991
    %v10160 = vadd.f32 %v10156, %v9991
    %v10161 = vadd.f32 %v10157, %v9991
    %v10162 = vmax.f32 %v10158, 0.0
    %v10163 = vmax.f32 %v10159, 0.0
    %v10164 = vmax.f32 %v10160, 0.0
    %v10165 = vmax.f32 %v10161, 0.0
    %v10166 = vmax.f32 %v10142, %v10162
    %v10167 = vmax.f32 %v10143, %v10163
    %v10168 = vmax.f32 %v10144, %v10164
    %v10169 = vmax.f32 %v10145, %v10165
    %10170 = vst.msk [vmem:[#allocation5 + $0x1e] sm:$0xff] %vm3444, %v10166
    %10171 = vst.msk [vmem:[#allocation5 + $0x26] sm:$0xff] %vm3444, %v10167
    %10172 = vst.msk [vmem:[#allocation5 + $0x2e] sm:$0xff] %vm3444, %v10168
    %10173 = vst.msk [vmem:[#allocation5 + $0x36] sm:$0x3f] %vm10076, %v10169
    %v10174 = vld [vmem:[#allocation5] sm:$0xff]
    %v10175 = vld [vmem:[#allocation5 + $0x8] sm:$0xff]
    %v10176 = vld [vmem:[#allocation5 + $0x10] sm:$0xff]
    %v10177 = vld [vmem:[#allocation5 + $0x18] sm:$0xf]
    %v10178 = vld [vmem:[%s9] sm:$0xff]
    %v10179 = vld [vmem:[%s9 + $0x8] sm:$0xff]
    %v10180 = vld [vmem:[%s9 + $0x10] sm:$0xff]
    %v10181 = vld [vmem:[%s9 + $0x18] sm:$0xff]
    %v10182 = vld [vmem:[#allocation5 + $0x1] sm:$0xff]
    %v10183 = vld [vmem:[#allocation5 + $0x9] sm:$0xff]
    %v10184 = vld [vmem:[#allocation5 + $0x11] sm:$0xff]
    %v10185 = vld [vmem:[#allocation5 + $0x19] sm:$0xf]
    %s10186 = scalar_lea.vmem %s9, 32
    %v10187 = vld [vmem:[%s10186] sm:$0xff]
    %v10188 = vld [vmem:[%s10186 + $0x8] sm:$0xff]
    %v10189 = vld [vmem:[%s10186 + $0x10] sm:$0xff]
    %v10190 = vld [vmem:[%s10186 + $0x18] sm:$0xff]
    %v10192 = vsel %vm3444, %v10182, 0
    %v10195 = vsel %vm3444, %v10183, 0
    %v10198 = vsel %vm3444, %v10184, 0
    %v10201 = vsel %vm3444, %v10185, 0
    %10203 = vmatprep.subr.mxu0 0.0
    %10204 = vmatpush1.msra.mxu0 %v10187
    %10205 = vmatprep.subr.mxu0 0.0
    %10206 = vmatpush1.msra.mxu0 %v10188
    %10207 = vmatprep.subr.mxu0 0.0
    %10208 = vmatpush1.msra.mxu0 %v10189
    %10209 = vmatprep.subr.mxu0 0.0
    %10210 = vmatpush1.msra.mxu0 %v10190
    %10211 = vmatprep.subr.mxu0 0.0
    %10212 = vmatpush1.msra.mxu0 0.0
    %10213 = vmatprep.subr.mxu0 0.0
    %10214 = vmatpush1.msra.mxu0 0.0
    %10215 = vmatprep.subr.mxu0 0.0
    %10216 = vmatpush1.msra.mxu0 0.0
    %10217 = vmatprep.subr.mxu0 0.0
    %10218 = vmatpush1.msra.mxu0 0.0
    %10219 = vmatprep.subr.mxu0 0.0
    %10220 = vmatpush1.msra.mxu0 0.0
    %10221 = vmatprep.subr.mxu0 0.0
    %10222 = vmatpush1.msra.mxu0 0.0
    %10223 = vmatprep.subr.mxu0 0.0
    %10224 = vmatpush1.msra.mxu0 0.0
    %10225 = vmatprep.subr.mxu0 0.0
    %10226 = vmatpush1.msra.mxu0 0.0
    %10227 = vmatprep.subr.mxu0 0.0
    %10228 = vmatpush1.msra.mxu0 0.0
    %10229 = vmatprep.subr.mxu0 0.0
    %10230 = vmatpush1.msra.mxu0 0.0
    %10231 = vmatprep.subr.mxu0 0.0
    %10232 = vmatpush1.msra.mxu0 0.0
    %10233 = vmatprep.subr.mxu0 0.0
    %10234 = vmatpush1.msra.mxu0 0.0
    %10235 = vmatprep.subr.mxu0 0.0
    %10236 = vmatpush1.msra.mxu0 0.0
    %10237 = vmatprep.subr.mxu0 0.0
    %10238 = vmatpush1.msra.mxu0 0.0
    %10239 = vmatprep.subr.mxu0 0.0
    %10240 = vmatpush1.msra.mxu0 0.0
    %10241 = vmatprep.subr.mxu0 0.0
    %10242 = vmatpush1.msra.mxu0 0.0
    %10243 = vmatprep.subr.mxu0 0.0
    %10244 = vmatpush1.msra.mxu0 0.0
    %10245 = vmatprep.subr.mxu0 0.0
    %10246 = vmatpush1.msra.mxu0 0.0
    %10247 = vmatprep.subr.mxu0 0.0
    %10248 = vmatpush1.msra.mxu0 0.0
    %10249 = vmatprep.subr.mxu0 0.0
    %10250 = vmatpush1.msra.mxu0 0.0
    %10251 = vmatprep.subr.mxu0 0.0
    %10252 = vmatpush1.msra.mxu0 0.0
    %10253 = vmatprep.subr.mxu0 0.0
    %10254 = vmatpush1.msra.mxu0 0.0
    %10255 = vmatprep.subr.mxu0 0.0
    %10256 = vmatpush1.msra.mxu0 0.0
    %10257 = vmatprep.subr.mxu0 0.0
    %10258 = vmatpush1.msra.mxu0 0.0
    %10259 = vmatprep.subr.mxu0 0.0
    %10260 = vmatpush1.msra.mxu0 0.0
    %10261 = vmatprep.subr.mxu0 0.0
    %10262 = vmatpush1.msra.mxu0 0.0
    %10263 = vmatprep.subr.mxu0 0.0
    %10264 = vmatpush1.msra.mxu0 0.0
    %10265 = vmatprep.subr.mxu0 0.0
    %10266 = vmatpush1.msra.mxu0 0.0
    %10267 = vmatprep.mubr.f32.mxu0 0.0
    %10268 = vmatmul.mubr.f32.gmra.mrb[0].mxu0 %v10192
    %v10269 = vpop.f32.mrb[0].mxu0
    %v10270 = vadd.f32 0.0, %v10269
    %v10271 = vpop.f32.mrb[0].mxu0
    %10272 = vmatprep.mubr.f32.mxu0 0.0
    %10273 = vmatmul.mubr.f32.gmra.mrb[0].mxu0 %v10195
    %v10274 = vpop.f32.mrb[0].mxu0
    %v10275 = vadd.f32 0.0, %v10274
    %v10276 = vpop.f32.mrb[0].mxu0
    %10277 = vmatprep.mubr.f32.mxu0 0.0
    %10278 = vmatmul.mubr.f32.gmra.mrb[0].mxu0 %v10198
    %v10279 = vpop.f32.mrb[0].mxu0
    %v10280 = vadd.f32 0.0, %v10279
    %v10281 = vpop.f32.mrb[0].mxu0
    %10282 = vmatprep.mubr.f32.mxu0 0.0
    %10283 = vmatmul.mubr.f32.gmra.mrb[0].mxu0 %v10201
    %v10284 = vpop.f32.mrb[0].mxu0
    %v10285 = vadd.f32 0.0, %v10284
    %v10286 = vpop.f32.mrb[0].mxu0
    %10287 = vdwg.mxu0
    %v10289 = vsel %vm3444, %v10174, 0
    %v10292 = vsel %vm3444, %v10175, 0
    %v10295 = vsel %vm3444, %v10176, 0
    %v10298 = vsel %vm3444, %v10177, 0
    %10300 = vmatprep.subr.mxu0 0.0
    %10301 = vmatpush1.msra.mxu0 %v10178
    %10302 = vmatprep.subr.mxu0 0.0
    %10303 = vmatpush1.msra.mxu0 %v10179
    %10304 = vmatprep.subr.mxu0 0.0
    %10305 = vmatpush1.msra.mxu0 %v10180
    %10306 = vmatprep.subr.mxu0 0.0
    %10307 = vmatpush1.msra.mxu0 %v10181
    %10308 = vmatprep.subr.mxu0 0.0
    %10309 = vmatpush1.msra.mxu0 0.0
    %10310 = vmatprep.subr.mxu0 0.0
    %10311 = vmatpush1.msra.mxu0 0.0
    %10312 = vmatprep.subr.mxu0 0.0
    %10313 = vmatpush1.msra.mxu0 0.0
    %10314 = vmatprep.subr.mxu0 0.0
    %10315 = vmatpush1.msra.mxu0 0.0
    %10316 = vmatprep.subr.mxu0 0.0
    %10317 = vmatpush1.msra.mxu0 0.0
    %10318 = vmatprep.subr.mxu0 0.0
    %10319 = vmatpush1.msra.mxu0 0.0
    %10320 = vmatprep.subr.mxu0 0.0
    %10321 = vmatpush1.msra.mxu0 0.0
    %10322 = vmatprep.subr.mxu0 0.0
    %10323 = vmatpush1.msra.mxu0 0.0
    %10324 = vmatprep.subr.mxu0 0.0
    %10325 = vmatpush1.msra.mxu0 0.0
    %10326 = vmatprep.subr.mxu0 0.0
    %10327 = vmatpush1.msra.mxu0 0.0
    %10328 = vmatprep.subr.mxu0 0.0
    %10329 = vmatpush1.msra.mxu0 0.0
    %10330 = vmatprep.subr.mxu0 0.0
    %10331 = vmatpush1.msra.mxu0 0.0
    %10332 = vmatprep.subr.mxu0 0.0
    %10333 = vmatpush1.msra.mxu0 0.0
    %10334 = vmatprep.subr.mxu0 0.0
    %10335 = vmatpush1.msra.mxu0 0.0
    %10336 = vmatprep.subr.mxu0 0.0
    %10337 = vmatpush1.msra.mxu0 0.0
    %10338 = vmatprep.subr.mxu0 0.0
    %10339 = vmatpush1.msra.mxu0 0.0
    %10340 = vmatprep.subr.mxu0 0.0
    %10341 = vmatpush1.msra.mxu0 0.0
    %10342 = vmatprep.subr.mxu0 0.0
    %10343 = vmatpush1.msra.mxu0 0.0
    %10344 = vmatprep.subr.mxu0 0.0
    %10345 = vmatpush1.msra.mxu0 0.0
    %10346 = vmatprep.subr.mxu0 0.0
    %10347 = vmatpush1.msra.mxu0 0.0
    %10348 = vmatprep.subr.mxu0 0.0
    %10349 = vmatpush1.msra.mxu0 0.0
    %10350 = vmatprep.subr.mxu0 0.0
    %10351 = vmatpush1.msra.mxu0 0.0
    %10352 = vmatprep.subr.mxu0 0.0
    %10353 = vmatpush1.msra.mxu0 0.0
    %10354 = vmatprep.subr.mxu0 0.0
    %10355 = vmatpush1.msra.mxu0 0.0
    %10356 = vmatprep.subr.mxu0 0.0
    %10357 = vmatpush1.msra.mxu0 0.0
    %10358 = vmatprep.subr.mxu0 0.0
    %10359 = vmatpush1.msra.mxu0 0.0
    %10360 = vmatprep.subr.mxu0 0.0
    %10361 = vmatpush1.msra.mxu0 0.0
    %10362 = vmatprep.subr.mxu0 0.0
    %10363 = vmatpush1.msra.mxu0 0.0
    %10364 = vmatprep.mubr.f32.mxu0 0.0
    %10365 = vmatmul.mubr.f32.gmra.mrb[0].mxu0 %v10289
    %v10366 = vpop.f32.mrb[0].mxu0
    %v10367 = vadd.f32 %v10270, %v10366
    %v10368 = vpop.f32.mrb[0].mxu0
    %10369 = vmatprep.mubr.f32.mxu0 0.0
    %10370 = vmatmul.mubr.f32.gmra.mrb[0].mxu0 %v10292
    %v10371 = vpop.f32.mrb[0].mxu0
    %v10372 = vadd.f32 %v10275, %v10371
    %v10373 = vpop.f32.mrb[0].mxu0
    %10374 = vmatprep.mubr.f32.mxu0 0.0
    %10375 = vmatmul.mubr.f32.gmra.mrb[0].mxu0 %v10295
    %v10376 = vpop.f32.mrb[0].mxu0
    %v10377 = vadd.f32 %v10280, %v10376
    %v10378 = vpop.f32.mrb[0].mxu0
    %10379 = vmatprep.mubr.f32.mxu0 0.0
    %10380 = vmatmul.mubr.f32.gmra.mrb[0].mxu0 %v10298
    %v10381 = vpop.f32.mrb[0].mxu0
    %v10382 = vadd.f32 %v10285, %v10381
    %v10383 = vpop.f32.mrb[0].mxu0
    %10384 = vdwg.mxu0
    %v10385 = vld [vmem:[#allocation5 + $0x2] sm:$0xff]
    %v10386 = vld [vmem:[#allocation5 + $0xa] sm:$0xff]
    %v10387 = vld [vmem:[#allocation5 + $0x12] sm:$0xff]
    %v10388 = vld [vmem:[#allocation5 + $0x1a] sm:$0xf]
    %s10389 = scalar_lea.vmem %s9, 64
    %v10390 = vld [vmem:[%s10389] sm:$0xff]
    %v10391 = vld [vmem:[%s10389 + $0x8] sm:$0xff]
    %v10392 = vld [vmem:[%s10389 + $0x10] sm:$0xff]
    %v10393 = vld [vmem:[%s10389 + $0x18] sm:$0xff]
    %v10395 = vsel %vm3444, %v10385, 0
    %v10398 = vsel %vm3444, %v10386, 0
    %v10401 = vsel %vm3444, %v10387, 0
    %v10404 = vsel %vm3444, %v10388, 0
    %10406 = vmatprep.subr.mxu0 0.0
    %10407 = vmatpush1.msra.mxu0 %v10390
    %10408 = vmatprep.subr.mxu0 0.0
    %10409 = vmatpush1.msra.mxu0 %v10391
    %10410 = vmatprep.subr.mxu0 0.0
    %10411 = vmatpush1.msra.mxu0 %v10392
    %10412 = vmatprep.subr.mxu0 0.0
    %10413 = vmatpush1.msra.mxu0 %v10393
    %10414 = vmatprep.subr.mxu0 0.0
    %10415 = vmatpush1.msra.mxu0 0.0
    %10416 = vmatprep.subr.mxu0 0.0
    %10417 = vmatpush1.msra.mxu0 0.0
    %10418 = vmatprep.subr.mxu0 0.0
    %10419 = vmatpush1.msra.mxu0 0.0
    %10420 = vmatprep.subr.mxu0 0.0
    %10421 = vmatpush1.msra.mxu0 0.0
    %10422 = vmatprep.subr.mxu0 0.0
    %10423 = vmatpush1.msra.mxu0 0.0
    %10424 = vmatprep.subr.mxu0 0.0
    %10425 = vmatpush1.msra.mxu0 0.0
    %10426 = vmatprep.subr.mxu0 0.0
    %10427 = vmatpush1.msra.mxu0 0.0
    %10428 = vmatprep.subr.mxu0 0.0
    %10429 = vmatpush1.msra.mxu0 0.0
    %10430 = vmatprep.subr.mxu0 0.0
    %10431 = vmatpush1.msra.mxu0 0.0
    %10432 = vmatprep.subr.mxu0 0.0
    %10433 = vmatpush1.msra.mxu0 0.0
    %10434 = vmatprep.subr.mxu0 0.0
    %10435 = vmatpush1.msra.mxu0 0.0
    %10436 = vmatprep.subr.mxu0 0.0
    %10437 = vmatpush1.msra.mxu0 0.0
    %10438 = vmatprep.subr.mxu0 0.0
    %10439 = vmatpush1.msra.mxu0 0.0
    %10440 = vmatprep.subr.mxu0 0.0
    %10441 = vmatpush1.msra.mxu0 0.0
    %10442 = vmatprep.subr.mxu0 0.0
    %10443 = vmatpush1.msra.mxu0 0.0
    %10444 = vmatprep.subr.mxu0 0.0
    %10445 = vmatpush1.msra.mxu0 0.0
    %10446 = vmatprep.subr.mxu0 0.0
    %10447 = vmatpush1.msra.mxu0 0.0
    %10448 = vmatprep.subr.mxu0 0.0
    %10449 = vmatpush1.msra.mxu0 0.0
    %10450 = vmatprep.subr.mxu0 0.0
    %10451 = vmatpush1.msra.mxu0 0.0
    %10452 = vmatprep.subr.mxu0 0.0
    %10453 = vmatpush1.msra.mxu0 0.0
    %10454 = vmatprep.subr.mxu0 0.0
    %10455 = vmatpush1.msra.mxu0 0.0
    %10456 = vmatprep.subr.mxu0 0.0
    %10457 = vmatpush1.msra.mxu0 0.0
    %10458 = vmatprep.subr.mxu0 0.0
    %10459 = vmatpush1.msra.mxu0 0.0
    %10460 = vmatprep.subr.mxu0 0.0
    %10461 = vmatpush1.msra.mxu0 0.0
    %10462 = vmatprep.subr.mxu0 0.0
    %10463 = vmatpush1.msra.mxu0 0.0
    %10464 = vmatprep.subr.mxu0 0.0
    %10465 = vmatpush1.msra.mxu0 0.0
    %10466 = vmatprep.subr.mxu0 0.0
    %10467 = vmatpush1.msra.mxu0 0.0
    %10468 = vmatprep.subr.mxu0 0.0
    %10469 = vmatpush1.msra.mxu0 0.0
    %10470 = vmatprep.mubr.f32.mxu0 0.0
    %10471 = vmatmul.mubr.f32.gmra.mrb[0].mxu0 %v10395
    %v10472 = vpop.f32.mrb[0].mxu0
    %v10473 = vadd.f32 0.0, %v10472
    %v10474 = vpop.f32.mrb[0].mxu0
    %10475 = vmatprep.mubr.f32.mxu0 0.0
    %10476 = vmatmul.mubr.f32.gmra.mrb[0].mxu0 %v10398
    %v10477 = vpop.f32.mrb[0].mxu0
    %v10478 = vadd.f32 0.0, %v10477
    %v10479 = vpop.f32.mrb[0].mxu0
    %10480 = vmatprep.mubr.f32.mxu0 0.0
    %10481 = vmatmul.mubr.f32.gmra.mrb[0].mxu0 %v10401
    %v10482 = vpop.f32.mrb[0].mxu0
    %v10483 = vadd.f32 0.0, %v10482
    %v10484 = vpop.f32.mrb[0].mxu0
    %10485 = vmatprep.mubr.f32.mxu0 0.0
    %10486 = vmatmul.mubr.f32.gmra.mrb[0].mxu0 %v10404
    %v10487 = vpop.f32.mrb[0].mxu0
    %v10488 = vadd.f32 0.0, %v10487
    %v10489 = vpop.f32.mrb[0].mxu0
    %10490 = vdwg.mxu0
    %v10491 = vadd.f32 %v10367, %v10473
    %v10492 = vadd.f32 %v10372, %v10478
    %v10493 = vadd.f32 %v10377, %v10483
    %v10494 = vadd.f32 %v10382, %v10488
    %v10495 = vld [vmem:[%s10] sm:$0x1]
    %v10497 = vlaneseq
    %v10498 = vshrl.u32 %v10497, 7
    %v10499 = vsub.s32 0, %v10498
    %v10500 = vrot.slane %v10495, %v10499
    %v10502 = vadd.f32 %v10491, %v10500
    %v10503 = vadd.f32 %v10492, %v10500
    %v10504 = vadd.f32 %v10493, %v10500
    %v10505 = vadd.f32 %v10494, %v10500
    %vm10506 = vcmask 523264
    %10507 = vst.msk [vmem:[#allocation6] sm:$0xff] %vm10506, %v10502
    %10508 = vst.msk [vmem:[#allocation6 + $0x8] sm:$0xff] %vm10506, %v10503
    %10509 = vst.msk [vmem:[#allocation6 + $0x10] sm:$0xff] %vm10506, %v10504
    %vm10510 = vcmask 519168
    %10511 = vst.msk [vmem:[#allocation6 + $0x18] sm:$0xf] %vm10510, %v10505
    %v10512 = vsel %vm10506, %v10502, 0.0
    %v10513 = vsel %vm10506, %v10503, 0.0
    %v10514 = vadd.f32 %v10512, %v10513
    %v10515 = vsel %vm10506, %v10504, 0.0
    %v10516 = vadd.f32 %v10514, %v10515
    %v10517 = vsel %vm10510, %v10505, 0.0
    %v10518 = vadd.f32 %v10516, %v10517
    %v10519 = vrot.slane %v10518, 4
    %v10520 = vadd.f32 %v10518, %v10519
    %v10521 = vrot.slane %v10520, 2
    %v10522 = vadd.f32 %v10520, %v10521
    %v10523 = vrot.slane %v10522, 1
    %v10524 = vadd.f32 %v10522, %v10523
    %v10525 = vadd.f32 %v10524, 0.0
    %v10526 = vmul.f32 %v10502, %v10502
    %v10527 = vmul.f32 %v10503, %v10503
    %v10528 = vmul.f32 %v10504, %v10504
    %v10529 = vmul.f32 %v10505, %v10505
    %v10530 = vsel %vm10506, %v10526, 0.0
    %v10531 = vsel %vm10506, %v10527, 0.0
    %v10532 = vadd.f32 %v10530, %v10531
    %v10533 = vsel %vm10506, %v10528, 0.0
    %v10534 = vadd.f32 %v10532, %v10533
    %v10535 = vsel %vm10510, %v10529, 0.0
    %v10536 = vadd.f32 %v10534, %v10535
    %v10537 = vrot.slane %v10536, 4
    %v10538 = vadd.f32 %v10536, %v10537
    %v10539 = vrot.slane %v10538, 2
    %v10540 = vadd.f32 %v10538, %v10539
    %v10541 = vrot.slane %v10540, 1
    %v10542 = vadd.f32 %v10540, %v10541
    %v10543 = vadd.f32 %v10542, 0.0
    %v10544 = vld [vmem:[#allocation5 + $0x1e] sm:$0xff]
    %v10545 = vld [vmem:[#allocation5 + $0x26] sm:$0xff]
    %v10546 = vld [vmem:[#allocation5 + $0x2e] sm:$0xff]
    %v10547 = vld [vmem:[#allocation5 + $0x36] sm:$0xf]
    %v10548 = vld [vmem:[%s9] sm:$0xff]
    %v10549 = vld [vmem:[%s9 + $0x8] sm:$0xff]
    %v10550 = vld [vmem:[%s9 + $0x10] sm:$0xff]
    %v10551 = vld [vmem:[%s9 + $0x18] sm:$0xff]
    %v10552 = vld [vmem:[#allocation5 + $0x1f] sm:$0xff]
    %v10553 = vld [vmem:[#allocation5 + $0x27] sm:$0xff]
    %v10554 = vld [vmem:[#allocation5 + $0x2f] sm:$0xff]
    %v10555 = vld [vmem:[#allocation5 + $0x37] sm:$0xf]
    %v10556 = vld [vmem:[%s10186] sm:$0xff]
    %v10557 = vld [vmem:[%s10186 + $0x8] sm:$0xff]
    %v10558 = vld [vmem:[%s10186 + $0x10] sm:$0xff]
    %v10559 = vld [vmem:[%s10186 + $0x18] sm:$0xff]
    %v10561 = vsel %vm3444, %v10552, 0
    %v10564 = vsel %vm3444, %v10553, 0
    %v10567 = vsel %vm3444, %v10554, 0
    %v10570 = vsel %vm3444, %v10555, 0
    %10572 = vmatprep.subr.mxu0 0.0
    %10573 = vmatpush1.msra.mxu0 %v10556
    %10574 = vmatprep.subr.mxu0 0.0
    %10575 = vmatpush1.msra.mxu0 %v10557
    %10576 = vmatprep.subr.mxu0 0.0
    %10577 = vmatpush1.msra.mxu0 %v10558
    %10578 = vmatprep.subr.mxu0 0.0
    %10579 = vmatpush1.msra.mxu0 %v10559
    %10580 = vmatprep.subr.mxu0 0.0
    %10581 = vmatpush1.msra.mxu0 0.0
    %10582 = vmatprep.subr.mxu0 0.0
    %10583 = vmatpush1.msra.mxu0 0.0
    %10584 = vmatprep.subr.mxu0 0.0
    %10585 = vmatpush1.msra.mxu0 0.0
    %10586 = vmatprep.subr.mxu0 0.0
    %10587 = vmatpush1.msra.mxu0 0.0
    %10588 = vmatprep.subr.mxu0 0.0
    %10589 = vmatpush1.msra.mxu0 0.0
    %10590 = vmatprep.subr.mxu0 0.0
    %10591 = vmatpush1.msra.mxu0 0.0
    %10592 = vmatprep.subr.mxu0 0.0
    %10593 = vmatpush1.msra.mxu0 0.0
    %10594 = vmatprep.subr.mxu0 0.0
    %10595 = vmatpush1.msra.mxu0 0.0
    %10596 = vmatprep.subr.mxu0 0.0
    %10597 = vmatpush1.msra.mxu0 0.0
    %10598 = vmatprep.subr.mxu0 0.0
    %10599 = vmatpush1.msra.mxu0 0.0
    %10600 = vmatprep.subr.mxu0 0.0
    %10601 = vmatpush1.msra.mxu0 0.0
    %10602 = vmatprep.subr.mxu0 0.0
    %10603 = vmatpush1.msra.mxu0 0.0
    %10604 = vmatprep.subr.mxu0 0.0
    %10605 = vmatpush1.msra.mxu0 0.0
    %10606 = vmatprep.subr.mxu0 0.0
    %10607 = vmatpush1.msra.mxu0 0.0
    %10608 = vmatprep.subr.mxu0 0.0
    %10609 = vmatpush1.msra.mxu0 0.0
    %10610 = vmatprep.subr.mxu0 0.0
    %10611 = vmatpush1.msra.mxu0 0.0
    %10612 = vmatprep.subr.mxu0 0.0
    %10613 = vmatpush1.msra.mxu0 0.0
    %10614 = vmatprep.subr.mxu0 0.0
    %10615 = vmatpush1.msra.mxu0 0.0
    %10616 = vmatprep.subr.mxu0 0.0
    %10617 = vmatpush1.msra.mxu0 0.0
    %10618 = vmatprep.subr.mxu0 0.0
    %10619 = vmatpush1.msra.mxu0 0.0
    %10620 = vmatprep.subr.mxu0 0.0
    %10621 = vmatpush1.msra.mxu0 0.0
    %10622 = vmatprep.subr.mxu0 0.0
    %10623 = vmatpush1.msra.mxu0 0.0
    %10624 = vmatprep.subr.mxu0 0.0
    %10625 = vmatpush1.msra.mxu0 0.0
    %10626 = vmatprep.subr.mxu0 0.0
    %10627 = vmatpush1.msra.mxu0 0.0
    %10628 = vmatprep.subr.mxu0 0.0
    %10629 = vmatpush1.msra.mxu0 0.0
    %10630 = vmatprep.subr.mxu0 0.0
    %10631 = vmatpush1.msra.mxu0 0.0
    %10632 = vmatprep.subr.mxu0 0.0
    %10633 = vmatpush1.msra.mxu0 0.0
    %10634 = vmatprep.subr.mxu0 0.0
    %10635 = vmatpush1.msra.mxu0 0.0
    %10636 = vmatprep.mubr.f32.mxu0 0.0
    %10637 = vmatmul.mubr.f32.gmra.mrb[0].mxu0 %v10561
    %v10638 = vpop.f32.mrb[0].mxu0
    %v10639 = vadd.f32 0.0, %v10638
    %v10640 = vpop.f32.mrb[0].mxu0
    %10641 = vmatprep.mubr.f32.mxu0 0.0
    %10642 = vmatmul.mubr.f32.gmra.mrb[0].mxu0 %v10564
    %v10643 = vpop.f32.mrb[0].mxu0
    %v10644 = vadd.f32 0.0, %v10643
    %v10645 = vpop.f32.mrb[0].mxu0
    %10646 = vmatprep.mubr.f32.mxu0 0.0
    %10647 = vmatmul.mubr.f32.gmra.mrb[0].mxu0 %v10567
    %v10648 = vpop.f32.mrb[0].mxu0
    %v10649 = vadd.f32 0.0, %v10648
    %v10650 = vpop.f32.mrb[0].mxu0
    %10651 = vmatprep.mubr.f32.mxu0 0.0
    %10652 = vmatmul.mubr.f32.gmra.mrb[0].mxu0 %v10570
    %v10653 = vpop.f32.mrb[0].mxu0
    %v10654 = vadd.f32 0.0, %v10653
    %v10655 = vpop.f32.mrb[0].mxu0
    %10656 = vdwg.mxu0
    %v10658 = vsel %vm3444, %v10544, 0
    %v10661 = vsel %vm3444, %v10545, 0
    %v10664 = vsel %vm3444, %v10546, 0
    %v10667 = vsel %vm3444, %v10547, 0
    %10669 = vmatprep.subr.mxu0 0.0
    %10670 = vmatpush1.msra.mxu0 %v10548
    %10671 = vmatprep.subr.mxu0 0.0
    %10672 = vmatpush1.msra.mxu0 %v10549
    %10673 = vmatprep.subr.mxu0 0.0
    %10674 = vmatpush1.msra.mxu0 %v10550
    %10675 = vmatprep.subr.mxu0 0.0
    %10676 = vmatpush1.msra.mxu0 %v10551
    %10677 = vmatprep.subr.mxu0 0.0
    %10678 = vmatpush1.msra.mxu0 0.0
    %10679 = vmatprep.subr.mxu0 0.0
    %10680 = vmatpush1.msra.mxu0 0.0
    %10681 = vmatprep.subr.mxu0 0.0
    %10682 = vmatpush1.msra.mxu0 0.0
    %10683 = vmatprep.subr.mxu0 0.0
    %10684 = vmatpush1.msra.mxu0 0.0
    %10685 = vmatprep.subr.mxu0 0.0
    %10686 = vmatpush1.msra.mxu0 0.0
    %10687 = vmatprep.subr.mxu0 0.0
    %10688 = vmatpush1.msra.mxu0 0.0
    %10689 = vmatprep.subr.mxu0 0.0
    %10690 = vmatpush1.msra.mxu0 0.0
    %10691 = vmatprep.subr.mxu0 0.0
    %10692 = vmatpush1.msra.mxu0 0.0
    %10693 = vmatprep.subr.mxu0 0.0
    %10694 = vmatpush1.msra.mxu0 0.0
    %10695 = vmatprep.subr.mxu0 0.0
    %10696 = vmatpush1.msra.mxu0 0.0
    %10697 = vmatprep.subr.mxu0 0.0
    %10698 = vmatpush1.msra.mxu0 0.0
    %10699 = vmatprep.subr.mxu0 0.0
    %10700 = vmatpush1.msra.mxu0 0.0
    %10701 = vmatprep.subr.mxu0 0.0
    %10702 = vmatpush1.msra.mxu0 0.0
    %10703 = vmatprep.subr.mxu0 0.0
    %10704 = vmatpush1.msra.mxu0 0.0
    %10705 = vmatprep.subr.mxu0 0.0
    %10706 = vmatpush1.msra.mxu0 0.0
    %10707 = vmatprep.subr.mxu0 0.0
    %10708 = vmatpush1.msra.mxu0 0.0
    %10709 = vmatprep.subr.mxu0 0.0
    %10710 = vmatpush1.msra.mxu0 0.0
    %10711 = vmatprep.subr.mxu0 0.0
    %10712 = vmatpush1.msra.mxu0 0.0
    %10713 = vmatprep.subr.mxu0 0.0
    %10714 = vmatpush1.msra.mxu0 0.0
    %10715 = vmatprep.subr.mxu0 0.0
    %10716 = vmatpush1.msra.mxu0 0.0
    %10717 = vmatprep.subr.mxu0 0.0
    %10718 = vmatpush1.msra.mxu0 0.0
    %10719 = vmatprep.subr.mxu0 0.0
    %10720 = vmatpush1.msra.mxu0 0.0
    %10721 = vmatprep.subr.mxu0 0.0
    %10722 = vmatpush1.msra.mxu0 0.0
    %10723 = vmatprep.subr.mxu0 0.0
    %10724 = vmatpush1.msra.mxu0 0.0
    %10725 = vmatprep.subr.mxu0 0.0
    %10726 = vmatpush1.msra.mxu0 0.0
    %10727 = vmatprep.subr.mxu0 0.0
    %10728 = vmatpush1.msra.mxu0 0.0
    %10729 = vmatprep.subr.mxu0 0.0
    %10730 = vmatpush1.msra.mxu0 0.0
    %10731 = vmatprep.subr.mxu0 0.0
    %10732 = vmatpush1.msra.mxu0 0.0
    %10733 = vmatprep.mubr.f32.mxu0 0.0
    %10734 = vmatmul.mubr.f32.gmra.mrb[0].mxu0 %v10658
    %v10735 = vpop.f32.mrb[0].mxu0
    %v10736 = vadd.f32 %v10639, %v10735
    %v10737 = vpop.f32.mrb[0].mxu0
    %10738 = vmatprep.mubr.f32.mxu0 0.0
    %10739 = vmatmul.mubr.f32.gmra.mrb[0].mxu0 %v10661
    %v10740 = vpop.f32.mrb[0].mxu0
    %v10741 = vadd.f32 %v10644, %v10740
    %v10742 = vpop.f32.mrb[0].mxu0
    %10743 = vmatprep.mubr.f32.mxu0 0.0
    %10744 = vmatmul.mubr.f32.gmra.mrb[0].mxu0 %v10664
    %v10745 = vpop.f32.mrb[0].mxu0
    %v10746 = vadd.f32 %v10649, %v10745
    %v10747 = vpop.f32.mrb[0].mxu0
    %10748 = vmatprep.mubr.f32.mxu0 0.0
    %10749 = vmatmul.mubr.f32.gmra.mrb[0].mxu0 %v10667
    %v10750 = vpop.f32.mrb[0].mxu0
    %v10751 = vadd.f32 %v10654, %v10750
    %v10752 = vpop.f32.mrb[0].mxu0
    %10753 = vdwg.mxu0
    %v10754 = vld [vmem:[#allocation5 + $0x20] sm:$0xff]
    %v10755 = vld [vmem:[#allocation5 + $0x28] sm:$0xff]
    %v10756 = vld [vmem:[#allocation5 + $0x30] sm:$0xff]
    %v10757 = vld [vmem:[#allocation5 + $0x38] sm:$0xf]
    %v10758 = vld [vmem:[%s10389] sm:$0xff]
    %v10759 = vld [vmem:[%s10389 + $0x8] sm:$0xff]
    %v10760 = vld [vmem:[%s10389 + $0x10] sm:$0xff]
    %v10761 = vld [vmem:[%s10389 + $0x18] sm:$0xff]
    %v10763 = vsel %vm3444, %v10754, 0
    %v10766 = vsel %vm3444, %v10755, 0
    %v10769 = vsel %vm3444, %v10756, 0
    %v10772 = vsel %vm3444, %v10757, 0
    %10774 = vmatprep.subr.mxu0 0.0
    %10775 = vmatpush1.msra.mxu0 %v10758
    %10776 = vmatprep.subr.mxu0 0.0
    %10777 = vmatpush1.msra.mxu0 %v10759
    %10778 = vmatprep.subr.mxu0 0.0
    %10779 = vmatpush1.msra.mxu0 %v10760
    %10780 = vmatprep.subr.mxu0 0.0
    %10781 = vmatpush1.msra.mxu0 %v10761
    %10782 = vmatprep.subr.mxu0 0.0
    %10783 = vmatpush1.msra.mxu0 0.0
    %10784 = vmatprep.subr.mxu0 0.0
    %10785 = vmatpush1.msra.mxu0 0.0
    %10786 = vmatprep.subr.mxu0 0.0
    %10787 = vmatpush1.msra.mxu0 0.0
    %10788 = vmatprep.subr.mxu0 0.0
    %10789 = vmatpush1.msra.mxu0 0.0
    %10790 = vmatprep.subr.mxu0 0.0
    %10791 = vmatpush1.msra.mxu0 0.0
    %10792 = vmatprep.subr.mxu0 0.0
    %10793 = vmatpush1.msra.mxu0 0.0
    %10794 = vmatprep.subr.mxu0 0.0
    %10795 = vmatpush1.msra.mxu0 0.0
    %10796 = vmatprep.subr.mxu0 0.0
    %10797 = vmatpush1.msra.mxu0 0.0
    %10798 = vmatprep.subr.mxu0 0.0
    %10799 = vmatpush1.msra.mxu0 0.0
    %10800 = vmatprep.subr.mxu0 0.0
    %10801 = vmatpush1.msra.mxu0 0.0
    %10802 = vmatprep.subr.mxu0 0.0
    %10803 = vmatpush1.msra.mxu0 0.0
    %10804 = vmatprep.subr.mxu0 0.0
    %10805 = vmatpush1.msra.mxu0 0.0
    %10806 = vmatprep.subr.mxu0 0.0
    %10807 = vmatpush1.msra.mxu0 0.0
    %10808 = vmatprep.subr.mxu0 0.0
    %10809 = vmatpush1.msra.mxu0 0.0
    %10810 = vmatprep.subr.mxu0 0.0
    %10811 = vmatpush1.msra.mxu0 0.0
    %10812 = vmatprep.subr.mxu0 0.0
    %10813 = vmatpush1.msra.mxu0 0.0
    %10814 = vmatprep.subr.mxu0 0.0
    %10815 = vmatpush1.msra.mxu0 0.0
    %10816 = vmatprep.subr.mxu0 0.0
    %10817 = vmatpush1.msra.mxu0 0.0
    %10818 = vmatprep.subr.mxu0 0.0
    %10819 = vmatpush1.msra.mxu0 0.0
    %10820 = vmatprep.subr.mxu0 0.0
    %10821 = vmatpush1.msra.mxu0 0.0
    %10822 = vmatprep.subr.mxu0 0.0
    %10823 = vmatpush1.msra.mxu0 0.0
    %10824 = vmatprep.subr.mxu0 0.0
    %10825 = vmatpush1.msra.mxu0 0.0
    %10826 = vmatprep.subr.mxu0 0.0
    %10827 = vmatpush1.msra.mxu0 0.0
    %10828 = vmatprep.subr.mxu0 0.0
    %10829 = vmatpush1.msra.mxu0 0.0
    %10830 = vmatprep.subr.mxu0 0.0
    %10831 = vmatpush1.msra.mxu0 0.0
    %10832 = vmatprep.subr.mxu0 0.0
    %10833 = vmatpush1.msra.mxu0 0.0
    %10834 = vmatprep.subr.mxu0 0.0
    %10835 = vmatpush1.msra.mxu0 0.0
    %10836 = vmatprep.subr.mxu0 0.0
    %10837 = vmatpush1.msra.mxu0 0.0
    %10838 = vmatprep.mubr.f32.mxu0 0.0
    %10839 = vmatmul.mubr.f32.gmra.mrb[0].mxu0 %v10763
    %v10840 = vpop.f32.mrb[0].mxu0
    %v10841 = vadd.f32 0.0, %v10840
    %v10842 = vpop.f32.mrb[0].mxu0
    %10843 = vmatprep.mubr.f32.mxu0 0.0
    %10844 = vmatmul.mubr.f32.gmra.mrb[0].mxu0 %v10766
    %v10845 = vpop.f32.mrb[0].mxu0
    %v10846 = vadd.f32 0.0, %v10845
    %v10847 = vpop.f32.mrb[0].mxu0
    %10848 = vmatprep.mubr.f32.mxu0 0.0
    %10849 = vmatmul.mubr.f32.gmra.mrb[0].mxu0 %v10769
    %v10850 = vpop.f32.mrb[0].mxu0
    %v10851 = vadd.f32 0.0, %v10850
    %v10852 = vpop.f32.mrb[0].mxu0
    %10853 = vmatprep.mubr.f32.mxu0 0.0
    %10854 = vmatmul.mubr.f32.gmra.mrb[0].mxu0 %v10772
    %v10855 = vpop.f32.mrb[0].mxu0
    %v10856 = vadd.f32 0.0, %v10855
    %v10857 = vpop.f32.mrb[0].mxu0
    %10858 = vdwg.mxu0
    %v10859 = vadd.f32 %v10736, %v10841
    %v10860 = vadd.f32 %v10741, %v10846
    %v10861 = vadd.f32 %v10746, %v10851
    %v10862 = vadd.f32 %v10751, %v10856
    %v10863 = vld [vmem:[%s10] sm:$0x1]
    %v10865 = vlaneseq
    %v10866 = vshrl.u32 %v10865, 7
    %v10867 = vsub.s32 0, %v10866
    %v10868 = vrot.slane %v10863, %v10867
    %v10870 = vadd.f32 %v10859, %v10868
    %v10871 = vadd.f32 %v10860, %v10868
    %v10872 = vadd.f32 %v10861, %v10868
    %v10873 = vadd.f32 %v10862, %v10868
    %10874 = vst.msk [vmem:[#allocation6 + $0x1c] sm:$0xff] %vm10506, %v10870
    %10875 = vst.msk [vmem:[#allocation6 + $0x24] sm:$0xff] %vm10506, %v10871
    %10876 = vst.msk [vmem:[#allocation6 + $0x2c] sm:$0xff] %vm10506, %v10872
    %10877 = vst.msk [vmem:[#allocation6 + $0x34] sm:$0xf] %vm10510, %v10873
    %v10878 = vsel %vm10506, %v10870, 0.0
    %v10879 = vsel %vm10506, %v10871, 0.0
    %v10880 = vadd.f32 %v10878, %v10879
    %v10881 = vsel %vm10506, %v10872, 0.0
    %v10882 = vadd.f32 %v10880, %v10881
    %v10883 = vsel %vm10510, %v10873, 0.0
    %v10884 = vadd.f32 %v10882, %v10883
    %v10885 = vrot.slane %v10884, 4
    %v10886 = vadd.f32 %v10884, %v10885
    %v10887 = vrot.slane %v10886, 2
    %v10888 = vadd.f32 %v10886, %v10887
    %v10889 = vrot.slane %v10888, 1
    %v10890 = vadd.f32 %v10888, %v10889
    %v10891 = vadd.f32 %v10525, %v10890
    %v10892 = vmul.f32 %v10870, %v10870
    %v10893 = vmul.f32 %v10871, %v10871
    %v10894 = vmul.f32 %v10872, %v10872
    %v10895 = vmul.f32 %v10873, %v10873
    %v10896 = vsel %vm10506, %v10892, 0.0
    %v10897 = vsel %vm10506, %v10893, 0.0
    %v10898 = vadd.f32 %v10896, %v10897
    %v10899 = vsel %vm10506, %v10894, 0.0
    %v10900 = vadd.f32 %v10898, %v10899
    %v10901 = vsel %vm10510, %v10895, 0.0
    %v10902 = vadd.f32 %v10900, %v10901
    %v10903 = vrot.slane %v10902, 4
    %v10904 = vadd.f32 %v10902, %v10903
    %v10905 = vrot.slane %v10904, 2
    %v10906 = vadd.f32 %v10904, %v10905
    %v10907 = vrot.slane %v10906, 1
    %v10908 = vadd.f32 %v10906, %v10907
    %v10909 = vadd.f32 %v10543, %v10908
    %v10910 = vmul.f32 %v10891, 0.017857144
    %v10911 = vmul.f32 %v10909, 0.017857144
    %v10912 = vmul.f32 %v10910, %v10910
    %v10913 = vsub.f32 %v10911, %v10912
    %v10914 = vld [vmem:[%s11] sm:$0x1]
    %v10915 = vadd.f32 %v10913, 1e-05
    %v10916 = vrsqrt.pop %v10915
    %v10917 = vmul.f32 %v10914, %v10916
    %v10918 = vld [vmem:[%s12] sm:$0x1]
    %v10919 = vmul.f32 %v10910, %v10917
    %v10920 = vsub.f32 %v10918, %v10919
    %v10921 = vld [vmem:[#allocation6] ss:$4 sm:$0x7f]
    %v10923 = vlaneseq
    %v10924 = vshrl.u32 %v10923, 7
    %v10925 = vsub.s32 0, %v10924
    %v10926 = vrot.slane %v10917, %v10925
    %v10928 = vmul.f32 %v10921, %v10926
    %v10930 = vlaneseq
    %v10931 = vshrl.u32 %v10930, 7
    %v10932 = vsub.s32 0, %v10931
    %v10933 = vrot.slane %v10920, %v10932
    %v10935 = vadd.f32 %v10928, %v10933
    %v10936 = vmax.f32 %v10935, 0.0
    %s10937 = scalar_lea.vmem [#allocation6], 1
    %v10938 = vld [vmem:[%s10937] ss:$4 sm:$0x7f]
    %v10939 = vmul.f32 %v10938, %v10926
    %v10940 = vadd.f32 %v10939, %v10933
    %v10941 = vmax.f32 %v10940, 0.0
    %v10942 = vmax.f32 %v10936, %v10941
    %s10943 = scalar_lea.vmem [#allocation6], 2
    %v10944 = vld [vmem:[%s10943] ss:$4 sm:$0x7f]
    %v10945 = vmul.f32 %v10944, %v10926
    %v10946 = vadd.f32 %v10945, %v10933
    %v10947 = vmax.f32 %v10946, 0.0
    %v10948 = vmax.f32 %v10942, %v10947
    %s10949 = scalar_lea.vmem [#allocation6], 3
    %v10950 = vld [vmem:[%s10949] ss:$4 sm:$0x7f]
    %v10951 = vmul.f32 %v10950, %v10926
    %v10952 = vadd.f32 %v10951, %v10933
    %v10953 = vmax.f32 %v10952, 0.0
    %v10954 = vmax.f32 %v10948, %v10953
    %vm10955 = vcmask 522240
    %10956 = vst.msk [vmem:[#allocation7] sm:$0x7f] %vm10955, %v10954
    %s10957 = scalar_lea.vmem [#allocation6], 28
    %v10958 = vld [vmem:[%s10957] ss:$4 sm:$0x7f]
    %v10959 = vmul.f32 %v10958, %v10926
    %v10960 = vadd.f32 %v10959, %v10933
    %v10961 = vmax.f32 %v10960, 0.0
    %s10962 = scalar_lea.vmem [#allocation6], 29
    %v10963 = vld [vmem:[%s10962] ss:$4 sm:$0x7f]
    %v10964 = vmul.f32 %v10963, %v10926
    %v10965 = vadd.f32 %v10964, %v10933
    %v10966 = vmax.f32 %v10965, 0.0
    %v10967 = vmax.f32 %v10961, %v10966
    %s10968 = scalar_lea.vmem [#allocation6], 30
    %v10969 = vld [vmem:[%s10968] ss:$4 sm:$0x7f]
    %v10970 = vmul.f32 %v10969, %v10926
    %v10971 = vadd.f32 %v10970, %v10933
    %v10972 = vmax.f32 %v10971, 0.0
    %v10973 = vmax.f32 %v10967, %v10972
    %s10974 = scalar_lea.vmem [#allocation6], 31
    %v10975 = vld [vmem:[%s10974] ss:$4 sm:$0x7f]
    %v10976 = vmul.f32 %v10975, %v10926
    %v10977 = vadd.f32 %v10976, %v10933
    %v10978 = vmax.f32 %v10977, 0.0
    %v10979 = vmax.f32 %v10973, %v10978
    %10980 = vst.msk [vmem:[#allocation7 + $0x7] sm:$0x7f] %vm10955, %v10979
    %v10981 = vld [vmem:[#allocation7] sm:$0x1f]
    %v10982 = vld [vmem:[%s13] sm:$0xff]
    %v10983 = vld [vmem:[%s13 + $0x8] sm:$0xff]
    %v10984 = vld [vmem:[%s13 + $0x10] sm:$0xff]
    %v10985 = vld [vmem:[%s13 + $0x18] sm:$0xff]
    %v10986 = vld [vmem:[%s13 + $0x20] sm:$0xff]
    %v10987 = vld [vmem:[%s13 + $0x28] sm:$0xff]
    %v10988 = vld [vmem:[%s13 + $0x30] sm:$0xff]
    %v10989 = vld [vmem:[%s13 + $0x38] sm:$0xff]
    %v10990 = vld [vmem:[#allocation7 + $0x1] sm:$0x1f]
    %s10991 = scalar_lea.vmem %s13, 64
    %v10992 = vld [vmem:[%s10991] sm:$0xff]
    %v10993 = vld [vmem:[%s10991 + $0x8] sm:$0xff]
    %v10994 = vld [vmem:[%s10991 + $0x10] sm:$0xff]
    %v10995 = vld [vmem:[%s10991 + $0x18] sm:$0xff]
    %v10996 = vld [vmem:[%s10991 + $0x20] sm:$0xff]
    %v10997 = vld [vmem:[%s10991 + $0x28] sm:$0xff]
    %v10998 = vld [vmem:[%s10991 + $0x30] sm:$0xff]
    %v10999 = vld [vmem:[%s10991 + $0x38] sm:$0xff]
    %v11001 = vsel %vm10506, %v10990, 0
    %11003 = vmatprep.subr.mxu0 0.0
    %11004 = vmatpush1.msra.mxu0 %v10992
    %11005 = vmatprep.subr.mxu0 0.0
    %11006 = vmatpush1.msra.mxu0 %v10993
    %11007 = vmatprep.subr.mxu0 0.0
    %11008 = vmatpush1.msra.mxu0 %v10994
    %11009 = vmatprep.subr.mxu0 0.0
    %11010 = vmatpush1.msra.mxu0 %v10995
    %11011 = vmatprep.subr.mxu0 0.0
    %11012 = vmatpush1.msra.mxu0 %v10996
    %11013 = vmatprep.subr.mxu0 0.0
    %11014 = vmatpush1.msra.mxu0 %v10997
    %11015 = vmatprep.subr.mxu0 0.0
    %11016 = vmatpush1.msra.mxu0 %v10998
    %11017 = vmatprep.subr.mxu0 0.0
    %11018 = vmatpush1.msra.mxu0 %v10999
    %11019 = vmatprep.subr.mxu0 0.0
    %11020 = vmatpush1.msra.mxu0 0.0
    %11021 = vmatprep.subr.mxu0 0.0
    %11022 = vmatpush1.msra.mxu0 0.0
    %11023 = vmatprep.subr.mxu0 0.0
    %11024 = vmatpush1.msra.mxu0 0.0
    %11025 = vmatprep.subr.mxu0 0.0
    %11026 = vmatpush1.msra.mxu0 0.0
    %11027 = vmatprep.subr.mxu0 0.0
    %11028 = vmatpush1.msra.mxu0 0.0
    %11029 = vmatprep.subr.mxu0 0.0
    %11030 = vmatpush1.msra.mxu0 0.0
    %11031 = vmatprep.subr.mxu0 0.0
    %11032 = vmatpush1.msra.mxu0 0.0
    %11033 = vmatprep.subr.mxu0 0.0
    %11034 = vmatpush1.msra.mxu0 0.0
    %11035 = vmatprep.subr.mxu0 0.0
    %11036 = vmatpush1.msra.mxu0 0.0
    %11037 = vmatprep.subr.mxu0 0.0
    %11038 = vmatpush1.msra.mxu0 0.0
    %11039 = vmatprep.subr.mxu0 0.0
    %11040 = vmatpush1.msra.mxu0 0.0
    %11041 = vmatprep.subr.mxu0 0.0
    %11042 = vmatpush1.msra.mxu0 0.0
    %11043 = vmatprep.subr.mxu0 0.0
    %11044 = vmatpush1.msra.mxu0 0.0
    %11045 = vmatprep.subr.mxu0 0.0
    %11046 = vmatpush1.msra.mxu0 0.0
    %11047 = vmatprep.subr.mxu0 0.0
    %11048 = vmatpush1.msra.mxu0 0.0
    %11049 = vmatprep.subr.mxu0 0.0
    %11050 = vmatpush1.msra.mxu0 0.0
    %11051 = vmatprep.subr.mxu0 0.0
    %11052 = vmatpush1.msra.mxu0 0.0
    %11053 = vmatprep.subr.mxu0 0.0
    %11054 = vmatpush1.msra.mxu0 0.0
    %11055 = vmatprep.subr.mxu0 0.0
    %11056 = vmatpush1.msra.mxu0 0.0
    %11057 = vmatprep.subr.mxu0 0.0
    %11058 = vmatpush1.msra.mxu0 0.0
    %11059 = vmatprep.subr.mxu0 0.0
    %11060 = vmatpush1.msra.mxu0 0.0
    %11061 = vmatprep.subr.mxu0 0.0
    %11062 = vmatpush1.msra.mxu0 0.0
    %11063 = vmatprep.subr.mxu0 0.0
    %11064 = vmatpush1.msra.mxu0 0.0
    %11065 = vmatprep.subr.mxu0 0.0
    %11066 = vmatpush1.msra.mxu0 0.0
    %11067 = vmatprep.mubr.f32.mxu0 0.0
    %11068 = vmatmul.mubr.f32.gmra.mrb[0].mxu0 %v11001
    %v11069 = vpop.f32.mrb[0].mxu0
    %v11070 = vadd.f32 0.0, %v11069
    %v11071 = vpop.f32.mrb[0].mxu0
    %11072 = vdwg.mxu0
    %v11074 = vsel %vm10506, %v10981, 0
    %11076 = vmatprep.subr.mxu0 0.0
    %11077 = vmatpush1.msra.mxu0 %v10982
    %11078 = vmatprep.subr.mxu0 0.0
    %11079 = vmatpush1.msra.mxu0 %v10983
    %11080 = vmatprep.subr.mxu0 0.0
    %11081 = vmatpush1.msra.mxu0 %v10984
    %11082 = vmatprep.subr.mxu0 0.0
    %11083 = vmatpush1.msra.mxu0 %v10985
    %11084 = vmatprep.subr.mxu0 0.0
    %11085 = vmatpush1.msra.mxu0 %v10986
    %11086 = vmatprep.subr.mxu0 0.0
    %11087 = vmatpush1.msra.mxu0 %v10987
    %11088 = vmatprep.subr.mxu0 0.0
    %11089 = vmatpush1.msra.mxu0 %v10988
    %11090 = vmatprep.subr.mxu0 0.0
    %11091 = vmatpush1.msra.mxu0 %v10989
    %11092 = vmatprep.subr.mxu0 0.0
    %11093 = vmatpush1.msra.mxu0 0.0
    %11094 = vmatprep.subr.mxu0 0.0
    %11095 = vmatpush1.msra.mxu0 0.0
    %11096 = vmatprep.subr.mxu0 0.0
    %11097 = vmatpush1.msra.mxu0 0.0
    %11098 = vmatprep.subr.mxu0 0.0
    %11099 = vmatpush1.msra.mxu0 0.0
    %11100 = vmatprep.subr.mxu0 0.0
    %11101 = vmatpush1.msra.mxu0 0.0
    %11102 = vmatprep.subr.mxu0 0.0
    %11103 = vmatpush1.msra.mxu0 0.0
    %11104 = vmatprep.subr.mxu0 0.0
    %11105 = vmatpush1.msra.mxu0 0.0
    %11106 = vmatprep.subr.mxu0 0.0
    %11107 = vmatpush1.msra.mxu0 0.0
    %11108 = vmatprep.subr.mxu0 0.0
    %11109 = vmatpush1.msra.mxu0 0.0
    %11110 = vmatprep.subr.mxu0 0.0
    %11111 = vmatpush1.msra.mxu0 0.0
    %11112 = vmatprep.subr.mxu0 0.0
    %11113 = vmatpush1.msra.mxu0 0.0
    %11114 = vmatprep.subr.mxu0 0.0
    %11115 = vmatpush1.msra.mxu0 0.0
    %11116 = vmatprep.subr.mxu0 0.0
    %11117 = vmatpush1.msra.mxu0 0.0
    %11118 = vmatprep.subr.mxu0 0.0
    %11119 = vmatpush1.msra.mxu0 0.0
    %11120 = vmatprep.subr.mxu0 0.0
    %11121 = vmatpush1.msra.mxu0 0.0
    %11122 = vmatprep.subr.mxu0 0.0
    %11123 = vmatpush1.msra.mxu0 0.0
    %11124 = vmatprep.subr.mxu0 0.0
    %11125 = vmatpush1.msra.mxu0 0.0
    %11126 = vmatprep.subr.mxu0 0.0
    %11127 = vmatpush1.msra.mxu0 0.0
    %11128 = vmatprep.subr.mxu0 0.0
    %11129 = vmatpush1.msra.mxu0 0.0
    %11130 = vmatprep.subr.mxu0 0.0
    %11131 = vmatpush1.msra.mxu0 0.0
    %11132 = vmatprep.subr.mxu0 0.0
    %11133 = vmatpush1.msra.mxu0 0.0
    %11134 = vmatprep.subr.mxu0 0.0
    %11135 = vmatpush1.msra.mxu0 0.0
    %11136 = vmatprep.subr.mxu0 0.0
    %11137 = vmatpush1.msra.mxu0 0.0
    %11138 = vmatprep.subr.mxu0 0.0
    %11139 = vmatpush1.msra.mxu0 0.0
    %11140 = vmatprep.mubr.f32.mxu0 0.0
    %11141 = vmatmul.mubr.f32.gmra.mrb[0].mxu0 %v11074
    %v11142 = vpop.f32.mrb[0].mxu0
    %v11143 = vadd.f32 %v11070, %v11142
    %v11144 = vpop.f32.mrb[0].mxu0
    %11145 = vdwg.mxu0
    %v11146 = vld [vmem:[#allocation7 + $0x2] sm:$0x1f]
    %s11147 = scalar_lea.vmem %s13, 128
    %v11148 = vld [vmem:[%s11147] sm:$0xff]
    %v11149 = vld [vmem:[%s11147 + $0x8] sm:$0xff]
    %v11150 = vld [vmem:[%s11147 + $0x10] sm:$0xff]
    %v11151 = vld [vmem:[%s11147 + $0x18] sm:$0xff]
    %v11152 = vld [vmem:[%s11147 + $0x20] sm:$0xff]
    %v11153 = vld [vmem:[%s11147 + $0x28] sm:$0xff]
    %v11154 = vld [vmem:[%s11147 + $0x30] sm:$0xff]
    %v11155 = vld [vmem:[%s11147 + $0x38] sm:$0xff]
    %v11157 = vsel %vm10506, %v11146, 0
    %11159 = vmatprep.subr.mxu0 0.0
    %11160 = vmatpush1.msra.mxu0 %v11148
    %11161 = vmatprep.subr.mxu0 0.0
    %11162 = vmatpush1.msra.mxu0 %v11149
    %11163 = vmatprep.subr.mxu0 0.0
    %11164 = vmatpush1.msra.mxu0 %v11150
    %11165 = vmatprep.subr.mxu0 0.0
    %11166 = vmatpush1.msra.mxu0 %v11151
    %11167 = vmatprep.subr.mxu0 0.0
    %11168 = vmatpush1.msra.mxu0 %v11152
    %11169 = vmatprep.subr.mxu0 0.0
    %11170 = vmatpush1.msra.mxu0 %v11153
    %11171 = vmatprep.subr.mxu0 0.0
    %11172 = vmatpush1.msra.mxu0 %v11154
    %11173 = vmatprep.subr.mxu0 0.0
    %11174 = vmatpush1.msra.mxu0 %v11155
    %11175 = vmatprep.subr.mxu0 0.0
    %11176 = vmatpush1.msra.mxu0 0.0
    %11177 = vmatprep.subr.mxu0 0.0
    %11178 = vmatpush1.msra.mxu0 0.0
    %11179 = vmatprep.subr.mxu0 0.0
    %11180 = vmatpush1.msra.mxu0 0.0
    %11181 = vmatprep.subr.mxu0 0.0
    %11182 = vmatpush1.msra.mxu0 0.0
    %11183 = vmatprep.subr.mxu0 0.0
    %11184 = vmatpush1.msra.mxu0 0.0
    %11185 = vmatprep.subr.mxu0 0.0
    %11186 = vmatpush1.msra.mxu0 0.0
    %11187 = vmatprep.subr.mxu0 0.0
    %11188 = vmatpush1.msra.mxu0 0.0
    %11189 = vmatprep.subr.mxu0 0.0
    %11190 = vmatpush1.msra.mxu0 0.0
    %11191 = vmatprep.subr.mxu0 0.0
    %11192 = vmatpush1.msra.mxu0 0.0
    %11193 = vmatprep.subr.mxu0 0.0
    %11194 = vmatpush1.msra.mxu0 0.0
    %11195 = vmatprep.subr.mxu0 0.0
    %11196 = vmatpush1.msra.mxu0 0.0
    %11197 = vmatprep.subr.mxu0 0.0
    %11198 = vmatpush1.msra.mxu0 0.0
    %11199 = vmatprep.subr.mxu0 0.0
    %11200 = vmatpush1.msra.mxu0 0.0
    %11201 = vmatprep.subr.mxu0 0.0
    %11202 = vmatpush1.msra.mxu0 0.0
    %11203 = vmatprep.subr.mxu0 0.0
    %11204 = vmatpush1.msra.mxu0 0.0
    %11205 = vmatprep.subr.mxu0 0.0
    %11206 = vmatpush1.msra.mxu0 0.0
    %11207 = vmatprep.subr.mxu0 0.0
    %11208 = vmatpush1.msra.mxu0 0.0
    %11209 = vmatprep.subr.mxu0 0.0
    %11210 = vmatpush1.msra.mxu0 0.0
    %11211 = vmatprep.subr.mxu0 0.0
    %11212 = vmatpush1.msra.mxu0 0.0
    %11213 = vmatprep.subr.mxu0 0.0
    %11214 = vmatpush1.msra.mxu0 0.0
    %11215 = vmatprep.subr.mxu0 0.0
    %11216 = vmatpush1.msra.mxu0 0.0
    %11217 = vmatprep.subr.mxu0 0.0
    %11218 = vmatpush1.msra.mxu0 0.0
    %11219 = vmatprep.subr.mxu0 0.0
    %11220 = vmatpush1.msra.mxu0 0.0
    %11221 = vmatprep.subr.mxu0 0.0
    %11222 = vmatpush1.msra.mxu0 0.0
    %11223 = vmatprep.mubr.f32.mxu0 0.0
    %11224 = vmatmul.mubr.f32.gmra.mrb[0].mxu0 %v11157
    %v11225 = vpop.f32.mrb[0].mxu0
    %v11226 = vadd.f32 0.0, %v11225
    %v11227 = vpop.f32.mrb[0].mxu0
    %11228 = vdwg.mxu0
    %v11229 = vadd.f32 %v11143, %v11226
    %v11230 = vld [vmem:[%s14] sm:$0x1]
    %v11232 = vlaneseq
    %v11233 = vshrl.u32 %v11232, 7
    %v11234 = vsub.s32 0, %v11233
    %v11235 = vrot.slane %v11230, %v11234
    %v11237 = vadd.f32 %v11229, %v11235
    %vm11238 = vcmask 520192
    %11239 = vst.msk [vmem:[#allocation8] sm:$0x1f] %vm11238, %v11237
    %v11240 = vsel %vm11238, %v11237, 0.0
    %v11241 = vrot.slane %v11240, 4
    %v11242 = vadd.f32 %v11240, %v11241
    %v11243 = vrot.slane %v11242, 2
    %v11244 = vadd.f32 %v11242, %v11243
    %v11245 = vrot.slane %v11244, 1
    %v11246 = vadd.f32 %v11244, %v11245
    %v11247 = vadd.f32 %v11246, 0.0
    %v11248 = vmul.f32 %v11237, %v11237
    %v11249 = vsel %vm11238, %v11248, 0.0
    %v11250 = vrot.slane %v11249, 4
    %v11251 = vadd.f32 %v11249, %v11250
    %v11252 = vrot.slane %v11251, 2
    %v11253 = vadd.f32 %v11251, %v11252
    %v11254 = vrot.slane %v11253, 1
    %v11255 = vadd.f32 %v11253, %v11254
    %v11256 = vadd.f32 %v11255, 0.0
    %v11257 = vld [vmem:[#allocation7 + $0x7] sm:$0x1f]
    %v11258 = vld [vmem:[%s13] sm:$0xff]
    %v11259 = vld [vmem:[%s13 + $0x8] sm:$0xff]
    %v11260 = vld [vmem:[%s13 + $0x10] sm:$0xff]
    %v11261 = vld [vmem:[%s13 + $0x18] sm:$0xff]
    %v11262 = vld [vmem:[%s13 + $0x20] sm:$0xff]
    %v11263 = vld [vmem:[%s13 + $0x28] sm:$0xff]
    %v11264 = vld [vmem:[%s13 + $0x30] sm:$0xff]
    %v11265 = vld [vmem:[%s13 + $0x38] sm:$0xff]
    %v11266 = vld [vmem:[#allocation7 + $0x8] sm:$0x1f]
    %v11267 = vld [vmem:[%s10991] sm:$0xff]
    %v11268 = vld [vmem:[%s10991 + $0x8] sm:$0xff]
    %v11269 = vld [vmem:[%s10991 + $0x10] sm:$0xff]
    %v11270 = vld [vmem:[%s10991 + $0x18] sm:$0xff]
    %v11271 = vld [vmem:[%s10991 + $0x20] sm:$0xff]
    %v11272 = vld [vmem:[%s10991 + $0x28] sm:$0xff]
    %v11273 = vld [vmem:[%s10991 + $0x30] sm:$0xff]
    %v11274 = vld [vmem:[%s10991 + $0x38] sm:$0xff]
    %v11276 = vsel %vm10506, %v11266, 0
    %11278 = vmatprep.subr.mxu0 0.0
    %11279 = vmatpush1.msra.mxu0 %v11267
    %11280 = vmatprep.subr.mxu0 0.0
    %11281 = vmatpush1.msra.mxu0 %v11268
    %11282 = vmatprep.subr.mxu0 0.0
    %11283 = vmatpush1.msra.mxu0 %v11269
    %11284 = vmatprep.subr.mxu0 0.0
    %11285 = vmatpush1.msra.mxu0 %v11270
    %11286 = vmatprep.subr.mxu0 0.0
    %11287 = vmatpush1.msra.mxu0 %v11271
    %11288 = vmatprep.subr.mxu0 0.0
    %11289 = vmatpush1.msra.mxu0 %v11272
    %11290 = vmatprep.subr.mxu0 0.0
    %11291 = vmatpush1.msra.mxu0 %v11273
    %11292 = vmatprep.subr.mxu0 0.0
    %11293 = vmatpush1.msra.mxu0 %v11274
    %11294 = vmatprep.subr.mxu0 0.0
    %11295 = vmatpush1.msra.mxu0 0.0
    %11296 = vmatprep.subr.mxu0 0.0
    %11297 = vmatpush1.msra.mxu0 0.0
    %11298 = vmatprep.subr.mxu0 0.0
    %11299 = vmatpush1.msra.mxu0 0.0
    %11300 = vmatprep.subr.mxu0 0.0
    %11301 = vmatpush1.msra.mxu0 0.0
    %11302 = vmatprep.subr.mxu0 0.0
    %11303 = vmatpush1.msra.mxu0 0.0
    %11304 = vmatprep.subr.mxu0 0.0
    %11305 = vmatpush1.msra.mxu0 0.0
    %11306 = vmatprep.subr.mxu0 0.0
    %11307 = vmatpush1.msra.mxu0 0.0
    %11308 = vmatprep.subr.mxu0 0.0
    %11309 = vmatpush1.msra.mxu0 0.0
    %11310 = vmatprep.subr.mxu0 0.0
    %11311 = vmatpush1.msra.mxu0 0.0
    %11312 = vmatprep.subr.mxu0 0.0
    %11313 = vmatpush1.msra.mxu0 0.0
    %11314 = vmatprep.subr.mxu0 0.0
    %11315 = vmatpush1.msra.mxu0 0.0
    %11316 = vmatprep.subr.mxu0 0.0
    %11317 = vmatpush1.msra.mxu0 0.0
    %11318 = vmatprep.subr.mxu0 0.0
    %11319 = vmatpush1.msra.mxu0 0.0
    %11320 = vmatprep.subr.mxu0 0.0
    %11321 = vmatpush1.msra.mxu0 0.0
    %11322 = vmatprep.subr.mxu0 0.0
    %11323 = vmatpush1.msra.mxu0 0.0
    %11324 = vmatprep.subr.mxu0 0.0
    %11325 = vmatpush1.msra.mxu0 0.0
    %11326 = vmatprep.subr.mxu0 0.0
    %11327 = vmatpush1.msra.mxu0 0.0
    %11328 = vmatprep.subr.mxu0 0.0
    %11329 = vmatpush1.msra.mxu0 0.0
    %11330 = vmatprep.subr.mxu0 0.0
    %11331 = vmatpush1.msra.mxu0 0.0
    %11332 = vmatprep.subr.mxu0 0.0
    %11333 = vmatpush1.msra.mxu0 0.0
    %11334 = vmatprep.subr.mxu0 0.0
    %11335 = vmatpush1.msra.mxu0 0.0
    %11336 = vmatprep.subr.mxu0 0.0
    %11337 = vmatpush1.msra.mxu0 0.0
    %11338 = vmatprep.subr.mxu0 0.0
    %11339 = vmatpush1.msra.mxu0 0.0
    %11340 = vmatprep.subr.mxu0 0.0
    %11341 = vmatpush1.msra.mxu0 0.0
    %11342 = vmatprep.mubr.f32.mxu0 0.0
    %11343 = vmatmul.mubr.f32.gmra.mrb[0].mxu0 %v11276
    %v11344 = vpop.f32.mrb[0].mxu0
    %v11345 = vadd.f32 0.0, %v11344
    %v11346 = vpop.f32.mrb[0].mxu0
    %11347 = vdwg.mxu0
    %v11349 = vsel %vm10506, %v11257, 0
    %11351 = vmatprep.subr.mxu0 0.0
    %11352 = vmatpush1.msra.mxu0 %v11258
    %11353 = vmatprep.subr.mxu0 0.0
    %11354 = vmatpush1.msra.mxu0 %v11259
    %11355 = vmatprep.subr.mxu0 0.0
    %11356 = vmatpush1.msra.mxu0 %v11260
    %11357 = vmatprep.subr.mxu0 0.0
    %11358 = vmatpush1.msra.mxu0 %v11261
    %11359 = vmatprep.subr.mxu0 0.0
    %11360 = vmatpush1.msra.mxu0 %v11262
    %11361 = vmatprep.subr.mxu0 0.0
    %11362 = vmatpush1.msra.mxu0 %v11263
    %11363 = vmatprep.subr.mxu0 0.0
    %11364 = vmatpush1.msra.mxu0 %v11264
    %11365 = vmatprep.subr.mxu0 0.0
    %11366 = vmatpush1.msra.mxu0 %v11265
    %11367 = vmatprep.subr.mxu0 0.0
    %11368 = vmatpush1.msra.mxu0 0.0
    %11369 = vmatprep.subr.mxu0 0.0
    %11370 = vmatpush1.msra.mxu0 0.0
    %11371 = vmatprep.subr.mxu0 0.0
    %11372 = vmatpush1.msra.mxu0 0.0
    %11373 = vmatprep.subr.mxu0 0.0
    %11374 = vmatpush1.msra.mxu0 0.0
    %11375 = vmatprep.subr.mxu0 0.0
    %11376 = vmatpush1.msra.mxu0 0.0
    %11377 = vmatprep.subr.mxu0 0.0
    %11378 = vmatpush1.msra.mxu0 0.0
    %11379 = vmatprep.subr.mxu0 0.0
    %11380 = vmatpush1.msra.mxu0 0.0
    %11381 = vmatprep.subr.mxu0 0.0
    %11382 = vmatpush1.msra.mxu0 0.0
    %11383 = vmatprep.subr.mxu0 0.0
    %11384 = vmatpush1.msra.mxu0 0.0
    %11385 = vmatprep.subr.mxu0 0.0
    %11386 = vmatpush1.msra.mxu0 0.0
    %11387 = vmatprep.subr.mxu0 0.0
    %11388 = vmatpush1.msra.mxu0 0.0
    %11389 = vmatprep.subr.mxu0 0.0
    %11390 = vmatpush1.msra.mxu0 0.0
    %11391 = vmatprep.subr.mxu0 0.0
    %11392 = vmatpush1.msra.mxu0 0.0
    %11393 = vmatprep.subr.mxu0 0.0
    %11394 = vmatpush1.msra.mxu0 0.0
    %11395 = vmatprep.subr.mxu0 0.0
    %11396 = vmatpush1.msra.mxu0 0.0
    %11397 = vmatprep.subr.mxu0 0.0
    %11398 = vmatpush1.msra.mxu0 0.0
    %11399 = vmatprep.subr.mxu0 0.0
    %11400 = vmatpush1.msra.mxu0 0.0
    %11401 = vmatprep.subr.mxu0 0.0
    %11402 = vmatpush1.msra.mxu0 0.0
    %11403 = vmatprep.subr.mxu0 0.0
    %11404 = vmatpush1.msra.mxu0 0.0
    %11405 = vmatprep.subr.mxu0 0.0
    %11406 = vmatpush1.msra.mxu0 0.0
    %11407 = vmatprep.subr.mxu0 0.0
    %11408 = vmatpush1.msra.mxu0 0.0
    %11409 = vmatprep.subr.mxu0 0.0
    %11410 = vmatpush1.msra.mxu0 0.0
    %11411 = vmatprep.subr.mxu0 0.0
    %11412 = vmatpush1.msra.mxu0 0.0
    %11413 = vmatprep.subr.mxu0 0.0
    %11414 = vmatpush1.msra.mxu0 0.0
    %11415 = vmatprep.mubr.f32.mxu0 0.0
    %11416 = vmatmul.mubr.f32.gmra.mrb[0].mxu0 %v11349
    %v11417 = vpop.f32.mrb[0].mxu0
    %v11418 = vadd.f32 %v11345, %v11417
    %v11419 = vpop.f32.mrb[0].mxu0
    %11420 = vdwg.mxu0
    %v11421 = vld [vmem:[#allocation7 + $0x9] sm:$0x1f]
    %v11422 = vld [vmem:[%s11147] sm:$0xff]
    %v11423 = vld [vmem:[%s11147 + $0x8] sm:$0xff]
    %v11424 = vld [vmem:[%s11147 + $0x10] sm:$0xff]
    %v11425 = vld [vmem:[%s11147 + $0x18] sm:$0xff]
    %v11426 = vld [vmem:[%s11147 + $0x20] sm:$0xff]
    %v11427 = vld [vmem:[%s11147 + $0x28] sm:$0xff]
    %v11428 = vld [vmem:[%s11147 + $0x30] sm:$0xff]
    %v11429 = vld [vmem:[%s11147 + $0x38] sm:$0xff]
    %v11431 = vsel %vm10506, %v11421, 0
    %11433 = vmatprep.subr.mxu0 0.0
    %11434 = vmatpush1.msra.mxu0 %v11422
    %11435 = vmatprep.subr.mxu0 0.0
    %11436 = vmatpush1.msra.mxu0 %v11423
    %11437 = vmatprep.subr.mxu0 0.0
    %11438 = vmatpush1.msra.mxu0 %v11424
    %11439 = vmatprep.subr.mxu0 0.0
    %11440 = vmatpush1.msra.mxu0 %v11425
    %11441 = vmatprep.subr.mxu0 0.0
    %11442 = vmatpush1.msra.mxu0 %v11426
    %11443 = vmatprep.subr.mxu0 0.0
    %11444 = vmatpush1.msra.mxu0 %v11427
    %11445 = vmatprep.subr.mxu0 0.0
    %11446 = vmatpush1.msra.mxu0 %v11428
    %11447 = vmatprep.subr.mxu0 0.0
    %11448 = vmatpush1.msra.mxu0 %v11429
    %11449 = vmatprep.subr.mxu0 0.0
    %11450 = vmatpush1.msra.mxu0 0.0
    %11451 = vmatprep.subr.mxu0 0.0
    %11452 = vmatpush1.msra.mxu0 0.0
    %11453 = vmatprep.subr.mxu0 0.0
    %11454 = vmatpush1.msra.mxu0 0.0
    %11455 = vmatprep.subr.mxu0 0.0
    %11456 = vmatpush1.msra.mxu0 0.0
    %11457 = vmatprep.subr.mxu0 0.0
    %11458 = vmatpush1.msra.mxu0 0.0
    %11459 = vmatprep.subr.mxu0 0.0
    %11460 = vmatpush1.msra.mxu0 0.0
    %11461 = vmatprep.subr.mxu0 0.0
    %11462 = vmatpush1.msra.mxu0 0.0
    %11463 = vmatprep.subr.mxu0 0.0
    %11464 = vmatpush1.msra.mxu0 0.0
    %11465 = vmatprep.subr.mxu0 0.0
    %11466 = vmatpush1.msra.mxu0 0.0
    %11467 = vmatprep.subr.mxu0 0.0
    %11468 = vmatpush1.msra.mxu0 0.0
    %11469 = vmatprep.subr.mxu0 0.0
    %11470 = vmatpush1.msra.mxu0 0.0
    %11471 = vmatprep.subr.mxu0 0.0
    %11472 = vmatpush1.msra.mxu0 0.0
    %11473 = vmatprep.subr.mxu0 0.0
    %11474 = vmatpush1.msra.mxu0 0.0
    %11475 = vmatprep.subr.mxu0 0.0
    %11476 = vmatpush1.msra.mxu0 0.0
    %11477 = vmatprep.subr.mxu0 0.0
    %11478 = vmatpush1.msra.mxu0 0.0
    %11479 = vmatprep.subr.mxu0 0.0
    %11480 = vmatpush1.msra.mxu0 0.0
    %11481 = vmatprep.subr.mxu0 0.0
    %11482 = vmatpush1.msra.mxu0 0.0
    %11483 = vmatprep.subr.mxu0 0.0
    %11484 = vmatpush1.msra.mxu0 0.0
    %11485 = vmatprep.subr.mxu0 0.0
    %11486 = vmatpush1.msra.mxu0 0.0
    %11487 = vmatprep.subr.mxu0 0.0
    %11488 = vmatpush1.msra.mxu0 0.0
    %11489 = vmatprep.subr.mxu0 0.0
    %11490 = vmatpush1.msra.mxu0 0.0
    %11491 = vmatprep.subr.mxu0 0.0
    %11492 = vmatpush1.msra.mxu0 0.0
    %11493 = vmatprep.subr.mxu0 0.0
    %11494 = vmatpush1.msra.mxu0 0.0
    %11495 = vmatprep.subr.mxu0 0.0
    %11496 = vmatpush1.msra.mxu0 0.0
    %11497 = vmatprep.mubr.f32.mxu0 0.0
    %11498 = vmatmul.mubr.f32.gmra.mrb[0].mxu0 %v11431
    %v11499 = vpop.f32.mrb[0].mxu0
    %v11500 = vadd.f32 0.0, %v11499
    %v11501 = vpop.f32.mrb[0].mxu0
    %11502 = vdwg.mxu0
    %v11503 = vadd.f32 %v11418, %v11500
    %v11504 = vld [vmem:[%s14] sm:$0x1]
    %v11506 = vlaneseq
    %v11507 = vshrl.u32 %v11506, 7
    %v11508 = vsub.s32 0, %v11507
    %v11509 = vrot.slane %v11504, %v11508
    %v11511 = vadd.f32 %v11503, %v11509
    %11512 = vst.msk [vmem:[#allocation8 + $0x5] sm:$0x1f] %vm11238, %v11511
    %v11513 = vsel %vm11238, %v11511, 0.0
    %v11514 = vrot.slane %v11513, 4
    %v11515 = vadd.f32 %v11513, %v11514
    %v11516 = vrot.slane %v11515, 2
    %v11517 = vadd.f32 %v11515, %v11516
    %v11518 = vrot.slane %v11517, 1
    %v11519 = vadd.f32 %v11517, %v11518
    %v11520 = vadd.f32 %v11247, %v11519
    %v11521 = vmul.f32 %v11511, %v11511
    %v11522 = vsel %vm11238, %v11521, 0.0
    %v11523 = vrot.slane %v11522, 4
    %v11524 = vadd.f32 %v11522, %v11523
    %v11525 = vrot.slane %v11524, 2
    %v11526 = vadd.f32 %v11524, %v11525
    %v11527 = vrot.slane %v11526, 1
    %v11528 = vadd.f32 %v11526, %v11527
    %v11529 = vadd.f32 %v11256, %v11528
    %v11530 = vmul.f32 %v11520, 0.1
    %v11531 = vmul.f32 %v11529, 0.1
    %v11532 = vmul.f32 %v11530, %v11530
    %v11533 = vsub.f32 %v11531, %v11532
    %v11534 = vld [vmem:[%s15] sm:$0x1]
    %v11535 = vadd.f32 %v11533, 1e-05
    %v11536 = vrsqrt.pop %v11535
    %v11537 = vmul.f32 %v11534, %v11536
    %v11538 = vld [vmem:[%s16] sm:$0x1]
    %v11539 = vmul.f32 %v11530, %v11537
    %v11540 = vsub.f32 %v11538, %v11539
    %v11541 = vld [vmem:[#allocation8] ss:$4 sm:$0x1]
    %v11542 = vmul.f32 %v11541, %v11537
    %v11543 = vadd.f32 %v11542, %v11540
    %v11544 = vmax.f32 %v11543, 0.0
    %s11545 = scalar_lea.vmem [#allocation8], 1
    %v11546 = vld [vmem:[%s11545] ss:$4 sm:$0x1]
    %v11547 = vmul.f32 %v11546, %v11537
    %v11548 = vadd.f32 %v11547, %v11540
    %v11549 = vmax.f32 %v11548, 0.0
    %v11550 = vmax.f32 %v11544, %v11549
    %s11551 = scalar_lea.vmem [#allocation8], 2
    %v11552 = vld [vmem:[%s11551] ss:$4 sm:$0x1]
    %v11553 = vmul.f32 %v11552, %v11537
    %v11554 = vadd.f32 %v11553, %v11540
    %v11555 = vmax.f32 %v11554, 0.0
    %v11556 = vmax.f32 %v11550, %v11555
    %s11557 = scalar_lea.vmem [#allocation8], 3
    %v11558 = vld [vmem:[%s11557] ss:$4 sm:$0x1]
    %v11559 = vmul.f32 %v11558, %v11537
    %v11560 = vadd.f32 %v11559, %v11540
    %v11561 = vmax.f32 %v11560, 0.0
    %v11562 = vmax.f32 %v11556, %v11561
    %vm11563 = vcmask 516096
    %11564 = vst.msk [vmem:[#allocation9] sm:$0x1] %vm11563, %v11562
    %s11565 = scalar_lea.vmem [#allocation8], 5
    %v11566 = vld [vmem:[%s11565] ss:$4 sm:$0x1]
    %v11567 = vmul.f32 %v11566, %v11537
    %v11568 = vadd.f32 %v11567, %v11540
    %v11569 = vmax.f32 %v11568, 0.0
    %s11570 = scalar_lea.vmem [#allocation8], 6
    %v11571 = vld [vmem:[%s11570] ss:$4 sm:$0x1]
    %v11572 = vmul.f32 %v11571, %v11537
    %v11573 = vadd.f32 %v11572, %v11540
    %v11574 = vmax.f32 %v11573, 0.0
    %v11575 = vmax.f32 %v11569, %v11574
    %s11576 = scalar_lea.vmem [#allocation8], 7
    %v11577 = vld [vmem:[%s11576] ss:$4 sm:$0x1]
    %v11578 = vmul.f32 %v11577, %v11537
    %v11579 = vadd.f32 %v11578, %v11540
    %v11580 = vmax.f32 %v11579, 0.0
    %v11581 = vmax.f32 %v11575, %v11580
    %s11582 = scalar_lea.vmem [#allocation8], 8
    %v11583 = vld [vmem:[%s11582] ss:$4 sm:$0x1]
    %v11584 = vmul.f32 %v11583, %v11537
    %v11585 = vadd.f32 %v11584, %v11540
    %v11586 = vmax.f32 %v11585, 0.0
    %v11587 = vmax.f32 %v11581, %v11586
    %11588 = vst.msk [vmem:[#allocation9 + $0x1] sm:$0x1] %vm11563, %v11587
    %v11589 = vld [vmem:[#allocation9] sm:$0x1]
    %v11590 = vadd.f32 %v11589, 0.0
    %11591 = vst.msk [vmem:[#allocation10] sm:$0x1] %vm11563, %v11590
    %v11592 = vld [vmem:[#allocation9 + $0x1] sm:$0x1]
    %v11593 = vadd.f32 %v11592, 0.0
    %11594 = vst.msk [vmem:[#allocation10 + $0x1] sm:$0x1] %vm11563, %v11593
    %v11595 = vld [vmem:[#allocation10] sm:$0x3]
    %v11596 = vld [vmem:[%s17] sm:$0xff]
    %v11597 = vld [vmem:[%s17 + $0x8] sm:$0xff]
    %v11598 = vld [vmem:[%s17 + $0x10] sm:$0xff]
    %v11599 = vld [vmem:[%s17 + $0x18] sm:$0xff]
    %v11600 = vld [vmem:[%s17 + $0x20] sm:$0xff]
    %v11601 = vld [vmem:[%s17 + $0x28] sm:$0xff]
    %v11602 = vld [vmem:[%s17 + $0x30] sm:$0xff]
    %v11603 = vld [vmem:[%s17 + $0x38] sm:$0xff]
    %v11604 = vld [vmem:[%s18] sm:$0x1]
    %v11606 = vlaneseq
    %v11607 = vshrl.u32 %v11606, 7
    %v11608 = vsub.s32 0, %v11607
    %v11609 = vrot.slane %v11604, %v11608
    %v11612 = vsel %vm10506, %v11595, 0
    %11614 = vmatprep.subr.mxu0 0.0
    %11615 = vmatpush1.msra.mxu0 %v11596
    %11616 = vmatprep.subr.mxu0 0.0
    %11617 = vmatpush1.msra.mxu0 %v11597
    %11618 = vmatprep.subr.mxu0 0.0
    %11619 = vmatpush1.msra.mxu0 %v11598
    %11620 = vmatprep.subr.mxu0 0.0
    %11621 = vmatpush1.msra.mxu0 %v11599
    %11622 = vmatprep.subr.mxu0 0.0
    %11623 = vmatpush1.msra.mxu0 %v11600
    %11624 = vmatprep.subr.mxu0 0.0
    %11625 = vmatpush1.msra.mxu0 %v11601
    %11626 = vmatprep.subr.mxu0 0.0
    %11627 = vmatpush1.msra.mxu0 %v11602
    %11628 = vmatprep.subr.mxu0 0.0
    %11629 = vmatpush1.msra.mxu0 %v11603
    %11630 = vmatprep.subr.mxu0 0.0
    %11631 = vmatpush1.msra.mxu0 0.0
    %11632 = vmatprep.subr.mxu0 0.0
    %11633 = vmatpush1.msra.mxu0 0.0
    %11634 = vmatprep.subr.mxu0 0.0
    %11635 = vmatpush1.msra.mxu0 0.0
    %11636 = vmatprep.subr.mxu0 0.0
    %11637 = vmatpush1.msra.mxu0 0.0
    %11638 = vmatprep.subr.mxu0 0.0
    %11639 = vmatpush1.msra.mxu0 0.0
    %11640 = vmatprep.subr.mxu0 0.0
    %11641 = vmatpush1.msra.mxu0 0.0
    %11642 = vmatprep.subr.mxu0 0.0
    %11643 = vmatpush1.msra.mxu0 0.0
    %11644 = vmatprep.subr.mxu0 0.0
    %11645 = vmatpush1.msra.mxu0 0.0
    %11646 = vmatprep.subr.mxu0 0.0
    %11647 = vmatpush1.msra.mxu0 0.0
    %11648 = vmatprep.subr.mxu0 0.0
    %11649 = vmatpush1.msra.mxu0 0.0
    %11650 = vmatprep.subr.mxu0 0.0
    %11651 = vmatpush1.msra.mxu0 0.0
    %11652 = vmatprep.subr.mxu0 0.0
    %11653 = vmatpush1.msra.mxu0 0.0
    %11654 = vmatprep.subr.mxu0 0.0
    %11655 = vmatpush1.msra.mxu0 0.0
    %11656 = vmatprep.subr.mxu0 0.0
    %11657 = vmatpush1.msra.mxu0 0.0
    %11658 = vmatprep.subr.mxu0 0.0
    %11659 = vmatpush1.msra.mxu0 0.0
    %11660 = vmatprep.subr.mxu0 0.0
    %11661 = vmatpush1.msra.mxu0 0.0
    %11662 = vmatprep.subr.mxu0 0.0
    %11663 = vmatpush1.msra.mxu0 0.0
    %11664 = vmatprep.subr.mxu0 0.0
    %11665 = vmatpush1.msra.mxu0 0.0
    %11666 = vmatprep.subr.mxu0 0.0
    %11667 = vmatpush1.msra.mxu0 0.0
    %11668 = vmatprep.subr.mxu0 0.0
    %11669 = vmatpush1.msra.mxu0 0.0
    %11670 = vmatprep.subr.mxu0 0.0
    %11671 = vmatpush1.msra.mxu0 0.0
    %11672 = vmatprep.subr.mxu0 0.0
    %11673 = vmatpush1.msra.mxu0 0.0
    %11674 = vmatprep.subr.mxu0 0.0
    %11675 = vmatpush1.msra.mxu0 0.0
    %11676 = vmatprep.subr.mxu0 0.0
    %11677 = vmatpush1.msra.mxu0 0.0
    %11678 = vmatprep.mubr.f32.mxu0 0.0
    %11679 = vmatmul.mubr.f32.gmra.mrb[0].mxu0 %v11612
    %v11680 = vpop.f32.mrb[0].mxu0
    %v11681 = vadd.f32 %v11609, %v11680
    %v11682 = vpop.f32.mrb[0].mxu0
    %11683 = vdwg.mxu0
    %vm11684 = vcmask 279552
    %v11685 = vsel %vm11684, %v11681, -inf
    %11686 = vmax.xlane.f32.xlu0 %v11685
    %v11687 = vpop.xlane.xlu0 %11686
    %v11688 = vsub.f32 %v11681, %v11687
    %v11689 = vmul.f32 %v11688, 1.442695
    %v11690 = vpow.pop %v11689
    %v11691 = vsel %vm11684, %v11690, 0.0
    %11692 = vadd.xlane.f32.xlu0 %v11691
    %v11693 = vpop.xlane.xlu0 %11692
    %v11694 = vlog2.pop %v11693
    %v11695 = vmul.f32 %v11694, 0.6931472
    %v11696 = vsub.f32 %v11688, %v11695
    %11697 = vst.msk [vmem:[#allocation11] sm:$0x3] %vm11684, %v11696
    // Predicated region
    $region78: #{m5_forward.1} parent=1 // pred_check
      _
    $region79: #{m5_forward.1} parent=1 // pred_check_branch
      %11699 = sbr.rel (0) target = $region81
    $region80: #{m5_forward.1} parent=1 // pred_region
      %s11701 = ssub.s32 32, 32
      %11702 = vsyncadd [#allocation12], %s11701
      %s11704 = sshll.u32 [#allocation11], 4
      %s11705 = int_to_ptr.vmem [resolvable:$true] %s11704
      %11707 = dma.vmem_to_hbm [thread:$0]  %s11705, 32, %s19, [#allocation12]
    $region81: #{m5_forward.1} parent=1 // pred_fallthru
      _
    // Predicated region
    $region82: #{m5_forward.1} parent=1 // pred_check
      _
    $region83: #{m5_forward.1} parent=1 // pred_check_branch
      %11709 = sbr.rel (0) target = $region85
    $region84: #{m5_forward.1} parent=1 // pred_region
      %11710 = dma.done [#allocation12], 32
    $region85: #{m5_forward.1} parent=1 // pred_fallthru
      _
    %11711 = vsyncpa [#allocation12], 1

</llo_original>
